<compile_context>
chip_gen: v5e
topology: v5e:2x2
jax: 0.10.0
libtpu: 0.0.40
codegen_flags: <defaults>
</compile_context>

<pallas_src>
import jax
import jax.numpy as jnp
from jax.experimental import pallas as pl
from jax.experimental.pallas import tpu as pltpu


# ----------------------------------------------------------------------------
# Fused SPPF kernel
# ----------------------------------------------------------------------------
def _sppf_kernel(x_ref, w1_ref, b1_ref, w2_ref, b2_ref, o_ref, pad_ref, cat_ref):
    # x_ref  : (1, H, W, C1)  f32   input image tile (NHWC)
    # w1_ref : (C1, C_)       bf16  cv1 weights (BN scale folded in)
    # b1_ref : (1, C_)        f32   cv1 folded BN bias
    # w2_ref : (4*C_, C2)     bf16  cv2 weights (BN folded; rows ordered [h | y1 | y2 | y3])
    # b2_ref : (1, C2)        f32   cv2 folded BN bias
    # o_ref  : (1, H, W, C2)
    # pad_ref: VMEM (H+4, W+4, C_) bf16  maxpool SAME-padding scratch (-inf border)
    # cat_ref: VMEM (H*W, 4*C_)    bf16  concat scratch feeding the single cv2 matmul
    H, W = o_ref.shape[1], o_ref.shape[2]
    C1 = x_ref.shape[3]
    C_ = w1_ref.shape[1]
    C2 = w2_ref.shape[1]
    HW = H * W
    NEG = jnp.bfloat16(-3.0e38)  # -inf stand-in; safe because SiLU output >= -0.279

    # --- SAME-padding border: 4 thin strips per step (interior never pre-filled). ----
    # Not guarded by pl.program_id(0)==0: with "parallel" grid sharding each TensorCore
    # has its own scratch and only one core ever sees grid index 0, so a one-time init
    # would leave the other core's border uninitialized.  The strips are tiny anyway.
    pad_ref[0:2, :, :] = jnp.full((2, W + 4, C_), NEG, jnp.bfloat16)
    pad_ref[H + 2:H + 4, :, :] = jnp.full((2, W + 4, C_), NEG, jnp.bfloat16)
    pad_ref[:, 0:2, :] = jnp.full((H + 4, 2, C_), NEG, jnp.bfloat16)
    pad_ref[:, W + 2:W + 4, :] = jnp.full((H + 4, 2, C_), NEG, jnp.bfloat16)

    # --- cv1: 1x1 conv (folded BN) + SiLU as a single (H*W, C1) @ (C1, C_) MXU matmul -
    x2d = x_ref[0].reshape(HW, C1).astype(jnp.bfloat16)
    h = jnp.dot(x2d, w1_ref[...], preferred_element_type=jnp.float32) + b1_ref[...]
    h = h * jax.nn.sigmoid(h)                                    # SiLU -> (HW, C_) f32
    h_bf = h.astype(jnp.bfloat16)

    # Concat chunk 0, and seed the pool buffer interior with h (h is not kept live as a
    # value across the pool loop, so no hidden vreg spills at realistic sizes).
    cat_ref[:, 0:C_] = h_bf
    pad_ref[2:2 + H, 2:2 + W, :] = h_bf.reshape(H, W, C_)

    # --- 3 chained 5x5 / stride-1 / pad-2 max pools, each written to its concat chunk -
    for chunk in range(1, 4):
        # Row direction: shifts land on the leading (non-tiled) dim -> cheap strided loads.
        m = pad_ref[0:H, :, :]
        for d in range(1, 5):
            m = jnp.maximum(m, pad_ref[d:d + H, :, :])           # (H, W+4, C_)
        # Column direction: slice the value directly (no scratch store + reload).
        cur = m[:, 0:W, :]
        for d in range(1, 5):
            cur = jnp.maximum(cur, m[:, d:d + W, :])             # (H, W, C_)
        cat_ref[:, chunk * C_:(chunk + 1) * C_] = cur.reshape(HW, C_)
        if chunk < 3:                                            # feed the next pool
            pad_ref[2:2 + H, 2:2 + W, :] = cur

    # --- cv2: ONE (H*W, 4*C_) @ (4*C_, C2) matmul + folded-BN bias + SiLU -------------
    y = jnp.dot(cat_ref[...], w2_ref[...], preferred_element_type=jnp.float32) + b2_ref[...]
    y = y * jax.nn.sigmoid(y)
    o_ref[...] = y.reshape(1, H, W, C2).astype(o_ref.dtype)


# ----------------------------------------------------------------------------
# VMEM budget (layout-padding aware)
# ----------------------------------------------------------------------------
def _padded_bytes(shape, dtype):
    """Bytes of one buffer after TPU (sublane, lane) layout padding."""
    itemsize = jnp.dtype(dtype).itemsize
    sublane = {4: 8, 2: 16, 1: 32}.get(itemsize, 8)
    dims = list(shape)
    if len(dims) >= 1:
        dims[-1] = -(-dims[-1] // 128) * 128
    if len(dims) >= 2:
        dims[-2] = -(-dims[-2] // sublane) * sublane
    n = 1
    for d in dims:
        n *= max(int(d), 1)
    return n * itemsize


def _vmem_limit_bytes(H, W, C1, C_, C2):
    need = 0
    need += 2 * _padded_bytes((1, H, W, C1), jnp.float32)          # input  (double-buffered)
    need += 2 * _padded_bytes((1, H, W, C2), jnp.float32)          # output (double-buffered)
    need += 2 * (_padded_bytes((C1, C_), jnp.bfloat16)             # weights / biases
                 + _padded_bytes((1, C_), jnp.float32)
                 + _padded_bytes((4 * C_, C2), jnp.bfloat16)
                 + _padded_bytes((1, C2), jnp.float32))
    need += _padded_bytes((H + 4, W + 4, C_), jnp.bfloat16)        # pool SAME-pad scratch
    need += _padded_bytes((H * W, 4 * C_), jnp.bfloat16)           # concat scratch
    need = int(need * 1.25) + (4 << 20)                            # headroom + compiler scratch
    try:                                                           # generation-aware cap
        cap = int(pltpu.get_tpu_info().vmem_capacity_bytes) * 3 // 4
    except Exception:
        cap = 48 * 1024 * 1024                                     # safe under v7x's 64 MiB
    return max(min(need, cap), 32 * 1024 * 1024)


# ----------------------------------------------------------------------------
# Wrappers
# ----------------------------------------------------------------------------
def sppf_forward_nhwc(x_nhwc, params):
    """SPPF forward, NHWC in / NHWC out (native kernel layout: no relayout passes)."""
    N, H, W, C1 = x_nhwc.shape
    C_ = params["w1"].shape[1]
    C2 = params["w2"].shape[1]

    return pl.pallas_call(
        _sppf_kernel,
        out_shape=jax.ShapeDtypeStruct((N, H, W, C2), x_nhwc.dtype),
        grid=(N,),
        in_specs=[
            pl.BlockSpec((1, H, W, C1), lambda n: (n, 0, 0, 0)),
            pl.BlockSpec((C1, C_), lambda n: (0, 0)),
            pl.BlockSpec((1, C_), lambda n: (0, 0)),
            pl.BlockSpec((4 * C_, C2), lambda n: (0, 0)),
            pl.BlockSpec((1, C2), lambda n: (0, 0)),
        ],
        out_specs=pl.BlockSpec((1, H, W, C2), lambda n: (n, 0, 0, 0)),
        scratch_shapes=[
            pltpu.VMEM((H + 4, W + 4, C_), jnp.bfloat16),   # pool SAME-pad scratch
            pltpu.VMEM((H * W, 4 * C_), jnp.bfloat16),      # concat scratch (single cv2 matmul)
        ],
        compiler_params=pltpu.CompilerParams(
            dimension_semantics=("parallel",),
            vmem_limit_bytes=_vmem_limit_bytes(H, W, C1, C_, C2),
        ),
    )(x_nhwc, params["w1"], params["b1"], params["w2"], params["b2"])


def sppf_forward(x_nchw, params):
    """NCHW in / NCHW out wrapper matching the PyTorch module.

    Prefer sppf_forward_nhwc directly in NHWC models: each transpose here is a full HBM
    relayout of the activation and can cost as much traffic as the fused kernel itself.
    """
    x = jnp.transpose(x_nchw, (0, 2, 3, 1))                        # NCHW -> NHWC
    out = sppf_forward_nhwc(x, params)
    return jnp.transpose(out, (0, 3, 1, 2))                        # NHWC -> NCHW


# ----------------------------------------------------------------------------
# Parameter init (deterministic; BN folded into weights, weights cast to bf16)
# ----------------------------------------------------------------------------
def _init_conv_bn(key, cin, cout):
    k1, k2, k3, k4, k5 = jax.random.split(key, 5)
    w = jax.random.normal(k1, (cin, cout), jnp.float32) * 0.1      # 1x1 conv as (Cin, Cout)
    gamma = jax.random.uniform(k2, (cout,), minval=0.5, maxval=1.5)
    beta = jax.random.normal(k3, (cout,)) * 0.1
    mean = jax.random.normal(k4, (cout,)) * 0.1
    var = jax.random.uniform(k5, (cout,), minval=0.5, maxval=1.5)
    scale = gamma / jnp.sqrt(var + 1e-5)                           # BN fold
    bias = beta - mean * scale
    return dict(w=w, scale=scale.astype(jnp.float32), bias=bias.astype(jnp.float32))


def init_sppf_params(key, c1, c2):
    c_ = c1 // 2
    k1, k2 = jax.random.split(key)
    cv1 = _init_conv_bn(k1, c1, c_)
    cv2 = _init_conv_bn(k2, 4 * c_, c2)
    w1 = (cv1["w"] * cv1["scale"][None, :]).astype(jnp.bfloat16)   # fold BN scale; bf16 for MXU
    w2 = (cv2["w"] * cv2["scale"][None, :]).astype(jnp.bfloat16)
    return dict(
        w1=w1,                                                     # (c1, c_)       bf16
        b1=cv1["bias"].reshape(1, c_),                             # (1, c_)        f32
        w2=w2,                                                     # (4*c_, c2)     bf16
        b2=cv2["bias"].reshape(1, c2),                             # (1, c2)        f32
        _ref=dict(cv1=cv1, cv2=cv2),                               # unfolded f32 copies (reference)
    )


# ----------------------------------------------------------------------------
# Pure-JAX reference (correctness check only)
# ----------------------------------------------------------------------------
def _ref_conv1x1(x_nhwc, p):
    y = jnp.einsum("nhwc,cf->nhwf", x_nhwc, p["w"])
    y = y * p["scale"] + p["bias"]
    return y * jax.nn.sigmoid(y)


def _ref_maxpool5(x_nhwc):
    return jax.lax.reduce_window(
        x_nhwc, -jnp.inf, jax.lax.max,
        window_dimensions=(1, 5, 5, 1),
        window_strides=(1, 1, 1, 1),
        padding=((0, 0), (2, 2), (2, 2), (0, 0)))


def _ref_sppf(x_nchw, params):
    x = jnp.transpose(x_nchw, (0, 2, 3, 1))
    h = _ref_conv1x1(x, params["_ref"]["cv1"])
    y1 = _ref_maxpool5(h)
    y2 = _ref_maxpool5(y1)
    y3 = _ref_maxpool5(y2)
    out = _ref_conv1x1(jnp.concatenate([h, y1, y2, y3], axis=-1), params["_ref"]["cv2"])
    return jnp.transpose(out, (0, 3, 1, 2))


# ----------------------------------------------------------------------------
if __name__ == "__main__":
    key = jax.random.PRNGKey(0)
    N, c1, c2, H, W = 2, 16, 32, 16, 16

    kx, kp = jax.random.split(key)
    x = jax.random.normal(kx, (N, c1, H, W), jnp.float32)
    params = init_sppf_params(kp, c1, c2)

    out = sppf_forward(x, params)
    jax.block_until_ready(out)
    assert out.shape == (N, c2, H, W), out.shape

    ref = _ref_sppf(x, params)
    err = float(jnp.max(jnp.abs(out - ref)))
    # bf16 matmul operands / pool scratch vs a pure-f32 reference -> slightly loose tol.
    assert jnp.allclose(out, ref, atol=2e-2, rtol=2e-2), f"max abs err {err}"

    print("KERNEL_OK")
</pallas_src>

<mosaic_0001>
module attributes {stable_mosaic.version = 11 : i64} {
  func.func @_sppf_kernel(%arg0: i32, %arg1: memref<1x16x16x16xf32, #tpu.memory_space<vmem>>, %arg2: memref<16x8xbf16, #tpu.memory_space<vmem>>, %arg3: memref<1x8xf32, #tpu.memory_space<vmem>>, %arg4: memref<32x32xbf16, #tpu.memory_space<vmem>>, %arg5: memref<1x32xf32, #tpu.memory_space<vmem>>, %arg6: memref<1x16x16x32xf32, #tpu.memory_space<vmem>>, %arg7: memref<20x20x8xbf16, #tpu.memory_space<vmem>>, %arg8: memref<256x32xbf16, #tpu.memory_space<vmem>>) attributes {dimension_semantics = [#tpu.dimension_semantics<parallel>], iteration_bounds = array<i64: 2>, scalar_prefetch = 0 : i64, scratch_operands = 2 : i64, tpu.core_type = #tpu.core_type<tc>, window_params = [{transform_indices = @transform_0, window_bounds = array<i64: 1, 16, 16, 16>}, {pipeline_mode = #tpu.pipeline_mode<synchronous>, transform_indices = @transform_1, window_bounds = array<i64: 16, 8>}, {pipeline_mode = #tpu.pipeline_mode<synchronous>, transform_indices = @transform_2, window_bounds = array<i64: 1, 8>}, {pipeline_mode = #tpu.pipeline_mode<synchronous>, transform_indices = @transform_3, window_bounds = array<i64: 32, 32>}, {pipeline_mode = #tpu.pipeline_mode<synchronous>, transform_indices = @transform_4, window_bounds = array<i64: 1, 32>}, {transform_indices = @transform_5, window_bounds = array<i64: 1, 16, 16, 32>}]} {
    %cst = arith.constant -3.004060e+38 : bf16
    %0 = vector.broadcast %cst : bf16 to vector<2x20x8xbf16>
    %c0 = arith.constant 0 : index
    %c0_0 = arith.constant 0 : index
    %c0_1 = arith.constant 0 : index
    %1 = vector.load %arg7[%c0, %c0_0, %c0_1] : memref<20x20x8xbf16, #tpu.memory_space<vmem>>, vector<2x20x8xbf16>
    tpu.vector_store %arg7[%c0, %c0_0, %c0_1], %0 {strides = array<i32>} : memref<20x20x8xbf16, #tpu.memory_space<vmem>>, vector<2x20x8xbf16>,
    %cst_2 = arith.constant -3.004060e+38 : bf16
    %2 = vector.broadcast %cst_2 : bf16 to vector<2x20x8xbf16>
    %c18 = arith.constant 18 : index
    %c0_3 = arith.constant 0 : index
    %c0_4 = arith.constant 0 : index
    %3 = vector.load %arg7[%c18, %c0_3, %c0_4] : memref<20x20x8xbf16, #tpu.memory_space<vmem>>, vector<2x20x8xbf16>
    tpu.vector_store %arg7[%c18, %c0_3, %c0_4], %2 {strides = array<i32>} : memref<20x20x8xbf16, #tpu.memory_space<vmem>>, vector<2x20x8xbf16>,
    %cst_5 = arith.constant -3.004060e+38 : bf16
    %4 = vector.broadcast %cst_5 : bf16 to vector<20x2x8xbf16>
    %c0_6 = arith.constant 0 : index
    %c0_7 = arith.constant 0 : index
    %c0_8 = arith.constant 0 : index
    %5 = vector.load %arg7[%c0_6, %c0_7, %c0_8] : memref<20x20x8xbf16, #tpu.memory_space<vmem>>, vector<20x2x8xbf16>
    tpu.vector_store %arg7[%c0_6, %c0_7, %c0_8], %4 {strides = array<i32>} : memref<20x20x8xbf16, #tpu.memory_space<vmem>>, vector<20x2x8xbf16>,
    %cst_9 = arith.constant -3.004060e+38 : bf16
    %6 = vector.broadcast %cst_9 : bf16 to vector<20x2x8xbf16>
    %c0_10 = arith.constant 0 : index
    %c18_11 = arith.constant 18 : index
    %c0_12 = arith.constant 0 : index
    %7 = vector.load %arg7[%c0_10, %c18_11, %c0_12] : memref<20x20x8xbf16, #tpu.memory_space<vmem>>, vector<20x2x8xbf16>
    tpu.vector_store %arg7[%c0_10, %c18_11, %c0_12], %6 {strides = array<i32>} : memref<20x20x8xbf16, #tpu.memory_space<vmem>>, vector<20x2x8xbf16>,
    %c0_13 = arith.constant 0 : index
    %c0_14 = arith.constant 0 : index
    %c0_15 = arith.constant 0 : index
    %c0_16 = arith.constant 0 : index
    %8 = vector.load %arg1[%c0_13, %c0_14, %c0_15, %c0_16] : memref<1x16x16x16xf32, #tpu.memory_space<vmem>>, vector<1x16x16x16xf32>
    %9 = vector.shape_cast %8 : vector<1x16x16x16xf32> to vector<16x16x16xf32>
    %10 = vector.shape_cast %9 : vector<16x16x16xf32> to vector<256x16xf32>
    %11 = arith.truncf %10 : vector<256x16xf32> to vector<256x16xbf16>
    %c0_17 = arith.constant 0 : index
    %c0_18 = arith.constant 0 : index
    %12 = vector.load %arg2[%c0_17, %c0_18] : memref<16x8xbf16, #tpu.memory_space<vmem>>, vector<16x8xbf16>
    %cst_19 = arith.constant dense<0.000000e+00> : vector<256x8xf32>
    %13 = tpu.matmul %11, %12, %cst_19 {dimension_numbers = #tpu.dot_dimension_numbers<[1], [0], [0], [1], [0, 0, 1, 1], [], []>} : vector<256x16xbf16>, vector<16x8xbf16>, vector<256x8xf32> -> vector<256x8xf32>
    %c0_20 = arith.constant 0 : index
    %c0_21 = arith.constant 0 : index
    %14 = vector.load %arg3[%c0_20, %c0_21] : memref<1x8xf32, #tpu.memory_space<vmem>>, vector<1x8xf32>
    %15 = vector.broadcast %14 : vector<1x8xf32> to vector<256x8xf32>
    %16 = arith.addf %13, %15 : vector<256x8xf32>
    %17 = arith.negf %16 : vector<256x8xf32>
    %18 = math.exp %17 : vector<256x8xf32>
    %cst_22 = arith.constant 1.000000e+00 : f32
    %19 = vector.broadcast %cst_22 : f32 to vector<256x8xf32>
    %20 = arith.addf %19, %18 : vector<256x8xf32>
    %21 = arith.divf %19, %20 : vector<256x8xf32>
    %22 = arith.mulf %16, %21 : vector<256x8xf32>
    %23 = arith.truncf %22 : vector<256x8xf32> to vector<256x8xbf16>
    %c0_23 = arith.constant 0 : index
    %c0_24 = arith.constant 0 : index
    %24 = vector.load %arg8[%c0_23, %c0_24] : memref<256x32xbf16, #tpu.memory_space<vmem>>, vector<256x8xbf16>
    tpu.vector_store %arg8[%c0_23, %c0_24], %23 {strides = array<i32>} : memref<256x32xbf16, #tpu.memory_space<vmem>>, vector<256x8xbf16>,
    %25 = vector.shape_cast %23 : vector<256x8xbf16> to vector<16x16x8xbf16>
    %c2 = arith.constant 2 : index
    %c2_25 = arith.constant 2 : index
    %c0_26 = arith.constant 0 : index
    %26 = vector.load %arg7[%c2, %c2_25, %c0_26] : memref<20x20x8xbf16, #tpu.memory_space<vmem>>, vector<16x16x8xbf16>
    tpu.vector_store %arg7[%c2, %c2_25, %c0_26], %25 {strides = array<i32>} : memref<20x20x8xbf16, #tpu.memory_space<vmem>>, vector<16x16x8xbf16>,
    %c0_27 = arith.constant 0 : index
    %c0_28 = arith.constant 0 : index
    %c0_29 = arith.constant 0 : index
    %27 = vector.load %arg7[%c0_27, %c0_28, %c0_29] : memref<20x20x8xbf16, #tpu.memory_space<vmem>>, vector<16x20x8xbf16>
    %c1 = arith.constant 1 : index
    %c0_30 = arith.constant 0 : index
    %c0_31 = arith.constant 0 : index
    %28 = vector.load %arg7[%c1, %c0_30, %c0_31] : memref<20x20x8xbf16, #tpu.memory_space<vmem>>, vector<16x20x8xbf16>
    %29 = arith.maximumf %27, %28 : vector<16x20x8xbf16>
    %c2_32 = arith.constant 2 : index
    %c0_33 = arith.constant 0 : index
    %c0_34 = arith.constant 0 : index
    %30 = vector.load %arg7[%c2_32, %c0_33, %c0_34] : memref<20x20x8xbf16, #tpu.memory_space<vmem>>, vector<16x20x8xbf16>
    %31 = arith.maximumf %29, %30 : vector<16x20x8xbf16>
    %c3 = arith.constant 3 : index
    %c0_35 = arith.constant 0 : index
    %c0_36 = arith.constant 0 : index
    %32 = vector.load %arg7[%c3, %c0_35, %c0_36] : memref<20x20x8xbf16, #tpu.memory_space<vmem>>, vector<16x20x8xbf16>
    %33 = arith.maximumf %31, %32 : vector<16x20x8xbf16>
    %c4 = arith.constant 4 : index
    %c0_37 = arith.constant 0 : index
    %c0_38 = arith.constant 0 : index
    %34 = vector.load %arg7[%c4, %c0_37, %c0_38] : memref<20x20x8xbf16, #tpu.memory_space<vmem>>, vector<16x20x8xbf16>
    %35 = arith.maximumf %33, %34 : vector<16x20x8xbf16>
    %36 = vector.extract_strided_slice %35 {offsets = [0, 0, 0], sizes = [16, 16, 8], strides = [1, 1, 1]} : vector<16x20x8xbf16> to vector<16x16x8xbf16>
    %37 = vector.extract_strided_slice %35 {offsets = [0, 1, 0], sizes = [16, 16, 8], strides = [1, 1, 1]} : vector<16x20x8xbf16> to vector<16x16x8xbf16>
    %38 = arith.maximumf %36, %37 : vector<16x16x8xbf16>
    %39 = vector.extract_strided_slice %35 {offsets = [0, 2, 0], sizes = [16, 16, 8], strides = [1, 1, 1]} : vector<16x20x8xbf16> to vector<16x16x8xbf16>
    %40 = arith.maximumf %38, %39 : vector<16x16x8xbf16>
    %41 = vector.extract_strided_slice %35 {offsets = [0, 3, 0], sizes = [16, 16, 8], strides = [1, 1, 1]} : vector<16x20x8xbf16> to vector<16x16x8xbf16>
    %42 = arith.maximumf %40, %41 : vector<16x16x8xbf16>
    %43 = vector.extract_strided_slice %35 {offsets = [0, 4, 0], sizes = [16, 16, 8], strides = [1, 1, 1]} : vector<16x20x8xbf16> to vector<16x16x8xbf16>
    %44 = arith.maximumf %42, %43 : vector<16x16x8xbf16>
    %45 = vector.shape_cast %44 : vector<16x16x8xbf16> to vector<256x8xbf16>
    %c0_39 = arith.constant 0 : index
    %c8 = arith.constant 8 : index
    %46 = vector.load %arg8[%c0_39, %c8] : memref<256x32xbf16, #tpu.memory_space<vmem>>, vector<256x8xbf16>
    tpu.vector_store %arg8[%c0_39, %c8], %45 {strides = array<i32>} : memref<256x32xbf16, #tpu.memory_space<vmem>>, vector<256x8xbf16>,
    %c2_40 = arith.constant 2 : index
    %c2_41 = arith.constant 2 : index
    %c0_42 = arith.constant 0 : index
    %47 = vector.load %arg7[%c2_40, %c2_41, %c0_42] : memref<20x20x8xbf16, #tpu.memory_space<vmem>>, vector<16x16x8xbf16>
    tpu.vector_store %arg7[%c2_40, %c2_41, %c0_42], %44 {strides = array<i32>} : memref<20x20x8xbf16, #tpu.memory_space<vmem>>, vector<16x16x8xbf16>,
    %c0_43 = arith.constant 0 : index
    %c0_44 = arith.constant 0 : index
    %c0_45 = arith.constant 0 : index
    %48 = vector.load %arg7[%c0_43, %c0_44, %c0_45] : memref<20x20x8xbf16, #tpu.memory_space<vmem>>, vector<16x20x8xbf16>
    %c1_46 = arith.constant 1 : index
    %c0_47 = arith.constant 0 : index
    %c0_48 = arith.constant 0 : index
    %49 = vector.load %arg7[%c1_46, %c0_47, %c0_48] : memref<20x20x8xbf16, #tpu.memory_space<vmem>>, vector<16x20x8xbf16>
    %50 = arith.maximumf %48, %49 : vector<16x20x8xbf16>
    %c2_49 = arith.constant 2 : index
    %c0_50 = arith.constant 0 : index
    %c0_51 = arith.constant 0 : index
    %51 = vector.load %arg7[%c2_49, %c0_50, %c0_51] : memref<20x20x8xbf16, #tpu.memory_space<vmem>>, vector<16x20x8xbf16>
    %52 = arith.maximumf %50, %51 : vector<16x20x8xbf16>
    %c3_52 = arith.constant 3 : index
    %c0_53 = arith.constant 0 : index
    %c0_54 = arith.constant 0 : index
    %53 = vector.load %arg7[%c3_52, %c0_53, %c0_54] : memref<20x20x8xbf16, #tpu.memory_space<vmem>>, vector<16x20x8xbf16>
    %54 = arith.maximumf %52, %53 : vector<16x20x8xbf16>
    %c4_55 = arith.constant 4 : index
    %c0_56 = arith.constant 0 : index
    %c0_57 = arith.constant 0 : index
    %55 = vector.load %arg7[%c4_55, %c0_56, %c0_57] : memref<20x20x8xbf16, #tpu.memory_space<vmem>>, vector<16x20x8xbf16>
    %56 = arith.maximumf %54, %55 : vector<16x20x8xbf16>
    %57 = vector.extract_strided_slice %56 {offsets = [0, 0, 0], sizes = [16, 16, 8], strides = [1, 1, 1]} : vector<16x20x8xbf16> to vector<16x16x8xbf16>
    %58 = vector.extract_strided_slice %56 {offsets = [0, 1, 0], sizes = [16, 16, 8], strides = [1, 1, 1]} : vector<16x20x8xbf16> to vector<16x16x8xbf16>
    %59 = arith.maximumf %57, %58 : vector<16x16x8xbf16>
    %60 = vector.extract_strided_slice %56 {offsets = [0, 2, 0], sizes = [16, 16, 8], strides = [1, 1, 1]} : vector<16x20x8xbf16> to vector<16x16x8xbf16>
    %61 = arith.maximumf %59, %60 : vector<16x16x8xbf16>
    %62 = vector.extract_strided_slice %56 {offsets = [0, 3, 0], sizes = [16, 16, 8], strides = [1, 1, 1]} : vector<16x20x8xbf16> to vector<16x16x8xbf16>
    %63 = arith.maximumf %61, %62 : vector<16x16x8xbf16>
    %64 = vector.extract_strided_slice %56 {offsets = [0, 4, 0], sizes = [16, 16, 8], strides = [1, 1, 1]} : vector<16x20x8xbf16> to vector<16x16x8xbf16>
    %65 = arith.maximumf %63, %64 : vector<16x16x8xbf16>
    %66 = vector.shape_cast %65 : vector<16x16x8xbf16> to vector<256x8xbf16>
    %c0_58 = arith.constant 0 : index
    %c16 = arith.constant 16 : index
    %67 = vector.load %arg8[%c0_58, %c16] : memref<256x32xbf16, #tpu.memory_space<vmem>>, vector<256x8xbf16>
    tpu.vector_store %arg8[%c0_58, %c16], %66 {strides = array<i32>} : memref<256x32xbf16, #tpu.memory_space<vmem>>, vector<256x8xbf16>,
    %c2_59 = arith.constant 2 : index
    %c2_60 = arith.constant 2 : index
    %c0_61 = arith.constant 0 : index
    %68 = vector.load %arg7[%c2_59, %c2_60, %c0_61] : memref<20x20x8xbf16, #tpu.memory_space<vmem>>, vector<16x16x8xbf16>
    tpu.vector_store %arg7[%c2_59, %c2_60, %c0_61], %65 {strides = array<i32>} : memref<20x20x8xbf16, #tpu.memory_space<vmem>>, vector<16x16x8xbf16>,
    %c0_62 = arith.constant 0 : index
    %c0_63 = arith.constant 0 : index
    %c0_64 = arith.constant 0 : index
    %69 = vector.load %arg7[%c0_62, %c0_63, %c0_64] : memref<20x20x8xbf16, #tpu.memory_space<vmem>>, vector<16x20x8xbf16>
    %c1_65 = arith.constant 1 : index
    %c0_66 = arith.constant 0 : index
    %c0_67 = arith.constant 0 : index
    %70 = vector.load %arg7[%c1_65, %c0_66, %c0_67] : memref<20x20x8xbf16, #tpu.memory_space<vmem>>, vector<16x20x8xbf16>
    %71 = arith.maximumf %69, %70 : vector<16x20x8xbf16>
    %c2_68 = arith.constant 2 : index
    %c0_69 = arith.constant 0 : index
    %c0_70 = arith.constant 0 : index
    %72 = vector.load %arg7[%c2_68, %c0_69, %c0_70] : memref<20x20x8xbf16, #tpu.memory_space<vmem>>, vector<16x20x8xbf16>
    %73 = arith.maximumf %71, %72 : vector<16x20x8xbf16>
    %c3_71 = arith.constant 3 : index
    %c0_72 = arith.constant 0 : index
    %c0_73 = arith.constant 0 : index
    %74 = vector.load %arg7[%c3_71, %c0_72, %c0_73] : memref<20x20x8xbf16, #tpu.memory_space<vmem>>, vector<16x20x8xbf16>
    %75 = arith.maximumf %73, %74 : vector<16x20x8xbf16>
    %c4_74 = arith.constant 4 : index
    %c0_75 = arith.constant 0 : index
    %c0_76 = arith.constant 0 : index
    %76 = vector.load %arg7[%c4_74, %c0_75, %c0_76] : memref<20x20x8xbf16, #tpu.memory_space<vmem>>, vector<16x20x8xbf16>
    %77 = arith.maximumf %75, %76 : vector<16x20x8xbf16>
    %78 = vector.extract_strided_slice %77 {offsets = [0, 0, 0], sizes = [16, 16, 8], strides = [1, 1, 1]} : vector<16x20x8xbf16> to vector<16x16x8xbf16>
    %79 = vector.extract_strided_slice %77 {offsets = [0, 1, 0], sizes = [16, 16, 8], strides = [1, 1, 1]} : vector<16x20x8xbf16> to vector<16x16x8xbf16>
    %80 = arith.maximumf %78, %79 : vector<16x16x8xbf16>
    %81 = vector.extract_strided_slice %77 {offsets = [0, 2, 0], sizes = [16, 16, 8], strides = [1, 1, 1]} : vector<16x20x8xbf16> to vector<16x16x8xbf16>
    %82 = arith.maximumf %80, %81 : vector<16x16x8xbf16>
    %83 = vector.extract_strided_slice %77 {offsets = [0, 3, 0], sizes = [16, 16, 8], strides = [1, 1, 1]} : vector<16x20x8xbf16> to vector<16x16x8xbf16>
    %84 = arith.maximumf %82, %83 : vector<16x16x8xbf16>
    %85 = vector.extract_strided_slice %77 {offsets = [0, 4, 0], sizes = [16, 16, 8], strides = [1, 1, 1]} : vector<16x20x8xbf16> to vector<16x16x8xbf16>
    %86 = arith.maximumf %84, %85 : vector<16x16x8xbf16>
    %87 = vector.shape_cast %86 : vector<16x16x8xbf16> to vector<256x8xbf16>
    %c0_77 = arith.constant 0 : index
    %c24 = arith.constant 24 : index
    %88 = vector.load %arg8[%c0_77, %c24] : memref<256x32xbf16, #tpu.memory_space<vmem>>, vector<256x8xbf16>
    tpu.vector_store %arg8[%c0_77, %c24], %87 {strides = array<i32>} : memref<256x32xbf16, #tpu.memory_space<vmem>>, vector<256x8xbf16>,
    %c0_78 = arith.constant 0 : index
    %c0_79 = arith.constant 0 : index
    %89 = vector.load %arg8[%c0_78, %c0_79] : memref<256x32xbf16, #tpu.memory_space<vmem>>, vector<256x32xbf16>
    %c0_80 = arith.constant 0 : index
    %c0_81 = arith.constant 0 : index
    %90 = vector.load %arg4[%c0_80, %c0_81] : memref<32x32xbf16, #tpu.memory_space<vmem>>, vector<32x32xbf16>
    %cst_82 = arith.constant dense<0.000000e+00> : vector<256x32xf32>
    %91 = tpu.matmul %89, %90, %cst_82 {dimension_numbers = #tpu.dot_dimension_numbers<[1], [0], [0], [1], [0, 0, 1, 1], [], []>} : vector<256x32xbf16>, vector<32x32xbf16>, vector<256x32xf32> -> vector<256x32xf32>
    %c0_83 = arith.constant 0 : index
    %c0_84 = arith.constant 0 : index
    %92 = vector.load %arg5[%c0_83, %c0_84] : memref<1x32xf32, #tpu.memory_space<vmem>>, vector<1x32xf32>
    %93 = vector.broadcast %92 : vector<1x32xf32> to vector<256x32xf32>
    %94 = arith.addf %91, %93 : vector<256x32xf32>
    %95 = arith.negf %94 : vector<256x32xf32>
    %96 = math.exp %95 : vector<256x32xf32>
    %cst_85 = arith.constant 1.000000e+00 : f32
    %97 = vector.broadcast %cst_85 : f32 to vector<256x32xf32>
    %98 = arith.addf %97, %96 : vector<256x32xf32>
    %99 = arith.divf %97, %98 : vector<256x32xf32>
    %100 = arith.mulf %94, %99 : vector<256x32xf32>
    %101 = vector.shape_cast %100 : vector<256x32xf32> to vector<1x16x16x32xf32>
    %c0_86 = arith.constant 0 : index
    %c0_87 = arith.constant 0 : index
    %c0_88 = arith.constant 0 : index
    %c0_89 = arith.constant 0 : index
    %102 = vector.load %arg6[%c0_86, %c0_87, %c0_88, %c0_89] : memref<1x16x16x32xf32, #tpu.memory_space<vmem>>, vector<1x16x16x32xf32>
    tpu.vector_store %arg6[%c0_86, %c0_87, %c0_88, %c0_89], %101 {strides = array<i32>} : memref<1x16x16x32xf32, #tpu.memory_space<vmem>>, vector<1x16x16x32xf32>,
    return
  }
  func.func @transform_0(%arg0: i32) -> (i32, i32, i32, i32) {
    %c0_i32 = arith.constant 0 : i32
    %c0_i32_0 = arith.constant 0 : i32
    %c0_i32_1 = arith.constant 0 : i32
    %c0_i32_2 = arith.constant 0 : i32
    return %arg0, %c0_i32, %c0_i32_0, %c0_i32_1 : i32, i32, i32, i32
  }
  func.func @transform_1(%arg0: i32) -> (i32, i32) {
    %c0_i32 = arith.constant 0 : i32
    %c0_i32_0 = arith.constant 0 : i32
    %c0_i32_1 = arith.constant 0 : i32
    return %c0_i32, %c0_i32_0 : i32, i32
  }
  func.func @transform_2(%arg0: i32) -> (i32, i32) {
    %c0_i32 = arith.constant 0 : i32
    %c0_i32_0 = arith.constant 0 : i32
    %c0_i32_1 = arith.constant 0 : i32
    return %c0_i32, %c0_i32_0 : i32, i32
  }
  func.func @transform_3(%arg0: i32) -> (i32, i32) {
    %c0_i32 = arith.constant 0 : i32
    %c0_i32_0 = arith.constant 0 : i32
    %c0_i32_1 = arith.constant 0 : i32
    return %c0_i32, %c0_i32_0 : i32, i32
  }
  func.func @transform_4(%arg0: i32) -> (i32, i32) {
    %c0_i32 = arith.constant 0 : i32
    %c0_i32_0 = arith.constant 0 : i32
    %c0_i32_1 = arith.constant 0 : i32
    return %c0_i32, %c0_i32_0 : i32, i32
  }
  func.func @transform_5(%arg0: i32) -> (i32, i32, i32, i32) {
    %c0_i32 = arith.constant 0 : i32
    %c0_i32_0 = arith.constant 0 : i32
    %c0_i32_1 = arith.constant 0 : i32
    %c0_i32_2 = arith.constant 0 : i32
    return %arg0, %c0_i32, %c0_i32_0, %c0_i32_1 : i32, i32, i32, i32
  }
}

</mosaic_0001>

<llo_original>
// kernel: tpu_custom_call.1
$region0: #{tpu_custom_call.1}
  #allocation0 [shape = 'u32[]', space=smem, size = 0x4, offset = 0x4, fixed_abs, tag = 'smem constant byte address 0x4 - core index']
  #allocation1 [shape = 'u32[72,128]{1,0:T(1,128)}', space=vmem, size = 0x9000, scoped, tag = 'internal scratch']
  #allocation2 [shape = 'bf16[20,20,8]{2,1,0:T(8,128)(2,1)}', space=vmem, size = 0x1e000, scoped, tag = 'scratch operand']
  #allocation3 [shape = 'bf16[256,32]{1,0:T(8,128)(2,1)}', space=vmem, size = 0x10000, scoped, tag = 'scratch operand']
  %s0 = inlined_call_operand.hbm [shape: f32[2,16,16,16], index: 0, kind: input, shape index: {}]
  %s1 = inlined_call_operand.vmem [shape: bf16[16,8], index: 1, kind: input, shape index: {}]
  %s2 = inlined_call_operand.vmem [shape: f32[1,8], index: 2, kind: input, shape index: {}]
  %s3 = inlined_call_operand.hbm [shape: bf16[32,32], index: 3, kind: input, shape index: {}]
  %s4 = inlined_call_operand.vmem [shape: f32[1,32], index: 4, kind: input, shape index: {}]
  %s5 = inlined_call_operand.hbm [shape: f32[2,16,16,32], index: 5, kind: output, shape index: {}]
  %s6 = sld [smem:[#allocation0]]
  $region61: #{tpu_custom_call.1} parent=0
    _
  %s8 = ssub.s32 1, %s6
  %s9 = scalar_select 0, %s8, %s6
  $region1: #{tpu_custom_call.1} parent=0
    #allocation4 [shape = 'u8[262144]{0}', space=vmem, size = 0x40000, scoped, tag = 'input window, operand 0']
    #allocation5 [shape = 's32[2]{0}', space=sflag, size = 0x8, scoped, tag = 'scoped memory for tpu_custom_call.1']
    #allocation6 [shape = 's32[2]{0}', space=sflag, size = 0x8, scoped, tag = 'scoped memory for tpu_custom_call.1']
    #allocation7 [shape = 'u8[8192]{0}', space=vmem, size = 0x2000, scoped, tag = 'input window, operand 3, single buffered']
    #allocation8 [shape = 's32[1]{0}', space=sflag, size = 0x4, scoped, tag = 'scoped memory for tpu_custom_call.1']
    #allocation9 [shape = 'u8[262144]{0}', space=vmem, size = 0x40000, scoped, tag = 'output window, operand 0']
    %10 = vsyncpa [#allocation5], 0
    %s11 = scalar_lea.sflag [#allocation5], 1
    %12 = vsyncpa %s11, 0
    %13 = vsyncpa [#allocation8], 0
    %14 = vsyncpa [#allocation6], 0
    %s15 = scalar_lea.sflag [#allocation6], 1
    %16 = vsyncpa %s15, 0
    loop: start=0, step=1, limit=4
    $region2: #{tpu_custom_call.1} parent=1 // loop_pre_header
      _
    $region3: #{tpu_custom_call.1} parent=1 // loop_header
      %s18 = sphi 0, %s22
      %p19 = scmp.ge.s32.totalorder %s18, 4
      %s28 = sphi 0, %s30
      %s31 = sphi 0, %s28
      %s32 = sphi 0, %s31
      %s48 = sphi 0, %s32
      %s52 = sphi 0, %s52
      %s54 = sphi 0, %s52
      %s55 = sphi 0, %s54
      %s69 = sphi 0, %s55
      %s73 = sphi 0, %s73
      %s75 = sphi 0, %s73
      %s76 = sphi 0, %s75
      %s90 = sphi 0, %s76
      %s94 = sphi 0, %s94
      %s96 = sphi 0, %s94
      %s97 = sphi 0, %s96
      %s111 = sphi 0, %s97
      %s115 = sphi 0, %s115
      %s117 = sphi 0, %s115
      %s118 = sphi 0, %s117
      %s132 = sphi 0, %s118
      %s138 = sphi 0, %s140
      %s141 = sphi 0, %s138
      %s142 = sphi 0, %s141
      %s158 = sphi 0, %s142
    $region4: #{tpu_custom_call.1} parent=1 // loop_header_branch
      %21 = sbr.rel (%p19) target = $region8
    $region5: #{tpu_custom_call.1} parent=1 // loop_body
      %s23 = ssub.s32 %s18, 1
      %s24 = ssub.s32 %s18, 2
      %s25 = sadd.s32 %s18, 1
      %s26 = ssub.s32 %s18, %s25
      %p27 = scmp.eq.s32.totalorder %s26, 0
      %s29 = sadd.s32 %s28, 1
      %s30 = scalar_select %p27, %s28, %s29
      %p33 = pneg %p27
      %p34 = scmp.eq.s32.totalorder %s18, 1
      %p35 = por %p33, %p34
      %p36 = scmp.ne.s32.totalorder %s28, %s31
      %p37 = scmp.eq.s32.totalorder %s18, 0
      %p38 = por %p36, %p37
      %p39 = scmp.ne.s32.totalorder %s28, %s31
      %p40 = scmp.eq.s32.totalorder %s23, 1
      %p41 = por %p39, %p40
      %p42 = scmp.ne.s32.totalorder %s31, %s32
      %p43 = scmp.eq.s32.totalorder %s23, 0
      %p44 = por %p42, %p43
      %p45 = scmp.ne.s32.totalorder %s31, %s32
      %p46 = scmp.eq.s32.totalorder %s24, 1
      %p47 = por %p45, %p46
      %p49 = scmp.ne.s32.totalorder %s32, %s48
      %p50 = scmp.eq.s32.totalorder %s24, 0
      %p51 = por %p49, %p50
      %s53 = sadd.s32 %s52, 1
      %p56 = scmp.eq.s32.totalorder %s18, 1
      %p57 = scmp.ne.s32.totalorder %s52, %s54
      %p58 = scmp.eq.s32.totalorder %s18, 0
      %p59 = por %p57, %p58
      %p60 = scmp.ne.s32.totalorder %s52, %s54
      %p61 = scmp.eq.s32.totalorder %s23, 1
      %p62 = por %p60, %p61
      %p63 = scmp.ne.s32.totalorder %s54, %s55
      %p64 = scmp.eq.s32.totalorder %s23, 0
      %p65 = por %p63, %p64
      %p66 = scmp.ne.s32.totalorder %s54, %s55
      %p67 = scmp.eq.s32.totalorder %s24, 1
      %p68 = por %p66, %p67
      %p70 = scmp.ne.s32.totalorder %s55, %s69
      %p71 = scmp.eq.s32.totalorder %s24, 0
      %p72 = por %p70, %p71
      %s74 = sadd.s32 %s73, 1
      %p77 = scmp.eq.s32.totalorder %s18, 1
      %p78 = scmp.ne.s32.totalorder %s73, %s75
      %p79 = scmp.eq.s32.totalorder %s18, 0
      %p80 = por %p78, %p79
      %p81 = scmp.ne.s32.totalorder %s73, %s75
      %p82 = scmp.eq.s32.totalorder %s23, 1
      %p83 = por %p81, %p82
      %p84 = scmp.ne.s32.totalorder %s75, %s76
      %p85 = scmp.eq.s32.totalorder %s23, 0
      %p86 = por %p84, %p85
      %p87 = scmp.ne.s32.totalorder %s75, %s76
      %p88 = scmp.eq.s32.totalorder %s24, 1
      %p89 = por %p87, %p88
      %p91 = scmp.ne.s32.totalorder %s76, %s90
      %p92 = scmp.eq.s32.totalorder %s24, 0
      %p93 = por %p91, %p92
      %s95 = sadd.s32 %s94, 1
      %p98 = scmp.eq.s32.totalorder %s18, 1
      %p99 = scmp.ne.s32.totalorder %s94, %s96
      %p100 = scmp.eq.s32.totalorder %s18, 0
      %p101 = por %p99, %p100
      %p102 = scmp.ne.s32.totalorder %s94, %s96
      %p103 = scmp.eq.s32.totalorder %s23, 1
      %p104 = por %p102, %p103
      %p105 = scmp.ne.s32.totalorder %s96, %s97
      %p106 = scmp.eq.s32.totalorder %s23, 0
      %p107 = por %p105, %p106
      %p108 = scmp.ne.s32.totalorder %s96, %s97
      %p109 = scmp.eq.s32.totalorder %s24, 1
      %p110 = por %p108, %p109
      %p112 = scmp.ne.s32.totalorder %s97, %s111
      %p113 = scmp.eq.s32.totalorder %s24, 0
      %p114 = por %p112, %p113
      %s116 = sadd.s32 %s115, 1
      %p119 = scmp.eq.s32.totalorder %s18, 1
      %p120 = scmp.ne.s32.totalorder %s115, %s117
      %p121 = scmp.eq.s32.totalorder %s18, 0
      %p122 = por %p120, %p121
      %p123 = scmp.ne.s32.totalorder %s115, %s117
      %p124 = scmp.eq.s32.totalorder %s23, 1
      %p125 = por %p123, %p124
      %p126 = scmp.ne.s32.totalorder %s117, %s118
      %p127 = scmp.eq.s32.totalorder %s23, 0
      %p128 = por %p126, %p127
      %p129 = scmp.ne.s32.totalorder %s117, %s118
      %p130 = scmp.eq.s32.totalorder %s24, 1
      %p131 = por %p129, %p130
      %p133 = scmp.ne.s32.totalorder %s118, %s132
      %p134 = scmp.eq.s32.totalorder %s24, 0
      %p135 = por %p133, %p134
      %s136 = ssub.s32 %s18, %s25
      %p137 = scmp.eq.s32.totalorder %s136, 0
      %s139 = sadd.s32 %s138, 1
      %s140 = scalar_select %p137, %s138, %s139
      %p143 = pneg %p137
      %p144 = scmp.eq.s32.totalorder %s18, 1
      %p145 = por %p143, %p144
      %p146 = scmp.ne.s32.totalorder %s138, %s141
      %p147 = scmp.eq.s32.totalorder %s18, 0
      %p148 = por %p146, %p147
      %p149 = scmp.ne.s32.totalorder %s138, %s141
      %p150 = scmp.eq.s32.totalorder %s23, 1
      %p151 = por %p149, %p150
      %p152 = scmp.ne.s32.totalorder %s141, %s142
      %p153 = scmp.eq.s32.totalorder %s23, 0
      %p154 = por %p152, %p153
      %p155 = scmp.ne.s32.totalorder %s141, %s142
      %p156 = scmp.eq.s32.totalorder %s24, 1
      %p157 = por %p155, %p156
      %p159 = scmp.ne.s32.totalorder %s142, %s158
      %p160 = scmp.eq.s32.totalorder %s24, 0
      %p161 = por %p159, %p160
      %p162 = scmp.le.s32.totalorder 1, %s18
      %p163 = scmp.lt.s32.totalorder %s18, 3
      %p164 = pnand %p162, %p163
      %p165 = pneg %p164
      // Predicated region
      $region9: #{tpu_custom_call.1} parent=5 // pred_check
        _
      $region10: #{tpu_custom_call.1} parent=5 // pred_check_branch
        %167 = sbr.rel (%p164) target = $region12
      $region11: #{tpu_custom_call.1} parent=5 // pred_region
        %s168 = ssub.s32 %s18, 1
        // Predicated region
        $region13: #{tpu_custom_call.1} parent=11 // pred_check
          %p169 = pneg %p65
        $region14: #{tpu_custom_call.1} parent=11 // pred_check_branch
          %171 = sbr.rel (%p169) target = $region16
        $region15: #{tpu_custom_call.1} parent=11 // pred_region
          _
        $region16: #{tpu_custom_call.1} parent=11 // pred_fallthru
          _
        // Predicated region
        $region17: #{tpu_custom_call.1} parent=11 // pred_check
          %p172 = pneg %p86
        $region18: #{tpu_custom_call.1} parent=11 // pred_check_branch
          %174 = sbr.rel (%p172) target = $region20
        $region19: #{tpu_custom_call.1} parent=11 // pred_region
          _
        $region20: #{tpu_custom_call.1} parent=11 // pred_fallthru
          _
        // Predicated region
        $region21: #{tpu_custom_call.1} parent=11 // pred_check
          %p175 = pneg %p107
        $region22: #{tpu_custom_call.1} parent=11 // pred_check_branch
          %177 = sbr.rel (%p175) target = $region24
        $region23: #{tpu_custom_call.1} parent=11 // pred_region
          %179 = vsyncadd [#allocation8], 0
          %s180 = sshll.u32 %s3, 4
          %s181 = int_to_ptr.hbm [resolvable:$true] %s180
          %s182 = sshll.u32 [#allocation7], 4
          %s183 = int_to_ptr.vmem [resolvable:$true] %s182
          %188 = dma.hbm_to_vmem [thread:$0]  %s181, 256, %s183, [#allocation8], 64, 64, 4
        $region24: #{tpu_custom_call.1} parent=11 // pred_fallthru
          _
        // Predicated region
        $region25: #{tpu_custom_call.1} parent=11 // pred_check
          %p189 = pneg %p128
        $region26: #{tpu_custom_call.1} parent=11 // pred_check_branch
          %191 = sbr.rel (%p189) target = $region28
        $region27: #{tpu_custom_call.1} parent=11 // pred_region
          _
        $region28: #{tpu_custom_call.1} parent=11 // pred_fallthru
          _
      $region12: #{tpu_custom_call.1} parent=5 // pred_fallthru
        _
      %p192 = scmp.lt.s32.totalorder %s18, 2
      // Predicated region
      $region29: #{tpu_custom_call.1} parent=5 // pred_check
        %p193 = pneg %p192
      $region30: #{tpu_custom_call.1} parent=5 // pred_check_branch
        %195 = sbr.rel (%p193) target = $region32
      $region31: #{tpu_custom_call.1} parent=5 // pred_region
        // Predicated region
        $region33: #{tpu_custom_call.1} parent=31 // pred_check
          %p196 = pneg %p38
        $region34: #{tpu_custom_call.1} parent=31 // pred_check_branch
          %198 = sbr.rel (%p196) target = $region36
        $region35: #{tpu_custom_call.1} parent=31 // pred_region
          %s199 = sand.u32 %s28, 1
          %s200 = scalar_lea.sflag [#allocation5], %s199
          %s201 = sand.u32 %s28, 1
          %s202 = smul.addr %s201, 256
          %s203 = scalar_lea.vmem [#allocation4], %s202
          %205 = vsyncadd %s200, 0
          %s206 = smul.addr %s18, 32
          %s207 = smul.addr %s206, 8
          %s208 = scalar_lea.hbm %s0, %s207
          %s209 = sshll.u32 %s208, 4
          %s210 = int_to_ptr.hbm [resolvable:$true] %s209
          %s211 = sshll.u32 %s203, 4
          %s212 = int_to_ptr.vmem [resolvable:$true] %s211
          %217 = dma.hbm_to_vmem [thread:$0]  %s210, 4096, %s212, %s200, 128, 128, 8
        $region36: #{tpu_custom_call.1} parent=31 // pred_fallthru
          _
      $region32: #{tpu_custom_call.1} parent=5 // pred_fallthru
        _
      %p218 = scmp.le.s32.totalorder 1, %s18
      %p219 = scmp.lt.s32.totalorder %s18, 3
      %p220 = pnand %p218, %p219
      %p221 = pneg %p220
      // Predicated region
      $region37: #{tpu_custom_call.1} parent=5 // pred_check
        _
      $region38: #{tpu_custom_call.1} parent=5 // pred_check_branch
        %223 = sbr.rel (%p220) target = $region40
      $region39: #{tpu_custom_call.1} parent=5 // pred_region
        %s224 = ssub.s32 %s18, 1
        %s225 = sand.u32 %s31, 1
        %s226 = scalar_lea.sflag [#allocation5], %s225
        %s227 = sand.u32 %s31, 1
        %s228 = smul.addr %s227, 256
        %s229 = scalar_lea.vmem [#allocation4], %s228
        // Predicated region
        $region41: #{tpu_custom_call.1} parent=39 // pred_check
          %p230 = pneg %p44
        $region42: #{tpu_custom_call.1} parent=39 // pred_check_branch
          %232 = sbr.rel (%p230) target = $region44
        $region43: #{tpu_custom_call.1} parent=39 // pred_region
          %234 = dma.done %s226, 4096
        $region44: #{tpu_custom_call.1} parent=39 // pred_fallthru
          _
        // Predicated region
        $region45: #{tpu_custom_call.1} parent=39 // pred_check
          %p235 = pneg %p107
        $region46: #{tpu_custom_call.1} parent=39 // pred_check_branch
          %237 = sbr.rel (%p235) target = $region48
        $region47: #{tpu_custom_call.1} parent=39 // pred_region
          %239 = dma.done [#allocation8], 256
        $region48: #{tpu_custom_call.1} parent=39 // pred_fallthru
          _
        %s240 = sand.u32 %s31, 1
        %s241 = scalar_lea.sflag [#allocation5], %s240
        %s242 = sand.u32 %s31, 1
        %s243 = smul.addr %s242, 256
        %s244 = scalar_lea.vmem [#allocation4], %s243
        %p245 = pneg %p44
        %p246 = pneg %p41
        %p247 = pneg %p65
        %p248 = pneg %p62
        %p249 = pneg %p86
        %p250 = pneg %p83
        %p251 = pneg %p107
        %p252 = pneg %p104
        %p253 = pneg %p128
        %p254 = pneg %p125
        %p255 = pneg %p154
        %p256 = pneg %p151
        %s257 = sand.u32 %s141, 1
        %s258 = scalar_lea.sflag [#allocation6], %s257
        %s259 = sand.u32 %s141, 1
        %s260 = smul.addr %s259, 256
        %s261 = scalar_lea.vmem [#allocation9], %s260
        %vm264 = vcmask 60416
        %265 = vst.msk [vmem:[#allocation2] sm:$0xf] %vm264, 4284677986
        %266 = vst.msk [vmem:[#allocation2 + $0x4] sm:$0xf] %vm264, 4284677986
        %vm267 = vcmask 58368
        %268 = vst.msk [vmem:[#allocation2 + $0x8] sm:$0x3] %vm267, 4284677986
        %269 = vst.msk [vmem:[#allocation2 + $0xc] sm:$0xf] %vm264, 4284677986
        %270 = vst.msk [vmem:[#allocation2 + $0x10] sm:$0xf] %vm264, 4284677986
        %271 = vst.msk [vmem:[#allocation2 + $0x14] sm:$0x3] %vm267, 4284677986
        %s272 = scalar_lea.vmem [#allocation2], 216
        %273 = vst.msk [vmem:[%s272] sm:$0xf] %vm264, 4284677986
        %274 = vst.msk [vmem:[%s272 + $0x4] sm:$0xf] %vm264, 4284677986
        %275 = vst.msk [vmem:[%s272 + $0x8] sm:$0x3] %vm267, 4284677986
        %276 = vst.msk [vmem:[%s272 + $0xc] sm:$0xf] %vm264, 4284677986
        %277 = vst.msk [vmem:[%s272 + $0x10] sm:$0xf] %vm264, 4284677986
        %278 = vst.msk [vmem:[%s272 + $0x14] sm:$0x3] %vm267, 4284677986
        %vm279 = vcmask 57344
        %280 = vst.msk [vmem:[#allocation2] sm:$0x1] %vm279, 4284677986
        %281 = vst.msk [vmem:[#allocation2 + $0xc] sm:$0x1] %vm279, 4284677986
        %282 = vst.msk [vmem:[#allocation2 + $0x18] sm:$0x1] %vm279, 4284677986
        %283 = vst.msk [vmem:[#allocation2 + $0x24] sm:$0x1] %vm279, 4284677986
        %284 = vst.msk [vmem:[#allocation2 + $0x30] sm:$0x1] %vm279, 4284677986
        %285 = vst.msk [vmem:[#allocation2 + $0x3c] sm:$0x1] %vm279, 4284677986
        %286 = vst.msk [vmem:[#allocation2 + $0x48] sm:$0x1] %vm279, 4284677986
        %287 = vst.msk [vmem:[#allocation2 + $0x54] sm:$0x1] %vm279, 4284677986
        %288 = vst.msk [vmem:[#allocation2 + $0x60] sm:$0x1] %vm279, 4284677986
        %289 = vst.msk [vmem:[#allocation2 + $0x6c] sm:$0x1] %vm279, 4284677986
        %290 = vst.msk [vmem:[#allocation2 + $0x78] sm:$0x1] %vm279, 4284677986
        %291 = vst.msk [vmem:[#allocation2 + $0x84] sm:$0x1] %vm279, 4284677986
        %292 = vst.msk [vmem:[#allocation2 + $0x90] sm:$0x1] %vm279, 4284677986
        %293 = vst.msk [vmem:[#allocation2 + $0x9c] sm:$0x1] %vm279, 4284677986
        %294 = vst.msk [vmem:[#allocation2 + $0xa8] sm:$0x1] %vm279, 4284677986
        %295 = vst.msk [vmem:[#allocation2 + $0xb4] sm:$0x1] %vm279, 4284677986
        %296 = vst.msk [vmem:[#allocation2 + $0xc0] sm:$0x1] %vm279, 4284677986
        %297 = vst.msk [vmem:[#allocation2 + $0xcc] sm:$0x1] %vm279, 4284677986
        %298 = vst.msk [vmem:[#allocation2 + $0xd8] sm:$0x1] %vm279, 4284677986
        %299 = vst.msk [vmem:[#allocation2 + $0xe4] sm:$0x1] %vm279, 4284677986
        %vm300 = vcmask 58369
        %301 = vst.msk [vmem:[#allocation2 + $0x8] sm:$0x2] %vm300, 4284677986
        %302 = vst.msk [vmem:[#allocation2 + $0x14] sm:$0x2] %vm300, 4284677986
        %303 = vst.msk [vmem:[#allocation2 + $0x20] sm:$0x2] %vm300, 4284677986
        %304 = vst.msk [vmem:[#allocation2 + $0x2c] sm:$0x2] %vm300, 4284677986
        %305 = vst.msk [vmem:[#allocation2 + $0x38] sm:$0x2] %vm300, 4284677986
        %306 = vst.msk [vmem:[#allocation2 + $0x44] sm:$0x2] %vm300, 4284677986
        %307 = vst.msk [vmem:[#allocation2 + $0x50] sm:$0x2] %vm300, 4284677986
        %308 = vst.msk [vmem:[#allocation2 + $0x5c] sm:$0x2] %vm300, 4284677986
        %309 = vst.msk [vmem:[#allocation2 + $0x68] sm:$0x2] %vm300, 4284677986
        %310 = vst.msk [vmem:[#allocation2 + $0x74] sm:$0x2] %vm300, 4284677986
        %311 = vst.msk [vmem:[#allocation2 + $0x80] sm:$0x2] %vm300, 4284677986
        %312 = vst.msk [vmem:[#allocation2 + $0x8c] sm:$0x2] %vm300, 4284677986
        %313 = vst.msk [vmem:[#allocation2 + $0x98] sm:$0x2] %vm300, 4284677986
        %314 = vst.msk [vmem:[#allocation2 + $0xa4] sm:$0x2] %vm300, 4284677986
        %315 = vst.msk [vmem:[#allocation2 + $0xb0] sm:$0x2] %vm300, 4284677986
        %316 = vst.msk [vmem:[#allocation2 + $0xbc] sm:$0x2] %vm300, 4284677986
        %317 = vst.msk [vmem:[#allocation2 + $0xc8] sm:$0x2] %vm300, 4284677986
        %318 = vst.msk [vmem:[#allocation2 + $0xd4] sm:$0x2] %vm300, 4284677986
        %319 = vst.msk [vmem:[#allocation2 + $0xe0] sm:$0x2] %vm300, 4284677986
        %320 = vst.msk [vmem:[#allocation2 + $0xec] sm:$0x2] %vm300, 4284677986
        %v321 = vld [vmem:[%s229] sm:$0xff]
        %v322 = vld [vmem:[%s229 + $0x8] sm:$0xff]
        %v323 = vld [vmem:[%s229 + $0x10] sm:$0xff]
        %v324 = vld [vmem:[%s229 + $0x18] sm:$0xff]
        %v325 = vld [vmem:[%s229 + $0x20] sm:$0xff]
        %v326 = vld [vmem:[%s229 + $0x28] sm:$0xff]
        %v327 = vld [vmem:[%s229 + $0x30] sm:$0xff]
        %v328 = vld [vmem:[%s229 + $0x38] sm:$0xff]
        %v329 = vld [vmem:[%s229 + $0x40] sm:$0xff]
        %v330 = vld [vmem:[%s229 + $0x48] sm:$0xff]
        %v331 = vld [vmem:[%s229 + $0x50] sm:$0xff]
        %v332 = vld [vmem:[%s229 + $0x58] sm:$0xff]
        %v333 = vld [vmem:[%s229 + $0x60] sm:$0xff]
        %v334 = vld [vmem:[%s229 + $0x68] sm:$0xff]
        %v335 = vld [vmem:[%s229 + $0x70] sm:$0xff]
        %v336 = vld [vmem:[%s229 + $0x78] sm:$0xff]
        %v337 = vld [vmem:[%s229 + $0x80] sm:$0xff]
        %v338 = vld [vmem:[%s229 + $0x88] sm:$0xff]
        %v339 = vld [vmem:[%s229 + $0x90] sm:$0xff]
        %v340 = vld [vmem:[%s229 + $0x98] sm:$0xff]
        %v341 = vld [vmem:[%s229 + $0xa0] sm:$0xff]
        %v342 = vld [vmem:[%s229 + $0xa8] sm:$0xff]
        %v343 = vld [vmem:[%s229 + $0xb0] sm:$0xff]
        %v344 = vld [vmem:[%s229 + $0xb8] sm:$0xff]
        %v345 = vld [vmem:[%s229 + $0xc0] sm:$0xff]
        %v346 = vld [vmem:[%s229 + $0xc8] sm:$0xff]
        %v347 = vld [vmem:[%s229 + $0xd0] sm:$0xff]
        %v348 = vld [vmem:[%s229 + $0xd8] sm:$0xff]
        %v349 = vld [vmem:[%s229 + $0xe0] sm:$0xff]
        %v350 = vld [vmem:[%s229 + $0xe8] sm:$0xff]
        %v351 = vld [vmem:[%s229 + $0xf0] sm:$0xff]
        %v352 = vld [vmem:[%s229 + $0xf8] sm:$0xff]
        %v353 = vpack.c.bf16 %v322, %v321
        %v354 = vpack.c.bf16 %v324, %v323
        %v355 = vpack.c.bf16 %v326, %v325
        %v356 = vpack.c.bf16 %v328, %v327
        %v357 = vpack.c.bf16 %v330, %v329
        %v358 = vpack.c.bf16 %v332, %v331
        %v359 = vpack.c.bf16 %v334, %v333
        %v360 = vpack.c.bf16 %v336, %v335
        %v361 = vpack.c.bf16 %v338, %v337
        %v362 = vpack.c.bf16 %v340, %v339
        %v363 = vpack.c.bf16 %v342, %v341
        %v364 = vpack.c.bf16 %v344, %v343
        %v365 = vpack.c.bf16 %v346, %v345
        %v366 = vpack.c.bf16 %v348, %v347
        %v367 = vpack.c.bf16 %v350, %v349
        %v368 = vpack.c.bf16 %v352, %v351
        %v369 = vld [vmem:[%s1] sm:$0xf]
        %v370 = vld [vmem:[%s1 + $0x4] sm:$0xf]
        %v371 = vld [vmem:[%s2] sm:$0x1]
        %v373 = vperm.slane %v371, 0
        %v377 = vunpack.c.l.b16 %v369
        %v378 = vunpack.c.l.b16 %v370
        %v379 = vpack.c.b16 %v378, %v377
        %vm381 = vcmask 130048
        %v383 = vsel %vm381, %v353, 0
        %v386 = vsel %vm381, %v354, 0
        %v389 = vsel %vm381, %v355, 0
        %v392 = vsel %vm381, %v356, 0
        %v395 = vsel %vm381, %v357, 0
        %v398 = vsel %vm381, %v358, 0
        %v401 = vsel %vm381, %v359, 0
        %v404 = vsel %vm381, %v360, 0
        %v407 = vsel %vm381, %v361, 0
        %v410 = vsel %vm381, %v362, 0
        %v413 = vsel %vm381, %v363, 0
        %v416 = vsel %vm381, %v364, 0
        %v419 = vsel %vm381, %v365, 0
        %v422 = vsel %vm381, %v366, 0
        %v425 = vsel %vm381, %v367, 0
        %v428 = vsel %vm381, %v368, 0
        %430 = vmatpush.bf16.msra.mxu0 0
        %431 = vmatpush.bf16.msra.mxu0 0
        %432 = vmatpush.bf16.msra.mxu0 0
        %433 = vmatpush.bf16.msra.mxu0 0
        %434 = vmatpush.bf16.msra.mxu0 0
        %435 = vmatpush.bf16.msra.mxu0 0
        %436 = vmatpush.bf16.msra.mxu0 0
        %437 = vmatpush.bf16.msra.mxu0 %v379
        %438 = vmatmul.bf16.gmra.mxu0 %v383
        %v439 = vpop.f32.mrf.mxu0
        %v440 = vadd.f32 %v373, %v439
        %v441 = vpop.f32.mrf.mxu0
        %v442 = vadd.f32 %v373, %v441
        %443 = vmatmul.bf16.gmra.mxu0 %v386
        %v444 = vpop.f32.mrf.mxu0
        %v445 = vadd.f32 %v373, %v444
        %v446 = vpop.f32.mrf.mxu0
        %v447 = vadd.f32 %v373, %v446
        %448 = vmatmul.bf16.gmra.mxu0 %v389
        %v449 = vpop.f32.mrf.mxu0
        %v450 = vadd.f32 %v373, %v449
        %v451 = vpop.f32.mrf.mxu0
        %v452 = vadd.f32 %v373, %v451
        %453 = vmatmul.bf16.gmra.mxu0 %v392
        %v454 = vpop.f32.mrf.mxu0
        %v455 = vadd.f32 %v373, %v454
        %v456 = vpop.f32.mrf.mxu0
        %v457 = vadd.f32 %v373, %v456
        %458 = vmatmul.bf16.gmra.mxu0 %v395
        %v459 = vpop.f32.mrf.mxu0
        %v460 = vadd.f32 %v373, %v459
        %v461 = vpop.f32.mrf.mxu0
        %v462 = vadd.f32 %v373, %v461
        %463 = vmatmul.bf16.gmra.mxu0 %v398
        %v464 = vpop.f32.mrf.mxu0
        %v465 = vadd.f32 %v373, %v464
        %v466 = vpop.f32.mrf.mxu0
        %v467 = vadd.f32 %v373, %v466
        %468 = vmatmul.bf16.gmra.mxu0 %v401
        %v469 = vpop.f32.mrf.mxu0
        %v470 = vadd.f32 %v373, %v469
        %v471 = vpop.f32.mrf.mxu0
        %v472 = vadd.f32 %v373, %v471
        %473 = vmatmul.bf16.gmra.mxu0 %v404
        %v474 = vpop.f32.mrf.mxu0
        %v475 = vadd.f32 %v373, %v474
        %v476 = vpop.f32.mrf.mxu0
        %v477 = vadd.f32 %v373, %v476
        %478 = vmatmul.bf16.gmra.mxu0 %v407
        %v479 = vpop.f32.mrf.mxu0
        %v480 = vadd.f32 %v373, %v479
        %v481 = vpop.f32.mrf.mxu0
        %v482 = vadd.f32 %v373, %v481
        %483 = vmatmul.bf16.gmra.mxu0 %v410
        %v484 = vpop.f32.mrf.mxu0
        %v485 = vadd.f32 %v373, %v484
        %v486 = vpop.f32.mrf.mxu0
        %v487 = vadd.f32 %v373, %v486
        %488 = vmatmul.bf16.gmra.mxu0 %v413
        %v489 = vpop.f32.mrf.mxu0
        %v490 = vadd.f32 %v373, %v489
        %v491 = vpop.f32.mrf.mxu0
        %v492 = vadd.f32 %v373, %v491
        %493 = vmatmul.bf16.gmra.mxu0 %v416
        %v494 = vpop.f32.mrf.mxu0
        %v495 = vadd.f32 %v373, %v494
        %v496 = vpop.f32.mrf.mxu0
        %v497 = vadd.f32 %v373, %v496
        %498 = vmatmul.bf16.gmra.mxu0 %v419
        %v499 = vpop.f32.mrf.mxu0
        %v500 = vadd.f32 %v373, %v499
        %v501 = vpop.f32.mrf.mxu0
        %v502 = vadd.f32 %v373, %v501
        %503 = vmatmul.bf16.gmra.mxu0 %v422
        %v504 = vpop.f32.mrf.mxu0
        %v505 = vadd.f32 %v373, %v504
        %v506 = vpop.f32.mrf.mxu0
        %v507 = vadd.f32 %v373, %v506
        %508 = vmatmul.bf16.gmra.mxu0 %v425
        %v509 = vpop.f32.mrf.mxu0
        %v510 = vadd.f32 %v373, %v509
        %v511 = vpop.f32.mrf.mxu0
        %v512 = vadd.f32 %v373, %v511
        %513 = vmatmul.bf16.gmra.mxu0 %v428
        %v514 = vpop.f32.mrf.mxu0
        %v515 = vadd.f32 %v373, %v514
        %v516 = vpop.f32.mrf.mxu0
        %v517 = vadd.f32 %v373, %v516
        %518 = vdwg.mxu0
        %v519 = vxor.u32 %v440, 2147483648
        %v520 = vxor.u32 %v442, 2147483648
        %v521 = vxor.u32 %v445, 2147483648
        %v522 = vxor.u32 %v447, 2147483648
        %v523 = vxor.u32 %v450, 2147483648
        %v524 = vxor.u32 %v452, 2147483648
        %v525 = vxor.u32 %v455, 2147483648
        %v526 = vxor.u32 %v457, 2147483648
        %v527 = vxor.u32 %v460, 2147483648
        %v528 = vxor.u32 %v462, 2147483648
        %v529 = vxor.u32 %v465, 2147483648
        %v530 = vxor.u32 %v467, 2147483648
        %v531 = vxor.u32 %v470, 2147483648
        %v532 = vxor.u32 %v472, 2147483648
        %v533 = vxor.u32 %v475, 2147483648
        %v534 = vxor.u32 %v477, 2147483648
        %v535 = vxor.u32 %v480, 2147483648
        %v536 = vxor.u32 %v482, 2147483648
        %v537 = vxor.u32 %v485, 2147483648
        %v538 = vxor.u32 %v487, 2147483648
        %v539 = vxor.u32 %v490, 2147483648
        %v540 = vxor.u32 %v492, 2147483648
        %v541 = vxor.u32 %v495, 2147483648
        %v542 = vxor.u32 %v497, 2147483648
        %v543 = vxor.u32 %v500, 2147483648
        %v544 = vxor.u32 %v502, 2147483648
        %v545 = vxor.u32 %v505, 2147483648
        %v546 = vxor.u32 %v507, 2147483648
        %v547 = vxor.u32 %v510, 2147483648
        %v548 = vxor.u32 %v512, 2147483648
        %v549 = vxor.u32 %v515, 2147483648
        %v550 = vxor.u32 %v517, 2147483648
        %v551 = vmul.f32 %v519, 1.442695
        %v552 = vpow.pop %v551
        %v553 = vmul.f32 %v520, 1.442695
        %v554 = vpow.pop %v553
        %v555 = vmul.f32 %v521, 1.442695
        %v556 = vpow.pop %v555
        %v557 = vmul.f32 %v522, 1.442695
        %v558 = vpow.pop %v557
        %v559 = vmul.f32 %v523, 1.442695
        %v560 = vpow.pop %v559
        %v561 = vmul.f32 %v524, 1.442695
        %v562 = vpow.pop %v561
        %v563 = vmul.f32 %v525, 1.442695
        %v564 = vpow.pop %v563
        %v565 = vmul.f32 %v526, 1.442695
        %v566 = vpow.pop %v565
        %v567 = vmul.f32 %v527, 1.442695
        %v568 = vpow.pop %v567
        %v569 = vmul.f32 %v528, 1.442695
        %v570 = vpow.pop %v569
        %v571 = vmul.f32 %v529, 1.442695
        %v572 = vpow.pop %v571
        %v573 = vmul.f32 %v530, 1.442695
        %v574 = vpow.pop %v573
        %v575 = vmul.f32 %v531, 1.442695
        %v576 = vpow.pop %v575
        %v577 = vmul.f32 %v532, 1.442695
        %v578 = vpow.pop %v577
        %v579 = vmul.f32 %v533, 1.442695
        %v580 = vpow.pop %v579
        %v581 = vmul.f32 %v534, 1.442695
        %v582 = vpow.pop %v581
        %v583 = vmul.f32 %v535, 1.442695
        %v584 = vpow.pop %v583
        %v585 = vmul.f32 %v536, 1.442695
        %v586 = vpow.pop %v585
        %v587 = vmul.f32 %v537, 1.442695
        %v588 = vpow.pop %v587
        %v589 = vmul.f32 %v538, 1.442695
        %v590 = vpow.pop %v589
        %v591 = vmul.f32 %v539, 1.442695
        %v592 = vpow.pop %v591
        %v593 = vmul.f32 %v540, 1.442695
        %v594 = vpow.pop %v593
        %v595 = vmul.f32 %v541, 1.442695
        %v596 = vpow.pop %v595
        %v597 = vmul.f32 %v542, 1.442695
        %v598 = vpow.pop %v597
        %v599 = vmul.f32 %v543, 1.442695
        %v600 = vpow.pop %v599
        %v601 = vmul.f32 %v544, 1.442695
        %v602 = vpow.pop %v601
        %v603 = vmul.f32 %v545, 1.442695
        %v604 = vpow.pop %v603
        %v605 = vmul.f32 %v546, 1.442695
        %v606 = vpow.pop %v605
        %v607 = vmul.f32 %v547, 1.442695
        %v608 = vpow.pop %v607
        %v609 = vmul.f32 %v548, 1.442695
        %v610 = vpow.pop %v609
        %v611 = vmul.f32 %v549, 1.442695
        %v612 = vpow.pop %v611
        %v613 = vmul.f32 %v550, 1.442695
        %v614 = vpow.pop %v613
        %v615 = vadd.f32 %v552, 1.0
        %v616 = vadd.f32 %v554, 1.0
        %v617 = vadd.f32 %v556, 1.0
        %v618 = vadd.f32 %v558, 1.0
        %v619 = vadd.f32 %v560, 1.0
        %v620 = vadd.f32 %v562, 1.0
        %v621 = vadd.f32 %v564, 1.0
        %v622 = vadd.f32 %v566, 1.0
        %v623 = vadd.f32 %v568, 1.0
        %v624 = vadd.f32 %v570, 1.0
        %v625 = vadd.f32 %v572, 1.0
        %v626 = vadd.f32 %v574, 1.0
        %v627 = vadd.f32 %v576, 1.0
        %v628 = vadd.f32 %v578, 1.0
        %v629 = vadd.f32 %v580, 1.0
        %v630 = vadd.f32 %v582, 1.0
        %v631 = vadd.f32 %v584, 1.0
        %v632 = vadd.f32 %v586, 1.0
        %v633 = vadd.f32 %v588, 1.0
        %v634 = vadd.f32 %v590, 1.0
        %v635 = vadd.f32 %v592, 1.0
        %v636 = vadd.f32 %v594, 1.0
        %v637 = vadd.f32 %v596, 1.0
        %v638 = vadd.f32 %v598, 1.0
        %v639 = vadd.f32 %v600, 1.0
        %v640 = vadd.f32 %v602, 1.0
        %v641 = vadd.f32 %v604, 1.0
        %v642 = vadd.f32 %v606, 1.0
        %v643 = vadd.f32 %v608, 1.0
        %v644 = vadd.f32 %v610, 1.0
        %v645 = vadd.f32 %v612, 1.0
        %v646 = vadd.f32 %v614, 1.0
        %v647 = vrcp.pop %v615
        %v648 = vmul.f32 %v615, %v647
        %v649 = vsub.f32 1.0, %v648
        %v650 = vmul.f32 %v647, %v649
        %v651 = vadd.f32 %v647, %v650
        %vm652 = vweird.f32 %v615
        %vm653 = vweird.f32 %v647
        %vm654 = vmor %vm652, %vm653
        %v655 = vsel %vm654, %v647, %v651
        %v656 = vand.u32 2147483647, %v615
        %vm657 = vcmp.eq.f32.partialorder %v656, 8.507059e+37
        %v658 = vand.u32 %v615, 2147483648
        %v659 = vor.u32 1.1754944e-38, %v658
        %v660 = vsel %vm657, %v659, %v655
        %v661 = vmul.f32 1.0, %v660
        %v662 = vrcp.pop %v616
        %v663 = vmul.f32 %v616, %v662
        %v664 = vsub.f32 1.0, %v663
        %v665 = vmul.f32 %v662, %v664
        %v666 = vadd.f32 %v662, %v665
        %vm667 = vweird.f32 %v616
        %vm668 = vweird.f32 %v662
        %vm669 = vmor %vm667, %vm668
        %v670 = vsel %vm669, %v662, %v666
        %v671 = vand.u32 2147483647, %v616
        %vm672 = vcmp.eq.f32.partialorder %v671, 8.507059e+37
        %v673 = vand.u32 %v616, 2147483648
        %v674 = vor.u32 1.1754944e-38, %v673
        %v675 = vsel %vm672, %v674, %v670
        %v676 = vmul.f32 1.0, %v675
        %v677 = vrcp.pop %v617
        %v678 = vmul.f32 %v617, %v677
        %v679 = vsub.f32 1.0, %v678
        %v680 = vmul.f32 %v677, %v679
        %v681 = vadd.f32 %v677, %v680
        %vm682 = vweird.f32 %v617
        %vm683 = vweird.f32 %v677
        %vm684 = vmor %vm682, %vm683
        %v685 = vsel %vm684, %v677, %v681
        %v686 = vand.u32 2147483647, %v617
        %vm687 = vcmp.eq.f32.partialorder %v686, 8.507059e+37
        %v688 = vand.u32 %v617, 2147483648
        %v689 = vor.u32 1.1754944e-38, %v688
        %v690 = vsel %vm687, %v689, %v685
        %v691 = vmul.f32 1.0, %v690
        %v692 = vrcp.pop %v618
        %v693 = vmul.f32 %v618, %v692
        %v694 = vsub.f32 1.0, %v693
        %v695 = vmul.f32 %v692, %v694
        %v696 = vadd.f32 %v692, %v695
        %vm697 = vweird.f32 %v618
        %vm698 = vweird.f32 %v692
        %vm699 = vmor %vm697, %vm698
        %v700 = vsel %vm699, %v692, %v696
        %v701 = vand.u32 2147483647, %v618
        %vm702 = vcmp.eq.f32.partialorder %v701, 8.507059e+37
        %v703 = vand.u32 %v618, 2147483648
        %v704 = vor.u32 1.1754944e-38, %v703
        %v705 = vsel %vm702, %v704, %v700
        %v706 = vmul.f32 1.0, %v705
        %v707 = vrcp.pop %v619
        %v708 = vmul.f32 %v619, %v707
        %v709 = vsub.f32 1.0, %v708
        %v710 = vmul.f32 %v707, %v709
        %v711 = vadd.f32 %v707, %v710
        %vm712 = vweird.f32 %v619
        %vm713 = vweird.f32 %v707
        %vm714 = vmor %vm712, %vm713
        %v715 = vsel %vm714, %v707, %v711
        %v716 = vand.u32 2147483647, %v619
        %vm717 = vcmp.eq.f32.partialorder %v716, 8.507059e+37
        %v718 = vand.u32 %v619, 2147483648
        %v719 = vor.u32 1.1754944e-38, %v718
        %v720 = vsel %vm717, %v719, %v715
        %v721 = vmul.f32 1.0, %v720
        %v722 = vrcp.pop %v620
        %v723 = vmul.f32 %v620, %v722
        %v724 = vsub.f32 1.0, %v723
        %v725 = vmul.f32 %v722, %v724
        %v726 = vadd.f32 %v722, %v725
        %vm727 = vweird.f32 %v620
        %vm728 = vweird.f32 %v722
        %vm729 = vmor %vm727, %vm728
        %v730 = vsel %vm729, %v722, %v726
        %v731 = vand.u32 2147483647, %v620
        %vm732 = vcmp.eq.f32.partialorder %v731, 8.507059e+37
        %v733 = vand.u32 %v620, 2147483648
        %v734 = vor.u32 1.1754944e-38, %v733
        %v735 = vsel %vm732, %v734, %v730
        %v736 = vmul.f32 1.0, %v735
        %v737 = vrcp.pop %v621
        %v738 = vmul.f32 %v621, %v737
        %v739 = vsub.f32 1.0, %v738
        %v740 = vmul.f32 %v737, %v739
        %v741 = vadd.f32 %v737, %v740
        %vm742 = vweird.f32 %v621
        %vm743 = vweird.f32 %v737
        %vm744 = vmor %vm742, %vm743
        %v745 = vsel %vm744, %v737, %v741
        %v746 = vand.u32 2147483647, %v621
        %vm747 = vcmp.eq.f32.partialorder %v746, 8.507059e+37
        %v748 = vand.u32 %v621, 2147483648
        %v749 = vor.u32 1.1754944e-38, %v748
        %v750 = vsel %vm747, %v749, %v745
        %v751 = vmul.f32 1.0, %v750
        %v752 = vrcp.pop %v622
        %v753 = vmul.f32 %v622, %v752
        %v754 = vsub.f32 1.0, %v753
        %v755 = vmul.f32 %v752, %v754
        %v756 = vadd.f32 %v752, %v755
        %vm757 = vweird.f32 %v622
        %vm758 = vweird.f32 %v752
        %vm759 = vmor %vm757, %vm758
        %v760 = vsel %vm759, %v752, %v756
        %v761 = vand.u32 2147483647, %v622
        %vm762 = vcmp.eq.f32.partialorder %v761, 8.507059e+37
        %v763 = vand.u32 %v622, 2147483648
        %v764 = vor.u32 1.1754944e-38, %v763
        %v765 = vsel %vm762, %v764, %v760
        %v766 = vmul.f32 1.0, %v765
        %v767 = vrcp.pop %v623
        %v768 = vmul.f32 %v623, %v767
        %v769 = vsub.f32 1.0, %v768
        %v770 = vmul.f32 %v767, %v769
        %v771 = vadd.f32 %v767, %v770
        %vm772 = vweird.f32 %v623
        %vm773 = vweird.f32 %v767
        %vm774 = vmor %vm772, %vm773
        %v775 = vsel %vm774, %v767, %v771
        %v776 = vand.u32 2147483647, %v623
        %vm777 = vcmp.eq.f32.partialorder %v776, 8.507059e+37
        %v778 = vand.u32 %v623, 2147483648
        %v779 = vor.u32 1.1754944e-38, %v778
        %v780 = vsel %vm777, %v779, %v775
        %v781 = vmul.f32 1.0, %v780
        %v782 = vrcp.pop %v624
        %v783 = vmul.f32 %v624, %v782
        %v784 = vsub.f32 1.0, %v783
        %v785 = vmul.f32 %v782, %v784
        %v786 = vadd.f32 %v782, %v785
        %vm787 = vweird.f32 %v624
        %vm788 = vweird.f32 %v782
        %vm789 = vmor %vm787, %vm788
        %v790 = vsel %vm789, %v782, %v786
        %v791 = vand.u32 2147483647, %v624
        %vm792 = vcmp.eq.f32.partialorder %v791, 8.507059e+37
        %v793 = vand.u32 %v624, 2147483648
        %v794 = vor.u32 1.1754944e-38, %v793
        %v795 = vsel %vm792, %v794, %v790
        %v796 = vmul.f32 1.0, %v795
        %v797 = vrcp.pop %v625
        %v798 = vmul.f32 %v625, %v797
        %v799 = vsub.f32 1.0, %v798
        %v800 = vmul.f32 %v797, %v799
        %v801 = vadd.f32 %v797, %v800
        %vm802 = vweird.f32 %v625
        %vm803 = vweird.f32 %v797
        %vm804 = vmor %vm802, %vm803
        %v805 = vsel %vm804, %v797, %v801
        %v806 = vand.u32 2147483647, %v625
        %vm807 = vcmp.eq.f32.partialorder %v806, 8.507059e+37
        %v808 = vand.u32 %v625, 2147483648
        %v809 = vor.u32 1.1754944e-38, %v808
        %v810 = vsel %vm807, %v809, %v805
        %v811 = vmul.f32 1.0, %v810
        %v812 = vrcp.pop %v626
        %v813 = vmul.f32 %v626, %v812
        %v814 = vsub.f32 1.0, %v813
        %v815 = vmul.f32 %v812, %v814
        %v816 = vadd.f32 %v812, %v815
        %vm817 = vweird.f32 %v626
        %vm818 = vweird.f32 %v812
        %vm819 = vmor %vm817, %vm818
        %v820 = vsel %vm819, %v812, %v816
        %v821 = vand.u32 2147483647, %v626
        %vm822 = vcmp.eq.f32.partialorder %v821, 8.507059e+37
        %v823 = vand.u32 %v626, 2147483648
        %v824 = vor.u32 1.1754944e-38, %v823
        %v825 = vsel %vm822, %v824, %v820
        %v826 = vmul.f32 1.0, %v825
        %v827 = vrcp.pop %v627
        %v828 = vmul.f32 %v627, %v827
        %v829 = vsub.f32 1.0, %v828
        %v830 = vmul.f32 %v827, %v829
        %v831 = vadd.f32 %v827, %v830
        %vm832 = vweird.f32 %v627
        %vm833 = vweird.f32 %v827
        %vm834 = vmor %vm832, %vm833
        %v835 = vsel %vm834, %v827, %v831
        %v836 = vand.u32 2147483647, %v627
        %vm837 = vcmp.eq.f32.partialorder %v836, 8.507059e+37
        %v838 = vand.u32 %v627, 2147483648
        %v839 = vor.u32 1.1754944e-38, %v838
        %v840 = vsel %vm837, %v839, %v835
        %v841 = vmul.f32 1.0, %v840
        %v842 = vrcp.pop %v628
        %v843 = vmul.f32 %v628, %v842
        %v844 = vsub.f32 1.0, %v843
        %v845 = vmul.f32 %v842, %v844
        %v846 = vadd.f32 %v842, %v845
        %vm847 = vweird.f32 %v628
        %vm848 = vweird.f32 %v842
        %vm849 = vmor %vm847, %vm848
        %v850 = vsel %vm849, %v842, %v846
        %v851 = vand.u32 2147483647, %v628
        %vm852 = vcmp.eq.f32.partialorder %v851, 8.507059e+37
        %v853 = vand.u32 %v628, 2147483648
        %v854 = vor.u32 1.1754944e-38, %v853
        %v855 = vsel %vm852, %v854, %v850
        %v856 = vmul.f32 1.0, %v855
        %v857 = vrcp.pop %v629
        %v858 = vmul.f32 %v629, %v857
        %v859 = vsub.f32 1.0, %v858
        %v860 = vmul.f32 %v857, %v859
        %v861 = vadd.f32 %v857, %v860
        %vm862 = vweird.f32 %v629
        %vm863 = vweird.f32 %v857
        %vm864 = vmor %vm862, %vm863
        %v865 = vsel %vm864, %v857, %v861
        %v866 = vand.u32 2147483647, %v629
        %vm867 = vcmp.eq.f32.partialorder %v866, 8.507059e+37
        %v868 = vand.u32 %v629, 2147483648
        %v869 = vor.u32 1.1754944e-38, %v868
        %v870 = vsel %vm867, %v869, %v865
        %v871 = vmul.f32 1.0, %v870
        %v872 = vrcp.pop %v630
        %v873 = vmul.f32 %v630, %v872
        %v874 = vsub.f32 1.0, %v873
        %v875 = vmul.f32 %v872, %v874
        %v876 = vadd.f32 %v872, %v875
        %vm877 = vweird.f32 %v630
        %vm878 = vweird.f32 %v872
        %vm879 = vmor %vm877, %vm878
        %v880 = vsel %vm879, %v872, %v876
        %v881 = vand.u32 2147483647, %v630
        %vm882 = vcmp.eq.f32.partialorder %v881, 8.507059e+37
        %v883 = vand.u32 %v630, 2147483648
        %v884 = vor.u32 1.1754944e-38, %v883
        %v885 = vsel %vm882, %v884, %v880
        %v886 = vmul.f32 1.0, %v885
        %v887 = vrcp.pop %v631
        %v888 = vmul.f32 %v631, %v887
        %v889 = vsub.f32 1.0, %v888
        %v890 = vmul.f32 %v887, %v889
        %v891 = vadd.f32 %v887, %v890
        %vm892 = vweird.f32 %v631
        %vm893 = vweird.f32 %v887
        %vm894 = vmor %vm892, %vm893
        %v895 = vsel %vm894, %v887, %v891
        %v896 = vand.u32 2147483647, %v631
        %vm897 = vcmp.eq.f32.partialorder %v896, 8.507059e+37
        %v898 = vand.u32 %v631, 2147483648
        %v899 = vor.u32 1.1754944e-38, %v898
        %v900 = vsel %vm897, %v899, %v895
        %v901 = vmul.f32 1.0, %v900
        %v902 = vrcp.pop %v632
        %v903 = vmul.f32 %v632, %v902
        %v904 = vsub.f32 1.0, %v903
        %v905 = vmul.f32 %v902, %v904
        %v906 = vadd.f32 %v902, %v905
        %vm907 = vweird.f32 %v632
        %vm908 = vweird.f32 %v902
        %vm909 = vmor %vm907, %vm908
        %v910 = vsel %vm909, %v902, %v906
        %v911 = vand.u32 2147483647, %v632
        %vm912 = vcmp.eq.f32.partialorder %v911, 8.507059e+37
        %v913 = vand.u32 %v632, 2147483648
        %v914 = vor.u32 1.1754944e-38, %v913
        %v915 = vsel %vm912, %v914, %v910
        %v916 = vmul.f32 1.0, %v915
        %v917 = vrcp.pop %v633
        %v918 = vmul.f32 %v633, %v917
        %v919 = vsub.f32 1.0, %v918
        %v920 = vmul.f32 %v917, %v919
        %v921 = vadd.f32 %v917, %v920
        %vm922 = vweird.f32 %v633
        %vm923 = vweird.f32 %v917
        %vm924 = vmor %vm922, %vm923
        %v925 = vsel %vm924, %v917, %v921
        %v926 = vand.u32 2147483647, %v633
        %vm927 = vcmp.eq.f32.partialorder %v926, 8.507059e+37
        %v928 = vand.u32 %v633, 2147483648
        %v929 = vor.u32 1.1754944e-38, %v928
        %v930 = vsel %vm927, %v929, %v925
        %v931 = vmul.f32 1.0, %v930
        %v932 = vrcp.pop %v634
        %v933 = vmul.f32 %v634, %v932
        %v934 = vsub.f32 1.0, %v933
        %v935 = vmul.f32 %v932, %v934
        %v936 = vadd.f32 %v932, %v935
        %vm937 = vweird.f32 %v634
        %vm938 = vweird.f32 %v932
        %vm939 = vmor %vm937, %vm938
        %v940 = vsel %vm939, %v932, %v936
        %v941 = vand.u32 2147483647, %v634
        %vm942 = vcmp.eq.f32.partialorder %v941, 8.507059e+37
        %v943 = vand.u32 %v634, 2147483648
        %v944 = vor.u32 1.1754944e-38, %v943
        %v945 = vsel %vm942, %v944, %v940
        %v946 = vmul.f32 1.0, %v945
        %v947 = vrcp.pop %v635
        %v948 = vmul.f32 %v635, %v947
        %v949 = vsub.f32 1.0, %v948
        %v950 = vmul.f32 %v947, %v949
        %v951 = vadd.f32 %v947, %v950
        %vm952 = vweird.f32 %v635
        %vm953 = vweird.f32 %v947
        %vm954 = vmor %vm952, %vm953
        %v955 = vsel %vm954, %v947, %v951
        %v956 = vand.u32 2147483647, %v635
        %vm957 = vcmp.eq.f32.partialorder %v956, 8.507059e+37
        %v958 = vand.u32 %v635, 2147483648
        %v959 = vor.u32 1.1754944e-38, %v958
        %v960 = vsel %vm957, %v959, %v955
        %v961 = vmul.f32 1.0, %v960
        %v962 = vrcp.pop %v636
        %v963 = vmul.f32 %v636, %v962
        %v964 = vsub.f32 1.0, %v963
        %v965 = vmul.f32 %v962, %v964
        %v966 = vadd.f32 %v962, %v965
        %vm967 = vweird.f32 %v636
        %vm968 = vweird.f32 %v962
        %vm969 = vmor %vm967, %vm968
        %v970 = vsel %vm969, %v962, %v966
        %v971 = vand.u32 2147483647, %v636
        %vm972 = vcmp.eq.f32.partialorder %v971, 8.507059e+37
        %v973 = vand.u32 %v636, 2147483648
        %v974 = vor.u32 1.1754944e-38, %v973
        %v975 = vsel %vm972, %v974, %v970
        %v976 = vmul.f32 1.0, %v975
        %v977 = vrcp.pop %v637
        %v978 = vmul.f32 %v637, %v977
        %v979 = vsub.f32 1.0, %v978
        %v980 = vmul.f32 %v977, %v979
        %v981 = vadd.f32 %v977, %v980
        %vm982 = vweird.f32 %v637
        %vm983 = vweird.f32 %v977
        %vm984 = vmor %vm982, %vm983
        %v985 = vsel %vm984, %v977, %v981
        %v986 = vand.u32 2147483647, %v637
        %vm987 = vcmp.eq.f32.partialorder %v986, 8.507059e+37
        %v988 = vand.u32 %v637, 2147483648
        %v989 = vor.u32 1.1754944e-38, %v988
        %v990 = vsel %vm987, %v989, %v985
        %v991 = vmul.f32 1.0, %v990
        %v992 = vrcp.pop %v638
        %v993 = vmul.f32 %v638, %v992
        %v994 = vsub.f32 1.0, %v993
        %v995 = vmul.f32 %v992, %v994
        %v996 = vadd.f32 %v992, %v995
        %vm997 = vweird.f32 %v638
        %vm998 = vweird.f32 %v992
        %vm999 = vmor %vm997, %vm998
        %v1000 = vsel %vm999, %v992, %v996
        %v1001 = vand.u32 2147483647, %v638
        %vm1002 = vcmp.eq.f32.partialorder %v1001, 8.507059e+37
        %v1003 = vand.u32 %v638, 2147483648
        %v1004 = vor.u32 1.1754944e-38, %v1003
        %v1005 = vsel %vm1002, %v1004, %v1000
        %v1006 = vmul.f32 1.0, %v1005
        %v1007 = vrcp.pop %v639
        %v1008 = vmul.f32 %v639, %v1007
        %v1009 = vsub.f32 1.0, %v1008
        %v1010 = vmul.f32 %v1007, %v1009
        %v1011 = vadd.f32 %v1007, %v1010
        %vm1012 = vweird.f32 %v639
        %vm1013 = vweird.f32 %v1007
        %vm1014 = vmor %vm1012, %vm1013
        %v1015 = vsel %vm1014, %v1007, %v1011
        %v1016 = vand.u32 2147483647, %v639
        %vm1017 = vcmp.eq.f32.partialorder %v1016, 8.507059e+37
        %v1018 = vand.u32 %v639, 2147483648
        %v1019 = vor.u32 1.1754944e-38, %v1018
        %v1020 = vsel %vm1017, %v1019, %v1015
        %v1021 = vmul.f32 1.0, %v1020
        %v1022 = vrcp.pop %v640
        %v1023 = vmul.f32 %v640, %v1022
        %v1024 = vsub.f32 1.0, %v1023
        %v1025 = vmul.f32 %v1022, %v1024
        %v1026 = vadd.f32 %v1022, %v1025
        %vm1027 = vweird.f32 %v640
        %vm1028 = vweird.f32 %v1022
        %vm1029 = vmor %vm1027, %vm1028
        %v1030 = vsel %vm1029, %v1022, %v1026
        %v1031 = vand.u32 2147483647, %v640
        %vm1032 = vcmp.eq.f32.partialorder %v1031, 8.507059e+37
        %v1033 = vand.u32 %v640, 2147483648
        %v1034 = vor.u32 1.1754944e-38, %v1033
        %v1035 = vsel %vm1032, %v1034, %v1030
        %v1036 = vmul.f32 1.0, %v1035
        %v1037 = vrcp.pop %v641
        %v1038 = vmul.f32 %v641, %v1037
        %v1039 = vsub.f32 1.0, %v1038
        %v1040 = vmul.f32 %v1037, %v1039
        %v1041 = vadd.f32 %v1037, %v1040
        %vm1042 = vweird.f32 %v641
        %vm1043 = vweird.f32 %v1037
        %vm1044 = vmor %vm1042, %vm1043
        %v1045 = vsel %vm1044, %v1037, %v1041
        %v1046 = vand.u32 2147483647, %v641
        %vm1047 = vcmp.eq.f32.partialorder %v1046, 8.507059e+37
        %v1048 = vand.u32 %v641, 2147483648
        %v1049 = vor.u32 1.1754944e-38, %v1048
        %v1050 = vsel %vm1047, %v1049, %v1045
        %v1051 = vmul.f32 1.0, %v1050
        %v1052 = vrcp.pop %v642
        %v1053 = vmul.f32 %v642, %v1052
        %v1054 = vsub.f32 1.0, %v1053
        %v1055 = vmul.f32 %v1052, %v1054
        %v1056 = vadd.f32 %v1052, %v1055
        %vm1057 = vweird.f32 %v642
        %vm1058 = vweird.f32 %v1052
        %vm1059 = vmor %vm1057, %vm1058
        %v1060 = vsel %vm1059, %v1052, %v1056
        %v1061 = vand.u32 2147483647, %v642
        %vm1062 = vcmp.eq.f32.partialorder %v1061, 8.507059e+37
        %v1063 = vand.u32 %v642, 2147483648
        %v1064 = vor.u32 1.1754944e-38, %v1063
        %v1065 = vsel %vm1062, %v1064, %v1060
        %v1066 = vmul.f32 1.0, %v1065
        %v1067 = vrcp.pop %v643
        %v1068 = vmul.f32 %v643, %v1067
        %v1069 = vsub.f32 1.0, %v1068
        %v1070 = vmul.f32 %v1067, %v1069
        %v1071 = vadd.f32 %v1067, %v1070
        %vm1072 = vweird.f32 %v643
        %vm1073 = vweird.f32 %v1067
        %vm1074 = vmor %vm1072, %vm1073
        %v1075 = vsel %vm1074, %v1067, %v1071
        %v1076 = vand.u32 2147483647, %v643
        %vm1077 = vcmp.eq.f32.partialorder %v1076, 8.507059e+37
        %v1078 = vand.u32 %v643, 2147483648
        %v1079 = vor.u32 1.1754944e-38, %v1078
        %v1080 = vsel %vm1077, %v1079, %v1075
        %v1081 = vmul.f32 1.0, %v1080
        %v1082 = vrcp.pop %v644
        %v1083 = vmul.f32 %v644, %v1082
        %v1084 = vsub.f32 1.0, %v1083
        %v1085 = vmul.f32 %v1082, %v1084
        %v1086 = vadd.f32 %v1082, %v1085
        %vm1087 = vweird.f32 %v644
        %vm1088 = vweird.f32 %v1082
        %vm1089 = vmor %vm1087, %vm1088
        %v1090 = vsel %vm1089, %v1082, %v1086
        %v1091 = vand.u32 2147483647, %v644
        %vm1092 = vcmp.eq.f32.partialorder %v1091, 8.507059e+37
        %v1093 = vand.u32 %v644, 2147483648
        %v1094 = vor.u32 1.1754944e-38, %v1093
        %v1095 = vsel %vm1092, %v1094, %v1090
        %v1096 = vmul.f32 1.0, %v1095
        %v1097 = vrcp.pop %v645
        %v1098 = vmul.f32 %v645, %v1097
        %v1099 = vsub.f32 1.0, %v1098
        %v1100 = vmul.f32 %v1097, %v1099
        %v1101 = vadd.f32 %v1097, %v1100
        %vm1102 = vweird.f32 %v645
        %vm1103 = vweird.f32 %v1097
        %vm1104 = vmor %vm1102, %vm1103
        %v1105 = vsel %vm1104, %v1097, %v1101
        %v1106 = vand.u32 2147483647, %v645
        %vm1107 = vcmp.eq.f32.partialorder %v1106, 8.507059e+37
        %v1108 = vand.u32 %v645, 2147483648
        %v1109 = vor.u32 1.1754944e-38, %v1108
        %v1110 = vsel %vm1107, %v1109, %v1105
        %v1111 = vmul.f32 1.0, %v1110
        %v1112 = vrcp.pop %v646
        %v1113 = vmul.f32 %v646, %v1112
        %v1114 = vsub.f32 1.0, %v1113
        %v1115 = vmul.f32 %v1112, %v1114
        %v1116 = vadd.f32 %v1112, %v1115
        %vm1117 = vweird.f32 %v646
        %vm1118 = vweird.f32 %v1112
        %vm1119 = vmor %vm1117, %vm1118
        %v1120 = vsel %vm1119, %v1112, %v1116
        %v1121 = vand.u32 2147483647, %v646
        %vm1122 = vcmp.eq.f32.partialorder %v1121, 8.507059e+37
        %v1123 = vand.u32 %v646, 2147483648
        %v1124 = vor.u32 1.1754944e-38, %v1123
        %v1125 = vsel %vm1122, %v1124, %v1120
        %v1126 = vmul.f32 1.0, %v1125
        %v1127 = vmul.f32 %v440, %v661
        %v1128 = vmul.f32 %v442, %v676
        %v1129 = vmul.f32 %v445, %v691
        %v1130 = vmul.f32 %v447, %v706
        %v1131 = vmul.f32 %v450, %v721
        %v1132 = vmul.f32 %v452, %v736
        %v1133 = vmul.f32 %v455, %v751
        %v1134 = vmul.f32 %v457, %v766
        %v1135 = vmul.f32 %v460, %v781
        %v1136 = vmul.f32 %v462, %v796
        %v1137 = vmul.f32 %v465, %v811
        %v1138 = vmul.f32 %v467, %v826
        %v1139 = vmul.f32 %v470, %v841
        %v1140 = vmul.f32 %v472, %v856
        %v1141 = vmul.f32 %v475, %v871
        %v1142 = vmul.f32 %v477, %v886
        %v1143 = vmul.f32 %v480, %v901
        %v1144 = vmul.f32 %v482, %v916
        %v1145 = vmul.f32 %v485, %v931
        %v1146 = vmul.f32 %v487, %v946
        %v1147 = vmul.f32 %v490, %v961
        %v1148 = vmul.f32 %v492, %v976
        %v1149 = vmul.f32 %v495, %v991
        %v1150 = vmul.f32 %v497, %v1006
        %v1151 = vmul.f32 %v500, %v1021
        %v1152 = vmul.f32 %v502, %v1036
        %v1153 = vmul.f32 %v505, %v1051
        %v1154 = vmul.f32 %v507, %v1066
        %v1155 = vmul.f32 %v510, %v1081
        %v1156 = vmul.f32 %v512, %v1096
        %v1157 = vmul.f32 %v515, %v1111
        %v1158 = vmul.f32 %v517, %v1126
        %v1159 = vpack.c.bf16 %v1127, %v1127
        %v1160 = vpack.c.bf16 %v1128, %v1128
        %v1161 = vpack.c.bf16 %v1129, %v1129
        %v1162 = vpack.c.bf16 %v1130, %v1130
        %v1163 = vpack.c.bf16 %v1131, %v1131
        %v1164 = vpack.c.bf16 %v1132, %v1132
        %v1165 = vpack.c.bf16 %v1133, %v1133
        %v1166 = vpack.c.bf16 %v1134, %v1134
        %v1167 = vpack.c.bf16 %v1135, %v1135
        %v1168 = vpack.c.bf16 %v1136, %v1136
        %v1169 = vpack.c.bf16 %v1137, %v1137
        %v1170 = vpack.c.bf16 %v1138, %v1138
        %v1171 = vpack.c.bf16 %v1139, %v1139
        %v1172 = vpack.c.bf16 %v1140, %v1140
        %v1173 = vpack.c.bf16 %v1141, %v1141
        %v1174 = vpack.c.bf16 %v1142, %v1142
        %v1175 = vpack.c.bf16 %v1143, %v1143
        %v1176 = vpack.c.bf16 %v1144, %v1144
        %v1177 = vpack.c.bf16 %v1145, %v1145
        %v1178 = vpack.c.bf16 %v1146, %v1146
        %v1179 = vpack.c.bf16 %v1147, %v1147
        %v1180 = vpack.c.bf16 %v1148, %v1148
        %v1181 = vpack.c.bf16 %v1149, %v1149
        %v1182 = vpack.c.bf16 %v1150, %v1150
        %v1183 = vpack.c.bf16 %v1151, %v1151
        %v1184 = vpack.c.bf16 %v1152, %v1152
        %v1185 = vpack.c.bf16 %v1153, %v1153
        %v1186 = vpack.c.bf16 %v1154, %v1154
        %v1187 = vpack.c.bf16 %v1155, %v1155
        %v1188 = vpack.c.bf16 %v1156, %v1156
        %v1189 = vpack.c.bf16 %v1157, %v1157
        %v1190 = vpack.c.bf16 %v1158, %v1158
        %1191 = vst.msk [vmem:[#allocation3] sm:$0xf] %vm264, %v1159
        %1192 = vst.msk [vmem:[#allocation3 + $0x4] sm:$0xf] %vm264, %v1160
        %1193 = vst.msk [vmem:[#allocation3 + $0x8] sm:$0xf] %vm264, %v1161
        %1194 = vst.msk [vmem:[#allocation3 + $0xc] sm:$0xf] %vm264, %v1162
        %1195 = vst.msk [vmem:[#allocation3 + $0x10] sm:$0xf] %vm264, %v1163
        %1196 = vst.msk [vmem:[#allocation3 + $0x14] sm:$0xf] %vm264, %v1164
        %1197 = vst.msk [vmem:[#allocation3 + $0x18] sm:$0xf] %vm264, %v1165
        %1198 = vst.msk [vmem:[#allocation3 + $0x1c] sm:$0xf] %vm264, %v1166
        %1199 = vst.msk [vmem:[#allocation3 + $0x20] sm:$0xf] %vm264, %v1167
        %1200 = vst.msk [vmem:[#allocation3 + $0x24] sm:$0xf] %vm264, %v1168
        %1201 = vst.msk [vmem:[#allocation3 + $0x28] sm:$0xf] %vm264, %v1169
        %1202 = vst.msk [vmem:[#allocation3 + $0x2c] sm:$0xf] %vm264, %v1170
        %1203 = vst.msk [vmem:[#allocation3 + $0x30] sm:$0xf] %vm264, %v1171
        %1204 = vst.msk [vmem:[#allocation3 + $0x34] sm:$0xf] %vm264, %v1172
        %1205 = vst.msk [vmem:[#allocation3 + $0x38] sm:$0xf] %vm264, %v1173
        %1206 = vst.msk [vmem:[#allocation3 + $0x3c] sm:$0xf] %vm264, %v1174
        %1207 = vst.msk [vmem:[#allocation3 + $0x40] sm:$0xf] %vm264, %v1175
        %1208 = vst.msk [vmem:[#allocation3 + $0x44] sm:$0xf] %vm264, %v1176
        %1209 = vst.msk [vmem:[#allocation3 + $0x48] sm:$0xf] %vm264, %v1177
        %1210 = vst.msk [vmem:[#allocation3 + $0x4c] sm:$0xf] %vm264, %v1178
        %1211 = vst.msk [vmem:[#allocation3 + $0x50] sm:$0xf] %vm264, %v1179
        %1212 = vst.msk [vmem:[#allocation3 + $0x54] sm:$0xf] %vm264, %v1180
        %1213 = vst.msk [vmem:[#allocation3 + $0x58] sm:$0xf] %vm264, %v1181
        %1214 = vst.msk [vmem:[#allocation3 + $0x5c] sm:$0xf] %vm264, %v1182
        %1215 = vst.msk [vmem:[#allocation3 + $0x60] sm:$0xf] %vm264, %v1183
        %1216 = vst.msk [vmem:[#allocation3 + $0x64] sm:$0xf] %vm264, %v1184
        %1217 = vst.msk [vmem:[#allocation3 + $0x68] sm:$0xf] %vm264, %v1185
        %1218 = vst.msk [vmem:[#allocation3 + $0x6c] sm:$0xf] %vm264, %v1186
        %1219 = vst.msk [vmem:[#allocation3 + $0x70] sm:$0xf] %vm264, %v1187
        %1220 = vst.msk [vmem:[#allocation3 + $0x74] sm:$0xf] %vm264, %v1188
        %1221 = vst.msk [vmem:[#allocation3 + $0x78] sm:$0xf] %vm264, %v1189
        %1222 = vst.msk [vmem:[#allocation3 + $0x7c] sm:$0xf] %vm264, %v1190
        %vm1255 = vcmask 1040384
        %vm1256 = vcmask 1044484
        %vm1257 = vmor %vm1255, %vm1256
        %v1258 = vrot.slane %v1159, 7
        %v1259 = vrot.slane %v1258, 4
        %v1260 = vrot.slane %v1160, 7
        %v1261 = vsel %vm1257, %v1259, %v1260
        %v1262 = vrot.slane %v1260, 4
        %v1263 = vrot.slane %v1161, 7
        %v1264 = vrot.slane %v1263, 4
        %v1265 = vrot.slane %v1162, 7
        %v1266 = vsel %vm1257, %v1264, %v1265
        %v1267 = vrot.slane %v1265, 4
        %v1268 = vrot.slane %v1163, 7
        %v1269 = vrot.slane %v1268, 4
        %v1270 = vrot.slane %v1164, 7
        %v1271 = vsel %vm1257, %v1269, %v1270
        %v1272 = vrot.slane %v1270, 4
        %v1273 = vrot.slane %v1165, 7
        %v1274 = vrot.slane %v1273, 4
        %v1275 = vrot.slane %v1166, 7
        %v1276 = vsel %vm1257, %v1274, %v1275
        %v1277 = vrot.slane %v1275, 4
        %v1278 = vrot.slane %v1167, 7
        %v1279 = vrot.slane %v1278, 4
        %v1280 = vrot.slane %v1168, 7
        %v1281 = vsel %vm1257, %v1279, %v1280
        %v1282 = vrot.slane %v1280, 4
        %v1283 = vrot.slane %v1169, 7
        %v1284 = vrot.slane %v1283, 4
        %v1285 = vrot.slane %v1170, 7
        %v1286 = vsel %vm1257, %v1284, %v1285
        %v1287 = vrot.slane %v1285, 4
        %v1288 = vrot.slane %v1171, 7
        %v1289 = vrot.slane %v1288, 4
        %v1290 = vrot.slane %v1172, 7
        %v1291 = vsel %vm1257, %v1289, %v1290
        %v1292 = vrot.slane %v1290, 4
        %v1293 = vrot.slane %v1173, 7
        %v1294 = vrot.slane %v1293, 4
        %v1295 = vrot.slane %v1174, 7
        %v1296 = vsel %vm1257, %v1294, %v1295
        %v1297 = vrot.slane %v1295, 4
        %v1298 = vrot.slane %v1175, 7
        %v1299 = vrot.slane %v1298, 4
        %v1300 = vrot.slane %v1176, 7
        %v1301 = vsel %vm1257, %v1299, %v1300
        %v1302 = vrot.slane %v1300, 4
        %v1303 = vrot.slane %v1177, 7
        %v1304 = vrot.slane %v1303, 4
        %v1305 = vrot.slane %v1178, 7
        %v1306 = vsel %vm1257, %v1304, %v1305
        %v1307 = vrot.slane %v1305, 4
        %v1308 = vrot.slane %v1179, 7
        %v1309 = vrot.slane %v1308, 4
        %v1310 = vrot.slane %v1180, 7
        %v1311 = vsel %vm1257, %v1309, %v1310
        %v1312 = vrot.slane %v1310, 4
        %v1313 = vrot.slane %v1181, 7
        %v1314 = vrot.slane %v1313, 4
        %v1315 = vrot.slane %v1182, 7
        %v1316 = vsel %vm1257, %v1314, %v1315
        %v1317 = vrot.slane %v1315, 4
        %v1318 = vrot.slane %v1183, 7
        %v1319 = vrot.slane %v1318, 4
        %v1320 = vrot.slane %v1184, 7
        %v1321 = vsel %vm1257, %v1319, %v1320
        %v1322 = vrot.slane %v1320, 4
        %v1323 = vrot.slane %v1185, 7
        %v1324 = vrot.slane %v1323, 4
        %v1325 = vrot.slane %v1186, 7
        %v1326 = vsel %vm1257, %v1324, %v1325
        %v1327 = vrot.slane %v1325, 4
        %v1328 = vrot.slane %v1187, 7
        %v1329 = vrot.slane %v1328, 4
        %v1330 = vrot.slane %v1188, 7
        %v1331 = vsel %vm1257, %v1329, %v1330
        %v1332 = vrot.slane %v1330, 4
        %v1333 = vrot.slane %v1189, 7
        %v1334 = vrot.slane %v1333, 4
        %v1335 = vrot.slane %v1190, 7
        %v1336 = vsel %vm1257, %v1334, %v1335
        %v1337 = vrot.slane %v1335, 4
        %s1386 = scalar_lea.vmem [#allocation2], 24
        %vm1387 = vcmask 60417
        %1388 = vst.msk [vmem:[%s1386] sm:$0xe] %vm1387, %v1258
        %1389 = vst.msk [vmem:[%s1386 + $0x4] sm:$0xf] %vm264, %v1261
        %1390 = vst.msk [vmem:[%s1386 + $0x8] sm:$0x1] %vm279, %v1262
        %1391 = vst.msk [vmem:[%s1386 + $0xc] sm:$0xe] %vm1387, %v1263
        %1392 = vst.msk [vmem:[%s1386 + $0x10] sm:$0xf] %vm264, %v1266
        %1393 = vst.msk [vmem:[%s1386 + $0x14] sm:$0x1] %vm279, %v1267
        %1394 = vst.msk [vmem:[%s1386 + $0x18] sm:$0xe] %vm1387, %v1268
        %1395 = vst.msk [vmem:[%s1386 + $0x1c] sm:$0xf] %vm264, %v1271
        %1396 = vst.msk [vmem:[%s1386 + $0x20] sm:$0x1] %vm279, %v1272
        %1397 = vst.msk [vmem:[%s1386 + $0x24] sm:$0xe] %vm1387, %v1273
        %1398 = vst.msk [vmem:[%s1386 + $0x28] sm:$0xf] %vm264, %v1276
        %1399 = vst.msk [vmem:[%s1386 + $0x2c] sm:$0x1] %vm279, %v1277
        %1400 = vst.msk [vmem:[%s1386 + $0x30] sm:$0xe] %vm1387, %v1278
        %1401 = vst.msk [vmem:[%s1386 + $0x34] sm:$0xf] %vm264, %v1281
        %1402 = vst.msk [vmem:[%s1386 + $0x38] sm:$0x1] %vm279, %v1282
        %1403 = vst.msk [vmem:[%s1386 + $0x3c] sm:$0xe] %vm1387, %v1283
        %1404 = vst.msk [vmem:[%s1386 + $0x40] sm:$0xf] %vm264, %v1286
        %1405 = vst.msk [vmem:[%s1386 + $0x44] sm:$0x1] %vm279, %v1287
        %1406 = vst.msk [vmem:[%s1386 + $0x48] sm:$0xe] %vm1387, %v1288
        %1407 = vst.msk [vmem:[%s1386 + $0x4c] sm:$0xf] %vm264, %v1291
        %1408 = vst.msk [vmem:[%s1386 + $0x50] sm:$0x1] %vm279, %v1292
        %1409 = vst.msk [vmem:[%s1386 + $0x54] sm:$0xe] %vm1387, %v1293
        %1410 = vst.msk [vmem:[%s1386 + $0x58] sm:$0xf] %vm264, %v1296
        %1411 = vst.msk [vmem:[%s1386 + $0x5c] sm:$0x1] %vm279, %v1297
        %1412 = vst.msk [vmem:[%s1386 + $0x60] sm:$0xe] %vm1387, %v1298
        %1413 = vst.msk [vmem:[%s1386 + $0x64] sm:$0xf] %vm264, %v1301
        %1414 = vst.msk [vmem:[%s1386 + $0x68] sm:$0x1] %vm279, %v1302
        %1415 = vst.msk [vmem:[%s1386 + $0x6c] sm:$0xe] %vm1387, %v1303
        %1416 = vst.msk [vmem:[%s1386 + $0x70] sm:$0xf] %vm264, %v1306
        %1417 = vst.msk [vmem:[%s1386 + $0x74] sm:$0x1] %vm279, %v1307
        %1418 = vst.msk [vmem:[%s1386 + $0x78] sm:$0xe] %vm1387, %v1308
        %1419 = vst.msk [vmem:[%s1386 + $0x7c] sm:$0xf] %vm264, %v1311
        %1420 = vst.msk [vmem:[%s1386 + $0x80] sm:$0x1] %vm279, %v1312
        %1421 = vst.msk [vmem:[%s1386 + $0x84] sm:$0xe] %vm1387, %v1313
        %1422 = vst.msk [vmem:[%s1386 + $0x88] sm:$0xf] %vm264, %v1316
        %1423 = vst.msk [vmem:[%s1386 + $0x8c] sm:$0x1] %vm279, %v1317
        %1424 = vst.msk [vmem:[%s1386 + $0x90] sm:$0xe] %vm1387, %v1318
        %1425 = vst.msk [vmem:[%s1386 + $0x94] sm:$0xf] %vm264, %v1321
        %1426 = vst.msk [vmem:[%s1386 + $0x98] sm:$0x1] %vm279, %v1322
        %1427 = vst.msk [vmem:[%s1386 + $0x9c] sm:$0xe] %vm1387, %v1323
        %1428 = vst.msk [vmem:[%s1386 + $0xa0] sm:$0xf] %vm264, %v1326
        %1429 = vst.msk [vmem:[%s1386 + $0xa4] sm:$0x1] %vm279, %v1327
        %1430 = vst.msk [vmem:[%s1386 + $0xa8] sm:$0xe] %vm1387, %v1328
        %1431 = vst.msk [vmem:[%s1386 + $0xac] sm:$0xf] %vm264, %v1331
        %1432 = vst.msk [vmem:[%s1386 + $0xb0] sm:$0x1] %vm279, %v1332
        %1433 = vst.msk [vmem:[%s1386 + $0xb4] sm:$0xe] %vm1387, %v1333
        %1434 = vst.msk [vmem:[%s1386 + $0xb8] sm:$0xf] %vm264, %v1336
        %1435 = vst.msk [vmem:[%s1386 + $0xbc] sm:$0x1] %vm279, %v1337
        %v1436 = vld [vmem:[#allocation2] sm:$0xf]
        %v1437 = vld [vmem:[#allocation2 + $0x4] sm:$0xf]
        %v1438 = vld [vmem:[#allocation2 + $0x8] sm:$0x3]
        %v1439 = vld [vmem:[#allocation2 + $0xc] sm:$0xf]
        %v1440 = vld [vmem:[#allocation2 + $0x10] sm:$0xf]
        %v1441 = vld [vmem:[#allocation2 + $0x14] sm:$0x3]
        %v1442 = vld [vmem:[#allocation2 + $0x18] sm:$0xf]
        %v1443 = vld [vmem:[#allocation2 + $0x1c] sm:$0xf]
        %v1444 = vld [vmem:[#allocation2 + $0x20] sm:$0x3]
        %v1445 = vld [vmem:[#allocation2 + $0x24] sm:$0xf]
        %v1446 = vld [vmem:[#allocation2 + $0x28] sm:$0xf]
        %v1447 = vld [vmem:[#allocation2 + $0x2c] sm:$0x3]
        %v1448 = vld [vmem:[#allocation2 + $0x30] sm:$0xf]
        %v1449 = vld [vmem:[#allocation2 + $0x34] sm:$0xf]
        %v1450 = vld [vmem:[#allocation2 + $0x38] sm:$0x3]
        %v1451 = vld [vmem:[#allocation2 + $0x3c] sm:$0xf]
        %v1452 = vld [vmem:[#allocation2 + $0x40] sm:$0xf]
        %v1453 = vld [vmem:[#allocation2 + $0x44] sm:$0x3]
        %v1454 = vld [vmem:[#allocation2 + $0x48] sm:$0xf]
        %v1455 = vld [vmem:[#allocation2 + $0x4c] sm:$0xf]
        %v1456 = vld [vmem:[#allocation2 + $0x50] sm:$0x3]
        %v1457 = vld [vmem:[#allocation2 + $0x54] sm:$0xf]
        %v1458 = vld [vmem:[#allocation2 + $0x58] sm:$0xf]
        %v1459 = vld [vmem:[#allocation2 + $0x5c] sm:$0x3]
        %v1460 = vld [vmem:[#allocation2 + $0x60] sm:$0xf]
        %v1461 = vld [vmem:[#allocation2 + $0x64] sm:$0xf]
        %v1462 = vld [vmem:[#allocation2 + $0x68] sm:$0x3]
        %v1463 = vld [vmem:[#allocation2 + $0x6c] sm:$0xf]
        %v1464 = vld [vmem:[#allocation2 + $0x70] sm:$0xf]
        %v1465 = vld [vmem:[#allocation2 + $0x74] sm:$0x3]
        %v1466 = vld [vmem:[#allocation2 + $0x78] sm:$0xf]
        %v1467 = vld [vmem:[#allocation2 + $0x7c] sm:$0xf]
        %v1468 = vld [vmem:[#allocation2 + $0x80] sm:$0x3]
        %v1469 = vld [vmem:[#allocation2 + $0x84] sm:$0xf]
        %v1470 = vld [vmem:[#allocation2 + $0x88] sm:$0xf]
        %v1471 = vld [vmem:[#allocation2 + $0x8c] sm:$0x3]
        %v1472 = vld [vmem:[#allocation2 + $0x90] sm:$0xf]
        %v1473 = vld [vmem:[#allocation2 + $0x94] sm:$0xf]
        %v1474 = vld [vmem:[#allocation2 + $0x98] sm:$0x3]
        %v1475 = vld [vmem:[#allocation2 + $0x9c] sm:$0xf]
        %v1476 = vld [vmem:[#allocation2 + $0xa0] sm:$0xf]
        %v1477 = vld [vmem:[#allocation2 + $0xa4] sm:$0x3]
        %v1478 = vld [vmem:[#allocation2 + $0xa8] sm:$0xf]
        %v1479 = vld [vmem:[#allocation2 + $0xac] sm:$0xf]
        %v1480 = vld [vmem:[#allocation2 + $0xb0] sm:$0x3]
        %v1481 = vld [vmem:[#allocation2 + $0xb4] sm:$0xf]
        %v1482 = vld [vmem:[#allocation2 + $0xb8] sm:$0xf]
        %v1483 = vld [vmem:[#allocation2 + $0xbc] sm:$0x3]
        %s1484 = scalar_lea.vmem [#allocation2], 12
        %v1485 = vld [vmem:[%s1484] sm:$0xf]
        %v1486 = vld [vmem:[%s1484 + $0x4] sm:$0xf]
        %v1487 = vld [vmem:[%s1484 + $0x8] sm:$0x3]
        %v1488 = vld [vmem:[%s1484 + $0xc] sm:$0xf]
        %v1489 = vld [vmem:[%s1484 + $0x10] sm:$0xf]
        %v1490 = vld [vmem:[%s1484 + $0x14] sm:$0x3]
        %v1491 = vld [vmem:[%s1484 + $0x18] sm:$0xf]
        %v1492 = vld [vmem:[%s1484 + $0x1c] sm:$0xf]
        %v1493 = vld [vmem:[%s1484 + $0x20] sm:$0x3]
        %v1494 = vld [vmem:[%s1484 + $0x24] sm:$0xf]
        %v1495 = vld [vmem:[%s1484 + $0x28] sm:$0xf]
        %v1496 = vld [vmem:[%s1484 + $0x2c] sm:$0x3]
        %v1497 = vld [vmem:[%s1484 + $0x30] sm:$0xf]
        %v1498 = vld [vmem:[%s1484 + $0x34] sm:$0xf]
        %v1499 = vld [vmem:[%s1484 + $0x38] sm:$0x3]
        %v1500 = vld [vmem:[%s1484 + $0x3c] sm:$0xf]
        %v1501 = vld [vmem:[%s1484 + $0x40] sm:$0xf]
        %v1502 = vld [vmem:[%s1484 + $0x44] sm:$0x3]
        %v1503 = vld [vmem:[%s1484 + $0x48] sm:$0xf]
        %v1504 = vld [vmem:[%s1484 + $0x4c] sm:$0xf]
        %v1505 = vld [vmem:[%s1484 + $0x50] sm:$0x3]
        %v1506 = vld [vmem:[%s1484 + $0x54] sm:$0xf]
        %v1507 = vld [vmem:[%s1484 + $0x58] sm:$0xf]
        %v1508 = vld [vmem:[%s1484 + $0x5c] sm:$0x3]
        %v1509 = vld [vmem:[%s1484 + $0x60] sm:$0xf]
        %v1510 = vld [vmem:[%s1484 + $0x64] sm:$0xf]
        %v1511 = vld [vmem:[%s1484 + $0x68] sm:$0x3]
        %v1512 = vld [vmem:[%s1484 + $0x6c] sm:$0xf]
        %v1513 = vld [vmem:[%s1484 + $0x70] sm:$0xf]
        %v1514 = vld [vmem:[%s1484 + $0x74] sm:$0x3]
        %v1515 = vld [vmem:[%s1484 + $0x78] sm:$0xf]
        %v1516 = vld [vmem:[%s1484 + $0x7c] sm:$0xf]
        %v1517 = vld [vmem:[%s1484 + $0x80] sm:$0x3]
        %v1518 = vld [vmem:[%s1484 + $0x84] sm:$0xf]
        %v1519 = vld [vmem:[%s1484 + $0x88] sm:$0xf]
        %v1520 = vld [vmem:[%s1484 + $0x8c] sm:$0x3]
        %v1521 = vld [vmem:[%s1484 + $0x90] sm:$0xf]
        %v1522 = vld [vmem:[%s1484 + $0x94] sm:$0xf]
        %v1523 = vld [vmem:[%s1484 + $0x98] sm:$0x3]
        %v1524 = vld [vmem:[%s1484 + $0x9c] sm:$0xf]
        %v1525 = vld [vmem:[%s1484 + $0xa0] sm:$0xf]
        %v1526 = vld [vmem:[%s1484 + $0xa4] sm:$0x3]
        %v1527 = vld [vmem:[%s1484 + $0xa8] sm:$0xf]
        %v1528 = vld [vmem:[%s1484 + $0xac] sm:$0xf]
        %v1529 = vld [vmem:[%s1484 + $0xb0] sm:$0x3]
        %v1530 = vld [vmem:[%s1484 + $0xb4] sm:$0xf]
        %v1531 = vld [vmem:[%s1484 + $0xb8] sm:$0xf]
        %v1532 = vld [vmem:[%s1484 + $0xbc] sm:$0x3]
        %v1533 = vunpack.c.l.bf16 %v1436
        %v1534 = vunpack.c.l.bf16 %v1437
        %v1535 = vunpack.c.l.bf16 %v1438
        %v1536 = vunpack.c.l.bf16 %v1439
        %v1537 = vunpack.c.l.bf16 %v1440
        %v1538 = vunpack.c.l.bf16 %v1441
        %v1539 = vunpack.c.l.bf16 %v1442
        %v1540 = vunpack.c.l.bf16 %v1443
        %v1541 = vunpack.c.l.bf16 %v1444
        %v1542 = vunpack.c.l.bf16 %v1445
        %v1543 = vunpack.c.l.bf16 %v1446
        %v1544 = vunpack.c.l.bf16 %v1447
        %v1545 = vunpack.c.l.bf16 %v1448
        %v1546 = vunpack.c.l.bf16 %v1449
        %v1547 = vunpack.c.l.bf16 %v1450
        %v1548 = vunpack.c.l.bf16 %v1451
        %v1549 = vunpack.c.l.bf16 %v1452
        %v1550 = vunpack.c.l.bf16 %v1453
        %v1551 = vunpack.c.l.bf16 %v1454
        %v1552 = vunpack.c.l.bf16 %v1455
        %v1553 = vunpack.c.l.bf16 %v1456
        %v1554 = vunpack.c.l.bf16 %v1457
        %v1555 = vunpack.c.l.bf16 %v1458
        %v1556 = vunpack.c.l.bf16 %v1459
        %v1557 = vunpack.c.l.bf16 %v1460
        %v1558 = vunpack.c.l.bf16 %v1461
        %v1559 = vunpack.c.l.bf16 %v1462
        %v1560 = vunpack.c.l.bf16 %v1463
        %v1561 = vunpack.c.l.bf16 %v1464
        %v1562 = vunpack.c.l.bf16 %v1465
        %v1563 = vunpack.c.l.bf16 %v1466
        %v1564 = vunpack.c.l.bf16 %v1467
        %v1565 = vunpack.c.l.bf16 %v1468
        %v1566 = vunpack.c.l.bf16 %v1469
        %v1567 = vunpack.c.l.bf16 %v1470
        %v1568 = vunpack.c.l.bf16 %v1471
        %v1569 = vunpack.c.l.bf16 %v1472
        %v1570 = vunpack.c.l.bf16 %v1473
        %v1571 = vunpack.c.l.bf16 %v1474
        %v1572 = vunpack.c.l.bf16 %v1475
        %v1573 = vunpack.c.l.bf16 %v1476
        %v1574 = vunpack.c.l.bf16 %v1477
        %v1575 = vunpack.c.l.bf16 %v1478
        %v1576 = vunpack.c.l.bf16 %v1479
        %v1577 = vunpack.c.l.bf16 %v1480
        %v1578 = vunpack.c.l.bf16 %v1481
        %v1579 = vunpack.c.l.bf16 %v1482
        %v1580 = vunpack.c.l.bf16 %v1483
        %v1581 = vunpack.c.l.bf16 %v1485
        %v1582 = vunpack.c.l.bf16 %v1486
        %v1583 = vunpack.c.l.bf16 %v1487
        %v1584 = vunpack.c.l.bf16 %v1488
        %v1585 = vunpack.c.l.bf16 %v1489
        %v1586 = vunpack.c.l.bf16 %v1490
        %v1587 = vunpack.c.l.bf16 %v1491
        %v1588 = vunpack.c.l.bf16 %v1492
        %v1589 = vunpack.c.l.bf16 %v1493
        %v1590 = vunpack.c.l.bf16 %v1494
        %v1591 = vunpack.c.l.bf16 %v1495
        %v1592 = vunpack.c.l.bf16 %v1496
        %v1593 = vunpack.c.l.bf16 %v1497
        %v1594 = vunpack.c.l.bf16 %v1498
        %v1595 = vunpack.c.l.bf16 %v1499
        %v1596 = vunpack.c.l.bf16 %v1500
        %v1597 = vunpack.c.l.bf16 %v1501
        %v1598 = vunpack.c.l.bf16 %v1502
        %v1599 = vunpack.c.l.bf16 %v1503
        %v1600 = vunpack.c.l.bf16 %v1504
        %v1601 = vunpack.c.l.bf16 %v1505
        %v1602 = vunpack.c.l.bf16 %v1506
        %v1603 = vunpack.c.l.bf16 %v1507
        %v1604 = vunpack.c.l.bf16 %v1508
        %v1605 = vunpack.c.l.bf16 %v1509
        %v1606 = vunpack.c.l.bf16 %v1510
        %v1607 = vunpack.c.l.bf16 %v1511
        %v1608 = vunpack.c.l.bf16 %v1512
        %v1609 = vunpack.c.l.bf16 %v1513
        %v1610 = vunpack.c.l.bf16 %v1514
        %v1611 = vunpack.c.l.bf16 %v1515
        %v1612 = vunpack.c.l.bf16 %v1516
        %v1613 = vunpack.c.l.bf16 %v1517
        %v1614 = vunpack.c.l.bf16 %v1518
        %v1615 = vunpack.c.l.bf16 %v1519
        %v1616 = vunpack.c.l.bf16 %v1520
        %v1617 = vunpack.c.l.bf16 %v1521
        %v1618 = vunpack.c.l.bf16 %v1522
        %v1619 = vunpack.c.l.bf16 %v1523
        %v1620 = vunpack.c.l.bf16 %v1524
        %v1621 = vunpack.c.l.bf16 %v1525
        %v1622 = vunpack.c.l.bf16 %v1526
        %v1623 = vunpack.c.l.bf16 %v1527
        %v1624 = vunpack.c.l.bf16 %v1528
        %v1625 = vunpack.c.l.bf16 %v1529
        %v1626 = vunpack.c.l.bf16 %v1530
        %v1627 = vunpack.c.l.bf16 %v1531
        %v1628 = vunpack.c.l.bf16 %v1532
        %v1629 = vmax.f32 %v1533, %v1581
        %v1630 = vmax.f32 %v1534, %v1582
        %v1631 = vmax.f32 %v1535, %v1583
        %v1632 = vmax.f32 %v1536, %v1584
        %v1633 = vmax.f32 %v1537, %v1585
        %v1634 = vmax.f32 %v1538, %v1586
        %v1635 = vmax.f32 %v1539, %v1587
        %v1636 = vmax.f32 %v1540, %v1588
        %v1637 = vmax.f32 %v1541, %v1589
        %v1638 = vmax.f32 %v1542, %v1590
        %v1639 = vmax.f32 %v1543, %v1591
        %v1640 = vmax.f32 %v1544, %v1592
        %v1641 = vmax.f32 %v1545, %v1593
        %v1642 = vmax.f32 %v1546, %v1594
        %v1643 = vmax.f32 %v1547, %v1595
        %v1644 = vmax.f32 %v1548, %v1596
        %v1645 = vmax.f32 %v1549, %v1597
        %v1646 = vmax.f32 %v1550, %v1598
        %v1647 = vmax.f32 %v1551, %v1599
        %v1648 = vmax.f32 %v1552, %v1600
        %v1649 = vmax.f32 %v1553, %v1601
        %v1650 = vmax.f32 %v1554, %v1602
        %v1651 = vmax.f32 %v1555, %v1603
        %v1652 = vmax.f32 %v1556, %v1604
        %v1653 = vmax.f32 %v1557, %v1605
        %v1654 = vmax.f32 %v1558, %v1606
        %v1655 = vmax.f32 %v1559, %v1607
        %v1656 = vmax.f32 %v1560, %v1608
        %v1657 = vmax.f32 %v1561, %v1609
        %v1658 = vmax.f32 %v1562, %v1610
        %v1659 = vmax.f32 %v1563, %v1611
        %v1660 = vmax.f32 %v1564, %v1612
        %v1661 = vmax.f32 %v1565, %v1613
        %v1662 = vmax.f32 %v1566, %v1614
        %v1663 = vmax.f32 %v1567, %v1615
        %v1664 = vmax.f32 %v1568, %v1616
        %v1665 = vmax.f32 %v1569, %v1617
        %v1666 = vmax.f32 %v1570, %v1618
        %v1667 = vmax.f32 %v1571, %v1619
        %v1668 = vmax.f32 %v1572, %v1620
        %v1669 = vmax.f32 %v1573, %v1621
        %v1670 = vmax.f32 %v1574, %v1622
        %v1671 = vmax.f32 %v1575, %v1623
        %v1672 = vmax.f32 %v1576, %v1624
        %v1673 = vmax.f32 %v1577, %v1625
        %v1674 = vmax.f32 %v1578, %v1626
        %v1675 = vmax.f32 %v1579, %v1627
        %v1676 = vmax.f32 %v1580, %v1628
        %v1677 = vpack.c.bf16 %v1629, %v1629
        %v1678 = vpack.c.bf16 %v1630, %v1630
        %v1679 = vpack.c.bf16 %v1631, %v1631
        %v1680 = vpack.c.bf16 %v1632, %v1632
        %v1681 = vpack.c.bf16 %v1633, %v1633
        %v1682 = vpack.c.bf16 %v1634, %v1634
        %v1683 = vpack.c.bf16 %v1635, %v1635
        %v1684 = vpack.c.bf16 %v1636, %v1636
        %v1685 = vpack.c.bf16 %v1637, %v1637
        %v1686 = vpack.c.bf16 %v1638, %v1638
        %v1687 = vpack.c.bf16 %v1639, %v1639
        %v1688 = vpack.c.bf16 %v1640, %v1640
        %v1689 = vpack.c.bf16 %v1641, %v1641
        %v1690 = vpack.c.bf16 %v1642, %v1642
        %v1691 = vpack.c.bf16 %v1643, %v1643
        %v1692 = vpack.c.bf16 %v1644, %v1644
        %v1693 = vpack.c.bf16 %v1645, %v1645
        %v1694 = vpack.c.bf16 %v1646, %v1646
        %v1695 = vpack.c.bf16 %v1647, %v1647
        %v1696 = vpack.c.bf16 %v1648, %v1648
        %v1697 = vpack.c.bf16 %v1649, %v1649
        %v1698 = vpack.c.bf16 %v1650, %v1650
        %v1699 = vpack.c.bf16 %v1651, %v1651
        %v1700 = vpack.c.bf16 %v1652, %v1652
        %v1701 = vpack.c.bf16 %v1653, %v1653
        %v1702 = vpack.c.bf16 %v1654, %v1654
        %v1703 = vpack.c.bf16 %v1655, %v1655
        %v1704 = vpack.c.bf16 %v1656, %v1656
        %v1705 = vpack.c.bf16 %v1657, %v1657
        %v1706 = vpack.c.bf16 %v1658, %v1658
        %v1707 = vpack.c.bf16 %v1659, %v1659
        %v1708 = vpack.c.bf16 %v1660, %v1660
        %v1709 = vpack.c.bf16 %v1661, %v1661
        %v1710 = vpack.c.bf16 %v1662, %v1662
        %v1711 = vpack.c.bf16 %v1663, %v1663
        %v1712 = vpack.c.bf16 %v1664, %v1664
        %v1713 = vpack.c.bf16 %v1665, %v1665
        %v1714 = vpack.c.bf16 %v1666, %v1666
        %v1715 = vpack.c.bf16 %v1667, %v1667
        %v1716 = vpack.c.bf16 %v1668, %v1668
        %v1717 = vpack.c.bf16 %v1669, %v1669
        %v1718 = vpack.c.bf16 %v1670, %v1670
        %v1719 = vpack.c.bf16 %v1671, %v1671
        %v1720 = vpack.c.bf16 %v1672, %v1672
        %v1721 = vpack.c.bf16 %v1673, %v1673
        %v1722 = vpack.c.bf16 %v1674, %v1674
        %v1723 = vpack.c.bf16 %v1675, %v1675
        %v1724 = vpack.c.bf16 %v1676, %v1676
        %v1725 = vld [vmem:[%s1386] sm:$0xf]
        %v1726 = vld [vmem:[%s1386 + $0x4] sm:$0xf]
        %v1727 = vld [vmem:[%s1386 + $0x8] sm:$0x3]
        %v1728 = vld [vmem:[%s1386 + $0xc] sm:$0xf]
        %v1729 = vld [vmem:[%s1386 + $0x10] sm:$0xf]
        %v1730 = vld [vmem:[%s1386 + $0x14] sm:$0x3]
        %v1731 = vld [vmem:[%s1386 + $0x18] sm:$0xf]
        %v1732 = vld [vmem:[%s1386 + $0x1c] sm:$0xf]
        %v1733 = vld [vmem:[%s1386 + $0x20] sm:$0x3]
        %v1734 = vld [vmem:[%s1386 + $0x24] sm:$0xf]
        %v1735 = vld [vmem:[%s1386 + $0x28] sm:$0xf]
        %v1736 = vld [vmem:[%s1386 + $0x2c] sm:$0x3]
        %v1737 = vld [vmem:[%s1386 + $0x30] sm:$0xf]
        %v1738 = vld [vmem:[%s1386 + $0x34] sm:$0xf]
        %v1739 = vld [vmem:[%s1386 + $0x38] sm:$0x3]
        %v1740 = vld [vmem:[%s1386 + $0x3c] sm:$0xf]
        %v1741 = vld [vmem:[%s1386 + $0x40] sm:$0xf]
        %v1742 = vld [vmem:[%s1386 + $0x44] sm:$0x3]
        %v1743 = vld [vmem:[%s1386 + $0x48] sm:$0xf]
        %v1744 = vld [vmem:[%s1386 + $0x4c] sm:$0xf]
        %v1745 = vld [vmem:[%s1386 + $0x50] sm:$0x3]
        %v1746 = vld [vmem:[%s1386 + $0x54] sm:$0xf]
        %v1747 = vld [vmem:[%s1386 + $0x58] sm:$0xf]
        %v1748 = vld [vmem:[%s1386 + $0x5c] sm:$0x3]
        %v1749 = vld [vmem:[%s1386 + $0x60] sm:$0xf]
        %v1750 = vld [vmem:[%s1386 + $0x64] sm:$0xf]
        %v1751 = vld [vmem:[%s1386 + $0x68] sm:$0x3]
        %v1752 = vld [vmem:[%s1386 + $0x6c] sm:$0xf]
        %v1753 = vld [vmem:[%s1386 + $0x70] sm:$0xf]
        %v1754 = vld [vmem:[%s1386 + $0x74] sm:$0x3]
        %v1755 = vld [vmem:[%s1386 + $0x78] sm:$0xf]
        %v1756 = vld [vmem:[%s1386 + $0x7c] sm:$0xf]
        %v1757 = vld [vmem:[%s1386 + $0x80] sm:$0x3]
        %v1758 = vld [vmem:[%s1386 + $0x84] sm:$0xf]
        %v1759 = vld [vmem:[%s1386 + $0x88] sm:$0xf]
        %v1760 = vld [vmem:[%s1386 + $0x8c] sm:$0x3]
        %v1761 = vld [vmem:[%s1386 + $0x90] sm:$0xf]
        %v1762 = vld [vmem:[%s1386 + $0x94] sm:$0xf]
        %v1763 = vld [vmem:[%s1386 + $0x98] sm:$0x3]
        %v1764 = vld [vmem:[%s1386 + $0x9c] sm:$0xf]
        %v1765 = vld [vmem:[%s1386 + $0xa0] sm:$0xf]
        %v1766 = vld [vmem:[%s1386 + $0xa4] sm:$0x3]
        %v1767 = vld [vmem:[%s1386 + $0xa8] sm:$0xf]
        %v1768 = vld [vmem:[%s1386 + $0xac] sm:$0xf]
        %v1769 = vld [vmem:[%s1386 + $0xb0] sm:$0x3]
        %v1770 = vld [vmem:[%s1386 + $0xb4] sm:$0xf]
        %v1771 = vld [vmem:[%s1386 + $0xb8] sm:$0xf]
        %v1772 = vld [vmem:[%s1386 + $0xbc] sm:$0x3]
        %v1773 = vunpack.c.l.bf16 %v1677
        %v1774 = vunpack.c.l.bf16 %v1678
        %v1775 = vunpack.c.l.bf16 %v1679
        %v1776 = vunpack.c.l.bf16 %v1680
        %v1777 = vunpack.c.l.bf16 %v1681
        %v1778 = vunpack.c.l.bf16 %v1682
        %v1779 = vunpack.c.l.bf16 %v1683
        %v1780 = vunpack.c.l.bf16 %v1684
        %v1781 = vunpack.c.l.bf16 %v1685
        %v1782 = vunpack.c.l.bf16 %v1686
        %v1783 = vunpack.c.l.bf16 %v1687
        %v1784 = vunpack.c.l.bf16 %v1688
        %v1785 = vunpack.c.l.bf16 %v1689
        %v1786 = vunpack.c.l.bf16 %v1690
        %v1787 = vunpack.c.l.bf16 %v1691
        %v1788 = vunpack.c.l.bf16 %v1692
        %v1789 = vunpack.c.l.bf16 %v1693
        %v1790 = vunpack.c.l.bf16 %v1694
        %v1791 = vunpack.c.l.bf16 %v1695
        %v1792 = vunpack.c.l.bf16 %v1696
        %v1793 = vunpack.c.l.bf16 %v1697
        %v1794 = vunpack.c.l.bf16 %v1698
        %v1795 = vunpack.c.l.bf16 %v1699
        %v1796 = vunpack.c.l.bf16 %v1700
        %v1797 = vunpack.c.l.bf16 %v1701
        %v1798 = vunpack.c.l.bf16 %v1702
        %v1799 = vunpack.c.l.bf16 %v1703
        %v1800 = vunpack.c.l.bf16 %v1704
        %v1801 = vunpack.c.l.bf16 %v1705
        %v1802 = vunpack.c.l.bf16 %v1706
        %v1803 = vunpack.c.l.bf16 %v1707
        %v1804 = vunpack.c.l.bf16 %v1708
        %v1805 = vunpack.c.l.bf16 %v1709
        %v1806 = vunpack.c.l.bf16 %v1710
        %v1807 = vunpack.c.l.bf16 %v1711
        %v1808 = vunpack.c.l.bf16 %v1712
        %v1809 = vunpack.c.l.bf16 %v1713
        %v1810 = vunpack.c.l.bf16 %v1714
        %v1811 = vunpack.c.l.bf16 %v1715
        %v1812 = vunpack.c.l.bf16 %v1716
        %v1813 = vunpack.c.l.bf16 %v1717
        %v1814 = vunpack.c.l.bf16 %v1718
        %v1815 = vunpack.c.l.bf16 %v1719
        %v1816 = vunpack.c.l.bf16 %v1720
        %v1817 = vunpack.c.l.bf16 %v1721
        %v1818 = vunpack.c.l.bf16 %v1722
        %v1819 = vunpack.c.l.bf16 %v1723
        %v1820 = vunpack.c.l.bf16 %v1724
        %v1821 = vunpack.c.l.bf16 %v1725
        %v1822 = vunpack.c.l.bf16 %v1726
        %v1823 = vunpack.c.l.bf16 %v1727
        %v1824 = vunpack.c.l.bf16 %v1728
        %v1825 = vunpack.c.l.bf16 %v1729
        %v1826 = vunpack.c.l.bf16 %v1730
        %v1827 = vunpack.c.l.bf16 %v1731
        %v1828 = vunpack.c.l.bf16 %v1732
        %v1829 = vunpack.c.l.bf16 %v1733
        %v1830 = vunpack.c.l.bf16 %v1734
        %v1831 = vunpack.c.l.bf16 %v1735
        %v1832 = vunpack.c.l.bf16 %v1736
        %v1833 = vunpack.c.l.bf16 %v1737
        %v1834 = vunpack.c.l.bf16 %v1738
        %v1835 = vunpack.c.l.bf16 %v1739
        %v1836 = vunpack.c.l.bf16 %v1740
        %v1837 = vunpack.c.l.bf16 %v1741
        %v1838 = vunpack.c.l.bf16 %v1742
        %v1839 = vunpack.c.l.bf16 %v1743
        %v1840 = vunpack.c.l.bf16 %v1744
        %v1841 = vunpack.c.l.bf16 %v1745
        %v1842 = vunpack.c.l.bf16 %v1746
        %v1843 = vunpack.c.l.bf16 %v1747
        %v1844 = vunpack.c.l.bf16 %v1748
        %v1845 = vunpack.c.l.bf16 %v1749
        %v1846 = vunpack.c.l.bf16 %v1750
        %v1847 = vunpack.c.l.bf16 %v1751
        %v1848 = vunpack.c.l.bf16 %v1752
        %v1849 = vunpack.c.l.bf16 %v1753
        %v1850 = vunpack.c.l.bf16 %v1754
        %v1851 = vunpack.c.l.bf16 %v1755
        %v1852 = vunpack.c.l.bf16 %v1756
        %v1853 = vunpack.c.l.bf16 %v1757
        %v1854 = vunpack.c.l.bf16 %v1758
        %v1855 = vunpack.c.l.bf16 %v1759
        %v1856 = vunpack.c.l.bf16 %v1760
        %v1857 = vunpack.c.l.bf16 %v1761
        %v1858 = vunpack.c.l.bf16 %v1762
        %v1859 = vunpack.c.l.bf16 %v1763
        %v1860 = vunpack.c.l.bf16 %v1764
        %v1861 = vunpack.c.l.bf16 %v1765
        %v1862 = vunpack.c.l.bf16 %v1766
        %v1863 = vunpack.c.l.bf16 %v1767
        %v1864 = vunpack.c.l.bf16 %v1768
        %v1865 = vunpack.c.l.bf16 %v1769
        %v1866 = vunpack.c.l.bf16 %v1770
        %v1867 = vunpack.c.l.bf16 %v1771
        %v1868 = vunpack.c.l.bf16 %v1772
        %v1869 = vmax.f32 %v1773, %v1821
        %v1870 = vmax.f32 %v1774, %v1822
        %v1871 = vmax.f32 %v1775, %v1823
        %v1872 = vmax.f32 %v1776, %v1824
        %v1873 = vmax.f32 %v1777, %v1825
        %v1874 = vmax.f32 %v1778, %v1826
        %v1875 = vmax.f32 %v1779, %v1827
        %v1876 = vmax.f32 %v1780, %v1828
        %v1877 = vmax.f32 %v1781, %v1829
        %v1878 = vmax.f32 %v1782, %v1830
        %v1879 = vmax.f32 %v1783, %v1831
        %v1880 = vmax.f32 %v1784, %v1832
        %v1881 = vmax.f32 %v1785, %v1833
        %v1882 = vmax.f32 %v1786, %v1834
        %v1883 = vmax.f32 %v1787, %v1835
        %v1884 = vmax.f32 %v1788, %v1836
        %v1885 = vmax.f32 %v1789, %v1837
        %v1886 = vmax.f32 %v1790, %v1838
        %v1887 = vmax.f32 %v1791, %v1839
        %v1888 = vmax.f32 %v1792, %v1840
        %v1889 = vmax.f32 %v1793, %v1841
        %v1890 = vmax.f32 %v1794, %v1842
        %v1891 = vmax.f32 %v1795, %v1843
        %v1892 = vmax.f32 %v1796, %v1844
        %v1893 = vmax.f32 %v1797, %v1845
        %v1894 = vmax.f32 %v1798, %v1846
        %v1895 = vmax.f32 %v1799, %v1847
        %v1896 = vmax.f32 %v1800, %v1848
        %v1897 = vmax.f32 %v1801, %v1849
        %v1898 = vmax.f32 %v1802, %v1850
        %v1899 = vmax.f32 %v1803, %v1851
        %v1900 = vmax.f32 %v1804, %v1852
        %v1901 = vmax.f32 %v1805, %v1853
        %v1902 = vmax.f32 %v1806, %v1854
        %v1903 = vmax.f32 %v1807, %v1855
        %v1904 = vmax.f32 %v1808, %v1856
        %v1905 = vmax.f32 %v1809, %v1857
        %v1906 = vmax.f32 %v1810, %v1858
        %v1907 = vmax.f32 %v1811, %v1859
        %v1908 = vmax.f32 %v1812, %v1860
        %v1909 = vmax.f32 %v1813, %v1861
        %v1910 = vmax.f32 %v1814, %v1862
        %v1911 = vmax.f32 %v1815, %v1863
        %v1912 = vmax.f32 %v1816, %v1864
        %v1913 = vmax.f32 %v1817, %v1865
        %v1914 = vmax.f32 %v1818, %v1866
        %v1915 = vmax.f32 %v1819, %v1867
        %v1916 = vmax.f32 %v1820, %v1868
        %v1917 = vpack.c.bf16 %v1869, %v1869
        %v1918 = vpack.c.bf16 %v1870, %v1870
        %v1919 = vpack.c.bf16 %v1871, %v1871
        %v1920 = vpack.c.bf16 %v1872, %v1872
        %v1921 = vpack.c.bf16 %v1873, %v1873
        %v1922 = vpack.c.bf16 %v1874, %v1874
        %v1923 = vpack.c.bf16 %v1875, %v1875
        %v1924 = vpack.c.bf16 %v1876, %v1876
        %v1925 = vpack.c.bf16 %v1877, %v1877
        %v1926 = vpack.c.bf16 %v1878, %v1878
        %v1927 = vpack.c.bf16 %v1879, %v1879
        %v1928 = vpack.c.bf16 %v1880, %v1880
        %v1929 = vpack.c.bf16 %v1881, %v1881
        %v1930 = vpack.c.bf16 %v1882, %v1882
        %v1931 = vpack.c.bf16 %v1883, %v1883
        %v1932 = vpack.c.bf16 %v1884, %v1884
        %v1933 = vpack.c.bf16 %v1885, %v1885
        %v1934 = vpack.c.bf16 %v1886, %v1886
        %v1935 = vpack.c.bf16 %v1887, %v1887
        %v1936 = vpack.c.bf16 %v1888, %v1888
        %v1937 = vpack.c.bf16 %v1889, %v1889
        %v1938 = vpack.c.bf16 %v1890, %v1890
        %v1939 = vpack.c.bf16 %v1891, %v1891
        %v1940 = vpack.c.bf16 %v1892, %v1892
        %v1941 = vpack.c.bf16 %v1893, %v1893
        %v1942 = vpack.c.bf16 %v1894, %v1894
        %v1943 = vpack.c.bf16 %v1895, %v1895
        %v1944 = vpack.c.bf16 %v1896, %v1896
        %v1945 = vpack.c.bf16 %v1897, %v1897
        %v1946 = vpack.c.bf16 %v1898, %v1898
        %v1947 = vpack.c.bf16 %v1899, %v1899
        %v1948 = vpack.c.bf16 %v1900, %v1900
        %v1949 = vpack.c.bf16 %v1901, %v1901
        %v1950 = vpack.c.bf16 %v1902, %v1902
        %v1951 = vpack.c.bf16 %v1903, %v1903
        %v1952 = vpack.c.bf16 %v1904, %v1904
        %v1953 = vpack.c.bf16 %v1905, %v1905
        %v1954 = vpack.c.bf16 %v1906, %v1906
        %v1955 = vpack.c.bf16 %v1907, %v1907
        %v1956 = vpack.c.bf16 %v1908, %v1908
        %v1957 = vpack.c.bf16 %v1909, %v1909
        %v1958 = vpack.c.bf16 %v1910, %v1910
        %v1959 = vpack.c.bf16 %v1911, %v1911
        %v1960 = vpack.c.bf16 %v1912, %v1912
        %v1961 = vpack.c.bf16 %v1913, %v1913
        %v1962 = vpack.c.bf16 %v1914, %v1914
        %v1963 = vpack.c.bf16 %v1915, %v1915
        %v1964 = vpack.c.bf16 %v1916, %v1916
        %s1965 = scalar_lea.vmem [#allocation2], 36
        %v1966 = vld [vmem:[%s1965] sm:$0xf]
        %v1967 = vld [vmem:[%s1965 + $0x4] sm:$0xf]
        %v1968 = vld [vmem:[%s1965 + $0x8] sm:$0x3]
        %v1969 = vld [vmem:[%s1965 + $0xc] sm:$0xf]
        %v1970 = vld [vmem:[%s1965 + $0x10] sm:$0xf]
        %v1971 = vld [vmem:[%s1965 + $0x14] sm:$0x3]
        %v1972 = vld [vmem:[%s1965 + $0x18] sm:$0xf]
        %v1973 = vld [vmem:[%s1965 + $0x1c] sm:$0xf]
        %v1974 = vld [vmem:[%s1965 + $0x20] sm:$0x3]
        %v1975 = vld [vmem:[%s1965 + $0x24] sm:$0xf]
        %v1976 = vld [vmem:[%s1965 + $0x28] sm:$0xf]
        %v1977 = vld [vmem:[%s1965 + $0x2c] sm:$0x3]
        %v1978 = vld [vmem:[%s1965 + $0x30] sm:$0xf]
        %v1979 = vld [vmem:[%s1965 + $0x34] sm:$0xf]
        %v1980 = vld [vmem:[%s1965 + $0x38] sm:$0x3]
        %v1981 = vld [vmem:[%s1965 + $0x3c] sm:$0xf]
        %v1982 = vld [vmem:[%s1965 + $0x40] sm:$0xf]
        %v1983 = vld [vmem:[%s1965 + $0x44] sm:$0x3]
        %v1984 = vld [vmem:[%s1965 + $0x48] sm:$0xf]
        %v1985 = vld [vmem:[%s1965 + $0x4c] sm:$0xf]
        %v1986 = vld [vmem:[%s1965 + $0x50] sm:$0x3]
        %v1987 = vld [vmem:[%s1965 + $0x54] sm:$0xf]
        %v1988 = vld [vmem:[%s1965 + $0x58] sm:$0xf]
        %v1989 = vld [vmem:[%s1965 + $0x5c] sm:$0x3]
        %v1990 = vld [vmem:[%s1965 + $0x60] sm:$0xf]
        %v1991 = vld [vmem:[%s1965 + $0x64] sm:$0xf]
        %v1992 = vld [vmem:[%s1965 + $0x68] sm:$0x3]
        %v1993 = vld [vmem:[%s1965 + $0x6c] sm:$0xf]
        %v1994 = vld [vmem:[%s1965 + $0x70] sm:$0xf]
        %v1995 = vld [vmem:[%s1965 + $0x74] sm:$0x3]
        %v1996 = vld [vmem:[%s1965 + $0x78] sm:$0xf]
        %v1997 = vld [vmem:[%s1965 + $0x7c] sm:$0xf]
        %v1998 = vld [vmem:[%s1965 + $0x80] sm:$0x3]
        %v1999 = vld [vmem:[%s1965 + $0x84] sm:$0xf]
        %v2000 = vld [vmem:[%s1965 + $0x88] sm:$0xf]
        %v2001 = vld [vmem:[%s1965 + $0x8c] sm:$0x3]
        %v2002 = vld [vmem:[%s1965 + $0x90] sm:$0xf]
        %v2003 = vld [vmem:[%s1965 + $0x94] sm:$0xf]
        %v2004 = vld [vmem:[%s1965 + $0x98] sm:$0x3]
        %v2005 = vld [vmem:[%s1965 + $0x9c] sm:$0xf]
        %v2006 = vld [vmem:[%s1965 + $0xa0] sm:$0xf]
        %v2007 = vld [vmem:[%s1965 + $0xa4] sm:$0x3]
        %v2008 = vld [vmem:[%s1965 + $0xa8] sm:$0xf]
        %v2009 = vld [vmem:[%s1965 + $0xac] sm:$0xf]
        %v2010 = vld [vmem:[%s1965 + $0xb0] sm:$0x3]
        %v2011 = vld [vmem:[%s1965 + $0xb4] sm:$0xf]
        %v2012 = vld [vmem:[%s1965 + $0xb8] sm:$0xf]
        %v2013 = vld [vmem:[%s1965 + $0xbc] sm:$0x3]
        %v2014 = vunpack.c.l.bf16 %v1917
        %v2015 = vunpack.c.l.bf16 %v1918
        %v2016 = vunpack.c.l.bf16 %v1919
        %v2017 = vunpack.c.l.bf16 %v1920
        %v2018 = vunpack.c.l.bf16 %v1921
        %v2019 = vunpack.c.l.bf16 %v1922
        %v2020 = vunpack.c.l.bf16 %v1923
        %v2021 = vunpack.c.l.bf16 %v1924
        %v2022 = vunpack.c.l.bf16 %v1925
        %v2023 = vunpack.c.l.bf16 %v1926
        %v2024 = vunpack.c.l.bf16 %v1927
        %v2025 = vunpack.c.l.bf16 %v1928
        %v2026 = vunpack.c.l.bf16 %v1929
        %v2027 = vunpack.c.l.bf16 %v1930
        %v2028 = vunpack.c.l.bf16 %v1931
        %v2029 = vunpack.c.l.bf16 %v1932
        %v2030 = vunpack.c.l.bf16 %v1933
        %v2031 = vunpack.c.l.bf16 %v1934
        %v2032 = vunpack.c.l.bf16 %v1935
        %v2033 = vunpack.c.l.bf16 %v1936
        %v2034 = vunpack.c.l.bf16 %v1937
        %v2035 = vunpack.c.l.bf16 %v1938
        %v2036 = vunpack.c.l.bf16 %v1939
        %v2037 = vunpack.c.l.bf16 %v1940
        %v2038 = vunpack.c.l.bf16 %v1941
        %v2039 = vunpack.c.l.bf16 %v1942
        %v2040 = vunpack.c.l.bf16 %v1943
        %v2041 = vunpack.c.l.bf16 %v1944
        %v2042 = vunpack.c.l.bf16 %v1945
        %v2043 = vunpack.c.l.bf16 %v1946
        %v2044 = vunpack.c.l.bf16 %v1947
        %v2045 = vunpack.c.l.bf16 %v1948
        %v2046 = vunpack.c.l.bf16 %v1949
        %v2047 = vunpack.c.l.bf16 %v1950
        %v2048 = vunpack.c.l.bf16 %v1951
        %v2049 = vunpack.c.l.bf16 %v1952
        %v2050 = vunpack.c.l.bf16 %v1953
        %v2051 = vunpack.c.l.bf16 %v1954
        %v2052 = vunpack.c.l.bf16 %v1955
        %v2053 = vunpack.c.l.bf16 %v1956
        %v2054 = vunpack.c.l.bf16 %v1957
        %v2055 = vunpack.c.l.bf16 %v1958
        %v2056 = vunpack.c.l.bf16 %v1959
        %v2057 = vunpack.c.l.bf16 %v1960
        %v2058 = vunpack.c.l.bf16 %v1961
        %v2059 = vunpack.c.l.bf16 %v1962
        %v2060 = vunpack.c.l.bf16 %v1963
        %v2061 = vunpack.c.l.bf16 %v1964
        %v2062 = vunpack.c.l.bf16 %v1966
        %v2063 = vunpack.c.l.bf16 %v1967
        %v2064 = vunpack.c.l.bf16 %v1968
        %v2065 = vunpack.c.l.bf16 %v1969
        %v2066 = vunpack.c.l.bf16 %v1970
        %v2067 = vunpack.c.l.bf16 %v1971
        %v2068 = vunpack.c.l.bf16 %v1972
        %v2069 = vunpack.c.l.bf16 %v1973
        %v2070 = vunpack.c.l.bf16 %v1974
        %v2071 = vunpack.c.l.bf16 %v1975
        %v2072 = vunpack.c.l.bf16 %v1976
        %v2073 = vunpack.c.l.bf16 %v1977
        %v2074 = vunpack.c.l.bf16 %v1978
        %v2075 = vunpack.c.l.bf16 %v1979
        %v2076 = vunpack.c.l.bf16 %v1980
        %v2077 = vunpack.c.l.bf16 %v1981
        %v2078 = vunpack.c.l.bf16 %v1982
        %v2079 = vunpack.c.l.bf16 %v1983
        %v2080 = vunpack.c.l.bf16 %v1984
        %v2081 = vunpack.c.l.bf16 %v1985
        %v2082 = vunpack.c.l.bf16 %v1986
        %v2083 = vunpack.c.l.bf16 %v1987
        %v2084 = vunpack.c.l.bf16 %v1988
        %v2085 = vunpack.c.l.bf16 %v1989
        %v2086 = vunpack.c.l.bf16 %v1990
        %v2087 = vunpack.c.l.bf16 %v1991
        %v2088 = vunpack.c.l.bf16 %v1992
        %v2089 = vunpack.c.l.bf16 %v1993
        %v2090 = vunpack.c.l.bf16 %v1994
        %v2091 = vunpack.c.l.bf16 %v1995
        %v2092 = vunpack.c.l.bf16 %v1996
        %v2093 = vunpack.c.l.bf16 %v1997
        %v2094 = vunpack.c.l.bf16 %v1998
        %v2095 = vunpack.c.l.bf16 %v1999
        %v2096 = vunpack.c.l.bf16 %v2000
        %v2097 = vunpack.c.l.bf16 %v2001
        %v2098 = vunpack.c.l.bf16 %v2002
        %v2099 = vunpack.c.l.bf16 %v2003
        %v2100 = vunpack.c.l.bf16 %v2004
        %v2101 = vunpack.c.l.bf16 %v2005
        %v2102 = vunpack.c.l.bf16 %v2006
        %v2103 = vunpack.c.l.bf16 %v2007
        %v2104 = vunpack.c.l.bf16 %v2008
        %v2105 = vunpack.c.l.bf16 %v2009
        %v2106 = vunpack.c.l.bf16 %v2010
        %v2107 = vunpack.c.l.bf16 %v2011
        %v2108 = vunpack.c.l.bf16 %v2012
        %v2109 = vunpack.c.l.bf16 %v2013
        %v2110 = vmax.f32 %v2014, %v2062
        %v2111 = vmax.f32 %v2015, %v2063
        %v2112 = vmax.f32 %v2016, %v2064
        %v2113 = vmax.f32 %v2017, %v2065
        %v2114 = vmax.f32 %v2018, %v2066
        %v2115 = vmax.f32 %v2019, %v2067
        %v2116 = vmax.f32 %v2020, %v2068
        %v2117 = vmax.f32 %v2021, %v2069
        %v2118 = vmax.f32 %v2022, %v2070
        %v2119 = vmax.f32 %v2023, %v2071
        %v2120 = vmax.f32 %v2024, %v2072
        %v2121 = vmax.f32 %v2025, %v2073
        %v2122 = vmax.f32 %v2026, %v2074
        %v2123 = vmax.f32 %v2027, %v2075
        %v2124 = vmax.f32 %v2028, %v2076
        %v2125 = vmax.f32 %v2029, %v2077
        %v2126 = vmax.f32 %v2030, %v2078
        %v2127 = vmax.f32 %v2031, %v2079
        %v2128 = vmax.f32 %v2032, %v2080
        %v2129 = vmax.f32 %v2033, %v2081
        %v2130 = vmax.f32 %v2034, %v2082
        %v2131 = vmax.f32 %v2035, %v2083
        %v2132 = vmax.f32 %v2036, %v2084
        %v2133 = vmax.f32 %v2037, %v2085
        %v2134 = vmax.f32 %v2038, %v2086
        %v2135 = vmax.f32 %v2039, %v2087
        %v2136 = vmax.f32 %v2040, %v2088
        %v2137 = vmax.f32 %v2041, %v2089
        %v2138 = vmax.f32 %v2042, %v2090
        %v2139 = vmax.f32 %v2043, %v2091
        %v2140 = vmax.f32 %v2044, %v2092
        %v2141 = vmax.f32 %v2045, %v2093
        %v2142 = vmax.f32 %v2046, %v2094
        %v2143 = vmax.f32 %v2047, %v2095
        %v2144 = vmax.f32 %v2048, %v2096
        %v2145 = vmax.f32 %v2049, %v2097
        %v2146 = vmax.f32 %v2050, %v2098
        %v2147 = vmax.f32 %v2051, %v2099
        %v2148 = vmax.f32 %v2052, %v2100
        %v2149 = vmax.f32 %v2053, %v2101
        %v2150 = vmax.f32 %v2054, %v2102
        %v2151 = vmax.f32 %v2055, %v2103
        %v2152 = vmax.f32 %v2056, %v2104
        %v2153 = vmax.f32 %v2057, %v2105
        %v2154 = vmax.f32 %v2058, %v2106
        %v2155 = vmax.f32 %v2059, %v2107
        %v2156 = vmax.f32 %v2060, %v2108
        %v2157 = vmax.f32 %v2061, %v2109
        %v2158 = vpack.c.bf16 %v2110, %v2110
        %v2159 = vpack.c.bf16 %v2111, %v2111
        %v2160 = vpack.c.bf16 %v2112, %v2112
        %v2161 = vpack.c.bf16 %v2113, %v2113
        %v2162 = vpack.c.bf16 %v2114, %v2114
        %v2163 = vpack.c.bf16 %v2115, %v2115
        %v2164 = vpack.c.bf16 %v2116, %v2116
        %v2165 = vpack.c.bf16 %v2117, %v2117
        %v2166 = vpack.c.bf16 %v2118, %v2118
        %v2167 = vpack.c.bf16 %v2119, %v2119
        %v2168 = vpack.c.bf16 %v2120, %v2120
        %v2169 = vpack.c.bf16 %v2121, %v2121
        %v2170 = vpack.c.bf16 %v2122, %v2122
        %v2171 = vpack.c.bf16 %v2123, %v2123
        %v2172 = vpack.c.bf16 %v2124, %v2124
        %v2173 = vpack.c.bf16 %v2125, %v2125
        %v2174 = vpack.c.bf16 %v2126, %v2126
        %v2175 = vpack.c.bf16 %v2127, %v2127
        %v2176 = vpack.c.bf16 %v2128, %v2128
        %v2177 = vpack.c.bf16 %v2129, %v2129
        %v2178 = vpack.c.bf16 %v2130, %v2130
        %v2179 = vpack.c.bf16 %v2131, %v2131
        %v2180 = vpack.c.bf16 %v2132, %v2132
        %v2181 = vpack.c.bf16 %v2133, %v2133
        %v2182 = vpack.c.bf16 %v2134, %v2134
        %v2183 = vpack.c.bf16 %v2135, %v2135
        %v2184 = vpack.c.bf16 %v2136, %v2136
        %v2185 = vpack.c.bf16 %v2137, %v2137
        %v2186 = vpack.c.bf16 %v2138, %v2138
        %v2187 = vpack.c.bf16 %v2139, %v2139
        %v2188 = vpack.c.bf16 %v2140, %v2140
        %v2189 = vpack.c.bf16 %v2141, %v2141
        %v2190 = vpack.c.bf16 %v2142, %v2142
        %v2191 = vpack.c.bf16 %v2143, %v2143
        %v2192 = vpack.c.bf16 %v2144, %v2144
        %v2193 = vpack.c.bf16 %v2145, %v2145
        %v2194 = vpack.c.bf16 %v2146, %v2146
        %v2195 = vpack.c.bf16 %v2147, %v2147
        %v2196 = vpack.c.bf16 %v2148, %v2148
        %v2197 = vpack.c.bf16 %v2149, %v2149
        %v2198 = vpack.c.bf16 %v2150, %v2150
        %v2199 = vpack.c.bf16 %v2151, %v2151
        %v2200 = vpack.c.bf16 %v2152, %v2152
        %v2201 = vpack.c.bf16 %v2153, %v2153
        %v2202 = vpack.c.bf16 %v2154, %v2154
        %v2203 = vpack.c.bf16 %v2155, %v2155
        %v2204 = vpack.c.bf16 %v2156, %v2156
        %v2205 = vpack.c.bf16 %v2157, %v2157
        %s2206 = scalar_lea.vmem [#allocation2], 48
        %v2207 = vld [vmem:[%s2206] sm:$0xf]
        %v2208 = vld [vmem:[%s2206 + $0x4] sm:$0xf]
        %v2209 = vld [vmem:[%s2206 + $0x8] sm:$0x3]
        %v2210 = vld [vmem:[%s2206 + $0xc] sm:$0xf]
        %v2211 = vld [vmem:[%s2206 + $0x10] sm:$0xf]
        %v2212 = vld [vmem:[%s2206 + $0x14] sm:$0x3]
        %v2213 = vld [vmem:[%s2206 + $0x18] sm:$0xf]
        %v2214 = vld [vmem:[%s2206 + $0x1c] sm:$0xf]
        %v2215 = vld [vmem:[%s2206 + $0x20] sm:$0x3]
        %v2216 = vld [vmem:[%s2206 + $0x24] sm:$0xf]
        %v2217 = vld [vmem:[%s2206 + $0x28] sm:$0xf]
        %v2218 = vld [vmem:[%s2206 + $0x2c] sm:$0x3]
        %v2219 = vld [vmem:[%s2206 + $0x30] sm:$0xf]
        %v2220 = vld [vmem:[%s2206 + $0x34] sm:$0xf]
        %v2221 = vld [vmem:[%s2206 + $0x38] sm:$0x3]
        %v2222 = vld [vmem:[%s2206 + $0x3c] sm:$0xf]
        %v2223 = vld [vmem:[%s2206 + $0x40] sm:$0xf]
        %v2224 = vld [vmem:[%s2206 + $0x44] sm:$0x3]
        %v2225 = vld [vmem:[%s2206 + $0x48] sm:$0xf]
        %v2226 = vld [vmem:[%s2206 + $0x4c] sm:$0xf]
        %v2227 = vld [vmem:[%s2206 + $0x50] sm:$0x3]
        %v2228 = vld [vmem:[%s2206 + $0x54] sm:$0xf]
        %v2229 = vld [vmem:[%s2206 + $0x58] sm:$0xf]
        %v2230 = vld [vmem:[%s2206 + $0x5c] sm:$0x3]
        %v2231 = vld [vmem:[%s2206 + $0x60] sm:$0xf]
        %v2232 = vld [vmem:[%s2206 + $0x64] sm:$0xf]
        %v2233 = vld [vmem:[%s2206 + $0x68] sm:$0x3]
        %v2234 = vld [vmem:[%s2206 + $0x6c] sm:$0xf]
        %v2235 = vld [vmem:[%s2206 + $0x70] sm:$0xf]
        %v2236 = vld [vmem:[%s2206 + $0x74] sm:$0x3]
        %v2237 = vld [vmem:[%s2206 + $0x78] sm:$0xf]
        %v2238 = vld [vmem:[%s2206 + $0x7c] sm:$0xf]
        %v2239 = vld [vmem:[%s2206 + $0x80] sm:$0x3]
        %v2240 = vld [vmem:[%s2206 + $0x84] sm:$0xf]
        %v2241 = vld [vmem:[%s2206 + $0x88] sm:$0xf]
        %v2242 = vld [vmem:[%s2206 + $0x8c] sm:$0x3]
        %v2243 = vld [vmem:[%s2206 + $0x90] sm:$0xf]
        %v2244 = vld [vmem:[%s2206 + $0x94] sm:$0xf]
        %v2245 = vld [vmem:[%s2206 + $0x98] sm:$0x3]
        %v2246 = vld [vmem:[%s2206 + $0x9c] sm:$0xf]
        %v2247 = vld [vmem:[%s2206 + $0xa0] sm:$0xf]
        %v2248 = vld [vmem:[%s2206 + $0xa4] sm:$0x3]
        %v2249 = vld [vmem:[%s2206 + $0xa8] sm:$0xf]
        %v2250 = vld [vmem:[%s2206 + $0xac] sm:$0xf]
        %v2251 = vld [vmem:[%s2206 + $0xb0] sm:$0x3]
        %v2252 = vld [vmem:[%s2206 + $0xb4] sm:$0xf]
        %v2253 = vld [vmem:[%s2206 + $0xb8] sm:$0xf]
        %v2254 = vld [vmem:[%s2206 + $0xbc] sm:$0x3]
        %v2255 = vunpack.c.l.bf16 %v2158
        %v2256 = vunpack.c.l.bf16 %v2159
        %v2257 = vunpack.c.l.bf16 %v2160
        %v2258 = vunpack.c.l.bf16 %v2161
        %v2259 = vunpack.c.l.bf16 %v2162
        %v2260 = vunpack.c.l.bf16 %v2163
        %v2261 = vunpack.c.l.bf16 %v2164
        %v2262 = vunpack.c.l.bf16 %v2165
        %v2263 = vunpack.c.l.bf16 %v2166
        %v2264 = vunpack.c.l.bf16 %v2167
        %v2265 = vunpack.c.l.bf16 %v2168
        %v2266 = vunpack.c.l.bf16 %v2169
        %v2267 = vunpack.c.l.bf16 %v2170
        %v2268 = vunpack.c.l.bf16 %v2171
        %v2269 = vunpack.c.l.bf16 %v2172
        %v2270 = vunpack.c.l.bf16 %v2173
        %v2271 = vunpack.c.l.bf16 %v2174
        %v2272 = vunpack.c.l.bf16 %v2175
        %v2273 = vunpack.c.l.bf16 %v2176
        %v2274 = vunpack.c.l.bf16 %v2177
        %v2275 = vunpack.c.l.bf16 %v2178
        %v2276 = vunpack.c.l.bf16 %v2179
        %v2277 = vunpack.c.l.bf16 %v2180
        %v2278 = vunpack.c.l.bf16 %v2181
        %v2279 = vunpack.c.l.bf16 %v2182
        %v2280 = vunpack.c.l.bf16 %v2183
        %v2281 = vunpack.c.l.bf16 %v2184
        %v2282 = vunpack.c.l.bf16 %v2185
        %v2283 = vunpack.c.l.bf16 %v2186
        %v2284 = vunpack.c.l.bf16 %v2187
        %v2285 = vunpack.c.l.bf16 %v2188
        %v2286 = vunpack.c.l.bf16 %v2189
        %v2287 = vunpack.c.l.bf16 %v2190
        %v2288 = vunpack.c.l.bf16 %v2191
        %v2289 = vunpack.c.l.bf16 %v2192
        %v2290 = vunpack.c.l.bf16 %v2193
        %v2291 = vunpack.c.l.bf16 %v2194
        %v2292 = vunpack.c.l.bf16 %v2195
        %v2293 = vunpack.c.l.bf16 %v2196
        %v2294 = vunpack.c.l.bf16 %v2197
        %v2295 = vunpack.c.l.bf16 %v2198
        %v2296 = vunpack.c.l.bf16 %v2199
        %v2297 = vunpack.c.l.bf16 %v2200
        %v2298 = vunpack.c.l.bf16 %v2201
        %v2299 = vunpack.c.l.bf16 %v2202
        %v2300 = vunpack.c.l.bf16 %v2203
        %v2301 = vunpack.c.l.bf16 %v2204
        %v2302 = vunpack.c.l.bf16 %v2205
        %v2303 = vunpack.c.l.bf16 %v2207
        %v2304 = vunpack.c.l.bf16 %v2208
        %v2305 = vunpack.c.l.bf16 %v2209
        %v2306 = vunpack.c.l.bf16 %v2210
        %v2307 = vunpack.c.l.bf16 %v2211
        %v2308 = vunpack.c.l.bf16 %v2212
        %v2309 = vunpack.c.l.bf16 %v2213
        %v2310 = vunpack.c.l.bf16 %v2214
        %v2311 = vunpack.c.l.bf16 %v2215
        %v2312 = vunpack.c.l.bf16 %v2216
        %v2313 = vunpack.c.l.bf16 %v2217
        %v2314 = vunpack.c.l.bf16 %v2218
        %v2315 = vunpack.c.l.bf16 %v2219
        %v2316 = vunpack.c.l.bf16 %v2220
        %v2317 = vunpack.c.l.bf16 %v2221
        %v2318 = vunpack.c.l.bf16 %v2222
        %v2319 = vunpack.c.l.bf16 %v2223
        %v2320 = vunpack.c.l.bf16 %v2224
        %v2321 = vunpack.c.l.bf16 %v2225
        %v2322 = vunpack.c.l.bf16 %v2226
        %v2323 = vunpack.c.l.bf16 %v2227
        %v2324 = vunpack.c.l.bf16 %v2228
        %v2325 = vunpack.c.l.bf16 %v2229
        %v2326 = vunpack.c.l.bf16 %v2230
        %v2327 = vunpack.c.l.bf16 %v2231
        %v2328 = vunpack.c.l.bf16 %v2232
        %v2329 = vunpack.c.l.bf16 %v2233
        %v2330 = vunpack.c.l.bf16 %v2234
        %v2331 = vunpack.c.l.bf16 %v2235
        %v2332 = vunpack.c.l.bf16 %v2236
        %v2333 = vunpack.c.l.bf16 %v2237
        %v2334 = vunpack.c.l.bf16 %v2238
        %v2335 = vunpack.c.l.bf16 %v2239
        %v2336 = vunpack.c.l.bf16 %v2240
        %v2337 = vunpack.c.l.bf16 %v2241
        %v2338 = vunpack.c.l.bf16 %v2242
        %v2339 = vunpack.c.l.bf16 %v2243
        %v2340 = vunpack.c.l.bf16 %v2244
        %v2341 = vunpack.c.l.bf16 %v2245
        %v2342 = vunpack.c.l.bf16 %v2246
        %v2343 = vunpack.c.l.bf16 %v2247
        %v2344 = vunpack.c.l.bf16 %v2248
        %v2345 = vunpack.c.l.bf16 %v2249
        %v2346 = vunpack.c.l.bf16 %v2250
        %v2347 = vunpack.c.l.bf16 %v2251
        %v2348 = vunpack.c.l.bf16 %v2252
        %v2349 = vunpack.c.l.bf16 %v2253
        %v2350 = vunpack.c.l.bf16 %v2254
        %v2351 = vmax.f32 %v2255, %v2303
        %v2352 = vmax.f32 %v2256, %v2304
        %v2353 = vmax.f32 %v2257, %v2305
        %v2354 = vmax.f32 %v2258, %v2306
        %v2355 = vmax.f32 %v2259, %v2307
        %v2356 = vmax.f32 %v2260, %v2308
        %v2357 = vmax.f32 %v2261, %v2309
        %v2358 = vmax.f32 %v2262, %v2310
        %v2359 = vmax.f32 %v2263, %v2311
        %v2360 = vmax.f32 %v2264, %v2312
        %v2361 = vmax.f32 %v2265, %v2313
        %v2362 = vmax.f32 %v2266, %v2314
        %v2363 = vmax.f32 %v2267, %v2315
        %v2364 = vmax.f32 %v2268, %v2316
        %v2365 = vmax.f32 %v2269, %v2317
        %v2366 = vmax.f32 %v2270, %v2318
        %v2367 = vmax.f32 %v2271, %v2319
        %v2368 = vmax.f32 %v2272, %v2320
        %v2369 = vmax.f32 %v2273, %v2321
        %v2370 = vmax.f32 %v2274, %v2322
        %v2371 = vmax.f32 %v2275, %v2323
        %v2372 = vmax.f32 %v2276, %v2324
        %v2373 = vmax.f32 %v2277, %v2325
        %v2374 = vmax.f32 %v2278, %v2326
        %v2375 = vmax.f32 %v2279, %v2327
        %v2376 = vmax.f32 %v2280, %v2328
        %v2377 = vmax.f32 %v2281, %v2329
        %v2378 = vmax.f32 %v2282, %v2330
        %v2379 = vmax.f32 %v2283, %v2331
        %v2380 = vmax.f32 %v2284, %v2332
        %v2381 = vmax.f32 %v2285, %v2333
        %v2382 = vmax.f32 %v2286, %v2334
        %v2383 = vmax.f32 %v2287, %v2335
        %v2384 = vmax.f32 %v2288, %v2336
        %v2385 = vmax.f32 %v2289, %v2337
        %v2386 = vmax.f32 %v2290, %v2338
        %v2387 = vmax.f32 %v2291, %v2339
        %v2388 = vmax.f32 %v2292, %v2340
        %v2389 = vmax.f32 %v2293, %v2341
        %v2390 = vmax.f32 %v2294, %v2342
        %v2391 = vmax.f32 %v2295, %v2343
        %v2392 = vmax.f32 %v2296, %v2344
        %v2393 = vmax.f32 %v2297, %v2345
        %v2394 = vmax.f32 %v2298, %v2346
        %v2395 = vmax.f32 %v2299, %v2347
        %v2396 = vmax.f32 %v2300, %v2348
        %v2397 = vmax.f32 %v2301, %v2349
        %v2398 = vmax.f32 %v2302, %v2350
        %v2399 = vpack.c.bf16 %v2351, %v2351
        %v2400 = vpack.c.bf16 %v2352, %v2352
        %v2401 = vpack.c.bf16 %v2353, %v2353
        %v2402 = vpack.c.bf16 %v2354, %v2354
        %v2403 = vpack.c.bf16 %v2355, %v2355
        %v2404 = vpack.c.bf16 %v2356, %v2356
        %v2405 = vpack.c.bf16 %v2357, %v2357
        %v2406 = vpack.c.bf16 %v2358, %v2358
        %v2407 = vpack.c.bf16 %v2359, %v2359
        %v2408 = vpack.c.bf16 %v2360, %v2360
        %v2409 = vpack.c.bf16 %v2361, %v2361
        %v2410 = vpack.c.bf16 %v2362, %v2362
        %v2411 = vpack.c.bf16 %v2363, %v2363
        %v2412 = vpack.c.bf16 %v2364, %v2364
        %v2413 = vpack.c.bf16 %v2365, %v2365
        %v2414 = vpack.c.bf16 %v2366, %v2366
        %v2415 = vpack.c.bf16 %v2367, %v2367
        %v2416 = vpack.c.bf16 %v2368, %v2368
        %v2417 = vpack.c.bf16 %v2369, %v2369
        %v2418 = vpack.c.bf16 %v2370, %v2370
        %v2419 = vpack.c.bf16 %v2371, %v2371
        %v2420 = vpack.c.bf16 %v2372, %v2372
        %v2421 = vpack.c.bf16 %v2373, %v2373
        %v2422 = vpack.c.bf16 %v2374, %v2374
        %v2423 = vpack.c.bf16 %v2375, %v2375
        %v2424 = vpack.c.bf16 %v2376, %v2376
        %v2425 = vpack.c.bf16 %v2377, %v2377
        %v2426 = vpack.c.bf16 %v2378, %v2378
        %v2427 = vpack.c.bf16 %v2379, %v2379
        %v2428 = vpack.c.bf16 %v2380, %v2380
        %v2429 = vpack.c.bf16 %v2381, %v2381
        %v2430 = vpack.c.bf16 %v2382, %v2382
        %v2431 = vpack.c.bf16 %v2383, %v2383
        %v2432 = vpack.c.bf16 %v2384, %v2384
        %v2433 = vpack.c.bf16 %v2385, %v2385
        %v2434 = vpack.c.bf16 %v2386, %v2386
        %v2435 = vpack.c.bf16 %v2387, %v2387
        %v2436 = vpack.c.bf16 %v2388, %v2388
        %v2437 = vpack.c.bf16 %v2389, %v2389
        %v2438 = vpack.c.bf16 %v2390, %v2390
        %v2439 = vpack.c.bf16 %v2391, %v2391
        %v2440 = vpack.c.bf16 %v2392, %v2392
        %v2441 = vpack.c.bf16 %v2393, %v2393
        %v2442 = vpack.c.bf16 %v2394, %v2394
        %v2443 = vpack.c.bf16 %v2395, %v2395
        %v2444 = vpack.c.bf16 %v2396, %v2396
        %v2445 = vpack.c.bf16 %v2397, %v2397
        %v2446 = vpack.c.bf16 %v2398, %v2398
        %v2447 = vunpack.c.l.bf16 %v2399
        %v2448 = vunpack.c.l.bf16 %v2400
        %v2449 = vunpack.c.l.bf16 %v2402
        %v2450 = vunpack.c.l.bf16 %v2403
        %v2451 = vunpack.c.l.bf16 %v2405
        %v2452 = vunpack.c.l.bf16 %v2406
        %v2453 = vunpack.c.l.bf16 %v2408
        %v2454 = vunpack.c.l.bf16 %v2409
        %v2455 = vunpack.c.l.bf16 %v2411
        %v2456 = vunpack.c.l.bf16 %v2412
        %v2457 = vunpack.c.l.bf16 %v2414
        %v2458 = vunpack.c.l.bf16 %v2415
        %v2459 = vunpack.c.l.bf16 %v2417
        %v2460 = vunpack.c.l.bf16 %v2418
        %v2461 = vunpack.c.l.bf16 %v2420
        %v2462 = vunpack.c.l.bf16 %v2421
        %v2463 = vunpack.c.l.bf16 %v2423
        %v2464 = vunpack.c.l.bf16 %v2424
        %v2465 = vunpack.c.l.bf16 %v2426
        %v2466 = vunpack.c.l.bf16 %v2427
        %v2467 = vunpack.c.l.bf16 %v2429
        %v2468 = vunpack.c.l.bf16 %v2430
        %v2469 = vunpack.c.l.bf16 %v2432
        %v2470 = vunpack.c.l.bf16 %v2433
        %v2471 = vunpack.c.l.bf16 %v2435
        %v2472 = vunpack.c.l.bf16 %v2436
        %v2473 = vunpack.c.l.bf16 %v2438
        %v2474 = vunpack.c.l.bf16 %v2439
        %v2475 = vunpack.c.l.bf16 %v2441
        %v2476 = vunpack.c.l.bf16 %v2442
        %v2477 = vunpack.c.l.bf16 %v2444
        %v2478 = vunpack.c.l.bf16 %v2445
        %v2479 = vunpack.c.l.bf16 %v2401
        %v2480 = vunpack.c.l.bf16 %v2404
        %v2481 = vunpack.c.l.bf16 %v2407
        %v2482 = vunpack.c.l.bf16 %v2410
        %v2483 = vunpack.c.l.bf16 %v2413
        %v2484 = vunpack.c.l.bf16 %v2416
        %v2485 = vunpack.c.l.bf16 %v2419
        %v2486 = vunpack.c.l.bf16 %v2422
        %v2487 = vunpack.c.l.bf16 %v2425
        %v2488 = vunpack.c.l.bf16 %v2428
        %v2489 = vunpack.c.l.bf16 %v2431
        %v2490 = vunpack.c.l.bf16 %v2434
        %v2491 = vunpack.c.l.bf16 %v2437
        %v2492 = vunpack.c.l.bf16 %v2440
        %v2493 = vunpack.c.l.bf16 %v2443
        %v2494 = vunpack.c.l.bf16 %v2446
        %vm2543 = vcmask 1046528
        %v2544 = vrot.slane %v2447, 1
        %v2545 = vrot.slane %v2448, 1
        %v2546 = vsel %vm2543, %v2544, %v2545
        %v2547 = vrot.slane %v2479, 1
        %v2548 = vsel %vm2543, %v2545, %v2547
        %v2549 = vrot.slane %v2449, 1
        %v2550 = vrot.slane %v2450, 1
        %v2551 = vsel %vm2543, %v2549, %v2550
        %v2552 = vrot.slane %v2480, 1
        %v2553 = vsel %vm2543, %v2550, %v2552
        %v2554 = vrot.slane %v2451, 1
        %v2555 = vrot.slane %v2452, 1
        %v2556 = vsel %vm2543, %v2554, %v2555
        %v2557 = vrot.slane %v2481, 1
        %v2558 = vsel %vm2543, %v2555, %v2557
        %v2559 = vrot.slane %v2453, 1
        %v2560 = vrot.slane %v2454, 1
        %v2561 = vsel %vm2543, %v2559, %v2560
        %v2562 = vrot.slane %v2482, 1
        %v2563 = vsel %vm2543, %v2560, %v2562
        %v2564 = vrot.slane %v2455, 1
        %v2565 = vrot.slane %v2456, 1
        %v2566 = vsel %vm2543, %v2564, %v2565
        %v2567 = vrot.slane %v2483, 1
        %v2568 = vsel %vm2543, %v2565, %v2567
        %v2569 = vrot.slane %v2457, 1
        %v2570 = vrot.slane %v2458, 1
        %v2571 = vsel %vm2543, %v2569, %v2570
        %v2572 = vrot.slane %v2484, 1
        %v2573 = vsel %vm2543, %v2570, %v2572
        %v2574 = vrot.slane %v2459, 1
        %v2575 = vrot.slane %v2460, 1
        %v2576 = vsel %vm2543, %v2574, %v2575
        %v2577 = vrot.slane %v2485, 1
        %v2578 = vsel %vm2543, %v2575, %v2577
        %v2579 = vrot.slane %v2461, 1
        %v2580 = vrot.slane %v2462, 1
        %v2581 = vsel %vm2543, %v2579, %v2580
        %v2582 = vrot.slane %v2486, 1
        %v2583 = vsel %vm2543, %v2580, %v2582
        %v2584 = vrot.slane %v2463, 1
        %v2585 = vrot.slane %v2464, 1
        %v2586 = vsel %vm2543, %v2584, %v2585
        %v2587 = vrot.slane %v2487, 1
        %v2588 = vsel %vm2543, %v2585, %v2587
        %v2589 = vrot.slane %v2465, 1
        %v2590 = vrot.slane %v2466, 1
        %v2591 = vsel %vm2543, %v2589, %v2590
        %v2592 = vrot.slane %v2488, 1
        %v2593 = vsel %vm2543, %v2590, %v2592
        %v2594 = vrot.slane %v2467, 1
        %v2595 = vrot.slane %v2468, 1
        %v2596 = vsel %vm2543, %v2594, %v2595
        %v2597 = vrot.slane %v2489, 1
        %v2598 = vsel %vm2543, %v2595, %v2597
        %v2599 = vrot.slane %v2469, 1
        %v2600 = vrot.slane %v2470, 1
        %v2601 = vsel %vm2543, %v2599, %v2600
        %v2602 = vrot.slane %v2490, 1
        %v2603 = vsel %vm2543, %v2600, %v2602
        %v2604 = vrot.slane %v2471, 1
        %v2605 = vrot.slane %v2472, 1
        %v2606 = vsel %vm2543, %v2604, %v2605
        %v2607 = vrot.slane %v2491, 1
        %v2608 = vsel %vm2543, %v2605, %v2607
        %v2609 = vrot.slane %v2473, 1
        %v2610 = vrot.slane %v2474, 1
        %v2611 = vsel %vm2543, %v2609, %v2610
        %v2612 = vrot.slane %v2492, 1
        %v2613 = vsel %vm2543, %v2610, %v2612
        %v2614 = vrot.slane %v2475, 1
        %v2615 = vrot.slane %v2476, 1
        %v2616 = vsel %vm2543, %v2614, %v2615
        %v2617 = vrot.slane %v2493, 1
        %v2618 = vsel %vm2543, %v2615, %v2617
        %v2619 = vrot.slane %v2477, 1
        %v2620 = vrot.slane %v2478, 1
        %v2621 = vsel %vm2543, %v2619, %v2620
        %v2622 = vrot.slane %v2494, 1
        %v2623 = vsel %vm2543, %v2620, %v2622
        %v2656 = vmax.f32 %v2447, %v2546
        %v2657 = vmax.f32 %v2448, %v2548
        %v2658 = vmax.f32 %v2449, %v2551
        %v2659 = vmax.f32 %v2450, %v2553
        %v2660 = vmax.f32 %v2451, %v2556
        %v2661 = vmax.f32 %v2452, %v2558
        %v2662 = vmax.f32 %v2453, %v2561
        %v2663 = vmax.f32 %v2454, %v2563
        %v2664 = vmax.f32 %v2455, %v2566
        %v2665 = vmax.f32 %v2456, %v2568
        %v2666 = vmax.f32 %v2457, %v2571
        %v2667 = vmax.f32 %v2458, %v2573
        %v2668 = vmax.f32 %v2459, %v2576
        %v2669 = vmax.f32 %v2460, %v2578
        %v2670 = vmax.f32 %v2461, %v2581
        %v2671 = vmax.f32 %v2462, %v2583
        %v2672 = vmax.f32 %v2463, %v2586
        %v2673 = vmax.f32 %v2464, %v2588
        %v2674 = vmax.f32 %v2465, %v2591
        %v2675 = vmax.f32 %v2466, %v2593
        %v2676 = vmax.f32 %v2467, %v2596
        %v2677 = vmax.f32 %v2468, %v2598
        %v2678 = vmax.f32 %v2469, %v2601
        %v2679 = vmax.f32 %v2470, %v2603
        %v2680 = vmax.f32 %v2471, %v2606
        %v2681 = vmax.f32 %v2472, %v2608
        %v2682 = vmax.f32 %v2473, %v2611
        %v2683 = vmax.f32 %v2474, %v2613
        %v2684 = vmax.f32 %v2475, %v2616
        %v2685 = vmax.f32 %v2476, %v2618
        %v2686 = vmax.f32 %v2477, %v2621
        %v2687 = vmax.f32 %v2478, %v2623
        %v2688 = vpack.c.bf16 %v2656, %v2656
        %v2689 = vpack.c.bf16 %v2657, %v2657
        %v2690 = vpack.c.bf16 %v2658, %v2658
        %v2691 = vpack.c.bf16 %v2659, %v2659
        %v2692 = vpack.c.bf16 %v2660, %v2660
        %v2693 = vpack.c.bf16 %v2661, %v2661
        %v2694 = vpack.c.bf16 %v2662, %v2662
        %v2695 = vpack.c.bf16 %v2663, %v2663
        %v2696 = vpack.c.bf16 %v2664, %v2664
        %v2697 = vpack.c.bf16 %v2665, %v2665
        %v2698 = vpack.c.bf16 %v2666, %v2666
        %v2699 = vpack.c.bf16 %v2667, %v2667
        %v2700 = vpack.c.bf16 %v2668, %v2668
        %v2701 = vpack.c.bf16 %v2669, %v2669
        %v2702 = vpack.c.bf16 %v2670, %v2670
        %v2703 = vpack.c.bf16 %v2671, %v2671
        %v2704 = vpack.c.bf16 %v2672, %v2672
        %v2705 = vpack.c.bf16 %v2673, %v2673
        %v2706 = vpack.c.bf16 %v2674, %v2674
        %v2707 = vpack.c.bf16 %v2675, %v2675
        %v2708 = vpack.c.bf16 %v2676, %v2676
        %v2709 = vpack.c.bf16 %v2677, %v2677
        %v2710 = vpack.c.bf16 %v2678, %v2678
        %v2711 = vpack.c.bf16 %v2679, %v2679
        %v2712 = vpack.c.bf16 %v2680, %v2680
        %v2713 = vpack.c.bf16 %v2681, %v2681
        %v2714 = vpack.c.bf16 %v2682, %v2682
        %v2715 = vpack.c.bf16 %v2683, %v2683
        %v2716 = vpack.c.bf16 %v2684, %v2684
        %v2717 = vpack.c.bf16 %v2685, %v2685
        %v2718 = vpack.c.bf16 %v2686, %v2686
        %v2719 = vpack.c.bf16 %v2687, %v2687
        %v2720 = vunpack.c.l.bf16 %v2688
        %v2721 = vunpack.c.l.bf16 %v2689
        %v2722 = vunpack.c.l.bf16 %v2690
        %v2723 = vunpack.c.l.bf16 %v2691
        %v2724 = vunpack.c.l.bf16 %v2692
        %v2725 = vunpack.c.l.bf16 %v2693
        %v2726 = vunpack.c.l.bf16 %v2694
        %v2727 = vunpack.c.l.bf16 %v2695
        %v2728 = vunpack.c.l.bf16 %v2696
        %v2729 = vunpack.c.l.bf16 %v2697
        %v2730 = vunpack.c.l.bf16 %v2698
        %v2731 = vunpack.c.l.bf16 %v2699
        %v2732 = vunpack.c.l.bf16 %v2700
        %v2733 = vunpack.c.l.bf16 %v2701
        %v2734 = vunpack.c.l.bf16 %v2702
        %v2735 = vunpack.c.l.bf16 %v2703
        %v2736 = vunpack.c.l.bf16 %v2704
        %v2737 = vunpack.c.l.bf16 %v2705
        %v2738 = vunpack.c.l.bf16 %v2706
        %v2739 = vunpack.c.l.bf16 %v2707
        %v2740 = vunpack.c.l.bf16 %v2708
        %v2741 = vunpack.c.l.bf16 %v2709
        %v2742 = vunpack.c.l.bf16 %v2710
        %v2743 = vunpack.c.l.bf16 %v2711
        %v2744 = vunpack.c.l.bf16 %v2712
        %v2745 = vunpack.c.l.bf16 %v2713
        %v2746 = vunpack.c.l.bf16 %v2714
        %v2747 = vunpack.c.l.bf16 %v2715
        %v2748 = vunpack.c.l.bf16 %v2716
        %v2749 = vunpack.c.l.bf16 %v2717
        %v2750 = vunpack.c.l.bf16 %v2718
        %v2751 = vunpack.c.l.bf16 %v2719
        %vm2752 = vcmask 1045504
        %v2753 = vrot.slane %v2447, 2
        %v2754 = vrot.slane %v2448, 2
        %v2755 = vsel %vm2752, %v2753, %v2754
        %v2756 = vrot.slane %v2479, 2
        %v2757 = vsel %vm2752, %v2754, %v2756
        %v2758 = vrot.slane %v2449, 2
        %v2759 = vrot.slane %v2450, 2
        %v2760 = vsel %vm2752, %v2758, %v2759
        %v2761 = vrot.slane %v2480, 2
        %v2762 = vsel %vm2752, %v2759, %v2761
        %v2763 = vrot.slane %v2451, 2
        %v2764 = vrot.slane %v2452, 2
        %v2765 = vsel %vm2752, %v2763, %v2764
        %v2766 = vrot.slane %v2481, 2
        %v2767 = vsel %vm2752, %v2764, %v2766
        %v2768 = vrot.slane %v2453, 2
        %v2769 = vrot.slane %v2454, 2
        %v2770 = vsel %vm2752, %v2768, %v2769
        %v2771 = vrot.slane %v2482, 2
        %v2772 = vsel %vm2752, %v2769, %v2771
        %v2773 = vrot.slane %v2455, 2
        %v2774 = vrot.slane %v2456, 2
        %v2775 = vsel %vm2752, %v2773, %v2774
        %v2776 = vrot.slane %v2483, 2
        %v2777 = vsel %vm2752, %v2774, %v2776
        %v2778 = vrot.slane %v2457, 2
        %v2779 = vrot.slane %v2458, 2
        %v2780 = vsel %vm2752, %v2778, %v2779
        %v2781 = vrot.slane %v2484, 2
        %v2782 = vsel %vm2752, %v2779, %v2781
        %v2783 = vrot.slane %v2459, 2
        %v2784 = vrot.slane %v2460, 2
        %v2785 = vsel %vm2752, %v2783, %v2784
        %v2786 = vrot.slane %v2485, 2
        %v2787 = vsel %vm2752, %v2784, %v2786
        %v2788 = vrot.slane %v2461, 2
        %v2789 = vrot.slane %v2462, 2
        %v2790 = vsel %vm2752, %v2788, %v2789
        %v2791 = vrot.slane %v2486, 2
        %v2792 = vsel %vm2752, %v2789, %v2791
        %v2793 = vrot.slane %v2463, 2
        %v2794 = vrot.slane %v2464, 2
        %v2795 = vsel %vm2752, %v2793, %v2794
        %v2796 = vrot.slane %v2487, 2
        %v2797 = vsel %vm2752, %v2794, %v2796
        %v2798 = vrot.slane %v2465, 2
        %v2799 = vrot.slane %v2466, 2
        %v2800 = vsel %vm2752, %v2798, %v2799
        %v2801 = vrot.slane %v2488, 2
        %v2802 = vsel %vm2752, %v2799, %v2801
        %v2803 = vrot.slane %v2467, 2
        %v2804 = vrot.slane %v2468, 2
        %v2805 = vsel %vm2752, %v2803, %v2804
        %v2806 = vrot.slane %v2489, 2
        %v2807 = vsel %vm2752, %v2804, %v2806
        %v2808 = vrot.slane %v2469, 2
        %v2809 = vrot.slane %v2470, 2
        %v2810 = vsel %vm2752, %v2808, %v2809
        %v2811 = vrot.slane %v2490, 2
        %v2812 = vsel %vm2752, %v2809, %v2811
        %v2813 = vrot.slane %v2471, 2
        %v2814 = vrot.slane %v2472, 2
        %v2815 = vsel %vm2752, %v2813, %v2814
        %v2816 = vrot.slane %v2491, 2
        %v2817 = vsel %vm2752, %v2814, %v2816
        %v2818 = vrot.slane %v2473, 2
        %v2819 = vrot.slane %v2474, 2
        %v2820 = vsel %vm2752, %v2818, %v2819
        %v2821 = vrot.slane %v2492, 2
        %v2822 = vsel %vm2752, %v2819, %v2821
        %v2823 = vrot.slane %v2475, 2
        %v2824 = vrot.slane %v2476, 2
        %v2825 = vsel %vm2752, %v2823, %v2824
        %v2826 = vrot.slane %v2493, 2
        %v2827 = vsel %vm2752, %v2824, %v2826
        %v2828 = vrot.slane %v2477, 2
        %v2829 = vrot.slane %v2478, 2
        %v2830 = vsel %vm2752, %v2828, %v2829
        %v2831 = vrot.slane %v2494, 2
        %v2832 = vsel %vm2752, %v2829, %v2831
        %v2865 = vmax.f32 %v2720, %v2755
        %v2866 = vmax.f32 %v2721, %v2757
        %v2867 = vmax.f32 %v2722, %v2760
        %v2868 = vmax.f32 %v2723, %v2762
        %v2869 = vmax.f32 %v2724, %v2765
        %v2870 = vmax.f32 %v2725, %v2767
        %v2871 = vmax.f32 %v2726, %v2770
        %v2872 = vmax.f32 %v2727, %v2772
        %v2873 = vmax.f32 %v2728, %v2775
        %v2874 = vmax.f32 %v2729, %v2777
        %v2875 = vmax.f32 %v2730, %v2780
        %v2876 = vmax.f32 %v2731, %v2782
        %v2877 = vmax.f32 %v2732, %v2785
        %v2878 = vmax.f32 %v2733, %v2787
        %v2879 = vmax.f32 %v2734, %v2790
        %v2880 = vmax.f32 %v2735, %v2792
        %v2881 = vmax.f32 %v2736, %v2795
        %v2882 = vmax.f32 %v2737, %v2797
        %v2883 = vmax.f32 %v2738, %v2800
        %v2884 = vmax.f32 %v2739, %v2802
        %v2885 = vmax.f32 %v2740, %v2805
        %v2886 = vmax.f32 %v2741, %v2807
        %v2887 = vmax.f32 %v2742, %v2810
        %v2888 = vmax.f32 %v2743, %v2812
        %v2889 = vmax.f32 %v2744, %v2815
        %v2890 = vmax.f32 %v2745, %v2817
        %v2891 = vmax.f32 %v2746, %v2820
        %v2892 = vmax.f32 %v2747, %v2822
        %v2893 = vmax.f32 %v2748, %v2825
        %v2894 = vmax.f32 %v2749, %v2827
        %v2895 = vmax.f32 %v2750, %v2830
        %v2896 = vmax.f32 %v2751, %v2832
        %v2897 = vpack.c.bf16 %v2865, %v2865
        %v2898 = vpack.c.bf16 %v2866, %v2866
        %v2899 = vpack.c.bf16 %v2867, %v2867
        %v2900 = vpack.c.bf16 %v2868, %v2868
        %v2901 = vpack.c.bf16 %v2869, %v2869
        %v2902 = vpack.c.bf16 %v2870, %v2870
        %v2903 = vpack.c.bf16 %v2871, %v2871
        %v2904 = vpack.c.bf16 %v2872, %v2872
        %v2905 = vpack.c.bf16 %v2873, %v2873
        %v2906 = vpack.c.bf16 %v2874, %v2874
        %v2907 = vpack.c.bf16 %v2875, %v2875
        %v2908 = vpack.c.bf16 %v2876, %v2876
        %v2909 = vpack.c.bf16 %v2877, %v2877
        %v2910 = vpack.c.bf16 %v2878, %v2878
        %v2911 = vpack.c.bf16 %v2879, %v2879
        %v2912 = vpack.c.bf16 %v2880, %v2880
        %v2913 = vpack.c.bf16 %v2881, %v2881
        %v2914 = vpack.c.bf16 %v2882, %v2882
        %v2915 = vpack.c.bf16 %v2883, %v2883
        %v2916 = vpack.c.bf16 %v2884, %v2884
        %v2917 = vpack.c.bf16 %v2885, %v2885
        %v2918 = vpack.c.bf16 %v2886, %v2886
        %v2919 = vpack.c.bf16 %v2887, %v2887
        %v2920 = vpack.c.bf16 %v2888, %v2888
        %v2921 = vpack.c.bf16 %v2889, %v2889
        %v2922 = vpack.c.bf16 %v2890, %v2890
        %v2923 = vpack.c.bf16 %v2891, %v2891
        %v2924 = vpack.c.bf16 %v2892, %v2892
        %v2925 = vpack.c.bf16 %v2893, %v2893
        %v2926 = vpack.c.bf16 %v2894, %v2894
        %v2927 = vpack.c.bf16 %v2895, %v2895
        %v2928 = vpack.c.bf16 %v2896, %v2896
        %v2929 = vunpack.c.l.bf16 %v2897
        %v2930 = vunpack.c.l.bf16 %v2898
        %v2931 = vunpack.c.l.bf16 %v2899
        %v2932 = vunpack.c.l.bf16 %v2900
        %v2933 = vunpack.c.l.bf16 %v2901
        %v2934 = vunpack.c.l.bf16 %v2902
        %v2935 = vunpack.c.l.bf16 %v2903
        %v2936 = vunpack.c.l.bf16 %v2904
        %v2937 = vunpack.c.l.bf16 %v2905
        %v2938 = vunpack.c.l.bf16 %v2906
        %v2939 = vunpack.c.l.bf16 %v2907
        %v2940 = vunpack.c.l.bf16 %v2908
        %v2941 = vunpack.c.l.bf16 %v2909
        %v2942 = vunpack.c.l.bf16 %v2910
        %v2943 = vunpack.c.l.bf16 %v2911
        %v2944 = vunpack.c.l.bf16 %v2912
        %v2945 = vunpack.c.l.bf16 %v2913
        %v2946 = vunpack.c.l.bf16 %v2914
        %v2947 = vunpack.c.l.bf16 %v2915
        %v2948 = vunpack.c.l.bf16 %v2916
        %v2949 = vunpack.c.l.bf16 %v2917
        %v2950 = vunpack.c.l.bf16 %v2918
        %v2951 = vunpack.c.l.bf16 %v2919
        %v2952 = vunpack.c.l.bf16 %v2920
        %v2953 = vunpack.c.l.bf16 %v2921
        %v2954 = vunpack.c.l.bf16 %v2922
        %v2955 = vunpack.c.l.bf16 %v2923
        %v2956 = vunpack.c.l.bf16 %v2924
        %v2957 = vunpack.c.l.bf16 %v2925
        %v2958 = vunpack.c.l.bf16 %v2926
        %v2959 = vunpack.c.l.bf16 %v2927
        %v2960 = vunpack.c.l.bf16 %v2928
        %vm2961 = vcmask 1044480
        %v2962 = vrot.slane %v2447, 3
        %v2963 = vrot.slane %v2448, 3
        %v2964 = vsel %vm2961, %v2962, %v2963
        %v2965 = vrot.slane %v2479, 3
        %v2966 = vsel %vm2961, %v2963, %v2965
        %v2967 = vrot.slane %v2449, 3
        %v2968 = vrot.slane %v2450, 3
        %v2969 = vsel %vm2961, %v2967, %v2968
        %v2970 = vrot.slane %v2480, 3
        %v2971 = vsel %vm2961, %v2968, %v2970
        %v2972 = vrot.slane %v2451, 3
        %v2973 = vrot.slane %v2452, 3
        %v2974 = vsel %vm2961, %v2972, %v2973
        %v2975 = vrot.slane %v2481, 3
        %v2976 = vsel %vm2961, %v2973, %v2975
        %v2977 = vrot.slane %v2453, 3
        %v2978 = vrot.slane %v2454, 3
        %v2979 = vsel %vm2961, %v2977, %v2978
        %v2980 = vrot.slane %v2482, 3
        %v2981 = vsel %vm2961, %v2978, %v2980
        %v2982 = vrot.slane %v2455, 3
        %v2983 = vrot.slane %v2456, 3
        %v2984 = vsel %vm2961, %v2982, %v2983
        %v2985 = vrot.slane %v2483, 3
        %v2986 = vsel %vm2961, %v2983, %v2985
        %v2987 = vrot.slane %v2457, 3
        %v2988 = vrot.slane %v2458, 3
        %v2989 = vsel %vm2961, %v2987, %v2988
        %v2990 = vrot.slane %v2484, 3
        %v2991 = vsel %vm2961, %v2988, %v2990
        %v2992 = vrot.slane %v2459, 3
        %v2993 = vrot.slane %v2460, 3
        %v2994 = vsel %vm2961, %v2992, %v2993
        %v2995 = vrot.slane %v2485, 3
        %v2996 = vsel %vm2961, %v2993, %v2995
        %v2997 = vrot.slane %v2461, 3
        %v2998 = vrot.slane %v2462, 3
        %v2999 = vsel %vm2961, %v2997, %v2998
        %v3000 = vrot.slane %v2486, 3
        %v3001 = vsel %vm2961, %v2998, %v3000
        %v3002 = vrot.slane %v2463, 3
        %v3003 = vrot.slane %v2464, 3
        %v3004 = vsel %vm2961, %v3002, %v3003
        %v3005 = vrot.slane %v2487, 3
        %v3006 = vsel %vm2961, %v3003, %v3005
        %v3007 = vrot.slane %v2465, 3
        %v3008 = vrot.slane %v2466, 3
        %v3009 = vsel %vm2961, %v3007, %v3008
        %v3010 = vrot.slane %v2488, 3
        %v3011 = vsel %vm2961, %v3008, %v3010
        %v3012 = vrot.slane %v2467, 3
        %v3013 = vrot.slane %v2468, 3
        %v3014 = vsel %vm2961, %v3012, %v3013
        %v3015 = vrot.slane %v2489, 3
        %v3016 = vsel %vm2961, %v3013, %v3015
        %v3017 = vrot.slane %v2469, 3
        %v3018 = vrot.slane %v2470, 3
        %v3019 = vsel %vm2961, %v3017, %v3018
        %v3020 = vrot.slane %v2490, 3
        %v3021 = vsel %vm2961, %v3018, %v3020
        %v3022 = vrot.slane %v2471, 3
        %v3023 = vrot.slane %v2472, 3
        %v3024 = vsel %vm2961, %v3022, %v3023
        %v3025 = vrot.slane %v2491, 3
        %v3026 = vsel %vm2961, %v3023, %v3025
        %v3027 = vrot.slane %v2473, 3
        %v3028 = vrot.slane %v2474, 3
        %v3029 = vsel %vm2961, %v3027, %v3028
        %v3030 = vrot.slane %v2492, 3
        %v3031 = vsel %vm2961, %v3028, %v3030
        %v3032 = vrot.slane %v2475, 3
        %v3033 = vrot.slane %v2476, 3
        %v3034 = vsel %vm2961, %v3032, %v3033
        %v3035 = vrot.slane %v2493, 3
        %v3036 = vsel %vm2961, %v3033, %v3035
        %v3037 = vrot.slane %v2477, 3
        %v3038 = vrot.slane %v2478, 3
        %v3039 = vsel %vm2961, %v3037, %v3038
        %v3040 = vrot.slane %v2494, 3
        %v3041 = vsel %vm2961, %v3038, %v3040
        %v3074 = vmax.f32 %v2929, %v2964
        %v3075 = vmax.f32 %v2930, %v2966
        %v3076 = vmax.f32 %v2931, %v2969
        %v3077 = vmax.f32 %v2932, %v2971
        %v3078 = vmax.f32 %v2933, %v2974
        %v3079 = vmax.f32 %v2934, %v2976
        %v3080 = vmax.f32 %v2935, %v2979
        %v3081 = vmax.f32 %v2936, %v2981
        %v3082 = vmax.f32 %v2937, %v2984
        %v3083 = vmax.f32 %v2938, %v2986
        %v3084 = vmax.f32 %v2939, %v2989
        %v3085 = vmax.f32 %v2940, %v2991
        %v3086 = vmax.f32 %v2941, %v2994
        %v3087 = vmax.f32 %v2942, %v2996
        %v3088 = vmax.f32 %v2943, %v2999
        %v3089 = vmax.f32 %v2944, %v3001
        %v3090 = vmax.f32 %v2945, %v3004
        %v3091 = vmax.f32 %v2946, %v3006
        %v3092 = vmax.f32 %v2947, %v3009
        %v3093 = vmax.f32 %v2948, %v3011
        %v3094 = vmax.f32 %v2949, %v3014
        %v3095 = vmax.f32 %v2950, %v3016
        %v3096 = vmax.f32 %v2951, %v3019
        %v3097 = vmax.f32 %v2952, %v3021
        %v3098 = vmax.f32 %v2953, %v3024
        %v3099 = vmax.f32 %v2954, %v3026
        %v3100 = vmax.f32 %v2955, %v3029
        %v3101 = vmax.f32 %v2956, %v3031
        %v3102 = vmax.f32 %v2957, %v3034
        %v3103 = vmax.f32 %v2958, %v3036
        %v3104 = vmax.f32 %v2959, %v3039
        %v3105 = vmax.f32 %v2960, %v3041
        %v3106 = vpack.c.bf16 %v3074, %v3074
        %v3107 = vpack.c.bf16 %v3075, %v3075
        %v3108 = vpack.c.bf16 %v3076, %v3076
        %v3109 = vpack.c.bf16 %v3077, %v3077
        %v3110 = vpack.c.bf16 %v3078, %v3078
        %v3111 = vpack.c.bf16 %v3079, %v3079
        %v3112 = vpack.c.bf16 %v3080, %v3080
        %v3113 = vpack.c.bf16 %v3081, %v3081
        %v3114 = vpack.c.bf16 %v3082, %v3082
        %v3115 = vpack.c.bf16 %v3083, %v3083
        %v3116 = vpack.c.bf16 %v3084, %v3084
        %v3117 = vpack.c.bf16 %v3085, %v3085
        %v3118 = vpack.c.bf16 %v3086, %v3086
        %v3119 = vpack.c.bf16 %v3087, %v3087
        %v3120 = vpack.c.bf16 %v3088, %v3088
        %v3121 = vpack.c.bf16 %v3089, %v3089
        %v3122 = vpack.c.bf16 %v3090, %v3090
        %v3123 = vpack.c.bf16 %v3091, %v3091
        %v3124 = vpack.c.bf16 %v3092, %v3092
        %v3125 = vpack.c.bf16 %v3093, %v3093
        %v3126 = vpack.c.bf16 %v3094, %v3094
        %v3127 = vpack.c.bf16 %v3095, %v3095
        %v3128 = vpack.c.bf16 %v3096, %v3096
        %v3129 = vpack.c.bf16 %v3097, %v3097
        %v3130 = vpack.c.bf16 %v3098, %v3098
        %v3131 = vpack.c.bf16 %v3099, %v3099
        %v3132 = vpack.c.bf16 %v3100, %v3100
        %v3133 = vpack.c.bf16 %v3101, %v3101
        %v3134 = vpack.c.bf16 %v3102, %v3102
        %v3135 = vpack.c.bf16 %v3103, %v3103
        %v3136 = vpack.c.bf16 %v3104, %v3104
        %v3137 = vpack.c.bf16 %v3105, %v3105
        %v3138 = vunpack.c.l.bf16 %v3106
        %v3139 = vunpack.c.l.bf16 %v3107
        %v3140 = vunpack.c.l.bf16 %v3108
        %v3141 = vunpack.c.l.bf16 %v3109
        %v3142 = vunpack.c.l.bf16 %v3110
        %v3143 = vunpack.c.l.bf16 %v3111
        %v3144 = vunpack.c.l.bf16 %v3112
        %v3145 = vunpack.c.l.bf16 %v3113
        %v3146 = vunpack.c.l.bf16 %v3114
        %v3147 = vunpack.c.l.bf16 %v3115
        %v3148 = vunpack.c.l.bf16 %v3116
        %v3149 = vunpack.c.l.bf16 %v3117
        %v3150 = vunpack.c.l.bf16 %v3118
        %v3151 = vunpack.c.l.bf16 %v3119
        %v3152 = vunpack.c.l.bf16 %v3120
        %v3153 = vunpack.c.l.bf16 %v3121
        %v3154 = vunpack.c.l.bf16 %v3122
        %v3155 = vunpack.c.l.bf16 %v3123
        %v3156 = vunpack.c.l.bf16 %v3124
        %v3157 = vunpack.c.l.bf16 %v3125
        %v3158 = vunpack.c.l.bf16 %v3126
        %v3159 = vunpack.c.l.bf16 %v3127
        %v3160 = vunpack.c.l.bf16 %v3128
        %v3161 = vunpack.c.l.bf16 %v3129
        %v3162 = vunpack.c.l.bf16 %v3130
        %v3163 = vunpack.c.l.bf16 %v3131
        %v3164 = vunpack.c.l.bf16 %v3132
        %v3165 = vunpack.c.l.bf16 %v3133
        %v3166 = vunpack.c.l.bf16 %v3134
        %v3167 = vunpack.c.l.bf16 %v3135
        %v3168 = vunpack.c.l.bf16 %v3136
        %v3169 = vunpack.c.l.bf16 %v3137
        %vm3170 = vcmask 1043456
        %v3171 = vrot.slane %v2447, 4
        %v3172 = vrot.slane %v2448, 4
        %v3173 = vsel %vm3170, %v3171, %v3172
        %v3174 = vrot.slane %v2479, 4
        %v3175 = vsel %vm3170, %v3172, %v3174
        %v3176 = vrot.slane %v2449, 4
        %v3177 = vrot.slane %v2450, 4
        %v3178 = vsel %vm3170, %v3176, %v3177
        %v3179 = vrot.slane %v2480, 4
        %v3180 = vsel %vm3170, %v3177, %v3179
        %v3181 = vrot.slane %v2451, 4
        %v3182 = vrot.slane %v2452, 4
        %v3183 = vsel %vm3170, %v3181, %v3182
        %v3184 = vrot.slane %v2481, 4
        %v3185 = vsel %vm3170, %v3182, %v3184
        %v3186 = vrot.slane %v2453, 4
        %v3187 = vrot.slane %v2454, 4
        %v3188 = vsel %vm3170, %v3186, %v3187
        %v3189 = vrot.slane %v2482, 4
        %v3190 = vsel %vm3170, %v3187, %v3189
        %v3191 = vrot.slane %v2455, 4
        %v3192 = vrot.slane %v2456, 4
        %v3193 = vsel %vm3170, %v3191, %v3192
        %v3194 = vrot.slane %v2483, 4
        %v3195 = vsel %vm3170, %v3192, %v3194
        %v3196 = vrot.slane %v2457, 4
        %v3197 = vrot.slane %v2458, 4
        %v3198 = vsel %vm3170, %v3196, %v3197
        %v3199 = vrot.slane %v2484, 4
        %v3200 = vsel %vm3170, %v3197, %v3199
        %v3201 = vrot.slane %v2459, 4
        %v3202 = vrot.slane %v2460, 4
        %v3203 = vsel %vm3170, %v3201, %v3202
        %v3204 = vrot.slane %v2485, 4
        %v3205 = vsel %vm3170, %v3202, %v3204
        %v3206 = vrot.slane %v2461, 4
        %v3207 = vrot.slane %v2462, 4
        %v3208 = vsel %vm3170, %v3206, %v3207
        %v3209 = vrot.slane %v2486, 4
        %v3210 = vsel %vm3170, %v3207, %v3209
        %v3211 = vrot.slane %v2463, 4
        %v3212 = vrot.slane %v2464, 4
        %v3213 = vsel %vm3170, %v3211, %v3212
        %v3214 = vrot.slane %v2487, 4
        %v3215 = vsel %vm3170, %v3212, %v3214
        %v3216 = vrot.slane %v2465, 4
        %v3217 = vrot.slane %v2466, 4
        %v3218 = vsel %vm3170, %v3216, %v3217
        %v3219 = vrot.slane %v2488, 4
        %v3220 = vsel %vm3170, %v3217, %v3219
        %v3221 = vrot.slane %v2467, 4
        %v3222 = vrot.slane %v2468, 4
        %v3223 = vsel %vm3170, %v3221, %v3222
        %v3224 = vrot.slane %v2489, 4
        %v3225 = vsel %vm3170, %v3222, %v3224
        %v3226 = vrot.slane %v2469, 4
        %v3227 = vrot.slane %v2470, 4
        %v3228 = vsel %vm3170, %v3226, %v3227
        %v3229 = vrot.slane %v2490, 4
        %v3230 = vsel %vm3170, %v3227, %v3229
        %v3231 = vrot.slane %v2471, 4
        %v3232 = vrot.slane %v2472, 4
        %v3233 = vsel %vm3170, %v3231, %v3232
        %v3234 = vrot.slane %v2491, 4
        %v3235 = vsel %vm3170, %v3232, %v3234
        %v3236 = vrot.slane %v2473, 4
        %v3237 = vrot.slane %v2474, 4
        %v3238 = vsel %vm3170, %v3236, %v3237
        %v3239 = vrot.slane %v2492, 4
        %v3240 = vsel %vm3170, %v3237, %v3239
        %v3241 = vrot.slane %v2475, 4
        %v3242 = vrot.slane %v2476, 4
        %v3243 = vsel %vm3170, %v3241, %v3242
        %v3244 = vrot.slane %v2493, 4
        %v3245 = vsel %vm3170, %v3242, %v3244
        %v3246 = vrot.slane %v2477, 4
        %v3247 = vrot.slane %v2478, 4
        %v3248 = vsel %vm3170, %v3246, %v3247
        %v3249 = vrot.slane %v2494, 4
        %v3250 = vsel %vm3170, %v3247, %v3249
        %v3283 = vmax.f32 %v3138, %v3173
        %v3284 = vmax.f32 %v3139, %v3175
        %v3285 = vmax.f32 %v3140, %v3178
        %v3286 = vmax.f32 %v3141, %v3180
        %v3287 = vmax.f32 %v3142, %v3183
        %v3288 = vmax.f32 %v3143, %v3185
        %v3289 = vmax.f32 %v3144, %v3188
        %v3290 = vmax.f32 %v3145, %v3190
        %v3291 = vmax.f32 %v3146, %v3193
        %v3292 = vmax.f32 %v3147, %v3195
        %v3293 = vmax.f32 %v3148, %v3198
        %v3294 = vmax.f32 %v3149, %v3200
        %v3295 = vmax.f32 %v3150, %v3203
        %v3296 = vmax.f32 %v3151, %v3205
        %v3297 = vmax.f32 %v3152, %v3208
        %v3298 = vmax.f32 %v3153, %v3210
        %v3299 = vmax.f32 %v3154, %v3213
        %v3300 = vmax.f32 %v3155, %v3215
        %v3301 = vmax.f32 %v3156, %v3218
        %v3302 = vmax.f32 %v3157, %v3220
        %v3303 = vmax.f32 %v3158, %v3223
        %v3304 = vmax.f32 %v3159, %v3225
        %v3305 = vmax.f32 %v3160, %v3228
        %v3306 = vmax.f32 %v3161, %v3230
        %v3307 = vmax.f32 %v3162, %v3233
        %v3308 = vmax.f32 %v3163, %v3235
        %v3309 = vmax.f32 %v3164, %v3238
        %v3310 = vmax.f32 %v3165, %v3240
        %v3311 = vmax.f32 %v3166, %v3243
        %v3312 = vmax.f32 %v3167, %v3245
        %v3313 = vmax.f32 %v3168, %v3248
        %v3314 = vmax.f32 %v3169, %v3250
        %v3315 = vpack.c.bf16 %v3283, %v3283
        %v3316 = vpack.c.bf16 %v3284, %v3284
        %v3317 = vpack.c.bf16 %v3285, %v3285
        %v3318 = vpack.c.bf16 %v3286, %v3286
        %v3319 = vpack.c.bf16 %v3287, %v3287
        %v3320 = vpack.c.bf16 %v3288, %v3288
        %v3321 = vpack.c.bf16 %v3289, %v3289
        %v3322 = vpack.c.bf16 %v3290, %v3290
        %v3323 = vpack.c.bf16 %v3291, %v3291
        %v3324 = vpack.c.bf16 %v3292, %v3292
        %v3325 = vpack.c.bf16 %v3293, %v3293
        %v3326 = vpack.c.bf16 %v3294, %v3294
        %v3327 = vpack.c.bf16 %v3295, %v3295
        %v3328 = vpack.c.bf16 %v3296, %v3296
        %v3329 = vpack.c.bf16 %v3297, %v3297
        %v3330 = vpack.c.bf16 %v3298, %v3298
        %v3331 = vpack.c.bf16 %v3299, %v3299
        %v3332 = vpack.c.bf16 %v3300, %v3300
        %v3333 = vpack.c.bf16 %v3301, %v3301
        %v3334 = vpack.c.bf16 %v3302, %v3302
        %v3335 = vpack.c.bf16 %v3303, %v3303
        %v3336 = vpack.c.bf16 %v3304, %v3304
        %v3337 = vpack.c.bf16 %v3305, %v3305
        %v3338 = vpack.c.bf16 %v3306, %v3306
        %v3339 = vpack.c.bf16 %v3307, %v3307
        %v3340 = vpack.c.bf16 %v3308, %v3308
        %v3341 = vpack.c.bf16 %v3309, %v3309
        %v3342 = vpack.c.bf16 %v3310, %v3310
        %v3343 = vpack.c.bf16 %v3311, %v3311
        %v3344 = vpack.c.bf16 %v3312, %v3312
        %v3345 = vpack.c.bf16 %v3313, %v3313
        %v3346 = vpack.c.bf16 %v3314, %v3314
        %3379 = vrot.lane.b32.xlu0 %v3315, 8
        %v3380 = vpop.permute.xlu0 %3379
        %3381 = vrot.lane.b32.xlu0 %v3316, 8
        %v3382 = vpop.permute.xlu0 %3381
        %3383 = vrot.lane.b32.xlu0 %v3317, 8
        %v3384 = vpop.permute.xlu0 %3383
        %3385 = vrot.lane.b32.xlu0 %v3318, 8
        %v3386 = vpop.permute.xlu0 %3385
        %3387 = vrot.lane.b32.xlu0 %v3319, 8
        %v3388 = vpop.permute.xlu0 %3387
        %3389 = vrot.lane.b32.xlu0 %v3320, 8
        %v3390 = vpop.permute.xlu0 %3389
        %3391 = vrot.lane.b32.xlu0 %v3321, 8
        %v3392 = vpop.permute.xlu0 %3391
        %3393 = vrot.lane.b32.xlu0 %v3322, 8
        %v3394 = vpop.permute.xlu0 %3393
        %3395 = vrot.lane.b32.xlu0 %v3323, 8
        %v3396 = vpop.permute.xlu0 %3395
        %3397 = vrot.lane.b32.xlu0 %v3324, 8
        %v3398 = vpop.permute.xlu0 %3397
        %3399 = vrot.lane.b32.xlu0 %v3325, 8
        %v3400 = vpop.permute.xlu0 %3399
        %3401 = vrot.lane.b32.xlu0 %v3326, 8
        %v3402 = vpop.permute.xlu0 %3401
        %3403 = vrot.lane.b32.xlu0 %v3327, 8
        %v3404 = vpop.permute.xlu0 %3403
        %3405 = vrot.lane.b32.xlu0 %v3328, 8
        %v3406 = vpop.permute.xlu0 %3405
        %3407 = vrot.lane.b32.xlu0 %v3329, 8
        %v3408 = vpop.permute.xlu0 %3407
        %3409 = vrot.lane.b32.xlu0 %v3330, 8
        %v3410 = vpop.permute.xlu0 %3409
        %3411 = vrot.lane.b32.xlu0 %v3331, 8
        %v3412 = vpop.permute.xlu0 %3411
        %3413 = vrot.lane.b32.xlu0 %v3332, 8
        %v3414 = vpop.permute.xlu0 %3413
        %3415 = vrot.lane.b32.xlu0 %v3333, 8
        %v3416 = vpop.permute.xlu0 %3415
        %3417 = vrot.lane.b32.xlu0 %v3334, 8
        %v3418 = vpop.permute.xlu0 %3417
        %3419 = vrot.lane.b32.xlu0 %v3335, 8
        %v3420 = vpop.permute.xlu0 %3419
        %3421 = vrot.lane.b32.xlu0 %v3336, 8
        %v3422 = vpop.permute.xlu0 %3421
        %3423 = vrot.lane.b32.xlu0 %v3337, 8
        %v3424 = vpop.permute.xlu0 %3423
        %3425 = vrot.lane.b32.xlu0 %v3338, 8
        %v3426 = vpop.permute.xlu0 %3425
        %3427 = vrot.lane.b32.xlu0 %v3339, 8
        %v3428 = vpop.permute.xlu0 %3427
        %3429 = vrot.lane.b32.xlu0 %v3340, 8
        %v3430 = vpop.permute.xlu0 %3429
        %3431 = vrot.lane.b32.xlu0 %v3341, 8
        %v3432 = vpop.permute.xlu0 %3431
        %3433 = vrot.lane.b32.xlu0 %v3342, 8
        %v3434 = vpop.permute.xlu0 %3433
        %3435 = vrot.lane.b32.xlu0 %v3343, 8
        %v3436 = vpop.permute.xlu0 %3435
        %3437 = vrot.lane.b32.xlu0 %v3344, 8
        %v3438 = vpop.permute.xlu0 %3437
        %3439 = vrot.lane.b32.xlu0 %v3345, 8
        %v3440 = vpop.permute.xlu0 %3439
        %3441 = vrot.lane.b32.xlu0 %v3346, 8
        %v3442 = vpop.permute.xlu0 %3441
        %vm3475 = vcmask 126016
        %3476 = vst.msk [vmem:[#allocation3] sm:$0xf] %vm3475, %v3380
        %3477 = vst.msk [vmem:[#allocation3 + $0x4] sm:$0xf] %vm3475, %v3382
        %3478 = vst.msk [vmem:[#allocation3 + $0x8] sm:$0xf] %vm3475, %v3384
        %3479 = vst.msk [vmem:[#allocation3 + $0xc] sm:$0xf] %vm3475, %v3386
        %3480 = vst.msk [vmem:[#allocation3 + $0x10] sm:$0xf] %vm3475, %v3388
        %3481 = vst.msk [vmem:[#allocation3 + $0x14] sm:$0xf] %vm3475, %v3390
        %3482 = vst.msk [vmem:[#allocation3 + $0x18] sm:$0xf] %vm3475, %v3392
        %3483 = vst.msk [vmem:[#allocation3 + $0x1c] sm:$0xf] %vm3475, %v3394
        %3484 = vst.msk [vmem:[#allocation3 + $0x20] sm:$0xf] %vm3475, %v3396
        %3485 = vst.msk [vmem:[#allocation3 + $0x24] sm:$0xf] %vm3475, %v3398
        %3486 = vst.msk [vmem:[#allocation3 + $0x28] sm:$0xf] %vm3475, %v3400
        %3487 = vst.msk [vmem:[#allocation3 + $0x2c] sm:$0xf] %vm3475, %v3402
        %3488 = vst.msk [vmem:[#allocation3 + $0x30] sm:$0xf] %vm3475, %v3404
        %3489 = vst.msk [vmem:[#allocation3 + $0x34] sm:$0xf] %vm3475, %v3406
        %3490 = vst.msk [vmem:[#allocation3 + $0x38] sm:$0xf] %vm3475, %v3408
        %3491 = vst.msk [vmem:[#allocation3 + $0x3c] sm:$0xf] %vm3475, %v3410
        %3492 = vst.msk [vmem:[#allocation3 + $0x40] sm:$0xf] %vm3475, %v3412
        %3493 = vst.msk [vmem:[#allocation3 + $0x44] sm:$0xf] %vm3475, %v3414
        %3494 = vst.msk [vmem:[#allocation3 + $0x48] sm:$0xf] %vm3475, %v3416
        %3495 = vst.msk [vmem:[#allocation3 + $0x4c] sm:$0xf] %vm3475, %v3418
        %3496 = vst.msk [vmem:[#allocation3 + $0x50] sm:$0xf] %vm3475, %v3420
        %3497 = vst.msk [vmem:[#allocation3 + $0x54] sm:$0xf] %vm3475, %v3422
        %3498 = vst.msk [vmem:[#allocation3 + $0x58] sm:$0xf] %vm3475, %v3424
        %3499 = vst.msk [vmem:[#allocation3 + $0x5c] sm:$0xf] %vm3475, %v3426
        %3500 = vst.msk [vmem:[#allocation3 + $0x60] sm:$0xf] %vm3475, %v3428
        %3501 = vst.msk [vmem:[#allocation3 + $0x64] sm:$0xf] %vm3475, %v3430
        %3502 = vst.msk [vmem:[#allocation3 + $0x68] sm:$0xf] %vm3475, %v3432
        %3503 = vst.msk [vmem:[#allocation3 + $0x6c] sm:$0xf] %vm3475, %v3434
        %3504 = vst.msk [vmem:[#allocation3 + $0x70] sm:$0xf] %vm3475, %v3436
        %3505 = vst.msk [vmem:[#allocation3 + $0x74] sm:$0xf] %vm3475, %v3438
        %3506 = vst.msk [vmem:[#allocation3 + $0x78] sm:$0xf] %vm3475, %v3440
        %3507 = vst.msk [vmem:[#allocation3 + $0x7c] sm:$0xf] %vm3475, %v3442
        %v3508 = vrot.slane %v3315, 7
        %v3509 = vrot.slane %v3508, 4
        %v3510 = vrot.slane %v3316, 7
        %v3511 = vsel %vm1257, %v3509, %v3510
        %v3512 = vrot.slane %v3510, 4
        %v3513 = vrot.slane %v3317, 7
        %v3514 = vrot.slane %v3513, 4
        %v3515 = vrot.slane %v3318, 7
        %v3516 = vsel %vm1257, %v3514, %v3515
        %v3517 = vrot.slane %v3515, 4
        %v3518 = vrot.slane %v3319, 7
        %v3519 = vrot.slane %v3518, 4
        %v3520 = vrot.slane %v3320, 7
        %v3521 = vsel %vm1257, %v3519, %v3520
        %v3522 = vrot.slane %v3520, 4
        %v3523 = vrot.slane %v3321, 7
        %v3524 = vrot.slane %v3523, 4
        %v3525 = vrot.slane %v3322, 7
        %v3526 = vsel %vm1257, %v3524, %v3525
        %v3527 = vrot.slane %v3525, 4
        %v3528 = vrot.slane %v3323, 7
        %v3529 = vrot.slane %v3528, 4
        %v3530 = vrot.slane %v3324, 7
        %v3531 = vsel %vm1257, %v3529, %v3530
        %v3532 = vrot.slane %v3530, 4
        %v3533 = vrot.slane %v3325, 7
        %v3534 = vrot.slane %v3533, 4
        %v3535 = vrot.slane %v3326, 7
        %v3536 = vsel %vm1257, %v3534, %v3535
        %v3537 = vrot.slane %v3535, 4
        %v3538 = vrot.slane %v3327, 7
        %v3539 = vrot.slane %v3538, 4
        %v3540 = vrot.slane %v3328, 7
        %v3541 = vsel %vm1257, %v3539, %v3540
        %v3542 = vrot.slane %v3540, 4
        %v3543 = vrot.slane %v3329, 7
        %v3544 = vrot.slane %v3543, 4
        %v3545 = vrot.slane %v3330, 7
        %v3546 = vsel %vm1257, %v3544, %v3545
        %v3547 = vrot.slane %v3545, 4
        %v3548 = vrot.slane %v3331, 7
        %v3549 = vrot.slane %v3548, 4
        %v3550 = vrot.slane %v3332, 7
        %v3551 = vsel %vm1257, %v3549, %v3550
        %v3552 = vrot.slane %v3550, 4
        %v3553 = vrot.slane %v3333, 7
        %v3554 = vrot.slane %v3553, 4
        %v3555 = vrot.slane %v3334, 7
        %v3556 = vsel %vm1257, %v3554, %v3555
        %v3557 = vrot.slane %v3555, 4
        %v3558 = vrot.slane %v3335, 7
        %v3559 = vrot.slane %v3558, 4
        %v3560 = vrot.slane %v3336, 7
        %v3561 = vsel %vm1257, %v3559, %v3560
        %v3562 = vrot.slane %v3560, 4
        %v3563 = vrot.slane %v3337, 7
        %v3564 = vrot.slane %v3563, 4
        %v3565 = vrot.slane %v3338, 7
        %v3566 = vsel %vm1257, %v3564, %v3565
        %v3567 = vrot.slane %v3565, 4
        %v3568 = vrot.slane %v3339, 7
        %v3569 = vrot.slane %v3568, 4
        %v3570 = vrot.slane %v3340, 7
        %v3571 = vsel %vm1257, %v3569, %v3570
        %v3572 = vrot.slane %v3570, 4
        %v3573 = vrot.slane %v3341, 7
        %v3574 = vrot.slane %v3573, 4
        %v3575 = vrot.slane %v3342, 7
        %v3576 = vsel %vm1257, %v3574, %v3575
        %v3577 = vrot.slane %v3575, 4
        %v3578 = vrot.slane %v3343, 7
        %v3579 = vrot.slane %v3578, 4
        %v3580 = vrot.slane %v3344, 7
        %v3581 = vsel %vm1257, %v3579, %v3580
        %v3582 = vrot.slane %v3580, 4
        %v3583 = vrot.slane %v3345, 7
        %v3584 = vrot.slane %v3583, 4
        %v3585 = vrot.slane %v3346, 7
        %v3586 = vsel %vm1257, %v3584, %v3585
        %v3587 = vrot.slane %v3585, 4
        %3636 = vst.msk [vmem:[%s1386] sm:$0xe] %vm1387, %v3508
        %3637 = vst.msk [vmem:[%s1386 + $0x4] sm:$0xf] %vm264, %v3511
        %3638 = vst.msk [vmem:[%s1386 + $0x8] sm:$0x1] %vm279, %v3512
        %3639 = vst.msk [vmem:[%s1386 + $0xc] sm:$0xe] %vm1387, %v3513
        %3640 = vst.msk [vmem:[%s1386 + $0x10] sm:$0xf] %vm264, %v3516
        %3641 = vst.msk [vmem:[%s1386 + $0x14] sm:$0x1] %vm279, %v3517
        %3642 = vst.msk [vmem:[%s1386 + $0x18] sm:$0xe] %vm1387, %v3518
        %3643 = vst.msk [vmem:[%s1386 + $0x1c] sm:$0xf] %vm264, %v3521
        %3644 = vst.msk [vmem:[%s1386 + $0x20] sm:$0x1] %vm279, %v3522
        %3645 = vst.msk [vmem:[%s1386 + $0x24] sm:$0xe] %vm1387, %v3523
        %3646 = vst.msk [vmem:[%s1386 + $0x28] sm:$0xf] %vm264, %v3526
        %3647 = vst.msk [vmem:[%s1386 + $0x2c] sm:$0x1] %vm279, %v3527
        %3648 = vst.msk [vmem:[%s1386 + $0x30] sm:$0xe] %vm1387, %v3528
        %3649 = vst.msk [vmem:[%s1386 + $0x34] sm:$0xf] %vm264, %v3531
        %3650 = vst.msk [vmem:[%s1386 + $0x38] sm:$0x1] %vm279, %v3532
        %3651 = vst.msk [vmem:[%s1386 + $0x3c] sm:$0xe] %vm1387, %v3533
        %3652 = vst.msk [vmem:[%s1386 + $0x40] sm:$0xf] %vm264, %v3536
        %3653 = vst.msk [vmem:[%s1386 + $0x44] sm:$0x1] %vm279, %v3537
        %3654 = vst.msk [vmem:[%s1386 + $0x48] sm:$0xe] %vm1387, %v3538
        %3655 = vst.msk [vmem:[%s1386 + $0x4c] sm:$0xf] %vm264, %v3541
        %3656 = vst.msk [vmem:[%s1386 + $0x50] sm:$0x1] %vm279, %v3542
        %3657 = vst.msk [vmem:[%s1386 + $0x54] sm:$0xe] %vm1387, %v3543
        %3658 = vst.msk [vmem:[%s1386 + $0x58] sm:$0xf] %vm264, %v3546
        %3659 = vst.msk [vmem:[%s1386 + $0x5c] sm:$0x1] %vm279, %v3547
        %3660 = vst.msk [vmem:[%s1386 + $0x60] sm:$0xe] %vm1387, %v3548
        %3661 = vst.msk [vmem:[%s1386 + $0x64] sm:$0xf] %vm264, %v3551
        %3662 = vst.msk [vmem:[%s1386 + $0x68] sm:$0x1] %vm279, %v3552
        %3663 = vst.msk [vmem:[%s1386 + $0x6c] sm:$0xe] %vm1387, %v3553
        %3664 = vst.msk [vmem:[%s1386 + $0x70] sm:$0xf] %vm264, %v3556
        %3665 = vst.msk [vmem:[%s1386 + $0x74] sm:$0x1] %vm279, %v3557
        %3666 = vst.msk [vmem:[%s1386 + $0x78] sm:$0xe] %vm1387, %v3558
        %3667 = vst.msk [vmem:[%s1386 + $0x7c] sm:$0xf] %vm264, %v3561
        %3668 = vst.msk [vmem:[%s1386 + $0x80] sm:$0x1] %vm279, %v3562
        %3669 = vst.msk [vmem:[%s1386 + $0x84] sm:$0xe] %vm1387, %v3563
        %3670 = vst.msk [vmem:[%s1386 + $0x88] sm:$0xf] %vm264, %v3566
        %3671 = vst.msk [vmem:[%s1386 + $0x8c] sm:$0x1] %vm279, %v3567
        %3672 = vst.msk [vmem:[%s1386 + $0x90] sm:$0xe] %vm1387, %v3568
        %3673 = vst.msk [vmem:[%s1386 + $0x94] sm:$0xf] %vm264, %v3571
        %3674 = vst.msk [vmem:[%s1386 + $0x98] sm:$0x1] %vm279, %v3572
        %3675 = vst.msk [vmem:[%s1386 + $0x9c] sm:$0xe] %vm1387, %v3573
        %3676 = vst.msk [vmem:[%s1386 + $0xa0] sm:$0xf] %vm264, %v3576
        %3677 = vst.msk [vmem:[%s1386 + $0xa4] sm:$0x1] %vm279, %v3577
        %3678 = vst.msk [vmem:[%s1386 + $0xa8] sm:$0xe] %vm1387, %v3578
        %3679 = vst.msk [vmem:[%s1386 + $0xac] sm:$0xf] %vm264, %v3581
        %3680 = vst.msk [vmem:[%s1386 + $0xb0] sm:$0x1] %vm279, %v3582
        %3681 = vst.msk [vmem:[%s1386 + $0xb4] sm:$0xe] %vm1387, %v3583
        %3682 = vst.msk [vmem:[%s1386 + $0xb8] sm:$0xf] %vm264, %v3586
        %3683 = vst.msk [vmem:[%s1386 + $0xbc] sm:$0x1] %vm279, %v3587
        %v3684 = vld [vmem:[#allocation2] sm:$0xf]
        %v3685 = vld [vmem:[#allocation2 + $0x4] sm:$0xf]
        %v3686 = vld [vmem:[#allocation2 + $0x8] sm:$0x3]
        %v3687 = vld [vmem:[#allocation2 + $0xc] sm:$0xf]
        %v3688 = vld [vmem:[#allocation2 + $0x10] sm:$0xf]
        %v3689 = vld [vmem:[#allocation2 + $0x14] sm:$0x3]
        %v3690 = vld [vmem:[#allocation2 + $0x18] sm:$0xf]
        %v3691 = vld [vmem:[#allocation2 + $0x1c] sm:$0xf]
        %v3692 = vld [vmem:[#allocation2 + $0x20] sm:$0x3]
        %v3693 = vld [vmem:[#allocation2 + $0x24] sm:$0xf]
        %v3694 = vld [vmem:[#allocation2 + $0x28] sm:$0xf]
        %v3695 = vld [vmem:[#allocation2 + $0x2c] sm:$0x3]
        %v3696 = vld [vmem:[#allocation2 + $0x30] sm:$0xf]
        %v3697 = vld [vmem:[#allocation2 + $0x34] sm:$0xf]
        %v3698 = vld [vmem:[#allocation2 + $0x38] sm:$0x3]
        %v3699 = vld [vmem:[#allocation2 + $0x3c] sm:$0xf]
        %v3700 = vld [vmem:[#allocation2 + $0x40] sm:$0xf]
        %v3701 = vld [vmem:[#allocation2 + $0x44] sm:$0x3]
        %v3702 = vld [vmem:[#allocation2 + $0x48] sm:$0xf]
        %v3703 = vld [vmem:[#allocation2 + $0x4c] sm:$0xf]
        %v3704 = vld [vmem:[#allocation2 + $0x50] sm:$0x3]
        %v3705 = vld [vmem:[#allocation2 + $0x54] sm:$0xf]
        %v3706 = vld [vmem:[#allocation2 + $0x58] sm:$0xf]
        %v3707 = vld [vmem:[#allocation2 + $0x5c] sm:$0x3]
        %v3708 = vld [vmem:[#allocation2 + $0x60] sm:$0xf]
        %v3709 = vld [vmem:[#allocation2 + $0x64] sm:$0xf]
        %v3710 = vld [vmem:[#allocation2 + $0x68] sm:$0x3]
        %v3711 = vld [vmem:[#allocation2 + $0x6c] sm:$0xf]
        %v3712 = vld [vmem:[#allocation2 + $0x70] sm:$0xf]
        %v3713 = vld [vmem:[#allocation2 + $0x74] sm:$0x3]
        %v3714 = vld [vmem:[#allocation2 + $0x78] sm:$0xf]
        %v3715 = vld [vmem:[#allocation2 + $0x7c] sm:$0xf]
        %v3716 = vld [vmem:[#allocation2 + $0x80] sm:$0x3]
        %v3717 = vld [vmem:[#allocation2 + $0x84] sm:$0xf]
        %v3718 = vld [vmem:[#allocation2 + $0x88] sm:$0xf]
        %v3719 = vld [vmem:[#allocation2 + $0x8c] sm:$0x3]
        %v3720 = vld [vmem:[#allocation2 + $0x90] sm:$0xf]
        %v3721 = vld [vmem:[#allocation2 + $0x94] sm:$0xf]
        %v3722 = vld [vmem:[#allocation2 + $0x98] sm:$0x3]
        %v3723 = vld [vmem:[#allocation2 + $0x9c] sm:$0xf]
        %v3724 = vld [vmem:[#allocation2 + $0xa0] sm:$0xf]
        %v3725 = vld [vmem:[#allocation2 + $0xa4] sm:$0x3]
        %v3726 = vld [vmem:[#allocation2 + $0xa8] sm:$0xf]
        %v3727 = vld [vmem:[#allocation2 + $0xac] sm:$0xf]
        %v3728 = vld [vmem:[#allocation2 + $0xb0] sm:$0x3]
        %v3729 = vld [vmem:[#allocation2 + $0xb4] sm:$0xf]
        %v3730 = vld [vmem:[#allocation2 + $0xb8] sm:$0xf]
        %v3731 = vld [vmem:[#allocation2 + $0xbc] sm:$0x3]
        %v3732 = vld [vmem:[%s1484] sm:$0xf]
        %v3733 = vld [vmem:[%s1484 + $0x4] sm:$0xf]
        %v3734 = vld [vmem:[%s1484 + $0x8] sm:$0x3]
        %v3735 = vld [vmem:[%s1484 + $0xc] sm:$0xf]
        %v3736 = vld [vmem:[%s1484 + $0x10] sm:$0xf]
        %v3737 = vld [vmem:[%s1484 + $0x14] sm:$0x3]
        %v3738 = vld [vmem:[%s1484 + $0x18] sm:$0xf]
        %v3739 = vld [vmem:[%s1484 + $0x1c] sm:$0xf]
        %v3740 = vld [vmem:[%s1484 + $0x20] sm:$0x3]
        %v3741 = vld [vmem:[%s1484 + $0x24] sm:$0xf]
        %v3742 = vld [vmem:[%s1484 + $0x28] sm:$0xf]
        %v3743 = vld [vmem:[%s1484 + $0x2c] sm:$0x3]
        %v3744 = vld [vmem:[%s1484 + $0x30] sm:$0xf]
        %v3745 = vld [vmem:[%s1484 + $0x34] sm:$0xf]
        %v3746 = vld [vmem:[%s1484 + $0x38] sm:$0x3]
        %v3747 = vld [vmem:[%s1484 + $0x3c] sm:$0xf]
        %v3748 = vld [vmem:[%s1484 + $0x40] sm:$0xf]
        %v3749 = vld [vmem:[%s1484 + $0x44] sm:$0x3]
        %v3750 = vld [vmem:[%s1484 + $0x48] sm:$0xf]
        %v3751 = vld [vmem:[%s1484 + $0x4c] sm:$0xf]
        %v3752 = vld [vmem:[%s1484 + $0x50] sm:$0x3]
        %v3753 = vld [vmem:[%s1484 + $0x54] sm:$0xf]
        %v3754 = vld [vmem:[%s1484 + $0x58] sm:$0xf]
        %v3755 = vld [vmem:[%s1484 + $0x5c] sm:$0x3]
        %v3756 = vld [vmem:[%s1484 + $0x60] sm:$0xf]
        %v3757 = vld [vmem:[%s1484 + $0x64] sm:$0xf]
        %v3758 = vld [vmem:[%s1484 + $0x68] sm:$0x3]
        %v3759 = vld [vmem:[%s1484 + $0x6c] sm:$0xf]
        %v3760 = vld [vmem:[%s1484 + $0x70] sm:$0xf]
        %v3761 = vld [vmem:[%s1484 + $0x74] sm:$0x3]
        %v3762 = vld [vmem:[%s1484 + $0x78] sm:$0xf]
        %v3763 = vld [vmem:[%s1484 + $0x7c] sm:$0xf]
        %v3764 = vld [vmem:[%s1484 + $0x80] sm:$0x3]
        %v3765 = vld [vmem:[%s1484 + $0x84] sm:$0xf]
        %v3766 = vld [vmem:[%s1484 + $0x88] sm:$0xf]
        %v3767 = vld [vmem:[%s1484 + $0x8c] sm:$0x3]
        %v3768 = vld [vmem:[%s1484 + $0x90] sm:$0xf]
        %v3769 = vld [vmem:[%s1484 + $0x94] sm:$0xf]
        %v3770 = vld [vmem:[%s1484 + $0x98] sm:$0x3]
        %v3771 = vld [vmem:[%s1484 + $0x9c] sm:$0xf]
        %v3772 = vld [vmem:[%s1484 + $0xa0] sm:$0xf]
        %v3773 = vld [vmem:[%s1484 + $0xa4] sm:$0x3]
        %v3774 = vld [vmem:[%s1484 + $0xa8] sm:$0xf]
        %v3775 = vld [vmem:[%s1484 + $0xac] sm:$0xf]
        %v3776 = vld [vmem:[%s1484 + $0xb0] sm:$0x3]
        %v3777 = vld [vmem:[%s1484 + $0xb4] sm:$0xf]
        %v3778 = vld [vmem:[%s1484 + $0xb8] sm:$0xf]
        %v3779 = vld [vmem:[%s1484 + $0xbc] sm:$0x3]
        %v3780 = vunpack.c.l.bf16 %v3684
        %v3781 = vunpack.c.l.bf16 %v3685
        %v3782 = vunpack.c.l.bf16 %v3686
        %v3783 = vunpack.c.l.bf16 %v3687
        %v3784 = vunpack.c.l.bf16 %v3688
        %v3785 = vunpack.c.l.bf16 %v3689
        %v3786 = vunpack.c.l.bf16 %v3690
        %v3787 = vunpack.c.l.bf16 %v3691
        %v3788 = vunpack.c.l.bf16 %v3692
        %v3789 = vunpack.c.l.bf16 %v3693
        %v3790 = vunpack.c.l.bf16 %v3694
        %v3791 = vunpack.c.l.bf16 %v3695
        %v3792 = vunpack.c.l.bf16 %v3696
        %v3793 = vunpack.c.l.bf16 %v3697
        %v3794 = vunpack.c.l.bf16 %v3698
        %v3795 = vunpack.c.l.bf16 %v3699
        %v3796 = vunpack.c.l.bf16 %v3700
        %v3797 = vunpack.c.l.bf16 %v3701
        %v3798 = vunpack.c.l.bf16 %v3702
        %v3799 = vunpack.c.l.bf16 %v3703
        %v3800 = vunpack.c.l.bf16 %v3704
        %v3801 = vunpack.c.l.bf16 %v3705
        %v3802 = vunpack.c.l.bf16 %v3706
        %v3803 = vunpack.c.l.bf16 %v3707
        %v3804 = vunpack.c.l.bf16 %v3708
        %v3805 = vunpack.c.l.bf16 %v3709
        %v3806 = vunpack.c.l.bf16 %v3710
        %v3807 = vunpack.c.l.bf16 %v3711
        %v3808 = vunpack.c.l.bf16 %v3712
        %v3809 = vunpack.c.l.bf16 %v3713
        %v3810 = vunpack.c.l.bf16 %v3714
        %v3811 = vunpack.c.l.bf16 %v3715
        %v3812 = vunpack.c.l.bf16 %v3716
        %v3813 = vunpack.c.l.bf16 %v3717
        %v3814 = vunpack.c.l.bf16 %v3718
        %v3815 = vunpack.c.l.bf16 %v3719
        %v3816 = vunpack.c.l.bf16 %v3720
        %v3817 = vunpack.c.l.bf16 %v3721
        %v3818 = vunpack.c.l.bf16 %v3722
        %v3819 = vunpack.c.l.bf16 %v3723
        %v3820 = vunpack.c.l.bf16 %v3724
        %v3821 = vunpack.c.l.bf16 %v3725
        %v3822 = vunpack.c.l.bf16 %v3726
        %v3823 = vunpack.c.l.bf16 %v3727
        %v3824 = vunpack.c.l.bf16 %v3728
        %v3825 = vunpack.c.l.bf16 %v3729
        %v3826 = vunpack.c.l.bf16 %v3730
        %v3827 = vunpack.c.l.bf16 %v3731
        %v3828 = vunpack.c.l.bf16 %v3732
        %v3829 = vunpack.c.l.bf16 %v3733
        %v3830 = vunpack.c.l.bf16 %v3734
        %v3831 = vunpack.c.l.bf16 %v3735
        %v3832 = vunpack.c.l.bf16 %v3736
        %v3833 = vunpack.c.l.bf16 %v3737
        %v3834 = vunpack.c.l.bf16 %v3738
        %v3835 = vunpack.c.l.bf16 %v3739
        %v3836 = vunpack.c.l.bf16 %v3740
        %v3837 = vunpack.c.l.bf16 %v3741
        %v3838 = vunpack.c.l.bf16 %v3742
        %v3839 = vunpack.c.l.bf16 %v3743
        %v3840 = vunpack.c.l.bf16 %v3744
        %v3841 = vunpack.c.l.bf16 %v3745
        %v3842 = vunpack.c.l.bf16 %v3746
        %v3843 = vunpack.c.l.bf16 %v3747
        %v3844 = vunpack.c.l.bf16 %v3748
        %v3845 = vunpack.c.l.bf16 %v3749
        %v3846 = vunpack.c.l.bf16 %v3750
        %v3847 = vunpack.c.l.bf16 %v3751
        %v3848 = vunpack.c.l.bf16 %v3752
        %v3849 = vunpack.c.l.bf16 %v3753
        %v3850 = vunpack.c.l.bf16 %v3754
        %v3851 = vunpack.c.l.bf16 %v3755
        %v3852 = vunpack.c.l.bf16 %v3756
        %v3853 = vunpack.c.l.bf16 %v3757
        %v3854 = vunpack.c.l.bf16 %v3758
        %v3855 = vunpack.c.l.bf16 %v3759
        %v3856 = vunpack.c.l.bf16 %v3760
        %v3857 = vunpack.c.l.bf16 %v3761
        %v3858 = vunpack.c.l.bf16 %v3762
        %v3859 = vunpack.c.l.bf16 %v3763
        %v3860 = vunpack.c.l.bf16 %v3764
        %v3861 = vunpack.c.l.bf16 %v3765
        %v3862 = vunpack.c.l.bf16 %v3766
        %v3863 = vunpack.c.l.bf16 %v3767
        %v3864 = vunpack.c.l.bf16 %v3768
        %v3865 = vunpack.c.l.bf16 %v3769
        %v3866 = vunpack.c.l.bf16 %v3770
        %v3867 = vunpack.c.l.bf16 %v3771
        %v3868 = vunpack.c.l.bf16 %v3772
        %v3869 = vunpack.c.l.bf16 %v3773
        %v3870 = vunpack.c.l.bf16 %v3774
        %v3871 = vunpack.c.l.bf16 %v3775
        %v3872 = vunpack.c.l.bf16 %v3776
        %v3873 = vunpack.c.l.bf16 %v3777
        %v3874 = vunpack.c.l.bf16 %v3778
        %v3875 = vunpack.c.l.bf16 %v3779
        %v3876 = vmax.f32 %v3780, %v3828
        %v3877 = vmax.f32 %v3781, %v3829
        %v3878 = vmax.f32 %v3782, %v3830
        %v3879 = vmax.f32 %v3783, %v3831
        %v3880 = vmax.f32 %v3784, %v3832
        %v3881 = vmax.f32 %v3785, %v3833
        %v3882 = vmax.f32 %v3786, %v3834
        %v3883 = vmax.f32 %v3787, %v3835
        %v3884 = vmax.f32 %v3788, %v3836
        %v3885 = vmax.f32 %v3789, %v3837
        %v3886 = vmax.f32 %v3790, %v3838
        %v3887 = vmax.f32 %v3791, %v3839
        %v3888 = vmax.f32 %v3792, %v3840
        %v3889 = vmax.f32 %v3793, %v3841
        %v3890 = vmax.f32 %v3794, %v3842
        %v3891 = vmax.f32 %v3795, %v3843
        %v3892 = vmax.f32 %v3796, %v3844
        %v3893 = vmax.f32 %v3797, %v3845
        %v3894 = vmax.f32 %v3798, %v3846
        %v3895 = vmax.f32 %v3799, %v3847
        %v3896 = vmax.f32 %v3800, %v3848
        %v3897 = vmax.f32 %v3801, %v3849
        %v3898 = vmax.f32 %v3802, %v3850
        %v3899 = vmax.f32 %v3803, %v3851
        %v3900 = vmax.f32 %v3804, %v3852
        %v3901 = vmax.f32 %v3805, %v3853
        %v3902 = vmax.f32 %v3806, %v3854
        %v3903 = vmax.f32 %v3807, %v3855
        %v3904 = vmax.f32 %v3808, %v3856
        %v3905 = vmax.f32 %v3809, %v3857
        %v3906 = vmax.f32 %v3810, %v3858
        %v3907 = vmax.f32 %v3811, %v3859
        %v3908 = vmax.f32 %v3812, %v3860
        %v3909 = vmax.f32 %v3813, %v3861
        %v3910 = vmax.f32 %v3814, %v3862
        %v3911 = vmax.f32 %v3815, %v3863
        %v3912 = vmax.f32 %v3816, %v3864
        %v3913 = vmax.f32 %v3817, %v3865
        %v3914 = vmax.f32 %v3818, %v3866
        %v3915 = vmax.f32 %v3819, %v3867
        %v3916 = vmax.f32 %v3820, %v3868
        %v3917 = vmax.f32 %v3821, %v3869
        %v3918 = vmax.f32 %v3822, %v3870
        %v3919 = vmax.f32 %v3823, %v3871
        %v3920 = vmax.f32 %v3824, %v3872
        %v3921 = vmax.f32 %v3825, %v3873
        %v3922 = vmax.f32 %v3826, %v3874
        %v3923 = vmax.f32 %v3827, %v3875
        %v3924 = vpack.c.bf16 %v3876, %v3876
        %v3925 = vpack.c.bf16 %v3877, %v3877
        %v3926 = vpack.c.bf16 %v3878, %v3878
        %v3927 = vpack.c.bf16 %v3879, %v3879
        %v3928 = vpack.c.bf16 %v3880, %v3880
        %v3929 = vpack.c.bf16 %v3881, %v3881
        %v3930 = vpack.c.bf16 %v3882, %v3882
        %v3931 = vpack.c.bf16 %v3883, %v3883
        %v3932 = vpack.c.bf16 %v3884, %v3884
        %v3933 = vpack.c.bf16 %v3885, %v3885
        %v3934 = vpack.c.bf16 %v3886, %v3886
        %v3935 = vpack.c.bf16 %v3887, %v3887
        %v3936 = vpack.c.bf16 %v3888, %v3888
        %v3937 = vpack.c.bf16 %v3889, %v3889
        %v3938 = vpack.c.bf16 %v3890, %v3890
        %v3939 = vpack.c.bf16 %v3891, %v3891
        %v3940 = vpack.c.bf16 %v3892, %v3892
        %v3941 = vpack.c.bf16 %v3893, %v3893
        %v3942 = vpack.c.bf16 %v3894, %v3894
        %v3943 = vpack.c.bf16 %v3895, %v3895
        %v3944 = vpack.c.bf16 %v3896, %v3896
        %v3945 = vpack.c.bf16 %v3897, %v3897
        %v3946 = vpack.c.bf16 %v3898, %v3898
        %v3947 = vpack.c.bf16 %v3899, %v3899
        %v3948 = vpack.c.bf16 %v3900, %v3900
        %v3949 = vpack.c.bf16 %v3901, %v3901
        %v3950 = vpack.c.bf16 %v3902, %v3902
        %v3951 = vpack.c.bf16 %v3903, %v3903
        %v3952 = vpack.c.bf16 %v3904, %v3904
        %v3953 = vpack.c.bf16 %v3905, %v3905
        %v3954 = vpack.c.bf16 %v3906, %v3906
        %v3955 = vpack.c.bf16 %v3907, %v3907
        %v3956 = vpack.c.bf16 %v3908, %v3908
        %v3957 = vpack.c.bf16 %v3909, %v3909
        %v3958 = vpack.c.bf16 %v3910, %v3910
        %v3959 = vpack.c.bf16 %v3911, %v3911
        %v3960 = vpack.c.bf16 %v3912, %v3912
        %v3961 = vpack.c.bf16 %v3913, %v3913
        %v3962 = vpack.c.bf16 %v3914, %v3914
        %v3963 = vpack.c.bf16 %v3915, %v3915
        %v3964 = vpack.c.bf16 %v3916, %v3916
        %v3965 = vpack.c.bf16 %v3917, %v3917
        %v3966 = vpack.c.bf16 %v3918, %v3918
        %v3967 = vpack.c.bf16 %v3919, %v3919
        %v3968 = vpack.c.bf16 %v3920, %v3920
        %v3969 = vpack.c.bf16 %v3921, %v3921
        %v3970 = vpack.c.bf16 %v3922, %v3922
        %v3971 = vpack.c.bf16 %v3923, %v3923
        %v3972 = vld [vmem:[%s1386] sm:$0xf]
        %v3973 = vld [vmem:[%s1386 + $0x4] sm:$0xf]
        %v3974 = vld [vmem:[%s1386 + $0x8] sm:$0x3]
        %v3975 = vld [vmem:[%s1386 + $0xc] sm:$0xf]
        %v3976 = vld [vmem:[%s1386 + $0x10] sm:$0xf]
        %v3977 = vld [vmem:[%s1386 + $0x14] sm:$0x3]
        %v3978 = vld [vmem:[%s1386 + $0x18] sm:$0xf]
        %v3979 = vld [vmem:[%s1386 + $0x1c] sm:$0xf]
        %v3980 = vld [vmem:[%s1386 + $0x20] sm:$0x3]
        %v3981 = vld [vmem:[%s1386 + $0x24] sm:$0xf]
        %v3982 = vld [vmem:[%s1386 + $0x28] sm:$0xf]
        %v3983 = vld [vmem:[%s1386 + $0x2c] sm:$0x3]
        %v3984 = vld [vmem:[%s1386 + $0x30] sm:$0xf]
        %v3985 = vld [vmem:[%s1386 + $0x34] sm:$0xf]
        %v3986 = vld [vmem:[%s1386 + $0x38] sm:$0x3]
        %v3987 = vld [vmem:[%s1386 + $0x3c] sm:$0xf]
        %v3988 = vld [vmem:[%s1386 + $0x40] sm:$0xf]
        %v3989 = vld [vmem:[%s1386 + $0x44] sm:$0x3]
        %v3990 = vld [vmem:[%s1386 + $0x48] sm:$0xf]
        %v3991 = vld [vmem:[%s1386 + $0x4c] sm:$0xf]
        %v3992 = vld [vmem:[%s1386 + $0x50] sm:$0x3]
        %v3993 = vld [vmem:[%s1386 + $0x54] sm:$0xf]
        %v3994 = vld [vmem:[%s1386 + $0x58] sm:$0xf]
        %v3995 = vld [vmem:[%s1386 + $0x5c] sm:$0x3]
        %v3996 = vld [vmem:[%s1386 + $0x60] sm:$0xf]
        %v3997 = vld [vmem:[%s1386 + $0x64] sm:$0xf]
        %v3998 = vld [vmem:[%s1386 + $0x68] sm:$0x3]
        %v3999 = vld [vmem:[%s1386 + $0x6c] sm:$0xf]
        %v4000 = vld [vmem:[%s1386 + $0x70] sm:$0xf]
        %v4001 = vld [vmem:[%s1386 + $0x74] sm:$0x3]
        %v4002 = vld [vmem:[%s1386 + $0x78] sm:$0xf]
        %v4003 = vld [vmem:[%s1386 + $0x7c] sm:$0xf]
        %v4004 = vld [vmem:[%s1386 + $0x80] sm:$0x3]
        %v4005 = vld [vmem:[%s1386 + $0x84] sm:$0xf]
        %v4006 = vld [vmem:[%s1386 + $0x88] sm:$0xf]
        %v4007 = vld [vmem:[%s1386 + $0x8c] sm:$0x3]
        %v4008 = vld [vmem:[%s1386 + $0x90] sm:$0xf]
        %v4009 = vld [vmem:[%s1386 + $0x94] sm:$0xf]
        %v4010 = vld [vmem:[%s1386 + $0x98] sm:$0x3]
        %v4011 = vld [vmem:[%s1386 + $0x9c] sm:$0xf]
        %v4012 = vld [vmem:[%s1386 + $0xa0] sm:$0xf]
        %v4013 = vld [vmem:[%s1386 + $0xa4] sm:$0x3]
        %v4014 = vld [vmem:[%s1386 + $0xa8] sm:$0xf]
        %v4015 = vld [vmem:[%s1386 + $0xac] sm:$0xf]
        %v4016 = vld [vmem:[%s1386 + $0xb0] sm:$0x3]
        %v4017 = vld [vmem:[%s1386 + $0xb4] sm:$0xf]
        %v4018 = vld [vmem:[%s1386 + $0xb8] sm:$0xf]
        %v4019 = vld [vmem:[%s1386 + $0xbc] sm:$0x3]
        %v4020 = vunpack.c.l.bf16 %v3924
        %v4021 = vunpack.c.l.bf16 %v3925
        %v4022 = vunpack.c.l.bf16 %v3926
        %v4023 = vunpack.c.l.bf16 %v3927
        %v4024 = vunpack.c.l.bf16 %v3928
        %v4025 = vunpack.c.l.bf16 %v3929
        %v4026 = vunpack.c.l.bf16 %v3930
        %v4027 = vunpack.c.l.bf16 %v3931
        %v4028 = vunpack.c.l.bf16 %v3932
        %v4029 = vunpack.c.l.bf16 %v3933
        %v4030 = vunpack.c.l.bf16 %v3934
        %v4031 = vunpack.c.l.bf16 %v3935
        %v4032 = vunpack.c.l.bf16 %v3936
        %v4033 = vunpack.c.l.bf16 %v3937
        %v4034 = vunpack.c.l.bf16 %v3938
        %v4035 = vunpack.c.l.bf16 %v3939
        %v4036 = vunpack.c.l.bf16 %v3940
        %v4037 = vunpack.c.l.bf16 %v3941
        %v4038 = vunpack.c.l.bf16 %v3942
        %v4039 = vunpack.c.l.bf16 %v3943
        %v4040 = vunpack.c.l.bf16 %v3944
        %v4041 = vunpack.c.l.bf16 %v3945
        %v4042 = vunpack.c.l.bf16 %v3946
        %v4043 = vunpack.c.l.bf16 %v3947
        %v4044 = vunpack.c.l.bf16 %v3948
        %v4045 = vunpack.c.l.bf16 %v3949
        %v4046 = vunpack.c.l.bf16 %v3950
        %v4047 = vunpack.c.l.bf16 %v3951
        %v4048 = vunpack.c.l.bf16 %v3952
        %v4049 = vunpack.c.l.bf16 %v3953
        %v4050 = vunpack.c.l.bf16 %v3954
        %v4051 = vunpack.c.l.bf16 %v3955
        %v4052 = vunpack.c.l.bf16 %v3956
        %v4053 = vunpack.c.l.bf16 %v3957
        %v4054 = vunpack.c.l.bf16 %v3958
        %v4055 = vunpack.c.l.bf16 %v3959
        %v4056 = vunpack.c.l.bf16 %v3960
        %v4057 = vunpack.c.l.bf16 %v3961
        %v4058 = vunpack.c.l.bf16 %v3962
        %v4059 = vunpack.c.l.bf16 %v3963
        %v4060 = vunpack.c.l.bf16 %v3964
        %v4061 = vunpack.c.l.bf16 %v3965
        %v4062 = vunpack.c.l.bf16 %v3966
        %v4063 = vunpack.c.l.bf16 %v3967
        %v4064 = vunpack.c.l.bf16 %v3968
        %v4065 = vunpack.c.l.bf16 %v3969
        %v4066 = vunpack.c.l.bf16 %v3970
        %v4067 = vunpack.c.l.bf16 %v3971
        %v4068 = vunpack.c.l.bf16 %v3972
        %v4069 = vunpack.c.l.bf16 %v3973
        %v4070 = vunpack.c.l.bf16 %v3974
        %v4071 = vunpack.c.l.bf16 %v3975
        %v4072 = vunpack.c.l.bf16 %v3976
        %v4073 = vunpack.c.l.bf16 %v3977
        %v4074 = vunpack.c.l.bf16 %v3978
        %v4075 = vunpack.c.l.bf16 %v3979
        %v4076 = vunpack.c.l.bf16 %v3980
        %v4077 = vunpack.c.l.bf16 %v3981
        %v4078 = vunpack.c.l.bf16 %v3982
        %v4079 = vunpack.c.l.bf16 %v3983
        %v4080 = vunpack.c.l.bf16 %v3984
        %v4081 = vunpack.c.l.bf16 %v3985
        %v4082 = vunpack.c.l.bf16 %v3986
        %v4083 = vunpack.c.l.bf16 %v3987
        %v4084 = vunpack.c.l.bf16 %v3988
        %v4085 = vunpack.c.l.bf16 %v3989
        %v4086 = vunpack.c.l.bf16 %v3990
        %v4087 = vunpack.c.l.bf16 %v3991
        %v4088 = vunpack.c.l.bf16 %v3992
        %v4089 = vunpack.c.l.bf16 %v3993
        %v4090 = vunpack.c.l.bf16 %v3994
        %v4091 = vunpack.c.l.bf16 %v3995
        %v4092 = vunpack.c.l.bf16 %v3996
        %v4093 = vunpack.c.l.bf16 %v3997
        %v4094 = vunpack.c.l.bf16 %v3998
        %v4095 = vunpack.c.l.bf16 %v3999
        %v4096 = vunpack.c.l.bf16 %v4000
        %v4097 = vunpack.c.l.bf16 %v4001
        %v4098 = vunpack.c.l.bf16 %v4002
        %v4099 = vunpack.c.l.bf16 %v4003
        %v4100 = vunpack.c.l.bf16 %v4004
        %v4101 = vunpack.c.l.bf16 %v4005
        %v4102 = vunpack.c.l.bf16 %v4006
        %v4103 = vunpack.c.l.bf16 %v4007
        %v4104 = vunpack.c.l.bf16 %v4008
        %v4105 = vunpack.c.l.bf16 %v4009
        %v4106 = vunpack.c.l.bf16 %v4010
        %v4107 = vunpack.c.l.bf16 %v4011
        %v4108 = vunpack.c.l.bf16 %v4012
        %v4109 = vunpack.c.l.bf16 %v4013
        %v4110 = vunpack.c.l.bf16 %v4014
        %v4111 = vunpack.c.l.bf16 %v4015
        %v4112 = vunpack.c.l.bf16 %v4016
        %v4113 = vunpack.c.l.bf16 %v4017
        %v4114 = vunpack.c.l.bf16 %v4018
        %v4115 = vunpack.c.l.bf16 %v4019
        %v4116 = vmax.f32 %v4020, %v4068
        %v4117 = vmax.f32 %v4021, %v4069
        %v4118 = vmax.f32 %v4022, %v4070
        %v4119 = vmax.f32 %v4023, %v4071
        %v4120 = vmax.f32 %v4024, %v4072
        %v4121 = vmax.f32 %v4025, %v4073
        %v4122 = vmax.f32 %v4026, %v4074
        %v4123 = vmax.f32 %v4027, %v4075
        %v4124 = vmax.f32 %v4028, %v4076
        %v4125 = vmax.f32 %v4029, %v4077
        %v4126 = vmax.f32 %v4030, %v4078
        %v4127 = vmax.f32 %v4031, %v4079
        %v4128 = vmax.f32 %v4032, %v4080
        %v4129 = vmax.f32 %v4033, %v4081
        %v4130 = vmax.f32 %v4034, %v4082
        %v4131 = vmax.f32 %v4035, %v4083
        %v4132 = vmax.f32 %v4036, %v4084
        %v4133 = vmax.f32 %v4037, %v4085
        %v4134 = vmax.f32 %v4038, %v4086
        %v4135 = vmax.f32 %v4039, %v4087
        %v4136 = vmax.f32 %v4040, %v4088
        %v4137 = vmax.f32 %v4041, %v4089
        %v4138 = vmax.f32 %v4042, %v4090
        %v4139 = vmax.f32 %v4043, %v4091
        %v4140 = vmax.f32 %v4044, %v4092
        %v4141 = vmax.f32 %v4045, %v4093
        %v4142 = vmax.f32 %v4046, %v4094
        %v4143 = vmax.f32 %v4047, %v4095
        %v4144 = vmax.f32 %v4048, %v4096
        %v4145 = vmax.f32 %v4049, %v4097
        %v4146 = vmax.f32 %v4050, %v4098
        %v4147 = vmax.f32 %v4051, %v4099
        %v4148 = vmax.f32 %v4052, %v4100
        %v4149 = vmax.f32 %v4053, %v4101
        %v4150 = vmax.f32 %v4054, %v4102
        %v4151 = vmax.f32 %v4055, %v4103
        %v4152 = vmax.f32 %v4056, %v4104
        %v4153 = vmax.f32 %v4057, %v4105
        %v4154 = vmax.f32 %v4058, %v4106
        %v4155 = vmax.f32 %v4059, %v4107
        %v4156 = vmax.f32 %v4060, %v4108
        %v4157 = vmax.f32 %v4061, %v4109
        %v4158 = vmax.f32 %v4062, %v4110
        %v4159 = vmax.f32 %v4063, %v4111
        %v4160 = vmax.f32 %v4064, %v4112
        %v4161 = vmax.f32 %v4065, %v4113
        %v4162 = vmax.f32 %v4066, %v4114
        %v4163 = vmax.f32 %v4067, %v4115
        %v4164 = vpack.c.bf16 %v4116, %v4116
        %v4165 = vpack.c.bf16 %v4117, %v4117
        %v4166 = vpack.c.bf16 %v4118, %v4118
        %v4167 = vpack.c.bf16 %v4119, %v4119
        %v4168 = vpack.c.bf16 %v4120, %v4120
        %v4169 = vpack.c.bf16 %v4121, %v4121
        %v4170 = vpack.c.bf16 %v4122, %v4122
        %v4171 = vpack.c.bf16 %v4123, %v4123
        %v4172 = vpack.c.bf16 %v4124, %v4124
        %v4173 = vpack.c.bf16 %v4125, %v4125
        %v4174 = vpack.c.bf16 %v4126, %v4126
        %v4175 = vpack.c.bf16 %v4127, %v4127
        %v4176 = vpack.c.bf16 %v4128, %v4128
        %v4177 = vpack.c.bf16 %v4129, %v4129
        %v4178 = vpack.c.bf16 %v4130, %v4130
        %v4179 = vpack.c.bf16 %v4131, %v4131
        %v4180 = vpack.c.bf16 %v4132, %v4132
        %v4181 = vpack.c.bf16 %v4133, %v4133
        %v4182 = vpack.c.bf16 %v4134, %v4134
        %v4183 = vpack.c.bf16 %v4135, %v4135
        %v4184 = vpack.c.bf16 %v4136, %v4136
        %v4185 = vpack.c.bf16 %v4137, %v4137
        %v4186 = vpack.c.bf16 %v4138, %v4138
        %v4187 = vpack.c.bf16 %v4139, %v4139
        %v4188 = vpack.c.bf16 %v4140, %v4140
        %v4189 = vpack.c.bf16 %v4141, %v4141
        %v4190 = vpack.c.bf16 %v4142, %v4142
        %v4191 = vpack.c.bf16 %v4143, %v4143
        %v4192 = vpack.c.bf16 %v4144, %v4144
        %v4193 = vpack.c.bf16 %v4145, %v4145
        %v4194 = vpack.c.bf16 %v4146, %v4146
        %v4195 = vpack.c.bf16 %v4147, %v4147
        %v4196 = vpack.c.bf16 %v4148, %v4148
        %v4197 = vpack.c.bf16 %v4149, %v4149
        %v4198 = vpack.c.bf16 %v4150, %v4150
        %v4199 = vpack.c.bf16 %v4151, %v4151
        %v4200 = vpack.c.bf16 %v4152, %v4152
        %v4201 = vpack.c.bf16 %v4153, %v4153
        %v4202 = vpack.c.bf16 %v4154, %v4154
        %v4203 = vpack.c.bf16 %v4155, %v4155
        %v4204 = vpack.c.bf16 %v4156, %v4156
        %v4205 = vpack.c.bf16 %v4157, %v4157
        %v4206 = vpack.c.bf16 %v4158, %v4158
        %v4207 = vpack.c.bf16 %v4159, %v4159
        %v4208 = vpack.c.bf16 %v4160, %v4160
        %v4209 = vpack.c.bf16 %v4161, %v4161
        %v4210 = vpack.c.bf16 %v4162, %v4162
        %v4211 = vpack.c.bf16 %v4163, %v4163
        %v4212 = vld [vmem:[%s1965] sm:$0xf]
        %v4213 = vld [vmem:[%s1965 + $0x4] sm:$0xf]
        %v4214 = vld [vmem:[%s1965 + $0x8] sm:$0x3]
        %v4215 = vld [vmem:[%s1965 + $0xc] sm:$0xf]
        %v4216 = vld [vmem:[%s1965 + $0x10] sm:$0xf]
        %v4217 = vld [vmem:[%s1965 + $0x14] sm:$0x3]
        %v4218 = vld [vmem:[%s1965 + $0x18] sm:$0xf]
        %v4219 = vld [vmem:[%s1965 + $0x1c] sm:$0xf]
        %v4220 = vld [vmem:[%s1965 + $0x20] sm:$0x3]
        %v4221 = vld [vmem:[%s1965 + $0x24] sm:$0xf]
        %v4222 = vld [vmem:[%s1965 + $0x28] sm:$0xf]
        %v4223 = vld [vmem:[%s1965 + $0x2c] sm:$0x3]
        %v4224 = vld [vmem:[%s1965 + $0x30] sm:$0xf]
        %v4225 = vld [vmem:[%s1965 + $0x34] sm:$0xf]
        %v4226 = vld [vmem:[%s1965 + $0x38] sm:$0x3]
        %v4227 = vld [vmem:[%s1965 + $0x3c] sm:$0xf]
        %v4228 = vld [vmem:[%s1965 + $0x40] sm:$0xf]
        %v4229 = vld [vmem:[%s1965 + $0x44] sm:$0x3]
        %v4230 = vld [vmem:[%s1965 + $0x48] sm:$0xf]
        %v4231 = vld [vmem:[%s1965 + $0x4c] sm:$0xf]
        %v4232 = vld [vmem:[%s1965 + $0x50] sm:$0x3]
        %v4233 = vld [vmem:[%s1965 + $0x54] sm:$0xf]
        %v4234 = vld [vmem:[%s1965 + $0x58] sm:$0xf]
        %v4235 = vld [vmem:[%s1965 + $0x5c] sm:$0x3]
        %v4236 = vld [vmem:[%s1965 + $0x60] sm:$0xf]
        %v4237 = vld [vmem:[%s1965 + $0x64] sm:$0xf]
        %v4238 = vld [vmem:[%s1965 + $0x68] sm:$0x3]
        %v4239 = vld [vmem:[%s1965 + $0x6c] sm:$0xf]
        %v4240 = vld [vmem:[%s1965 + $0x70] sm:$0xf]
        %v4241 = vld [vmem:[%s1965 + $0x74] sm:$0x3]
        %v4242 = vld [vmem:[%s1965 + $0x78] sm:$0xf]
        %v4243 = vld [vmem:[%s1965 + $0x7c] sm:$0xf]
        %v4244 = vld [vmem:[%s1965 + $0x80] sm:$0x3]
        %v4245 = vld [vmem:[%s1965 + $0x84] sm:$0xf]
        %v4246 = vld [vmem:[%s1965 + $0x88] sm:$0xf]
        %v4247 = vld [vmem:[%s1965 + $0x8c] sm:$0x3]
        %v4248 = vld [vmem:[%s1965 + $0x90] sm:$0xf]
        %v4249 = vld [vmem:[%s1965 + $0x94] sm:$0xf]
        %v4250 = vld [vmem:[%s1965 + $0x98] sm:$0x3]
        %v4251 = vld [vmem:[%s1965 + $0x9c] sm:$0xf]
        %v4252 = vld [vmem:[%s1965 + $0xa0] sm:$0xf]
        %v4253 = vld [vmem:[%s1965 + $0xa4] sm:$0x3]
        %v4254 = vld [vmem:[%s1965 + $0xa8] sm:$0xf]
        %v4255 = vld [vmem:[%s1965 + $0xac] sm:$0xf]
        %v4256 = vld [vmem:[%s1965 + $0xb0] sm:$0x3]
        %v4257 = vld [vmem:[%s1965 + $0xb4] sm:$0xf]
        %v4258 = vld [vmem:[%s1965 + $0xb8] sm:$0xf]
        %v4259 = vld [vmem:[%s1965 + $0xbc] sm:$0x3]
        %v4260 = vunpack.c.l.bf16 %v4164
        %v4261 = vunpack.c.l.bf16 %v4165
        %v4262 = vunpack.c.l.bf16 %v4166
        %v4263 = vunpack.c.l.bf16 %v4167
        %v4264 = vunpack.c.l.bf16 %v4168
        %v4265 = vunpack.c.l.bf16 %v4169
        %v4266 = vunpack.c.l.bf16 %v4170
        %v4267 = vunpack.c.l.bf16 %v4171
        %v4268 = vunpack.c.l.bf16 %v4172
        %v4269 = vunpack.c.l.bf16 %v4173
        %v4270 = vunpack.c.l.bf16 %v4174
        %v4271 = vunpack.c.l.bf16 %v4175
        %v4272 = vunpack.c.l.bf16 %v4176
        %v4273 = vunpack.c.l.bf16 %v4177
        %v4274 = vunpack.c.l.bf16 %v4178
        %v4275 = vunpack.c.l.bf16 %v4179
        %v4276 = vunpack.c.l.bf16 %v4180
        %v4277 = vunpack.c.l.bf16 %v4181
        %v4278 = vunpack.c.l.bf16 %v4182
        %v4279 = vunpack.c.l.bf16 %v4183
        %v4280 = vunpack.c.l.bf16 %v4184
        %v4281 = vunpack.c.l.bf16 %v4185
        %v4282 = vunpack.c.l.bf16 %v4186
        %v4283 = vunpack.c.l.bf16 %v4187
        %v4284 = vunpack.c.l.bf16 %v4188
        %v4285 = vunpack.c.l.bf16 %v4189
        %v4286 = vunpack.c.l.bf16 %v4190
        %v4287 = vunpack.c.l.bf16 %v4191
        %v4288 = vunpack.c.l.bf16 %v4192
        %v4289 = vunpack.c.l.bf16 %v4193
        %v4290 = vunpack.c.l.bf16 %v4194
        %v4291 = vunpack.c.l.bf16 %v4195
        %v4292 = vunpack.c.l.bf16 %v4196
        %v4293 = vunpack.c.l.bf16 %v4197
        %v4294 = vunpack.c.l.bf16 %v4198
        %v4295 = vunpack.c.l.bf16 %v4199
        %v4296 = vunpack.c.l.bf16 %v4200
        %v4297 = vunpack.c.l.bf16 %v4201
        %v4298 = vunpack.c.l.bf16 %v4202
        %v4299 = vunpack.c.l.bf16 %v4203
        %v4300 = vunpack.c.l.bf16 %v4204
        %v4301 = vunpack.c.l.bf16 %v4205
        %v4302 = vunpack.c.l.bf16 %v4206
        %v4303 = vunpack.c.l.bf16 %v4207
        %v4304 = vunpack.c.l.bf16 %v4208
        %v4305 = vunpack.c.l.bf16 %v4209
        %v4306 = vunpack.c.l.bf16 %v4210
        %v4307 = vunpack.c.l.bf16 %v4211
        %v4308 = vunpack.c.l.bf16 %v4212
        %v4309 = vunpack.c.l.bf16 %v4213
        %v4310 = vunpack.c.l.bf16 %v4214
        %v4311 = vunpack.c.l.bf16 %v4215
        %v4312 = vunpack.c.l.bf16 %v4216
        %v4313 = vunpack.c.l.bf16 %v4217
        %v4314 = vunpack.c.l.bf16 %v4218
        %v4315 = vunpack.c.l.bf16 %v4219
        %v4316 = vunpack.c.l.bf16 %v4220
        %v4317 = vunpack.c.l.bf16 %v4221
        %v4318 = vunpack.c.l.bf16 %v4222
        %v4319 = vunpack.c.l.bf16 %v4223
        %v4320 = vunpack.c.l.bf16 %v4224
        %v4321 = vunpack.c.l.bf16 %v4225
        %v4322 = vunpack.c.l.bf16 %v4226
        %v4323 = vunpack.c.l.bf16 %v4227
        %v4324 = vunpack.c.l.bf16 %v4228
        %v4325 = vunpack.c.l.bf16 %v4229
        %v4326 = vunpack.c.l.bf16 %v4230
        %v4327 = vunpack.c.l.bf16 %v4231
        %v4328 = vunpack.c.l.bf16 %v4232
        %v4329 = vunpack.c.l.bf16 %v4233
        %v4330 = vunpack.c.l.bf16 %v4234
        %v4331 = vunpack.c.l.bf16 %v4235
        %v4332 = vunpack.c.l.bf16 %v4236
        %v4333 = vunpack.c.l.bf16 %v4237
        %v4334 = vunpack.c.l.bf16 %v4238
        %v4335 = vunpack.c.l.bf16 %v4239
        %v4336 = vunpack.c.l.bf16 %v4240
        %v4337 = vunpack.c.l.bf16 %v4241
        %v4338 = vunpack.c.l.bf16 %v4242
        %v4339 = vunpack.c.l.bf16 %v4243
        %v4340 = vunpack.c.l.bf16 %v4244
        %v4341 = vunpack.c.l.bf16 %v4245
        %v4342 = vunpack.c.l.bf16 %v4246
        %v4343 = vunpack.c.l.bf16 %v4247
        %v4344 = vunpack.c.l.bf16 %v4248
        %v4345 = vunpack.c.l.bf16 %v4249
        %v4346 = vunpack.c.l.bf16 %v4250
        %v4347 = vunpack.c.l.bf16 %v4251
        %v4348 = vunpack.c.l.bf16 %v4252
        %v4349 = vunpack.c.l.bf16 %v4253
        %v4350 = vunpack.c.l.bf16 %v4254
        %v4351 = vunpack.c.l.bf16 %v4255
        %v4352 = vunpack.c.l.bf16 %v4256
        %v4353 = vunpack.c.l.bf16 %v4257
        %v4354 = vunpack.c.l.bf16 %v4258
        %v4355 = vunpack.c.l.bf16 %v4259
        %v4356 = vmax.f32 %v4260, %v4308
        %v4357 = vmax.f32 %v4261, %v4309
        %v4358 = vmax.f32 %v4262, %v4310
        %v4359 = vmax.f32 %v4263, %v4311
        %v4360 = vmax.f32 %v4264, %v4312
        %v4361 = vmax.f32 %v4265, %v4313
        %v4362 = vmax.f32 %v4266, %v4314
        %v4363 = vmax.f32 %v4267, %v4315
        %v4364 = vmax.f32 %v4268, %v4316
        %v4365 = vmax.f32 %v4269, %v4317
        %v4366 = vmax.f32 %v4270, %v4318
        %v4367 = vmax.f32 %v4271, %v4319
        %v4368 = vmax.f32 %v4272, %v4320
        %v4369 = vmax.f32 %v4273, %v4321
        %v4370 = vmax.f32 %v4274, %v4322
        %v4371 = vmax.f32 %v4275, %v4323
        %v4372 = vmax.f32 %v4276, %v4324
        %v4373 = vmax.f32 %v4277, %v4325
        %v4374 = vmax.f32 %v4278, %v4326
        %v4375 = vmax.f32 %v4279, %v4327
        %v4376 = vmax.f32 %v4280, %v4328
        %v4377 = vmax.f32 %v4281, %v4329
        %v4378 = vmax.f32 %v4282, %v4330
        %v4379 = vmax.f32 %v4283, %v4331
        %v4380 = vmax.f32 %v4284, %v4332
        %v4381 = vmax.f32 %v4285, %v4333
        %v4382 = vmax.f32 %v4286, %v4334
        %v4383 = vmax.f32 %v4287, %v4335
        %v4384 = vmax.f32 %v4288, %v4336
        %v4385 = vmax.f32 %v4289, %v4337
        %v4386 = vmax.f32 %v4290, %v4338
        %v4387 = vmax.f32 %v4291, %v4339
        %v4388 = vmax.f32 %v4292, %v4340
        %v4389 = vmax.f32 %v4293, %v4341
        %v4390 = vmax.f32 %v4294, %v4342
        %v4391 = vmax.f32 %v4295, %v4343
        %v4392 = vmax.f32 %v4296, %v4344
        %v4393 = vmax.f32 %v4297, %v4345
        %v4394 = vmax.f32 %v4298, %v4346
        %v4395 = vmax.f32 %v4299, %v4347
        %v4396 = vmax.f32 %v4300, %v4348
        %v4397 = vmax.f32 %v4301, %v4349
        %v4398 = vmax.f32 %v4302, %v4350
        %v4399 = vmax.f32 %v4303, %v4351
        %v4400 = vmax.f32 %v4304, %v4352
        %v4401 = vmax.f32 %v4305, %v4353
        %v4402 = vmax.f32 %v4306, %v4354
        %v4403 = vmax.f32 %v4307, %v4355
        %v4404 = vpack.c.bf16 %v4356, %v4356
        %v4405 = vpack.c.bf16 %v4357, %v4357
        %v4406 = vpack.c.bf16 %v4358, %v4358
        %v4407 = vpack.c.bf16 %v4359, %v4359
        %v4408 = vpack.c.bf16 %v4360, %v4360
        %v4409 = vpack.c.bf16 %v4361, %v4361
        %v4410 = vpack.c.bf16 %v4362, %v4362
        %v4411 = vpack.c.bf16 %v4363, %v4363
        %v4412 = vpack.c.bf16 %v4364, %v4364
        %v4413 = vpack.c.bf16 %v4365, %v4365
        %v4414 = vpack.c.bf16 %v4366, %v4366
        %v4415 = vpack.c.bf16 %v4367, %v4367
        %v4416 = vpack.c.bf16 %v4368, %v4368
        %v4417 = vpack.c.bf16 %v4369, %v4369
        %v4418 = vpack.c.bf16 %v4370, %v4370
        %v4419 = vpack.c.bf16 %v4371, %v4371
        %v4420 = vpack.c.bf16 %v4372, %v4372
        %v4421 = vpack.c.bf16 %v4373, %v4373
        %v4422 = vpack.c.bf16 %v4374, %v4374
        %v4423 = vpack.c.bf16 %v4375, %v4375
        %v4424 = vpack.c.bf16 %v4376, %v4376
        %v4425 = vpack.c.bf16 %v4377, %v4377
        %v4426 = vpack.c.bf16 %v4378, %v4378
        %v4427 = vpack.c.bf16 %v4379, %v4379
        %v4428 = vpack.c.bf16 %v4380, %v4380
        %v4429 = vpack.c.bf16 %v4381, %v4381
        %v4430 = vpack.c.bf16 %v4382, %v4382
        %v4431 = vpack.c.bf16 %v4383, %v4383
        %v4432 = vpack.c.bf16 %v4384, %v4384
        %v4433 = vpack.c.bf16 %v4385, %v4385
        %v4434 = vpack.c.bf16 %v4386, %v4386
        %v4435 = vpack.c.bf16 %v4387, %v4387
        %v4436 = vpack.c.bf16 %v4388, %v4388
        %v4437 = vpack.c.bf16 %v4389, %v4389
        %v4438 = vpack.c.bf16 %v4390, %v4390
        %v4439 = vpack.c.bf16 %v4391, %v4391
        %v4440 = vpack.c.bf16 %v4392, %v4392
        %v4441 = vpack.c.bf16 %v4393, %v4393
        %v4442 = vpack.c.bf16 %v4394, %v4394
        %v4443 = vpack.c.bf16 %v4395, %v4395
        %v4444 = vpack.c.bf16 %v4396, %v4396
        %v4445 = vpack.c.bf16 %v4397, %v4397
        %v4446 = vpack.c.bf16 %v4398, %v4398
        %v4447 = vpack.c.bf16 %v4399, %v4399
        %v4448 = vpack.c.bf16 %v4400, %v4400
        %v4449 = vpack.c.bf16 %v4401, %v4401
        %v4450 = vpack.c.bf16 %v4402, %v4402
        %v4451 = vpack.c.bf16 %v4403, %v4403
        %v4452 = vld [vmem:[%s2206] sm:$0xf]
        %v4453 = vld [vmem:[%s2206 + $0x4] sm:$0xf]
        %v4454 = vld [vmem:[%s2206 + $0x8] sm:$0x3]
        %v4455 = vld [vmem:[%s2206 + $0xc] sm:$0xf]
        %v4456 = vld [vmem:[%s2206 + $0x10] sm:$0xf]
        %v4457 = vld [vmem:[%s2206 + $0x14] sm:$0x3]
        %v4458 = vld [vmem:[%s2206 + $0x18] sm:$0xf]
        %v4459 = vld [vmem:[%s2206 + $0x1c] sm:$0xf]
        %v4460 = vld [vmem:[%s2206 + $0x20] sm:$0x3]
        %v4461 = vld [vmem:[%s2206 + $0x24] sm:$0xf]
        %v4462 = vld [vmem:[%s2206 + $0x28] sm:$0xf]
        %v4463 = vld [vmem:[%s2206 + $0x2c] sm:$0x3]
        %v4464 = vld [vmem:[%s2206 + $0x30] sm:$0xf]
        %v4465 = vld [vmem:[%s2206 + $0x34] sm:$0xf]
        %v4466 = vld [vmem:[%s2206 + $0x38] sm:$0x3]
        %v4467 = vld [vmem:[%s2206 + $0x3c] sm:$0xf]
        %v4468 = vld [vmem:[%s2206 + $0x40] sm:$0xf]
        %v4469 = vld [vmem:[%s2206 + $0x44] sm:$0x3]
        %v4470 = vld [vmem:[%s2206 + $0x48] sm:$0xf]
        %v4471 = vld [vmem:[%s2206 + $0x4c] sm:$0xf]
        %v4472 = vld [vmem:[%s2206 + $0x50] sm:$0x3]
        %v4473 = vld [vmem:[%s2206 + $0x54] sm:$0xf]
        %v4474 = vld [vmem:[%s2206 + $0x58] sm:$0xf]
        %v4475 = vld [vmem:[%s2206 + $0x5c] sm:$0x3]
        %v4476 = vld [vmem:[%s2206 + $0x60] sm:$0xf]
        %v4477 = vld [vmem:[%s2206 + $0x64] sm:$0xf]
        %v4478 = vld [vmem:[%s2206 + $0x68] sm:$0x3]
        %v4479 = vld [vmem:[%s2206 + $0x6c] sm:$0xf]
        %v4480 = vld [vmem:[%s2206 + $0x70] sm:$0xf]
        %v4481 = vld [vmem:[%s2206 + $0x74] sm:$0x3]
        %v4482 = vld [vmem:[%s2206 + $0x78] sm:$0xf]
        %v4483 = vld [vmem:[%s2206 + $0x7c] sm:$0xf]
        %v4484 = vld [vmem:[%s2206 + $0x80] sm:$0x3]
        %v4485 = vld [vmem:[%s2206 + $0x84] sm:$0xf]
        %v4486 = vld [vmem:[%s2206 + $0x88] sm:$0xf]
        %v4487 = vld [vmem:[%s2206 + $0x8c] sm:$0x3]
        %v4488 = vld [vmem:[%s2206 + $0x90] sm:$0xf]
        %v4489 = vld [vmem:[%s2206 + $0x94] sm:$0xf]
        %v4490 = vld [vmem:[%s2206 + $0x98] sm:$0x3]
        %v4491 = vld [vmem:[%s2206 + $0x9c] sm:$0xf]
        %v4492 = vld [vmem:[%s2206 + $0xa0] sm:$0xf]
        %v4493 = vld [vmem:[%s2206 + $0xa4] sm:$0x3]
        %v4494 = vld [vmem:[%s2206 + $0xa8] sm:$0xf]
        %v4495 = vld [vmem:[%s2206 + $0xac] sm:$0xf]
        %v4496 = vld [vmem:[%s2206 + $0xb0] sm:$0x3]
        %v4497 = vld [vmem:[%s2206 + $0xb4] sm:$0xf]
        %v4498 = vld [vmem:[%s2206 + $0xb8] sm:$0xf]
        %v4499 = vld [vmem:[%s2206 + $0xbc] sm:$0x3]
        %v4500 = vunpack.c.l.bf16 %v4404
        %v4501 = vunpack.c.l.bf16 %v4405
        %v4502 = vunpack.c.l.bf16 %v4406
        %v4503 = vunpack.c.l.bf16 %v4407
        %v4504 = vunpack.c.l.bf16 %v4408
        %v4505 = vunpack.c.l.bf16 %v4409
        %v4506 = vunpack.c.l.bf16 %v4410
        %v4507 = vunpack.c.l.bf16 %v4411
        %v4508 = vunpack.c.l.bf16 %v4412
        %v4509 = vunpack.c.l.bf16 %v4413
        %v4510 = vunpack.c.l.bf16 %v4414
        %v4511 = vunpack.c.l.bf16 %v4415
        %v4512 = vunpack.c.l.bf16 %v4416
        %v4513 = vunpack.c.l.bf16 %v4417
        %v4514 = vunpack.c.l.bf16 %v4418
        %v4515 = vunpack.c.l.bf16 %v4419
        %v4516 = vunpack.c.l.bf16 %v4420
        %v4517 = vunpack.c.l.bf16 %v4421
        %v4518 = vunpack.c.l.bf16 %v4422
        %v4519 = vunpack.c.l.bf16 %v4423
        %v4520 = vunpack.c.l.bf16 %v4424
        %v4521 = vunpack.c.l.bf16 %v4425
        %v4522 = vunpack.c.l.bf16 %v4426
        %v4523 = vunpack.c.l.bf16 %v4427
        %v4524 = vunpack.c.l.bf16 %v4428
        %v4525 = vunpack.c.l.bf16 %v4429
        %v4526 = vunpack.c.l.bf16 %v4430
        %v4527 = vunpack.c.l.bf16 %v4431
        %v4528 = vunpack.c.l.bf16 %v4432
        %v4529 = vunpack.c.l.bf16 %v4433
        %v4530 = vunpack.c.l.bf16 %v4434
        %v4531 = vunpack.c.l.bf16 %v4435
        %v4532 = vunpack.c.l.bf16 %v4436
        %v4533 = vunpack.c.l.bf16 %v4437
        %v4534 = vunpack.c.l.bf16 %v4438
        %v4535 = vunpack.c.l.bf16 %v4439
        %v4536 = vunpack.c.l.bf16 %v4440
        %v4537 = vunpack.c.l.bf16 %v4441
        %v4538 = vunpack.c.l.bf16 %v4442
        %v4539 = vunpack.c.l.bf16 %v4443
        %v4540 = vunpack.c.l.bf16 %v4444
        %v4541 = vunpack.c.l.bf16 %v4445
        %v4542 = vunpack.c.l.bf16 %v4446
        %v4543 = vunpack.c.l.bf16 %v4447
        %v4544 = vunpack.c.l.bf16 %v4448
        %v4545 = vunpack.c.l.bf16 %v4449
        %v4546 = vunpack.c.l.bf16 %v4450
        %v4547 = vunpack.c.l.bf16 %v4451
        %v4548 = vunpack.c.l.bf16 %v4452
        %v4549 = vunpack.c.l.bf16 %v4453
        %v4550 = vunpack.c.l.bf16 %v4454
        %v4551 = vunpack.c.l.bf16 %v4455
        %v4552 = vunpack.c.l.bf16 %v4456
        %v4553 = vunpack.c.l.bf16 %v4457
        %v4554 = vunpack.c.l.bf16 %v4458
        %v4555 = vunpack.c.l.bf16 %v4459
        %v4556 = vunpack.c.l.bf16 %v4460
        %v4557 = vunpack.c.l.bf16 %v4461
        %v4558 = vunpack.c.l.bf16 %v4462
        %v4559 = vunpack.c.l.bf16 %v4463
        %v4560 = vunpack.c.l.bf16 %v4464
        %v4561 = vunpack.c.l.bf16 %v4465
        %v4562 = vunpack.c.l.bf16 %v4466
        %v4563 = vunpack.c.l.bf16 %v4467
        %v4564 = vunpack.c.l.bf16 %v4468
        %v4565 = vunpack.c.l.bf16 %v4469
        %v4566 = vunpack.c.l.bf16 %v4470
        %v4567 = vunpack.c.l.bf16 %v4471
        %v4568 = vunpack.c.l.bf16 %v4472
        %v4569 = vunpack.c.l.bf16 %v4473
        %v4570 = vunpack.c.l.bf16 %v4474
        %v4571 = vunpack.c.l.bf16 %v4475
        %v4572 = vunpack.c.l.bf16 %v4476
        %v4573 = vunpack.c.l.bf16 %v4477
        %v4574 = vunpack.c.l.bf16 %v4478
        %v4575 = vunpack.c.l.bf16 %v4479
        %v4576 = vunpack.c.l.bf16 %v4480
        %v4577 = vunpack.c.l.bf16 %v4481
        %v4578 = vunpack.c.l.bf16 %v4482
        %v4579 = vunpack.c.l.bf16 %v4483
        %v4580 = vunpack.c.l.bf16 %v4484
        %v4581 = vunpack.c.l.bf16 %v4485
        %v4582 = vunpack.c.l.bf16 %v4486
        %v4583 = vunpack.c.l.bf16 %v4487
        %v4584 = vunpack.c.l.bf16 %v4488
        %v4585 = vunpack.c.l.bf16 %v4489
        %v4586 = vunpack.c.l.bf16 %v4490
        %v4587 = vunpack.c.l.bf16 %v4491
        %v4588 = vunpack.c.l.bf16 %v4492
        %v4589 = vunpack.c.l.bf16 %v4493
        %v4590 = vunpack.c.l.bf16 %v4494
        %v4591 = vunpack.c.l.bf16 %v4495
        %v4592 = vunpack.c.l.bf16 %v4496
        %v4593 = vunpack.c.l.bf16 %v4497
        %v4594 = vunpack.c.l.bf16 %v4498
        %v4595 = vunpack.c.l.bf16 %v4499
        %v4596 = vmax.f32 %v4500, %v4548
        %v4597 = vmax.f32 %v4501, %v4549
        %v4598 = vmax.f32 %v4502, %v4550
        %v4599 = vmax.f32 %v4503, %v4551
        %v4600 = vmax.f32 %v4504, %v4552
        %v4601 = vmax.f32 %v4505, %v4553
        %v4602 = vmax.f32 %v4506, %v4554
        %v4603 = vmax.f32 %v4507, %v4555
        %v4604 = vmax.f32 %v4508, %v4556
        %v4605 = vmax.f32 %v4509, %v4557
        %v4606 = vmax.f32 %v4510, %v4558
        %v4607 = vmax.f32 %v4511, %v4559
        %v4608 = vmax.f32 %v4512, %v4560
        %v4609 = vmax.f32 %v4513, %v4561
        %v4610 = vmax.f32 %v4514, %v4562
        %v4611 = vmax.f32 %v4515, %v4563
        %v4612 = vmax.f32 %v4516, %v4564
        %v4613 = vmax.f32 %v4517, %v4565
        %v4614 = vmax.f32 %v4518, %v4566
        %v4615 = vmax.f32 %v4519, %v4567
        %v4616 = vmax.f32 %v4520, %v4568
        %v4617 = vmax.f32 %v4521, %v4569
        %v4618 = vmax.f32 %v4522, %v4570
        %v4619 = vmax.f32 %v4523, %v4571
        %v4620 = vmax.f32 %v4524, %v4572
        %v4621 = vmax.f32 %v4525, %v4573
        %v4622 = vmax.f32 %v4526, %v4574
        %v4623 = vmax.f32 %v4527, %v4575
        %v4624 = vmax.f32 %v4528, %v4576
        %v4625 = vmax.f32 %v4529, %v4577
        %v4626 = vmax.f32 %v4530, %v4578
        %v4627 = vmax.f32 %v4531, %v4579
        %v4628 = vmax.f32 %v4532, %v4580
        %v4629 = vmax.f32 %v4533, %v4581
        %v4630 = vmax.f32 %v4534, %v4582
        %v4631 = vmax.f32 %v4535, %v4583
        %v4632 = vmax.f32 %v4536, %v4584
        %v4633 = vmax.f32 %v4537, %v4585
        %v4634 = vmax.f32 %v4538, %v4586
        %v4635 = vmax.f32 %v4539, %v4587
        %v4636 = vmax.f32 %v4540, %v4588
        %v4637 = vmax.f32 %v4541, %v4589
        %v4638 = vmax.f32 %v4542, %v4590
        %v4639 = vmax.f32 %v4543, %v4591
        %v4640 = vmax.f32 %v4544, %v4592
        %v4641 = vmax.f32 %v4545, %v4593
        %v4642 = vmax.f32 %v4546, %v4594
        %v4643 = vmax.f32 %v4547, %v4595
        %v4644 = vpack.c.bf16 %v4596, %v4596
        %v4645 = vpack.c.bf16 %v4597, %v4597
        %v4646 = vpack.c.bf16 %v4598, %v4598
        %v4647 = vpack.c.bf16 %v4599, %v4599
        %v4648 = vpack.c.bf16 %v4600, %v4600
        %v4649 = vpack.c.bf16 %v4601, %v4601
        %v4650 = vpack.c.bf16 %v4602, %v4602
        %v4651 = vpack.c.bf16 %v4603, %v4603
        %v4652 = vpack.c.bf16 %v4604, %v4604
        %v4653 = vpack.c.bf16 %v4605, %v4605
        %v4654 = vpack.c.bf16 %v4606, %v4606
        %v4655 = vpack.c.bf16 %v4607, %v4607
        %v4656 = vpack.c.bf16 %v4608, %v4608
        %v4657 = vpack.c.bf16 %v4609, %v4609
        %v4658 = vpack.c.bf16 %v4610, %v4610
        %v4659 = vpack.c.bf16 %v4611, %v4611
        %v4660 = vpack.c.bf16 %v4612, %v4612
        %v4661 = vpack.c.bf16 %v4613, %v4613
        %v4662 = vpack.c.bf16 %v4614, %v4614
        %v4663 = vpack.c.bf16 %v4615, %v4615
        %v4664 = vpack.c.bf16 %v4616, %v4616
        %v4665 = vpack.c.bf16 %v4617, %v4617
        %v4666 = vpack.c.bf16 %v4618, %v4618
        %v4667 = vpack.c.bf16 %v4619, %v4619
        %v4668 = vpack.c.bf16 %v4620, %v4620
        %v4669 = vpack.c.bf16 %v4621, %v4621
        %v4670 = vpack.c.bf16 %v4622, %v4622
        %v4671 = vpack.c.bf16 %v4623, %v4623
        %v4672 = vpack.c.bf16 %v4624, %v4624
        %v4673 = vpack.c.bf16 %v4625, %v4625
        %v4674 = vpack.c.bf16 %v4626, %v4626
        %v4675 = vpack.c.bf16 %v4627, %v4627
        %v4676 = vpack.c.bf16 %v4628, %v4628
        %v4677 = vpack.c.bf16 %v4629, %v4629
        %v4678 = vpack.c.bf16 %v4630, %v4630
        %v4679 = vpack.c.bf16 %v4631, %v4631
        %v4680 = vpack.c.bf16 %v4632, %v4632
        %v4681 = vpack.c.bf16 %v4633, %v4633
        %v4682 = vpack.c.bf16 %v4634, %v4634
        %v4683 = vpack.c.bf16 %v4635, %v4635
        %v4684 = vpack.c.bf16 %v4636, %v4636
        %v4685 = vpack.c.bf16 %v4637, %v4637
        %v4686 = vpack.c.bf16 %v4638, %v4638
        %v4687 = vpack.c.bf16 %v4639, %v4639
        %v4688 = vpack.c.bf16 %v4640, %v4640
        %v4689 = vpack.c.bf16 %v4641, %v4641
        %v4690 = vpack.c.bf16 %v4642, %v4642
        %v4691 = vpack.c.bf16 %v4643, %v4643
        %v4692 = vunpack.c.l.bf16 %v4644
        %v4693 = vunpack.c.l.bf16 %v4645
        %v4694 = vunpack.c.l.bf16 %v4647
        %v4695 = vunpack.c.l.bf16 %v4648
        %v4696 = vunpack.c.l.bf16 %v4650
        %v4697 = vunpack.c.l.bf16 %v4651
        %v4698 = vunpack.c.l.bf16 %v4653
        %v4699 = vunpack.c.l.bf16 %v4654
        %v4700 = vunpack.c.l.bf16 %v4656
        %v4701 = vunpack.c.l.bf16 %v4657
        %v4702 = vunpack.c.l.bf16 %v4659
        %v4703 = vunpack.c.l.bf16 %v4660
        %v4704 = vunpack.c.l.bf16 %v4662
        %v4705 = vunpack.c.l.bf16 %v4663
        %v4706 = vunpack.c.l.bf16 %v4665
        %v4707 = vunpack.c.l.bf16 %v4666
        %v4708 = vunpack.c.l.bf16 %v4668
        %v4709 = vunpack.c.l.bf16 %v4669
        %v4710 = vunpack.c.l.bf16 %v4671
        %v4711 = vunpack.c.l.bf16 %v4672
        %v4712 = vunpack.c.l.bf16 %v4674
        %v4713 = vunpack.c.l.bf16 %v4675
        %v4714 = vunpack.c.l.bf16 %v4677
        %v4715 = vunpack.c.l.bf16 %v4678
        %v4716 = vunpack.c.l.bf16 %v4680
        %v4717 = vunpack.c.l.bf16 %v4681
        %v4718 = vunpack.c.l.bf16 %v4683
        %v4719 = vunpack.c.l.bf16 %v4684
        %v4720 = vunpack.c.l.bf16 %v4686
        %v4721 = vunpack.c.l.bf16 %v4687
        %v4722 = vunpack.c.l.bf16 %v4689
        %v4723 = vunpack.c.l.bf16 %v4690
        %v4724 = vunpack.c.l.bf16 %v4646
        %v4725 = vunpack.c.l.bf16 %v4649
        %v4726 = vunpack.c.l.bf16 %v4652
        %v4727 = vunpack.c.l.bf16 %v4655
        %v4728 = vunpack.c.l.bf16 %v4658
        %v4729 = vunpack.c.l.bf16 %v4661
        %v4730 = vunpack.c.l.bf16 %v4664
        %v4731 = vunpack.c.l.bf16 %v4667
        %v4732 = vunpack.c.l.bf16 %v4670
        %v4733 = vunpack.c.l.bf16 %v4673
        %v4734 = vunpack.c.l.bf16 %v4676
        %v4735 = vunpack.c.l.bf16 %v4679
        %v4736 = vunpack.c.l.bf16 %v4682
        %v4737 = vunpack.c.l.bf16 %v4685
        %v4738 = vunpack.c.l.bf16 %v4688
        %v4739 = vunpack.c.l.bf16 %v4691
        %v4788 = vrot.slane %v4692, 1
        %v4789 = vrot.slane %v4693, 1
        %v4790 = vsel %vm2543, %v4788, %v4789
        %v4791 = vrot.slane %v4724, 1
        %v4792 = vsel %vm2543, %v4789, %v4791
        %v4793 = vrot.slane %v4694, 1
        %v4794 = vrot.slane %v4695, 1
        %v4795 = vsel %vm2543, %v4793, %v4794
        %v4796 = vrot.slane %v4725, 1
        %v4797 = vsel %vm2543, %v4794, %v4796
        %v4798 = vrot.slane %v4696, 1
        %v4799 = vrot.slane %v4697, 1
        %v4800 = vsel %vm2543, %v4798, %v4799
        %v4801 = vrot.slane %v4726, 1
        %v4802 = vsel %vm2543, %v4799, %v4801
        %v4803 = vrot.slane %v4698, 1
        %v4804 = vrot.slane %v4699, 1
        %v4805 = vsel %vm2543, %v4803, %v4804
        %v4806 = vrot.slane %v4727, 1
        %v4807 = vsel %vm2543, %v4804, %v4806
        %v4808 = vrot.slane %v4700, 1
        %v4809 = vrot.slane %v4701, 1
        %v4810 = vsel %vm2543, %v4808, %v4809
        %v4811 = vrot.slane %v4728, 1
        %v4812 = vsel %vm2543, %v4809, %v4811
        %v4813 = vrot.slane %v4702, 1
        %v4814 = vrot.slane %v4703, 1
        %v4815 = vsel %vm2543, %v4813, %v4814
        %v4816 = vrot.slane %v4729, 1
        %v4817 = vsel %vm2543, %v4814, %v4816
        %v4818 = vrot.slane %v4704, 1
        %v4819 = vrot.slane %v4705, 1
        %v4820 = vsel %vm2543, %v4818, %v4819
        %v4821 = vrot.slane %v4730, 1
        %v4822 = vsel %vm2543, %v4819, %v4821
        %v4823 = vrot.slane %v4706, 1
        %v4824 = vrot.slane %v4707, 1
        %v4825 = vsel %vm2543, %v4823, %v4824
        %v4826 = vrot.slane %v4731, 1
        %v4827 = vsel %vm2543, %v4824, %v4826
        %v4828 = vrot.slane %v4708, 1
        %v4829 = vrot.slane %v4709, 1
        %v4830 = vsel %vm2543, %v4828, %v4829
        %v4831 = vrot.slane %v4732, 1
        %v4832 = vsel %vm2543, %v4829, %v4831
        %v4833 = vrot.slane %v4710, 1
        %v4834 = vrot.slane %v4711, 1
        %v4835 = vsel %vm2543, %v4833, %v4834
        %v4836 = vrot.slane %v4733, 1
        %v4837 = vsel %vm2543, %v4834, %v4836
        %v4838 = vrot.slane %v4712, 1
        %v4839 = vrot.slane %v4713, 1
        %v4840 = vsel %vm2543, %v4838, %v4839
        %v4841 = vrot.slane %v4734, 1
        %v4842 = vsel %vm2543, %v4839, %v4841
        %v4843 = vrot.slane %v4714, 1
        %v4844 = vrot.slane %v4715, 1
        %v4845 = vsel %vm2543, %v4843, %v4844
        %v4846 = vrot.slane %v4735, 1
        %v4847 = vsel %vm2543, %v4844, %v4846
        %v4848 = vrot.slane %v4716, 1
        %v4849 = vrot.slane %v4717, 1
        %v4850 = vsel %vm2543, %v4848, %v4849
        %v4851 = vrot.slane %v4736, 1
        %v4852 = vsel %vm2543, %v4849, %v4851
        %v4853 = vrot.slane %v4718, 1
        %v4854 = vrot.slane %v4719, 1
        %v4855 = vsel %vm2543, %v4853, %v4854
        %v4856 = vrot.slane %v4737, 1
        %v4857 = vsel %vm2543, %v4854, %v4856
        %v4858 = vrot.slane %v4720, 1
        %v4859 = vrot.slane %v4721, 1
        %v4860 = vsel %vm2543, %v4858, %v4859
        %v4861 = vrot.slane %v4738, 1
        %v4862 = vsel %vm2543, %v4859, %v4861
        %v4863 = vrot.slane %v4722, 1
        %v4864 = vrot.slane %v4723, 1
        %v4865 = vsel %vm2543, %v4863, %v4864
        %v4866 = vrot.slane %v4739, 1
        %v4867 = vsel %vm2543, %v4864, %v4866
        %v4900 = vmax.f32 %v4692, %v4790
        %v4901 = vmax.f32 %v4693, %v4792
        %v4902 = vmax.f32 %v4694, %v4795
        %v4903 = vmax.f32 %v4695, %v4797
        %v4904 = vmax.f32 %v4696, %v4800
        %v4905 = vmax.f32 %v4697, %v4802
        %v4906 = vmax.f32 %v4698, %v4805
        %v4907 = vmax.f32 %v4699, %v4807
        %v4908 = vmax.f32 %v4700, %v4810
        %v4909 = vmax.f32 %v4701, %v4812
        %v4910 = vmax.f32 %v4702, %v4815
        %v4911 = vmax.f32 %v4703, %v4817
        %v4912 = vmax.f32 %v4704, %v4820
        %v4913 = vmax.f32 %v4705, %v4822
        %v4914 = vmax.f32 %v4706, %v4825
        %v4915 = vmax.f32 %v4707, %v4827
        %v4916 = vmax.f32 %v4708, %v4830
        %v4917 = vmax.f32 %v4709, %v4832
        %v4918 = vmax.f32 %v4710, %v4835
        %v4919 = vmax.f32 %v4711, %v4837
        %v4920 = vmax.f32 %v4712, %v4840
        %v4921 = vmax.f32 %v4713, %v4842
        %v4922 = vmax.f32 %v4714, %v4845
        %v4923 = vmax.f32 %v4715, %v4847
        %v4924 = vmax.f32 %v4716, %v4850
        %v4925 = vmax.f32 %v4717, %v4852
        %v4926 = vmax.f32 %v4718, %v4855
        %v4927 = vmax.f32 %v4719, %v4857
        %v4928 = vmax.f32 %v4720, %v4860
        %v4929 = vmax.f32 %v4721, %v4862
        %v4930 = vmax.f32 %v4722, %v4865
        %v4931 = vmax.f32 %v4723, %v4867
        %v4932 = vpack.c.bf16 %v4900, %v4900
        %v4933 = vpack.c.bf16 %v4901, %v4901
        %v4934 = vpack.c.bf16 %v4902, %v4902
        %v4935 = vpack.c.bf16 %v4903, %v4903
        %v4936 = vpack.c.bf16 %v4904, %v4904
        %v4937 = vpack.c.bf16 %v4905, %v4905
        %v4938 = vpack.c.bf16 %v4906, %v4906
        %v4939 = vpack.c.bf16 %v4907, %v4907
        %v4940 = vpack.c.bf16 %v4908, %v4908
        %v4941 = vpack.c.bf16 %v4909, %v4909
        %v4942 = vpack.c.bf16 %v4910, %v4910
        %v4943 = vpack.c.bf16 %v4911, %v4911
        %v4944 = vpack.c.bf16 %v4912, %v4912
        %v4945 = vpack.c.bf16 %v4913, %v4913
        %v4946 = vpack.c.bf16 %v4914, %v4914
        %v4947 = vpack.c.bf16 %v4915, %v4915
        %v4948 = vpack.c.bf16 %v4916, %v4916
        %v4949 = vpack.c.bf16 %v4917, %v4917
        %v4950 = vpack.c.bf16 %v4918, %v4918
        %v4951 = vpack.c.bf16 %v4919, %v4919
        %v4952 = vpack.c.bf16 %v4920, %v4920
        %v4953 = vpack.c.bf16 %v4921, %v4921
        %v4954 = vpack.c.bf16 %v4922, %v4922
        %v4955 = vpack.c.bf16 %v4923, %v4923
        %v4956 = vpack.c.bf16 %v4924, %v4924
        %v4957 = vpack.c.bf16 %v4925, %v4925
        %v4958 = vpack.c.bf16 %v4926, %v4926
        %v4959 = vpack.c.bf16 %v4927, %v4927
        %v4960 = vpack.c.bf16 %v4928, %v4928
        %v4961 = vpack.c.bf16 %v4929, %v4929
        %v4962 = vpack.c.bf16 %v4930, %v4930
        %v4963 = vpack.c.bf16 %v4931, %v4931
        %v4964 = vunpack.c.l.bf16 %v4932
        %v4965 = vunpack.c.l.bf16 %v4933
        %v4966 = vunpack.c.l.bf16 %v4934
        %v4967 = vunpack.c.l.bf16 %v4935
        %v4968 = vunpack.c.l.bf16 %v4936
        %v4969 = vunpack.c.l.bf16 %v4937
        %v4970 = vunpack.c.l.bf16 %v4938
        %v4971 = vunpack.c.l.bf16 %v4939
        %v4972 = vunpack.c.l.bf16 %v4940
        %v4973 = vunpack.c.l.bf16 %v4941
        %v4974 = vunpack.c.l.bf16 %v4942
        %v4975 = vunpack.c.l.bf16 %v4943
        %v4976 = vunpack.c.l.bf16 %v4944
        %v4977 = vunpack.c.l.bf16 %v4945
        %v4978 = vunpack.c.l.bf16 %v4946
        %v4979 = vunpack.c.l.bf16 %v4947
        %v4980 = vunpack.c.l.bf16 %v4948
        %v4981 = vunpack.c.l.bf16 %v4949
        %v4982 = vunpack.c.l.bf16 %v4950
        %v4983 = vunpack.c.l.bf16 %v4951
        %v4984 = vunpack.c.l.bf16 %v4952
        %v4985 = vunpack.c.l.bf16 %v4953
        %v4986 = vunpack.c.l.bf16 %v4954
        %v4987 = vunpack.c.l.bf16 %v4955
        %v4988 = vunpack.c.l.bf16 %v4956
        %v4989 = vunpack.c.l.bf16 %v4957
        %v4990 = vunpack.c.l.bf16 %v4958
        %v4991 = vunpack.c.l.bf16 %v4959
        %v4992 = vunpack.c.l.bf16 %v4960
        %v4993 = vunpack.c.l.bf16 %v4961
        %v4994 = vunpack.c.l.bf16 %v4962
        %v4995 = vunpack.c.l.bf16 %v4963
        %v4996 = vrot.slane %v4692, 2
        %v4997 = vrot.slane %v4693, 2
        %v4998 = vsel %vm2752, %v4996, %v4997
        %v4999 = vrot.slane %v4724, 2
        %v5000 = vsel %vm2752, %v4997, %v4999
        %v5001 = vrot.slane %v4694, 2
        %v5002 = vrot.slane %v4695, 2
        %v5003 = vsel %vm2752, %v5001, %v5002
        %v5004 = vrot.slane %v4725, 2
        %v5005 = vsel %vm2752, %v5002, %v5004
        %v5006 = vrot.slane %v4696, 2
        %v5007 = vrot.slane %v4697, 2
        %v5008 = vsel %vm2752, %v5006, %v5007
        %v5009 = vrot.slane %v4726, 2
        %v5010 = vsel %vm2752, %v5007, %v5009
        %v5011 = vrot.slane %v4698, 2
        %v5012 = vrot.slane %v4699, 2
        %v5013 = vsel %vm2752, %v5011, %v5012
        %v5014 = vrot.slane %v4727, 2
        %v5015 = vsel %vm2752, %v5012, %v5014
        %v5016 = vrot.slane %v4700, 2
        %v5017 = vrot.slane %v4701, 2
        %v5018 = vsel %vm2752, %v5016, %v5017
        %v5019 = vrot.slane %v4728, 2
        %v5020 = vsel %vm2752, %v5017, %v5019
        %v5021 = vrot.slane %v4702, 2
        %v5022 = vrot.slane %v4703, 2
        %v5023 = vsel %vm2752, %v5021, %v5022
        %v5024 = vrot.slane %v4729, 2
        %v5025 = vsel %vm2752, %v5022, %v5024
        %v5026 = vrot.slane %v4704, 2
        %v5027 = vrot.slane %v4705, 2
        %v5028 = vsel %vm2752, %v5026, %v5027
        %v5029 = vrot.slane %v4730, 2
        %v5030 = vsel %vm2752, %v5027, %v5029
        %v5031 = vrot.slane %v4706, 2
        %v5032 = vrot.slane %v4707, 2
        %v5033 = vsel %vm2752, %v5031, %v5032
        %v5034 = vrot.slane %v4731, 2
        %v5035 = vsel %vm2752, %v5032, %v5034
        %v5036 = vrot.slane %v4708, 2
        %v5037 = vrot.slane %v4709, 2
        %v5038 = vsel %vm2752, %v5036, %v5037
        %v5039 = vrot.slane %v4732, 2
        %v5040 = vsel %vm2752, %v5037, %v5039
        %v5041 = vrot.slane %v4710, 2
        %v5042 = vrot.slane %v4711, 2
        %v5043 = vsel %vm2752, %v5041, %v5042
        %v5044 = vrot.slane %v4733, 2
        %v5045 = vsel %vm2752, %v5042, %v5044
        %v5046 = vrot.slane %v4712, 2
        %v5047 = vrot.slane %v4713, 2
        %v5048 = vsel %vm2752, %v5046, %v5047
        %v5049 = vrot.slane %v4734, 2
        %v5050 = vsel %vm2752, %v5047, %v5049
        %v5051 = vrot.slane %v4714, 2
        %v5052 = vrot.slane %v4715, 2
        %v5053 = vsel %vm2752, %v5051, %v5052
        %v5054 = vrot.slane %v4735, 2
        %v5055 = vsel %vm2752, %v5052, %v5054
        %v5056 = vrot.slane %v4716, 2
        %v5057 = vrot.slane %v4717, 2
        %v5058 = vsel %vm2752, %v5056, %v5057
        %v5059 = vrot.slane %v4736, 2
        %v5060 = vsel %vm2752, %v5057, %v5059
        %v5061 = vrot.slane %v4718, 2
        %v5062 = vrot.slane %v4719, 2
        %v5063 = vsel %vm2752, %v5061, %v5062
        %v5064 = vrot.slane %v4737, 2
        %v5065 = vsel %vm2752, %v5062, %v5064
        %v5066 = vrot.slane %v4720, 2
        %v5067 = vrot.slane %v4721, 2
        %v5068 = vsel %vm2752, %v5066, %v5067
        %v5069 = vrot.slane %v4738, 2
        %v5070 = vsel %vm2752, %v5067, %v5069
        %v5071 = vrot.slane %v4722, 2
        %v5072 = vrot.slane %v4723, 2
        %v5073 = vsel %vm2752, %v5071, %v5072
        %v5074 = vrot.slane %v4739, 2
        %v5075 = vsel %vm2752, %v5072, %v5074
        %v5108 = vmax.f32 %v4964, %v4998
        %v5109 = vmax.f32 %v4965, %v5000
        %v5110 = vmax.f32 %v4966, %v5003
        %v5111 = vmax.f32 %v4967, %v5005
        %v5112 = vmax.f32 %v4968, %v5008
        %v5113 = vmax.f32 %v4969, %v5010
        %v5114 = vmax.f32 %v4970, %v5013
        %v5115 = vmax.f32 %v4971, %v5015
        %v5116 = vmax.f32 %v4972, %v5018
        %v5117 = vmax.f32 %v4973, %v5020
        %v5118 = vmax.f32 %v4974, %v5023
        %v5119 = vmax.f32 %v4975, %v5025
        %v5120 = vmax.f32 %v4976, %v5028
        %v5121 = vmax.f32 %v4977, %v5030
        %v5122 = vmax.f32 %v4978, %v5033
        %v5123 = vmax.f32 %v4979, %v5035
        %v5124 = vmax.f32 %v4980, %v5038
        %v5125 = vmax.f32 %v4981, %v5040
        %v5126 = vmax.f32 %v4982, %v5043
        %v5127 = vmax.f32 %v4983, %v5045
        %v5128 = vmax.f32 %v4984, %v5048
        %v5129 = vmax.f32 %v4985, %v5050
        %v5130 = vmax.f32 %v4986, %v5053
        %v5131 = vmax.f32 %v4987, %v5055
        %v5132 = vmax.f32 %v4988, %v5058
        %v5133 = vmax.f32 %v4989, %v5060
        %v5134 = vmax.f32 %v4990, %v5063
        %v5135 = vmax.f32 %v4991, %v5065
        %v5136 = vmax.f32 %v4992, %v5068
        %v5137 = vmax.f32 %v4993, %v5070
        %v5138 = vmax.f32 %v4994, %v5073
        %v5139 = vmax.f32 %v4995, %v5075
        %v5140 = vpack.c.bf16 %v5108, %v5108
        %v5141 = vpack.c.bf16 %v5109, %v5109
        %v5142 = vpack.c.bf16 %v5110, %v5110
        %v5143 = vpack.c.bf16 %v5111, %v5111
        %v5144 = vpack.c.bf16 %v5112, %v5112
        %v5145 = vpack.c.bf16 %v5113, %v5113
        %v5146 = vpack.c.bf16 %v5114, %v5114
        %v5147 = vpack.c.bf16 %v5115, %v5115
        %v5148 = vpack.c.bf16 %v5116, %v5116
        %v5149 = vpack.c.bf16 %v5117, %v5117
        %v5150 = vpack.c.bf16 %v5118, %v5118
        %v5151 = vpack.c.bf16 %v5119, %v5119
        %v5152 = vpack.c.bf16 %v5120, %v5120
        %v5153 = vpack.c.bf16 %v5121, %v5121
        %v5154 = vpack.c.bf16 %v5122, %v5122
        %v5155 = vpack.c.bf16 %v5123, %v5123
        %v5156 = vpack.c.bf16 %v5124, %v5124
        %v5157 = vpack.c.bf16 %v5125, %v5125
        %v5158 = vpack.c.bf16 %v5126, %v5126
        %v5159 = vpack.c.bf16 %v5127, %v5127
        %v5160 = vpack.c.bf16 %v5128, %v5128
        %v5161 = vpack.c.bf16 %v5129, %v5129
        %v5162 = vpack.c.bf16 %v5130, %v5130
        %v5163 = vpack.c.bf16 %v5131, %v5131
        %v5164 = vpack.c.bf16 %v5132, %v5132
        %v5165 = vpack.c.bf16 %v5133, %v5133
        %v5166 = vpack.c.bf16 %v5134, %v5134
        %v5167 = vpack.c.bf16 %v5135, %v5135
        %v5168 = vpack.c.bf16 %v5136, %v5136
        %v5169 = vpack.c.bf16 %v5137, %v5137
        %v5170 = vpack.c.bf16 %v5138, %v5138
        %v5171 = vpack.c.bf16 %v5139, %v5139
        %v5172 = vunpack.c.l.bf16 %v5140
        %v5173 = vunpack.c.l.bf16 %v5141
        %v5174 = vunpack.c.l.bf16 %v5142
        %v5175 = vunpack.c.l.bf16 %v5143
        %v5176 = vunpack.c.l.bf16 %v5144
        %v5177 = vunpack.c.l.bf16 %v5145
        %v5178 = vunpack.c.l.bf16 %v5146
        %v5179 = vunpack.c.l.bf16 %v5147
        %v5180 = vunpack.c.l.bf16 %v5148
        %v5181 = vunpack.c.l.bf16 %v5149
        %v5182 = vunpack.c.l.bf16 %v5150
        %v5183 = vunpack.c.l.bf16 %v5151
        %v5184 = vunpack.c.l.bf16 %v5152
        %v5185 = vunpack.c.l.bf16 %v5153
        %v5186 = vunpack.c.l.bf16 %v5154
        %v5187 = vunpack.c.l.bf16 %v5155
        %v5188 = vunpack.c.l.bf16 %v5156
        %v5189 = vunpack.c.l.bf16 %v5157
        %v5190 = vunpack.c.l.bf16 %v5158
        %v5191 = vunpack.c.l.bf16 %v5159
        %v5192 = vunpack.c.l.bf16 %v5160
        %v5193 = vunpack.c.l.bf16 %v5161
        %v5194 = vunpack.c.l.bf16 %v5162
        %v5195 = vunpack.c.l.bf16 %v5163
        %v5196 = vunpack.c.l.bf16 %v5164
        %v5197 = vunpack.c.l.bf16 %v5165
        %v5198 = vunpack.c.l.bf16 %v5166
        %v5199 = vunpack.c.l.bf16 %v5167
        %v5200 = vunpack.c.l.bf16 %v5168
        %v5201 = vunpack.c.l.bf16 %v5169
        %v5202 = vunpack.c.l.bf16 %v5170
        %v5203 = vunpack.c.l.bf16 %v5171
        %v5204 = vrot.slane %v4692, 3
        %v5205 = vrot.slane %v4693, 3
        %v5206 = vsel %vm2961, %v5204, %v5205
        %v5207 = vrot.slane %v4724, 3
        %v5208 = vsel %vm2961, %v5205, %v5207
        %v5209 = vrot.slane %v4694, 3
        %v5210 = vrot.slane %v4695, 3
        %v5211 = vsel %vm2961, %v5209, %v5210
        %v5212 = vrot.slane %v4725, 3
        %v5213 = vsel %vm2961, %v5210, %v5212
        %v5214 = vrot.slane %v4696, 3
        %v5215 = vrot.slane %v4697, 3
        %v5216 = vsel %vm2961, %v5214, %v5215
        %v5217 = vrot.slane %v4726, 3
        %v5218 = vsel %vm2961, %v5215, %v5217
        %v5219 = vrot.slane %v4698, 3
        %v5220 = vrot.slane %v4699, 3
        %v5221 = vsel %vm2961, %v5219, %v5220
        %v5222 = vrot.slane %v4727, 3
        %v5223 = vsel %vm2961, %v5220, %v5222
        %v5224 = vrot.slane %v4700, 3
        %v5225 = vrot.slane %v4701, 3
        %v5226 = vsel %vm2961, %v5224, %v5225
        %v5227 = vrot.slane %v4728, 3
        %v5228 = vsel %vm2961, %v5225, %v5227
        %v5229 = vrot.slane %v4702, 3
        %v5230 = vrot.slane %v4703, 3
        %v5231 = vsel %vm2961, %v5229, %v5230
        %v5232 = vrot.slane %v4729, 3
        %v5233 = vsel %vm2961, %v5230, %v5232
        %v5234 = vrot.slane %v4704, 3
        %v5235 = vrot.slane %v4705, 3
        %v5236 = vsel %vm2961, %v5234, %v5235
        %v5237 = vrot.slane %v4730, 3
        %v5238 = vsel %vm2961, %v5235, %v5237
        %v5239 = vrot.slane %v4706, 3
        %v5240 = vrot.slane %v4707, 3
        %v5241 = vsel %vm2961, %v5239, %v5240
        %v5242 = vrot.slane %v4731, 3
        %v5243 = vsel %vm2961, %v5240, %v5242
        %v5244 = vrot.slane %v4708, 3
        %v5245 = vrot.slane %v4709, 3
        %v5246 = vsel %vm2961, %v5244, %v5245
        %v5247 = vrot.slane %v4732, 3
        %v5248 = vsel %vm2961, %v5245, %v5247
        %v5249 = vrot.slane %v4710, 3
        %v5250 = vrot.slane %v4711, 3
        %v5251 = vsel %vm2961, %v5249, %v5250
        %v5252 = vrot.slane %v4733, 3
        %v5253 = vsel %vm2961, %v5250, %v5252
        %v5254 = vrot.slane %v4712, 3
        %v5255 = vrot.slane %v4713, 3
        %v5256 = vsel %vm2961, %v5254, %v5255
        %v5257 = vrot.slane %v4734, 3
        %v5258 = vsel %vm2961, %v5255, %v5257
        %v5259 = vrot.slane %v4714, 3
        %v5260 = vrot.slane %v4715, 3
        %v5261 = vsel %vm2961, %v5259, %v5260
        %v5262 = vrot.slane %v4735, 3
        %v5263 = vsel %vm2961, %v5260, %v5262
        %v5264 = vrot.slane %v4716, 3
        %v5265 = vrot.slane %v4717, 3
        %v5266 = vsel %vm2961, %v5264, %v5265
        %v5267 = vrot.slane %v4736, 3
        %v5268 = vsel %vm2961, %v5265, %v5267
        %v5269 = vrot.slane %v4718, 3
        %v5270 = vrot.slane %v4719, 3
        %v5271 = vsel %vm2961, %v5269, %v5270
        %v5272 = vrot.slane %v4737, 3
        %v5273 = vsel %vm2961, %v5270, %v5272
        %v5274 = vrot.slane %v4720, 3
        %v5275 = vrot.slane %v4721, 3
        %v5276 = vsel %vm2961, %v5274, %v5275
        %v5277 = vrot.slane %v4738, 3
        %v5278 = vsel %vm2961, %v5275, %v5277
        %v5279 = vrot.slane %v4722, 3
        %v5280 = vrot.slane %v4723, 3
        %v5281 = vsel %vm2961, %v5279, %v5280
        %v5282 = vrot.slane %v4739, 3
        %v5283 = vsel %vm2961, %v5280, %v5282
        %v5316 = vmax.f32 %v5172, %v5206
        %v5317 = vmax.f32 %v5173, %v5208
        %v5318 = vmax.f32 %v5174, %v5211
        %v5319 = vmax.f32 %v5175, %v5213
        %v5320 = vmax.f32 %v5176, %v5216
        %v5321 = vmax.f32 %v5177, %v5218
        %v5322 = vmax.f32 %v5178, %v5221
        %v5323 = vmax.f32 %v5179, %v5223
        %v5324 = vmax.f32 %v5180, %v5226
        %v5325 = vmax.f32 %v5181, %v5228
        %v5326 = vmax.f32 %v5182, %v5231
        %v5327 = vmax.f32 %v5183, %v5233
        %v5328 = vmax.f32 %v5184, %v5236
        %v5329 = vmax.f32 %v5185, %v5238
        %v5330 = vmax.f32 %v5186, %v5241
        %v5331 = vmax.f32 %v5187, %v5243
        %v5332 = vmax.f32 %v5188, %v5246
        %v5333 = vmax.f32 %v5189, %v5248
        %v5334 = vmax.f32 %v5190, %v5251
        %v5335 = vmax.f32 %v5191, %v5253
        %v5336 = vmax.f32 %v5192, %v5256
        %v5337 = vmax.f32 %v5193, %v5258
        %v5338 = vmax.f32 %v5194, %v5261
        %v5339 = vmax.f32 %v5195, %v5263
        %v5340 = vmax.f32 %v5196, %v5266
        %v5341 = vmax.f32 %v5197, %v5268
        %v5342 = vmax.f32 %v5198, %v5271
        %v5343 = vmax.f32 %v5199, %v5273
        %v5344 = vmax.f32 %v5200, %v5276
        %v5345 = vmax.f32 %v5201, %v5278
        %v5346 = vmax.f32 %v5202, %v5281
        %v5347 = vmax.f32 %v5203, %v5283
        %v5348 = vpack.c.bf16 %v5316, %v5316
        %v5349 = vpack.c.bf16 %v5317, %v5317
        %v5350 = vpack.c.bf16 %v5318, %v5318
        %v5351 = vpack.c.bf16 %v5319, %v5319
        %v5352 = vpack.c.bf16 %v5320, %v5320
        %v5353 = vpack.c.bf16 %v5321, %v5321
        %v5354 = vpack.c.bf16 %v5322, %v5322
        %v5355 = vpack.c.bf16 %v5323, %v5323
        %v5356 = vpack.c.bf16 %v5324, %v5324
        %v5357 = vpack.c.bf16 %v5325, %v5325
        %v5358 = vpack.c.bf16 %v5326, %v5326
        %v5359 = vpack.c.bf16 %v5327, %v5327
        %v5360 = vpack.c.bf16 %v5328, %v5328
        %v5361 = vpack.c.bf16 %v5329, %v5329
        %v5362 = vpack.c.bf16 %v5330, %v5330
        %v5363 = vpack.c.bf16 %v5331, %v5331
        %v5364 = vpack.c.bf16 %v5332, %v5332
        %v5365 = vpack.c.bf16 %v5333, %v5333
        %v5366 = vpack.c.bf16 %v5334, %v5334
        %v5367 = vpack.c.bf16 %v5335, %v5335
        %v5368 = vpack.c.bf16 %v5336, %v5336
        %v5369 = vpack.c.bf16 %v5337, %v5337
        %v5370 = vpack.c.bf16 %v5338, %v5338
        %v5371 = vpack.c.bf16 %v5339, %v5339
        %v5372 = vpack.c.bf16 %v5340, %v5340
        %v5373 = vpack.c.bf16 %v5341, %v5341
        %v5374 = vpack.c.bf16 %v5342, %v5342
        %v5375 = vpack.c.bf16 %v5343, %v5343
        %v5376 = vpack.c.bf16 %v5344, %v5344
        %v5377 = vpack.c.bf16 %v5345, %v5345
        %v5378 = vpack.c.bf16 %v5346, %v5346
        %v5379 = vpack.c.bf16 %v5347, %v5347
        %v5380 = vunpack.c.l.bf16 %v5348
        %v5381 = vunpack.c.l.bf16 %v5349
        %v5382 = vunpack.c.l.bf16 %v5350
        %v5383 = vunpack.c.l.bf16 %v5351
        %v5384 = vunpack.c.l.bf16 %v5352
        %v5385 = vunpack.c.l.bf16 %v5353
        %v5386 = vunpack.c.l.bf16 %v5354
        %v5387 = vunpack.c.l.bf16 %v5355
        %v5388 = vunpack.c.l.bf16 %v5356
        %v5389 = vunpack.c.l.bf16 %v5357
        %v5390 = vunpack.c.l.bf16 %v5358
        %v5391 = vunpack.c.l.bf16 %v5359
        %v5392 = vunpack.c.l.bf16 %v5360
        %v5393 = vunpack.c.l.bf16 %v5361
        %v5394 = vunpack.c.l.bf16 %v5362
        %v5395 = vunpack.c.l.bf16 %v5363
        %v5396 = vunpack.c.l.bf16 %v5364
        %v5397 = vunpack.c.l.bf16 %v5365
        %v5398 = vunpack.c.l.bf16 %v5366
        %v5399 = vunpack.c.l.bf16 %v5367
        %v5400 = vunpack.c.l.bf16 %v5368
        %v5401 = vunpack.c.l.bf16 %v5369
        %v5402 = vunpack.c.l.bf16 %v5370
        %v5403 = vunpack.c.l.bf16 %v5371
        %v5404 = vunpack.c.l.bf16 %v5372
        %v5405 = vunpack.c.l.bf16 %v5373
        %v5406 = vunpack.c.l.bf16 %v5374
        %v5407 = vunpack.c.l.bf16 %v5375
        %v5408 = vunpack.c.l.bf16 %v5376
        %v5409 = vunpack.c.l.bf16 %v5377
        %v5410 = vunpack.c.l.bf16 %v5378
        %v5411 = vunpack.c.l.bf16 %v5379
        %v5412 = vrot.slane %v4692, 4
        %v5413 = vrot.slane %v4693, 4
        %v5414 = vsel %vm3170, %v5412, %v5413
        %v5415 = vrot.slane %v4724, 4
        %v5416 = vsel %vm3170, %v5413, %v5415
        %v5417 = vrot.slane %v4694, 4
        %v5418 = vrot.slane %v4695, 4
        %v5419 = vsel %vm3170, %v5417, %v5418
        %v5420 = vrot.slane %v4725, 4
        %v5421 = vsel %vm3170, %v5418, %v5420
        %v5422 = vrot.slane %v4696, 4
        %v5423 = vrot.slane %v4697, 4
        %v5424 = vsel %vm3170, %v5422, %v5423
        %v5425 = vrot.slane %v4726, 4
        %v5426 = vsel %vm3170, %v5423, %v5425
        %v5427 = vrot.slane %v4698, 4
        %v5428 = vrot.slane %v4699, 4
        %v5429 = vsel %vm3170, %v5427, %v5428
        %v5430 = vrot.slane %v4727, 4
        %v5431 = vsel %vm3170, %v5428, %v5430
        %v5432 = vrot.slane %v4700, 4
        %v5433 = vrot.slane %v4701, 4
        %v5434 = vsel %vm3170, %v5432, %v5433
        %v5435 = vrot.slane %v4728, 4
        %v5436 = vsel %vm3170, %v5433, %v5435
        %v5437 = vrot.slane %v4702, 4
        %v5438 = vrot.slane %v4703, 4
        %v5439 = vsel %vm3170, %v5437, %v5438
        %v5440 = vrot.slane %v4729, 4
        %v5441 = vsel %vm3170, %v5438, %v5440
        %v5442 = vrot.slane %v4704, 4
        %v5443 = vrot.slane %v4705, 4
        %v5444 = vsel %vm3170, %v5442, %v5443
        %v5445 = vrot.slane %v4730, 4
        %v5446 = vsel %vm3170, %v5443, %v5445
        %v5447 = vrot.slane %v4706, 4
        %v5448 = vrot.slane %v4707, 4
        %v5449 = vsel %vm3170, %v5447, %v5448
        %v5450 = vrot.slane %v4731, 4
        %v5451 = vsel %vm3170, %v5448, %v5450
        %v5452 = vrot.slane %v4708, 4
        %v5453 = vrot.slane %v4709, 4
        %v5454 = vsel %vm3170, %v5452, %v5453
        %v5455 = vrot.slane %v4732, 4
        %v5456 = vsel %vm3170, %v5453, %v5455
        %v5457 = vrot.slane %v4710, 4
        %v5458 = vrot.slane %v4711, 4
        %v5459 = vsel %vm3170, %v5457, %v5458
        %v5460 = vrot.slane %v4733, 4
        %v5461 = vsel %vm3170, %v5458, %v5460
        %v5462 = vrot.slane %v4712, 4
        %v5463 = vrot.slane %v4713, 4
        %v5464 = vsel %vm3170, %v5462, %v5463
        %v5465 = vrot.slane %v4734, 4
        %v5466 = vsel %vm3170, %v5463, %v5465
        %v5467 = vrot.slane %v4714, 4
        %v5468 = vrot.slane %v4715, 4
        %v5469 = vsel %vm3170, %v5467, %v5468
        %v5470 = vrot.slane %v4735, 4
        %v5471 = vsel %vm3170, %v5468, %v5470
        %v5472 = vrot.slane %v4716, 4
        %v5473 = vrot.slane %v4717, 4
        %v5474 = vsel %vm3170, %v5472, %v5473
        %v5475 = vrot.slane %v4736, 4
        %v5476 = vsel %vm3170, %v5473, %v5475
        %v5477 = vrot.slane %v4718, 4
        %v5478 = vrot.slane %v4719, 4
        %v5479 = vsel %vm3170, %v5477, %v5478
        %v5480 = vrot.slane %v4737, 4
        %v5481 = vsel %vm3170, %v5478, %v5480
        %v5482 = vrot.slane %v4720, 4
        %v5483 = vrot.slane %v4721, 4
        %v5484 = vsel %vm3170, %v5482, %v5483
        %v5485 = vrot.slane %v4738, 4
        %v5486 = vsel %vm3170, %v5483, %v5485
        %v5487 = vrot.slane %v4722, 4
        %v5488 = vrot.slane %v4723, 4
        %v5489 = vsel %vm3170, %v5487, %v5488
        %v5490 = vrot.slane %v4739, 4
        %v5491 = vsel %vm3170, %v5488, %v5490
        %v5524 = vmax.f32 %v5380, %v5414
        %v5525 = vmax.f32 %v5381, %v5416
        %v5526 = vmax.f32 %v5382, %v5419
        %v5527 = vmax.f32 %v5383, %v5421
        %v5528 = vmax.f32 %v5384, %v5424
        %v5529 = vmax.f32 %v5385, %v5426
        %v5530 = vmax.f32 %v5386, %v5429
        %v5531 = vmax.f32 %v5387, %v5431
        %v5532 = vmax.f32 %v5388, %v5434
        %v5533 = vmax.f32 %v5389, %v5436
        %v5534 = vmax.f32 %v5390, %v5439
        %v5535 = vmax.f32 %v5391, %v5441
        %v5536 = vmax.f32 %v5392, %v5444
        %v5537 = vmax.f32 %v5393, %v5446
        %v5538 = vmax.f32 %v5394, %v5449
        %v5539 = vmax.f32 %v5395, %v5451
        %v5540 = vmax.f32 %v5396, %v5454
        %v5541 = vmax.f32 %v5397, %v5456
        %v5542 = vmax.f32 %v5398, %v5459
        %v5543 = vmax.f32 %v5399, %v5461
        %v5544 = vmax.f32 %v5400, %v5464
        %v5545 = vmax.f32 %v5401, %v5466
        %v5546 = vmax.f32 %v5402, %v5469
        %v5547 = vmax.f32 %v5403, %v5471
        %v5548 = vmax.f32 %v5404, %v5474
        %v5549 = vmax.f32 %v5405, %v5476
        %v5550 = vmax.f32 %v5406, %v5479
        %v5551 = vmax.f32 %v5407, %v5481
        %v5552 = vmax.f32 %v5408, %v5484
        %v5553 = vmax.f32 %v5409, %v5486
        %v5554 = vmax.f32 %v5410, %v5489
        %v5555 = vmax.f32 %v5411, %v5491
        %v5556 = vpack.c.bf16 %v5524, %v5524
        %v5557 = vpack.c.bf16 %v5525, %v5525
        %v5558 = vpack.c.bf16 %v5526, %v5526
        %v5559 = vpack.c.bf16 %v5527, %v5527
        %v5560 = vpack.c.bf16 %v5528, %v5528
        %v5561 = vpack.c.bf16 %v5529, %v5529
        %v5562 = vpack.c.bf16 %v5530, %v5530
        %v5563 = vpack.c.bf16 %v5531, %v5531
        %v5564 = vpack.c.bf16 %v5532, %v5532
        %v5565 = vpack.c.bf16 %v5533, %v5533
        %v5566 = vpack.c.bf16 %v5534, %v5534
        %v5567 = vpack.c.bf16 %v5535, %v5535
        %v5568 = vpack.c.bf16 %v5536, %v5536
        %v5569 = vpack.c.bf16 %v5537, %v5537
        %v5570 = vpack.c.bf16 %v5538, %v5538
        %v5571 = vpack.c.bf16 %v5539, %v5539
        %v5572 = vpack.c.bf16 %v5540, %v5540
        %v5573 = vpack.c.bf16 %v5541, %v5541
        %v5574 = vpack.c.bf16 %v5542, %v5542
        %v5575 = vpack.c.bf16 %v5543, %v5543
        %v5576 = vpack.c.bf16 %v5544, %v5544
        %v5577 = vpack.c.bf16 %v5545, %v5545
        %v5578 = vpack.c.bf16 %v5546, %v5546
        %v5579 = vpack.c.bf16 %v5547, %v5547
        %v5580 = vpack.c.bf16 %v5548, %v5548
        %v5581 = vpack.c.bf16 %v5549, %v5549
        %v5582 = vpack.c.bf16 %v5550, %v5550
        %v5583 = vpack.c.bf16 %v5551, %v5551
        %v5584 = vpack.c.bf16 %v5552, %v5552
        %v5585 = vpack.c.bf16 %v5553, %v5553
        %v5586 = vpack.c.bf16 %v5554, %v5554
        %v5587 = vpack.c.bf16 %v5555, %v5555
        %5620 = vrot.lane.b32.xlu0 %v5556, 16
        %v5621 = vpop.permute.xlu0 %5620
        %5622 = vrot.lane.b32.xlu0 %v5557, 16
        %v5623 = vpop.permute.xlu0 %5622
        %5624 = vrot.lane.b32.xlu0 %v5558, 16
        %v5625 = vpop.permute.xlu0 %5624
        %5626 = vrot.lane.b32.xlu0 %v5559, 16
        %v5627 = vpop.permute.xlu0 %5626
        %5628 = vrot.lane.b32.xlu0 %v5560, 16
        %v5629 = vpop.permute.xlu0 %5628
        %5630 = vrot.lane.b32.xlu0 %v5561, 16
        %v5631 = vpop.permute.xlu0 %5630
        %5632 = vrot.lane.b32.xlu0 %v5562, 16
        %v5633 = vpop.permute.xlu0 %5632
        %5634 = vrot.lane.b32.xlu0 %v5563, 16
        %v5635 = vpop.permute.xlu0 %5634
        %5636 = vrot.lane.b32.xlu0 %v5564, 16
        %v5637 = vpop.permute.xlu0 %5636
        %5638 = vrot.lane.b32.xlu0 %v5565, 16
        %v5639 = vpop.permute.xlu0 %5638
        %5640 = vrot.lane.b32.xlu0 %v5566, 16
        %v5641 = vpop.permute.xlu0 %5640
        %5642 = vrot.lane.b32.xlu0 %v5567, 16
        %v5643 = vpop.permute.xlu0 %5642
        %5644 = vrot.lane.b32.xlu0 %v5568, 16
        %v5645 = vpop.permute.xlu0 %5644
        %5646 = vrot.lane.b32.xlu0 %v5569, 16
        %v5647 = vpop.permute.xlu0 %5646
        %5648 = vrot.lane.b32.xlu0 %v5570, 16
        %v5649 = vpop.permute.xlu0 %5648
        %5650 = vrot.lane.b32.xlu0 %v5571, 16
        %v5651 = vpop.permute.xlu0 %5650
        %5652 = vrot.lane.b32.xlu0 %v5572, 16
        %v5653 = vpop.permute.xlu0 %5652
        %5654 = vrot.lane.b32.xlu0 %v5573, 16
        %v5655 = vpop.permute.xlu0 %5654
        %5656 = vrot.lane.b32.xlu0 %v5574, 16
        %v5657 = vpop.permute.xlu0 %5656
        %5658 = vrot.lane.b32.xlu0 %v5575, 16
        %v5659 = vpop.permute.xlu0 %5658
        %5660 = vrot.lane.b32.xlu0 %v5576, 16
        %v5661 = vpop.permute.xlu0 %5660
        %5662 = vrot.lane.b32.xlu0 %v5577, 16
        %v5663 = vpop.permute.xlu0 %5662
        %5664 = vrot.lane.b32.xlu0 %v5578, 16
        %v5665 = vpop.permute.xlu0 %5664
        %5666 = vrot.lane.b32.xlu0 %v5579, 16
        %v5667 = vpop.permute.xlu0 %5666
        %5668 = vrot.lane.b32.xlu0 %v5580, 16
        %v5669 = vpop.permute.xlu0 %5668
        %5670 = vrot.lane.b32.xlu0 %v5581, 16
        %v5671 = vpop.permute.xlu0 %5670
        %5672 = vrot.lane.b32.xlu0 %v5582, 16
        %v5673 = vpop.permute.xlu0 %5672
        %5674 = vrot.lane.b32.xlu0 %v5583, 16
        %v5675 = vpop.permute.xlu0 %5674
        %5676 = vrot.lane.b32.xlu0 %v5584, 16
        %v5677 = vpop.permute.xlu0 %5676
        %5678 = vrot.lane.b32.xlu0 %v5585, 16
        %v5679 = vpop.permute.xlu0 %5678
        %5680 = vrot.lane.b32.xlu0 %v5586, 16
        %v5681 = vpop.permute.xlu0 %5680
        %5682 = vrot.lane.b32.xlu0 %v5587, 16
        %v5683 = vpop.permute.xlu0 %5682
        %vm5716 = vcmask 191616
        %5717 = vst.msk [vmem:[#allocation3] sm:$0xf] %vm5716, %v5621
        %5718 = vst.msk [vmem:[#allocation3 + $0x4] sm:$0xf] %vm5716, %v5623
        %5719 = vst.msk [vmem:[#allocation3 + $0x8] sm:$0xf] %vm5716, %v5625
        %5720 = vst.msk [vmem:[#allocation3 + $0xc] sm:$0xf] %vm5716, %v5627
        %5721 = vst.msk [vmem:[#allocation3 + $0x10] sm:$0xf] %vm5716, %v5629
        %5722 = vst.msk [vmem:[#allocation3 + $0x14] sm:$0xf] %vm5716, %v5631
        %5723 = vst.msk [vmem:[#allocation3 + $0x18] sm:$0xf] %vm5716, %v5633
        %5724 = vst.msk [vmem:[#allocation3 + $0x1c] sm:$0xf] %vm5716, %v5635
        %5725 = vst.msk [vmem:[#allocation3 + $0x20] sm:$0xf] %vm5716, %v5637
        %5726 = vst.msk [vmem:[#allocation3 + $0x24] sm:$0xf] %vm5716, %v5639
        %5727 = vst.msk [vmem:[#allocation3 + $0x28] sm:$0xf] %vm5716, %v5641
        %5728 = vst.msk [vmem:[#allocation3 + $0x2c] sm:$0xf] %vm5716, %v5643
        %5729 = vst.msk [vmem:[#allocation3 + $0x30] sm:$0xf] %vm5716, %v5645
        %5730 = vst.msk [vmem:[#allocation3 + $0x34] sm:$0xf] %vm5716, %v5647
        %5731 = vst.msk [vmem:[#allocation3 + $0x38] sm:$0xf] %vm5716, %v5649
        %5732 = vst.msk [vmem:[#allocation3 + $0x3c] sm:$0xf] %vm5716, %v5651
        %5733 = vst.msk [vmem:[#allocation3 + $0x40] sm:$0xf] %vm5716, %v5653
        %5734 = vst.msk [vmem:[#allocation3 + $0x44] sm:$0xf] %vm5716, %v5655
        %5735 = vst.msk [vmem:[#allocation3 + $0x48] sm:$0xf] %vm5716, %v5657
        %5736 = vst.msk [vmem:[#allocation3 + $0x4c] sm:$0xf] %vm5716, %v5659
        %5737 = vst.msk [vmem:[#allocation3 + $0x50] sm:$0xf] %vm5716, %v5661
        %5738 = vst.msk [vmem:[#allocation3 + $0x54] sm:$0xf] %vm5716, %v5663
        %5739 = vst.msk [vmem:[#allocation3 + $0x58] sm:$0xf] %vm5716, %v5665
        %5740 = vst.msk [vmem:[#allocation3 + $0x5c] sm:$0xf] %vm5716, %v5667
        %5741 = vst.msk [vmem:[#allocation3 + $0x60] sm:$0xf] %vm5716, %v5669
        %5742 = vst.msk [vmem:[#allocation3 + $0x64] sm:$0xf] %vm5716, %v5671
        %5743 = vst.msk [vmem:[#allocation3 + $0x68] sm:$0xf] %vm5716, %v5673
        %5744 = vst.msk [vmem:[#allocation3 + $0x6c] sm:$0xf] %vm5716, %v5675
        %5745 = vst.msk [vmem:[#allocation3 + $0x70] sm:$0xf] %vm5716, %v5677
        %5746 = vst.msk [vmem:[#allocation3 + $0x74] sm:$0xf] %vm5716, %v5679
        %5747 = vst.msk [vmem:[#allocation3 + $0x78] sm:$0xf] %vm5716, %v5681
        %5748 = vst.msk [vmem:[#allocation3 + $0x7c] sm:$0xf] %vm5716, %v5683
        %v5749 = vrot.slane %v5556, 7
        %v5750 = vrot.slane %v5749, 4
        %v5751 = vrot.slane %v5557, 7
        %v5752 = vsel %vm1257, %v5750, %v5751
        %v5753 = vrot.slane %v5751, 4
        %v5754 = vrot.slane %v5558, 7
        %v5755 = vrot.slane %v5754, 4
        %v5756 = vrot.slane %v5559, 7
        %v5757 = vsel %vm1257, %v5755, %v5756
        %v5758 = vrot.slane %v5756, 4
        %v5759 = vrot.slane %v5560, 7
        %v5760 = vrot.slane %v5759, 4
        %v5761 = vrot.slane %v5561, 7
        %v5762 = vsel %vm1257, %v5760, %v5761
        %v5763 = vrot.slane %v5761, 4
        %v5764 = vrot.slane %v5562, 7
        %v5765 = vrot.slane %v5764, 4
        %v5766 = vrot.slane %v5563, 7
        %v5767 = vsel %vm1257, %v5765, %v5766
        %v5768 = vrot.slane %v5766, 4
        %v5769 = vrot.slane %v5564, 7
        %v5770 = vrot.slane %v5769, 4
        %v5771 = vrot.slane %v5565, 7
        %v5772 = vsel %vm1257, %v5770, %v5771
        %v5773 = vrot.slane %v5771, 4
        %v5774 = vrot.slane %v5566, 7
        %v5775 = vrot.slane %v5774, 4
        %v5776 = vrot.slane %v5567, 7
        %v5777 = vsel %vm1257, %v5775, %v5776
        %v5778 = vrot.slane %v5776, 4
        %v5779 = vrot.slane %v5568, 7
        %v5780 = vrot.slane %v5779, 4
        %v5781 = vrot.slane %v5569, 7
        %v5782 = vsel %vm1257, %v5780, %v5781
        %v5783 = vrot.slane %v5781, 4
        %v5784 = vrot.slane %v5570, 7
        %v5785 = vrot.slane %v5784, 4
        %v5786 = vrot.slane %v5571, 7
        %v5787 = vsel %vm1257, %v5785, %v5786
        %v5788 = vrot.slane %v5786, 4
        %v5789 = vrot.slane %v5572, 7
        %v5790 = vrot.slane %v5789, 4
        %v5791 = vrot.slane %v5573, 7
        %v5792 = vsel %vm1257, %v5790, %v5791
        %v5793 = vrot.slane %v5791, 4
        %v5794 = vrot.slane %v5574, 7
        %v5795 = vrot.slane %v5794, 4
        %v5796 = vrot.slane %v5575, 7
        %v5797 = vsel %vm1257, %v5795, %v5796
        %v5798 = vrot.slane %v5796, 4
        %v5799 = vrot.slane %v5576, 7
        %v5800 = vrot.slane %v5799, 4
        %v5801 = vrot.slane %v5577, 7
        %v5802 = vsel %vm1257, %v5800, %v5801
        %v5803 = vrot.slane %v5801, 4
        %v5804 = vrot.slane %v5578, 7
        %v5805 = vrot.slane %v5804, 4
        %v5806 = vrot.slane %v5579, 7
        %v5807 = vsel %vm1257, %v5805, %v5806
        %v5808 = vrot.slane %v5806, 4
        %v5809 = vrot.slane %v5580, 7
        %v5810 = vrot.slane %v5809, 4
        %v5811 = vrot.slane %v5581, 7
        %v5812 = vsel %vm1257, %v5810, %v5811
        %v5813 = vrot.slane %v5811, 4
        %v5814 = vrot.slane %v5582, 7
        %v5815 = vrot.slane %v5814, 4
        %v5816 = vrot.slane %v5583, 7
        %v5817 = vsel %vm1257, %v5815, %v5816
        %v5818 = vrot.slane %v5816, 4
        %v5819 = vrot.slane %v5584, 7
        %v5820 = vrot.slane %v5819, 4
        %v5821 = vrot.slane %v5585, 7
        %v5822 = vsel %vm1257, %v5820, %v5821
        %v5823 = vrot.slane %v5821, 4
        %v5824 = vrot.slane %v5586, 7
        %v5825 = vrot.slane %v5824, 4
        %v5826 = vrot.slane %v5587, 7
        %v5827 = vsel %vm1257, %v5825, %v5826
        %v5828 = vrot.slane %v5826, 4
        %5877 = vst.msk [vmem:[%s1386] sm:$0xe] %vm1387, %v5749
        %5878 = vst.msk [vmem:[%s1386 + $0x4] sm:$0xf] %vm264, %v5752
        %5879 = vst.msk [vmem:[%s1386 + $0x8] sm:$0x1] %vm279, %v5753
        %5880 = vst.msk [vmem:[%s1386 + $0xc] sm:$0xe] %vm1387, %v5754
        %5881 = vst.msk [vmem:[%s1386 + $0x10] sm:$0xf] %vm264, %v5757
        %5882 = vst.msk [vmem:[%s1386 + $0x14] sm:$0x1] %vm279, %v5758
        %5883 = vst.msk [vmem:[%s1386 + $0x18] sm:$0xe] %vm1387, %v5759
        %5884 = vst.msk [vmem:[%s1386 + $0x1c] sm:$0xf] %vm264, %v5762
        %5885 = vst.msk [vmem:[%s1386 + $0x20] sm:$0x1] %vm279, %v5763
        %5886 = vst.msk [vmem:[%s1386 + $0x24] sm:$0xe] %vm1387, %v5764
        %5887 = vst.msk [vmem:[%s1386 + $0x28] sm:$0xf] %vm264, %v5767
        %5888 = vst.msk [vmem:[%s1386 + $0x2c] sm:$0x1] %vm279, %v5768
        %5889 = vst.msk [vmem:[%s1386 + $0x30] sm:$0xe] %vm1387, %v5769
        %5890 = vst.msk [vmem:[%s1386 + $0x34] sm:$0xf] %vm264, %v5772
        %5891 = vst.msk [vmem:[%s1386 + $0x38] sm:$0x1] %vm279, %v5773
        %5892 = vst.msk [vmem:[%s1386 + $0x3c] sm:$0xe] %vm1387, %v5774
        %5893 = vst.msk [vmem:[%s1386 + $0x40] sm:$0xf] %vm264, %v5777
        %5894 = vst.msk [vmem:[%s1386 + $0x44] sm:$0x1] %vm279, %v5778
        %5895 = vst.msk [vmem:[%s1386 + $0x48] sm:$0xe] %vm1387, %v5779
        %5896 = vst.msk [vmem:[%s1386 + $0x4c] sm:$0xf] %vm264, %v5782
        %5897 = vst.msk [vmem:[%s1386 + $0x50] sm:$0x1] %vm279, %v5783
        %5898 = vst.msk [vmem:[%s1386 + $0x54] sm:$0xe] %vm1387, %v5784
        %5899 = vst.msk [vmem:[%s1386 + $0x58] sm:$0xf] %vm264, %v5787
        %5900 = vst.msk [vmem:[%s1386 + $0x5c] sm:$0x1] %vm279, %v5788
        %5901 = vst.msk [vmem:[%s1386 + $0x60] sm:$0xe] %vm1387, %v5789
        %5902 = vst.msk [vmem:[%s1386 + $0x64] sm:$0xf] %vm264, %v5792
        %5903 = vst.msk [vmem:[%s1386 + $0x68] sm:$0x1] %vm279, %v5793
        %5904 = vst.msk [vmem:[%s1386 + $0x6c] sm:$0xe] %vm1387, %v5794
        %5905 = vst.msk [vmem:[%s1386 + $0x70] sm:$0xf] %vm264, %v5797
        %5906 = vst.msk [vmem:[%s1386 + $0x74] sm:$0x1] %vm279, %v5798
        %5907 = vst.msk [vmem:[%s1386 + $0x78] sm:$0xe] %vm1387, %v5799
        %5908 = vst.msk [vmem:[%s1386 + $0x7c] sm:$0xf] %vm264, %v5802
        %5909 = vst.msk [vmem:[%s1386 + $0x80] sm:$0x1] %vm279, %v5803
        %5910 = vst.msk [vmem:[%s1386 + $0x84] sm:$0xe] %vm1387, %v5804
        %5911 = vst.msk [vmem:[%s1386 + $0x88] sm:$0xf] %vm264, %v5807
        %5912 = vst.msk [vmem:[%s1386 + $0x8c] sm:$0x1] %vm279, %v5808
        %5913 = vst.msk [vmem:[%s1386 + $0x90] sm:$0xe] %vm1387, %v5809
        %5914 = vst.msk [vmem:[%s1386 + $0x94] sm:$0xf] %vm264, %v5812
        %5915 = vst.msk [vmem:[%s1386 + $0x98] sm:$0x1] %vm279, %v5813
        %5916 = vst.msk [vmem:[%s1386 + $0x9c] sm:$0xe] %vm1387, %v5814
        %5917 = vst.msk [vmem:[%s1386 + $0xa0] sm:$0xf] %vm264, %v5817
        %5918 = vst.msk [vmem:[%s1386 + $0xa4] sm:$0x1] %vm279, %v5818
        %5919 = vst.msk [vmem:[%s1386 + $0xa8] sm:$0xe] %vm1387, %v5819
        %5920 = vst.msk [vmem:[%s1386 + $0xac] sm:$0xf] %vm264, %v5822
        %5921 = vst.msk [vmem:[%s1386 + $0xb0] sm:$0x1] %vm279, %v5823
        %5922 = vst.msk [vmem:[%s1386 + $0xb4] sm:$0xe] %vm1387, %v5824
        %5923 = vst.msk [vmem:[%s1386 + $0xb8] sm:$0xf] %vm264, %v5827
        %5924 = vst.msk [vmem:[%s1386 + $0xbc] sm:$0x1] %vm279, %v5828
        %v5925 = vld [vmem:[#allocation2] sm:$0xf]
        %v5926 = vld [vmem:[#allocation2 + $0x4] sm:$0xf]
        %v5927 = vld [vmem:[#allocation2 + $0x8] sm:$0x3]
        %v5928 = vld [vmem:[#allocation2 + $0xc] sm:$0xf]
        %v5929 = vld [vmem:[#allocation2 + $0x10] sm:$0xf]
        %v5930 = vld [vmem:[#allocation2 + $0x14] sm:$0x3]
        %v5931 = vld [vmem:[#allocation2 + $0x18] sm:$0xf]
        %v5932 = vld [vmem:[#allocation2 + $0x1c] sm:$0xf]
        %v5933 = vld [vmem:[#allocation2 + $0x20] sm:$0x3]
        %v5934 = vld [vmem:[#allocation2 + $0x24] sm:$0xf]
        %v5935 = vld [vmem:[#allocation2 + $0x28] sm:$0xf]
        %v5936 = vld [vmem:[#allocation2 + $0x2c] sm:$0x3]
        %v5937 = vld [vmem:[#allocation2 + $0x30] sm:$0xf]
        %v5938 = vld [vmem:[#allocation2 + $0x34] sm:$0xf]
        %v5939 = vld [vmem:[#allocation2 + $0x38] sm:$0x3]
        %v5940 = vld [vmem:[#allocation2 + $0x3c] sm:$0xf]
        %v5941 = vld [vmem:[#allocation2 + $0x40] sm:$0xf]
        %v5942 = vld [vmem:[#allocation2 + $0x44] sm:$0x3]
        %v5943 = vld [vmem:[#allocation2 + $0x48] sm:$0xf]
        %v5944 = vld [vmem:[#allocation2 + $0x4c] sm:$0xf]
        %v5945 = vld [vmem:[#allocation2 + $0x50] sm:$0x3]
        %v5946 = vld [vmem:[#allocation2 + $0x54] sm:$0xf]
        %v5947 = vld [vmem:[#allocation2 + $0x58] sm:$0xf]
        %v5948 = vld [vmem:[#allocation2 + $0x5c] sm:$0x3]
        %v5949 = vld [vmem:[#allocation2 + $0x60] sm:$0xf]
        %v5950 = vld [vmem:[#allocation2 + $0x64] sm:$0xf]
        %v5951 = vld [vmem:[#allocation2 + $0x68] sm:$0x3]
        %v5952 = vld [vmem:[#allocation2 + $0x6c] sm:$0xf]
        %v5953 = vld [vmem:[#allocation2 + $0x70] sm:$0xf]
        %v5954 = vld [vmem:[#allocation2 + $0x74] sm:$0x3]
        %v5955 = vld [vmem:[#allocation2 + $0x78] sm:$0xf]
        %v5956 = vld [vmem:[#allocation2 + $0x7c] sm:$0xf]
        %v5957 = vld [vmem:[#allocation2 + $0x80] sm:$0x3]
        %v5958 = vld [vmem:[#allocation2 + $0x84] sm:$0xf]
        %v5959 = vld [vmem:[#allocation2 + $0x88] sm:$0xf]
        %v5960 = vld [vmem:[#allocation2 + $0x8c] sm:$0x3]
        %v5961 = vld [vmem:[#allocation2 + $0x90] sm:$0xf]
        %v5962 = vld [vmem:[#allocation2 + $0x94] sm:$0xf]
        %v5963 = vld [vmem:[#allocation2 + $0x98] sm:$0x3]
        %v5964 = vld [vmem:[#allocation2 + $0x9c] sm:$0xf]
        %v5965 = vld [vmem:[#allocation2 + $0xa0] sm:$0xf]
        %v5966 = vld [vmem:[#allocation2 + $0xa4] sm:$0x3]
        %v5967 = vld [vmem:[#allocation2 + $0xa8] sm:$0xf]
        %v5968 = vld [vmem:[#allocation2 + $0xac] sm:$0xf]
        %v5969 = vld [vmem:[#allocation2 + $0xb0] sm:$0x3]
        %v5970 = vld [vmem:[#allocation2 + $0xb4] sm:$0xf]
        %v5971 = vld [vmem:[#allocation2 + $0xb8] sm:$0xf]
        %v5972 = vld [vmem:[#allocation2 + $0xbc] sm:$0x3]
        %v5973 = vld [vmem:[%s1484] sm:$0xf]
        %v5974 = vld [vmem:[%s1484 + $0x4] sm:$0xf]
        %v5975 = vld [vmem:[%s1484 + $0x8] sm:$0x3]
        %v5976 = vld [vmem:[%s1484 + $0xc] sm:$0xf]
        %v5977 = vld [vmem:[%s1484 + $0x10] sm:$0xf]
        %v5978 = vld [vmem:[%s1484 + $0x14] sm:$0x3]
        %v5979 = vld [vmem:[%s1484 + $0x18] sm:$0xf]
        %v5980 = vld [vmem:[%s1484 + $0x1c] sm:$0xf]
        %v5981 = vld [vmem:[%s1484 + $0x20] sm:$0x3]
        %v5982 = vld [vmem:[%s1484 + $0x24] sm:$0xf]
        %v5983 = vld [vmem:[%s1484 + $0x28] sm:$0xf]
        %v5984 = vld [vmem:[%s1484 + $0x2c] sm:$0x3]
        %v5985 = vld [vmem:[%s1484 + $0x30] sm:$0xf]
        %v5986 = vld [vmem:[%s1484 + $0x34] sm:$0xf]
        %v5987 = vld [vmem:[%s1484 + $0x38] sm:$0x3]
        %v5988 = vld [vmem:[%s1484 + $0x3c] sm:$0xf]
        %v5989 = vld [vmem:[%s1484 + $0x40] sm:$0xf]
        %v5990 = vld [vmem:[%s1484 + $0x44] sm:$0x3]
        %v5991 = vld [vmem:[%s1484 + $0x48] sm:$0xf]
        %v5992 = vld [vmem:[%s1484 + $0x4c] sm:$0xf]
        %v5993 = vld [vmem:[%s1484 + $0x50] sm:$0x3]
        %v5994 = vld [vmem:[%s1484 + $0x54] sm:$0xf]
        %v5995 = vld [vmem:[%s1484 + $0x58] sm:$0xf]
        %v5996 = vld [vmem:[%s1484 + $0x5c] sm:$0x3]
        %v5997 = vld [vmem:[%s1484 + $0x60] sm:$0xf]
        %v5998 = vld [vmem:[%s1484 + $0x64] sm:$0xf]
        %v5999 = vld [vmem:[%s1484 + $0x68] sm:$0x3]
        %v6000 = vld [vmem:[%s1484 + $0x6c] sm:$0xf]
        %v6001 = vld [vmem:[%s1484 + $0x70] sm:$0xf]
        %v6002 = vld [vmem:[%s1484 + $0x74] sm:$0x3]
        %v6003 = vld [vmem:[%s1484 + $0x78] sm:$0xf]
        %v6004 = vld [vmem:[%s1484 + $0x7c] sm:$0xf]
        %v6005 = vld [vmem:[%s1484 + $0x80] sm:$0x3]
        %v6006 = vld [vmem:[%s1484 + $0x84] sm:$0xf]
        %v6007 = vld [vmem:[%s1484 + $0x88] sm:$0xf]
        %v6008 = vld [vmem:[%s1484 + $0x8c] sm:$0x3]
        %v6009 = vld [vmem:[%s1484 + $0x90] sm:$0xf]
        %v6010 = vld [vmem:[%s1484 + $0x94] sm:$0xf]
        %v6011 = vld [vmem:[%s1484 + $0x98] sm:$0x3]
        %v6012 = vld [vmem:[%s1484 + $0x9c] sm:$0xf]
        %v6013 = vld [vmem:[%s1484 + $0xa0] sm:$0xf]
        %v6014 = vld [vmem:[%s1484 + $0xa4] sm:$0x3]
        %v6015 = vld [vmem:[%s1484 + $0xa8] sm:$0xf]
        %v6016 = vld [vmem:[%s1484 + $0xac] sm:$0xf]
        %v6017 = vld [vmem:[%s1484 + $0xb0] sm:$0x3]
        %v6018 = vld [vmem:[%s1484 + $0xb4] sm:$0xf]
        %v6019 = vld [vmem:[%s1484 + $0xb8] sm:$0xf]
        %v6020 = vld [vmem:[%s1484 + $0xbc] sm:$0x3]
        %v6021 = vunpack.c.l.bf16 %v5925
        %v6022 = vunpack.c.l.bf16 %v5926
        %v6023 = vunpack.c.l.bf16 %v5927
        %v6024 = vunpack.c.l.bf16 %v5928
        %v6025 = vunpack.c.l.bf16 %v5929
        %v6026 = vunpack.c.l.bf16 %v5930
        %v6027 = vunpack.c.l.bf16 %v5931
        %v6028 = vunpack.c.l.bf16 %v5932
        %v6029 = vunpack.c.l.bf16 %v5933
        %v6030 = vunpack.c.l.bf16 %v5934
        %v6031 = vunpack.c.l.bf16 %v5935
        %v6032 = vunpack.c.l.bf16 %v5936
        %v6033 = vunpack.c.l.bf16 %v5937
        %v6034 = vunpack.c.l.bf16 %v5938
        %v6035 = vunpack.c.l.bf16 %v5939
        %v6036 = vunpack.c.l.bf16 %v5940
        %v6037 = vunpack.c.l.bf16 %v5941
        %v6038 = vunpack.c.l.bf16 %v5942
        %v6039 = vunpack.c.l.bf16 %v5943
        %v6040 = vunpack.c.l.bf16 %v5944
        %v6041 = vunpack.c.l.bf16 %v5945
        %v6042 = vunpack.c.l.bf16 %v5946
        %v6043 = vunpack.c.l.bf16 %v5947
        %v6044 = vunpack.c.l.bf16 %v5948
        %v6045 = vunpack.c.l.bf16 %v5949
        %v6046 = vunpack.c.l.bf16 %v5950
        %v6047 = vunpack.c.l.bf16 %v5951
        %v6048 = vunpack.c.l.bf16 %v5952
        %v6049 = vunpack.c.l.bf16 %v5953
        %v6050 = vunpack.c.l.bf16 %v5954
        %v6051 = vunpack.c.l.bf16 %v5955
        %v6052 = vunpack.c.l.bf16 %v5956
        %v6053 = vunpack.c.l.bf16 %v5957
        %v6054 = vunpack.c.l.bf16 %v5958
        %v6055 = vunpack.c.l.bf16 %v5959
        %v6056 = vunpack.c.l.bf16 %v5960
        %v6057 = vunpack.c.l.bf16 %v5961
        %v6058 = vunpack.c.l.bf16 %v5962
        %v6059 = vunpack.c.l.bf16 %v5963
        %v6060 = vunpack.c.l.bf16 %v5964
        %v6061 = vunpack.c.l.bf16 %v5965
        %v6062 = vunpack.c.l.bf16 %v5966
        %v6063 = vunpack.c.l.bf16 %v5967
        %v6064 = vunpack.c.l.bf16 %v5968
        %v6065 = vunpack.c.l.bf16 %v5969
        %v6066 = vunpack.c.l.bf16 %v5970
        %v6067 = vunpack.c.l.bf16 %v5971
        %v6068 = vunpack.c.l.bf16 %v5972
        %v6069 = vunpack.c.l.bf16 %v5973
        %v6070 = vunpack.c.l.bf16 %v5974
        %v6071 = vunpack.c.l.bf16 %v5975
        %v6072 = vunpack.c.l.bf16 %v5976
        %v6073 = vunpack.c.l.bf16 %v5977
        %v6074 = vunpack.c.l.bf16 %v5978
        %v6075 = vunpack.c.l.bf16 %v5979
        %v6076 = vunpack.c.l.bf16 %v5980
        %v6077 = vunpack.c.l.bf16 %v5981
        %v6078 = vunpack.c.l.bf16 %v5982
        %v6079 = vunpack.c.l.bf16 %v5983
        %v6080 = vunpack.c.l.bf16 %v5984
        %v6081 = vunpack.c.l.bf16 %v5985
        %v6082 = vunpack.c.l.bf16 %v5986
        %v6083 = vunpack.c.l.bf16 %v5987
        %v6084 = vunpack.c.l.bf16 %v5988
        %v6085 = vunpack.c.l.bf16 %v5989
        %v6086 = vunpack.c.l.bf16 %v5990
        %v6087 = vunpack.c.l.bf16 %v5991
        %v6088 = vunpack.c.l.bf16 %v5992
        %v6089 = vunpack.c.l.bf16 %v5993
        %v6090 = vunpack.c.l.bf16 %v5994
        %v6091 = vunpack.c.l.bf16 %v5995
        %v6092 = vunpack.c.l.bf16 %v5996
        %v6093 = vunpack.c.l.bf16 %v5997
        %v6094 = vunpack.c.l.bf16 %v5998
        %v6095 = vunpack.c.l.bf16 %v5999
        %v6096 = vunpack.c.l.bf16 %v6000
        %v6097 = vunpack.c.l.bf16 %v6001
        %v6098 = vunpack.c.l.bf16 %v6002
        %v6099 = vunpack.c.l.bf16 %v6003
        %v6100 = vunpack.c.l.bf16 %v6004
        %v6101 = vunpack.c.l.bf16 %v6005
        %v6102 = vunpack.c.l.bf16 %v6006
        %v6103 = vunpack.c.l.bf16 %v6007
        %v6104 = vunpack.c.l.bf16 %v6008
        %v6105 = vunpack.c.l.bf16 %v6009
        %v6106 = vunpack.c.l.bf16 %v6010
        %v6107 = vunpack.c.l.bf16 %v6011
        %v6108 = vunpack.c.l.bf16 %v6012
        %v6109 = vunpack.c.l.bf16 %v6013
        %v6110 = vunpack.c.l.bf16 %v6014
        %v6111 = vunpack.c.l.bf16 %v6015
        %v6112 = vunpack.c.l.bf16 %v6016
        %v6113 = vunpack.c.l.bf16 %v6017
        %v6114 = vunpack.c.l.bf16 %v6018
        %v6115 = vunpack.c.l.bf16 %v6019
        %v6116 = vunpack.c.l.bf16 %v6020
        %v6117 = vmax.f32 %v6021, %v6069
        %v6118 = vmax.f32 %v6022, %v6070
        %v6119 = vmax.f32 %v6023, %v6071
        %v6120 = vmax.f32 %v6024, %v6072
        %v6121 = vmax.f32 %v6025, %v6073
        %v6122 = vmax.f32 %v6026, %v6074
        %v6123 = vmax.f32 %v6027, %v6075
        %v6124 = vmax.f32 %v6028, %v6076
        %v6125 = vmax.f32 %v6029, %v6077
        %v6126 = vmax.f32 %v6030, %v6078
        %v6127 = vmax.f32 %v6031, %v6079
        %v6128 = vmax.f32 %v6032, %v6080
        %v6129 = vmax.f32 %v6033, %v6081
        %v6130 = vmax.f32 %v6034, %v6082
        %v6131 = vmax.f32 %v6035, %v6083
        %v6132 = vmax.f32 %v6036, %v6084
        %v6133 = vmax.f32 %v6037, %v6085
        %v6134 = vmax.f32 %v6038, %v6086
        %v6135 = vmax.f32 %v6039, %v6087
        %v6136 = vmax.f32 %v6040, %v6088
        %v6137 = vmax.f32 %v6041, %v6089
        %v6138 = vmax.f32 %v6042, %v6090
        %v6139 = vmax.f32 %v6043, %v6091
        %v6140 = vmax.f32 %v6044, %v6092
        %v6141 = vmax.f32 %v6045, %v6093
        %v6142 = vmax.f32 %v6046, %v6094
        %v6143 = vmax.f32 %v6047, %v6095
        %v6144 = vmax.f32 %v6048, %v6096
        %v6145 = vmax.f32 %v6049, %v6097
        %v6146 = vmax.f32 %v6050, %v6098
        %v6147 = vmax.f32 %v6051, %v6099
        %v6148 = vmax.f32 %v6052, %v6100
        %v6149 = vmax.f32 %v6053, %v6101
        %v6150 = vmax.f32 %v6054, %v6102
        %v6151 = vmax.f32 %v6055, %v6103
        %v6152 = vmax.f32 %v6056, %v6104
        %v6153 = vmax.f32 %v6057, %v6105
        %v6154 = vmax.f32 %v6058, %v6106
        %v6155 = vmax.f32 %v6059, %v6107
        %v6156 = vmax.f32 %v6060, %v6108
        %v6157 = vmax.f32 %v6061, %v6109
        %v6158 = vmax.f32 %v6062, %v6110
        %v6159 = vmax.f32 %v6063, %v6111
        %v6160 = vmax.f32 %v6064, %v6112
        %v6161 = vmax.f32 %v6065, %v6113
        %v6162 = vmax.f32 %v6066, %v6114
        %v6163 = vmax.f32 %v6067, %v6115
        %v6164 = vmax.f32 %v6068, %v6116
        %v6165 = vpack.c.bf16 %v6117, %v6117
        %v6166 = vpack.c.bf16 %v6118, %v6118
        %v6167 = vpack.c.bf16 %v6119, %v6119
        %v6168 = vpack.c.bf16 %v6120, %v6120
        %v6169 = vpack.c.bf16 %v6121, %v6121
        %v6170 = vpack.c.bf16 %v6122, %v6122
        %v6171 = vpack.c.bf16 %v6123, %v6123
        %v6172 = vpack.c.bf16 %v6124, %v6124
        %v6173 = vpack.c.bf16 %v6125, %v6125
        %v6174 = vpack.c.bf16 %v6126, %v6126
        %v6175 = vpack.c.bf16 %v6127, %v6127
        %v6176 = vpack.c.bf16 %v6128, %v6128
        %v6177 = vpack.c.bf16 %v6129, %v6129
        %v6178 = vpack.c.bf16 %v6130, %v6130
        %v6179 = vpack.c.bf16 %v6131, %v6131
        %v6180 = vpack.c.bf16 %v6132, %v6132
        %v6181 = vpack.c.bf16 %v6133, %v6133
        %v6182 = vpack.c.bf16 %v6134, %v6134
        %v6183 = vpack.c.bf16 %v6135, %v6135
        %v6184 = vpack.c.bf16 %v6136, %v6136
        %v6185 = vpack.c.bf16 %v6137, %v6137
        %v6186 = vpack.c.bf16 %v6138, %v6138
        %v6187 = vpack.c.bf16 %v6139, %v6139
        %v6188 = vpack.c.bf16 %v6140, %v6140
        %v6189 = vpack.c.bf16 %v6141, %v6141
        %v6190 = vpack.c.bf16 %v6142, %v6142
        %v6191 = vpack.c.bf16 %v6143, %v6143
        %v6192 = vpack.c.bf16 %v6144, %v6144
        %v6193 = vpack.c.bf16 %v6145, %v6145
        %v6194 = vpack.c.bf16 %v6146, %v6146
        %v6195 = vpack.c.bf16 %v6147, %v6147
        %v6196 = vpack.c.bf16 %v6148, %v6148
        %v6197 = vpack.c.bf16 %v6149, %v6149
        %v6198 = vpack.c.bf16 %v6150, %v6150
        %v6199 = vpack.c.bf16 %v6151, %v6151
        %v6200 = vpack.c.bf16 %v6152, %v6152
        %v6201 = vpack.c.bf16 %v6153, %v6153
        %v6202 = vpack.c.bf16 %v6154, %v6154
        %v6203 = vpack.c.bf16 %v6155, %v6155
        %v6204 = vpack.c.bf16 %v6156, %v6156
        %v6205 = vpack.c.bf16 %v6157, %v6157
        %v6206 = vpack.c.bf16 %v6158, %v6158
        %v6207 = vpack.c.bf16 %v6159, %v6159
        %v6208 = vpack.c.bf16 %v6160, %v6160
        %v6209 = vpack.c.bf16 %v6161, %v6161
        %v6210 = vpack.c.bf16 %v6162, %v6162
        %v6211 = vpack.c.bf16 %v6163, %v6163
        %v6212 = vpack.c.bf16 %v6164, %v6164
        %v6213 = vld [vmem:[%s1386] sm:$0xf]
        %v6214 = vld [vmem:[%s1386 + $0x4] sm:$0xf]
        %v6215 = vld [vmem:[%s1386 + $0x8] sm:$0x3]
        %v6216 = vld [vmem:[%s1386 + $0xc] sm:$0xf]
        %v6217 = vld [vmem:[%s1386 + $0x10] sm:$0xf]
        %v6218 = vld [vmem:[%s1386 + $0x14] sm:$0x3]
        %v6219 = vld [vmem:[%s1386 + $0x18] sm:$0xf]
        %v6220 = vld [vmem:[%s1386 + $0x1c] sm:$0xf]
        %v6221 = vld [vmem:[%s1386 + $0x20] sm:$0x3]
        %v6222 = vld [vmem:[%s1386 + $0x24] sm:$0xf]
        %v6223 = vld [vmem:[%s1386 + $0x28] sm:$0xf]
        %v6224 = vld [vmem:[%s1386 + $0x2c] sm:$0x3]
        %v6225 = vld [vmem:[%s1386 + $0x30] sm:$0xf]
        %v6226 = vld [vmem:[%s1386 + $0x34] sm:$0xf]
        %v6227 = vld [vmem:[%s1386 + $0x38] sm:$0x3]
        %v6228 = vld [vmem:[%s1386 + $0x3c] sm:$0xf]
        %v6229 = vld [vmem:[%s1386 + $0x40] sm:$0xf]
        %v6230 = vld [vmem:[%s1386 + $0x44] sm:$0x3]
        %v6231 = vld [vmem:[%s1386 + $0x48] sm:$0xf]
        %v6232 = vld [vmem:[%s1386 + $0x4c] sm:$0xf]
        %v6233 = vld [vmem:[%s1386 + $0x50] sm:$0x3]
        %v6234 = vld [vmem:[%s1386 + $0x54] sm:$0xf]
        %v6235 = vld [vmem:[%s1386 + $0x58] sm:$0xf]
        %v6236 = vld [vmem:[%s1386 + $0x5c] sm:$0x3]
        %v6237 = vld [vmem:[%s1386 + $0x60] sm:$0xf]
        %v6238 = vld [vmem:[%s1386 + $0x64] sm:$0xf]
        %v6239 = vld [vmem:[%s1386 + $0x68] sm:$0x3]
        %v6240 = vld [vmem:[%s1386 + $0x6c] sm:$0xf]
        %v6241 = vld [vmem:[%s1386 + $0x70] sm:$0xf]
        %v6242 = vld [vmem:[%s1386 + $0x74] sm:$0x3]
        %v6243 = vld [vmem:[%s1386 + $0x78] sm:$0xf]
        %v6244 = vld [vmem:[%s1386 + $0x7c] sm:$0xf]
        %v6245 = vld [vmem:[%s1386 + $0x80] sm:$0x3]
        %v6246 = vld [vmem:[%s1386 + $0x84] sm:$0xf]
        %v6247 = vld [vmem:[%s1386 + $0x88] sm:$0xf]
        %v6248 = vld [vmem:[%s1386 + $0x8c] sm:$0x3]
        %v6249 = vld [vmem:[%s1386 + $0x90] sm:$0xf]
        %v6250 = vld [vmem:[%s1386 + $0x94] sm:$0xf]
        %v6251 = vld [vmem:[%s1386 + $0x98] sm:$0x3]
        %v6252 = vld [vmem:[%s1386 + $0x9c] sm:$0xf]
        %v6253 = vld [vmem:[%s1386 + $0xa0] sm:$0xf]
        %v6254 = vld [vmem:[%s1386 + $0xa4] sm:$0x3]
        %v6255 = vld [vmem:[%s1386 + $0xa8] sm:$0xf]
        %v6256 = vld [vmem:[%s1386 + $0xac] sm:$0xf]
        %v6257 = vld [vmem:[%s1386 + $0xb0] sm:$0x3]
        %v6258 = vld [vmem:[%s1386 + $0xb4] sm:$0xf]
        %v6259 = vld [vmem:[%s1386 + $0xb8] sm:$0xf]
        %v6260 = vld [vmem:[%s1386 + $0xbc] sm:$0x3]
        %v6261 = vunpack.c.l.bf16 %v6165
        %v6262 = vunpack.c.l.bf16 %v6166
        %v6263 = vunpack.c.l.bf16 %v6167
        %v6264 = vunpack.c.l.bf16 %v6168
        %v6265 = vunpack.c.l.bf16 %v6169
        %v6266 = vunpack.c.l.bf16 %v6170
        %v6267 = vunpack.c.l.bf16 %v6171
        %v6268 = vunpack.c.l.bf16 %v6172
        %v6269 = vunpack.c.l.bf16 %v6173
        %v6270 = vunpack.c.l.bf16 %v6174
        %v6271 = vunpack.c.l.bf16 %v6175
        %v6272 = vunpack.c.l.bf16 %v6176
        %v6273 = vunpack.c.l.bf16 %v6177
        %v6274 = vunpack.c.l.bf16 %v6178
        %v6275 = vunpack.c.l.bf16 %v6179
        %v6276 = vunpack.c.l.bf16 %v6180
        %v6277 = vunpack.c.l.bf16 %v6181
        %v6278 = vunpack.c.l.bf16 %v6182
        %v6279 = vunpack.c.l.bf16 %v6183
        %v6280 = vunpack.c.l.bf16 %v6184
        %v6281 = vunpack.c.l.bf16 %v6185
        %v6282 = vunpack.c.l.bf16 %v6186
        %v6283 = vunpack.c.l.bf16 %v6187
        %v6284 = vunpack.c.l.bf16 %v6188
        %v6285 = vunpack.c.l.bf16 %v6189
        %v6286 = vunpack.c.l.bf16 %v6190
        %v6287 = vunpack.c.l.bf16 %v6191
        %v6288 = vunpack.c.l.bf16 %v6192
        %v6289 = vunpack.c.l.bf16 %v6193
        %v6290 = vunpack.c.l.bf16 %v6194
        %v6291 = vunpack.c.l.bf16 %v6195
        %v6292 = vunpack.c.l.bf16 %v6196
        %v6293 = vunpack.c.l.bf16 %v6197
        %v6294 = vunpack.c.l.bf16 %v6198
        %v6295 = vunpack.c.l.bf16 %v6199
        %v6296 = vunpack.c.l.bf16 %v6200
        %v6297 = vunpack.c.l.bf16 %v6201
        %v6298 = vunpack.c.l.bf16 %v6202
        %v6299 = vunpack.c.l.bf16 %v6203
        %v6300 = vunpack.c.l.bf16 %v6204
        %v6301 = vunpack.c.l.bf16 %v6205
        %v6302 = vunpack.c.l.bf16 %v6206
        %v6303 = vunpack.c.l.bf16 %v6207
        %v6304 = vunpack.c.l.bf16 %v6208
        %v6305 = vunpack.c.l.bf16 %v6209
        %v6306 = vunpack.c.l.bf16 %v6210
        %v6307 = vunpack.c.l.bf16 %v6211
        %v6308 = vunpack.c.l.bf16 %v6212
        %v6309 = vunpack.c.l.bf16 %v6213
        %v6310 = vunpack.c.l.bf16 %v6214
        %v6311 = vunpack.c.l.bf16 %v6215
        %v6312 = vunpack.c.l.bf16 %v6216
        %v6313 = vunpack.c.l.bf16 %v6217
        %v6314 = vunpack.c.l.bf16 %v6218
        %v6315 = vunpack.c.l.bf16 %v6219
        %v6316 = vunpack.c.l.bf16 %v6220
        %v6317 = vunpack.c.l.bf16 %v6221
        %v6318 = vunpack.c.l.bf16 %v6222
        %v6319 = vunpack.c.l.bf16 %v6223
        %v6320 = vunpack.c.l.bf16 %v6224
        %v6321 = vunpack.c.l.bf16 %v6225
        %v6322 = vunpack.c.l.bf16 %v6226
        %v6323 = vunpack.c.l.bf16 %v6227
        %v6324 = vunpack.c.l.bf16 %v6228
        %v6325 = vunpack.c.l.bf16 %v6229
        %v6326 = vunpack.c.l.bf16 %v6230
        %v6327 = vunpack.c.l.bf16 %v6231
        %v6328 = vunpack.c.l.bf16 %v6232
        %v6329 = vunpack.c.l.bf16 %v6233
        %v6330 = vunpack.c.l.bf16 %v6234
        %v6331 = vunpack.c.l.bf16 %v6235
        %v6332 = vunpack.c.l.bf16 %v6236
        %v6333 = vunpack.c.l.bf16 %v6237
        %v6334 = vunpack.c.l.bf16 %v6238
        %v6335 = vunpack.c.l.bf16 %v6239
        %v6336 = vunpack.c.l.bf16 %v6240
        %v6337 = vunpack.c.l.bf16 %v6241
        %v6338 = vunpack.c.l.bf16 %v6242
        %v6339 = vunpack.c.l.bf16 %v6243
        %v6340 = vunpack.c.l.bf16 %v6244
        %v6341 = vunpack.c.l.bf16 %v6245
        %v6342 = vunpack.c.l.bf16 %v6246
        %v6343 = vunpack.c.l.bf16 %v6247
        %v6344 = vunpack.c.l.bf16 %v6248
        %v6345 = vunpack.c.l.bf16 %v6249
        %v6346 = vunpack.c.l.bf16 %v6250
        %v6347 = vunpack.c.l.bf16 %v6251
        %v6348 = vunpack.c.l.bf16 %v6252
        %v6349 = vunpack.c.l.bf16 %v6253
        %v6350 = vunpack.c.l.bf16 %v6254
        %v6351 = vunpack.c.l.bf16 %v6255
        %v6352 = vunpack.c.l.bf16 %v6256
        %v6353 = vunpack.c.l.bf16 %v6257
        %v6354 = vunpack.c.l.bf16 %v6258
        %v6355 = vunpack.c.l.bf16 %v6259
        %v6356 = vunpack.c.l.bf16 %v6260
        %v6357 = vmax.f32 %v6261, %v6309
        %v6358 = vmax.f32 %v6262, %v6310
        %v6359 = vmax.f32 %v6263, %v6311
        %v6360 = vmax.f32 %v6264, %v6312
        %v6361 = vmax.f32 %v6265, %v6313
        %v6362 = vmax.f32 %v6266, %v6314
        %v6363 = vmax.f32 %v6267, %v6315
        %v6364 = vmax.f32 %v6268, %v6316
        %v6365 = vmax.f32 %v6269, %v6317
        %v6366 = vmax.f32 %v6270, %v6318
        %v6367 = vmax.f32 %v6271, %v6319
        %v6368 = vmax.f32 %v6272, %v6320
        %v6369 = vmax.f32 %v6273, %v6321
        %v6370 = vmax.f32 %v6274, %v6322
        %v6371 = vmax.f32 %v6275, %v6323
        %v6372 = vmax.f32 %v6276, %v6324
        %v6373 = vmax.f32 %v6277, %v6325
        %v6374 = vmax.f32 %v6278, %v6326
        %v6375 = vmax.f32 %v6279, %v6327
        %v6376 = vmax.f32 %v6280, %v6328
        %v6377 = vmax.f32 %v6281, %v6329
        %v6378 = vmax.f32 %v6282, %v6330
        %v6379 = vmax.f32 %v6283, %v6331
        %v6380 = vmax.f32 %v6284, %v6332
        %v6381 = vmax.f32 %v6285, %v6333
        %v6382 = vmax.f32 %v6286, %v6334
        %v6383 = vmax.f32 %v6287, %v6335
        %v6384 = vmax.f32 %v6288, %v6336
        %v6385 = vmax.f32 %v6289, %v6337
        %v6386 = vmax.f32 %v6290, %v6338
        %v6387 = vmax.f32 %v6291, %v6339
        %v6388 = vmax.f32 %v6292, %v6340
        %v6389 = vmax.f32 %v6293, %v6341
        %v6390 = vmax.f32 %v6294, %v6342
        %v6391 = vmax.f32 %v6295, %v6343
        %v6392 = vmax.f32 %v6296, %v6344
        %v6393 = vmax.f32 %v6297, %v6345
        %v6394 = vmax.f32 %v6298, %v6346
        %v6395 = vmax.f32 %v6299, %v6347
        %v6396 = vmax.f32 %v6300, %v6348
        %v6397 = vmax.f32 %v6301, %v6349
        %v6398 = vmax.f32 %v6302, %v6350
        %v6399 = vmax.f32 %v6303, %v6351
        %v6400 = vmax.f32 %v6304, %v6352
        %v6401 = vmax.f32 %v6305, %v6353
        %v6402 = vmax.f32 %v6306, %v6354
        %v6403 = vmax.f32 %v6307, %v6355
        %v6404 = vmax.f32 %v6308, %v6356
        %v6405 = vpack.c.bf16 %v6357, %v6357
        %v6406 = vpack.c.bf16 %v6358, %v6358
        %v6407 = vpack.c.bf16 %v6359, %v6359
        %v6408 = vpack.c.bf16 %v6360, %v6360
        %v6409 = vpack.c.bf16 %v6361, %v6361
        %v6410 = vpack.c.bf16 %v6362, %v6362
        %v6411 = vpack.c.bf16 %v6363, %v6363
        %v6412 = vpack.c.bf16 %v6364, %v6364
        %v6413 = vpack.c.bf16 %v6365, %v6365
        %v6414 = vpack.c.bf16 %v6366, %v6366
        %v6415 = vpack.c.bf16 %v6367, %v6367
        %v6416 = vpack.c.bf16 %v6368, %v6368
        %v6417 = vpack.c.bf16 %v6369, %v6369
        %v6418 = vpack.c.bf16 %v6370, %v6370
        %v6419 = vpack.c.bf16 %v6371, %v6371
        %v6420 = vpack.c.bf16 %v6372, %v6372
        %v6421 = vpack.c.bf16 %v6373, %v6373
        %v6422 = vpack.c.bf16 %v6374, %v6374
        %v6423 = vpack.c.bf16 %v6375, %v6375
        %v6424 = vpack.c.bf16 %v6376, %v6376
        %v6425 = vpack.c.bf16 %v6377, %v6377
        %v6426 = vpack.c.bf16 %v6378, %v6378
        %v6427 = vpack.c.bf16 %v6379, %v6379
        %v6428 = vpack.c.bf16 %v6380, %v6380
        %v6429 = vpack.c.bf16 %v6381, %v6381
        %v6430 = vpack.c.bf16 %v6382, %v6382
        %v6431 = vpack.c.bf16 %v6383, %v6383
        %v6432 = vpack.c.bf16 %v6384, %v6384
        %v6433 = vpack.c.bf16 %v6385, %v6385
        %v6434 = vpack.c.bf16 %v6386, %v6386
        %v6435 = vpack.c.bf16 %v6387, %v6387
        %v6436 = vpack.c.bf16 %v6388, %v6388
        %v6437 = vpack.c.bf16 %v6389, %v6389
        %v6438 = vpack.c.bf16 %v6390, %v6390
        %v6439 = vpack.c.bf16 %v6391, %v6391
        %v6440 = vpack.c.bf16 %v6392, %v6392
        %v6441 = vpack.c.bf16 %v6393, %v6393
        %v6442 = vpack.c.bf16 %v6394, %v6394
        %v6443 = vpack.c.bf16 %v6395, %v6395
        %v6444 = vpack.c.bf16 %v6396, %v6396
        %v6445 = vpack.c.bf16 %v6397, %v6397
        %v6446 = vpack.c.bf16 %v6398, %v6398
        %v6447 = vpack.c.bf16 %v6399, %v6399
        %v6448 = vpack.c.bf16 %v6400, %v6400
        %v6449 = vpack.c.bf16 %v6401, %v6401
        %v6450 = vpack.c.bf16 %v6402, %v6402
        %v6451 = vpack.c.bf16 %v6403, %v6403
        %v6452 = vpack.c.bf16 %v6404, %v6404
        %v6453 = vld [vmem:[%s1965] sm:$0xf]
        %v6454 = vld [vmem:[%s1965 + $0x4] sm:$0xf]
        %v6455 = vld [vmem:[%s1965 + $0x8] sm:$0x3]
        %v6456 = vld [vmem:[%s1965 + $0xc] sm:$0xf]
        %v6457 = vld [vmem:[%s1965 + $0x10] sm:$0xf]
        %v6458 = vld [vmem:[%s1965 + $0x14] sm:$0x3]
        %v6459 = vld [vmem:[%s1965 + $0x18] sm:$0xf]
        %v6460 = vld [vmem:[%s1965 + $0x1c] sm:$0xf]
        %v6461 = vld [vmem:[%s1965 + $0x20] sm:$0x3]
        %v6462 = vld [vmem:[%s1965 + $0x24] sm:$0xf]
        %v6463 = vld [vmem:[%s1965 + $0x28] sm:$0xf]
        %v6464 = vld [vmem:[%s1965 + $0x2c] sm:$0x3]
        %v6465 = vld [vmem:[%s1965 + $0x30] sm:$0xf]
        %v6466 = vld [vmem:[%s1965 + $0x34] sm:$0xf]
        %v6467 = vld [vmem:[%s1965 + $0x38] sm:$0x3]
        %v6468 = vld [vmem:[%s1965 + $0x3c] sm:$0xf]
        %v6469 = vld [vmem:[%s1965 + $0x40] sm:$0xf]
        %v6470 = vld [vmem:[%s1965 + $0x44] sm:$0x3]
        %v6471 = vld [vmem:[%s1965 + $0x48] sm:$0xf]
        %v6472 = vld [vmem:[%s1965 + $0x4c] sm:$0xf]
        %v6473 = vld [vmem:[%s1965 + $0x50] sm:$0x3]
        %v6474 = vld [vmem:[%s1965 + $0x54] sm:$0xf]
        %v6475 = vld [vmem:[%s1965 + $0x58] sm:$0xf]
        %v6476 = vld [vmem:[%s1965 + $0x5c] sm:$0x3]
        %v6477 = vld [vmem:[%s1965 + $0x60] sm:$0xf]
        %v6478 = vld [vmem:[%s1965 + $0x64] sm:$0xf]
        %v6479 = vld [vmem:[%s1965 + $0x68] sm:$0x3]
        %v6480 = vld [vmem:[%s1965 + $0x6c] sm:$0xf]
        %v6481 = vld [vmem:[%s1965 + $0x70] sm:$0xf]
        %v6482 = vld [vmem:[%s1965 + $0x74] sm:$0x3]
        %v6483 = vld [vmem:[%s1965 + $0x78] sm:$0xf]
        %v6484 = vld [vmem:[%s1965 + $0x7c] sm:$0xf]
        %v6485 = vld [vmem:[%s1965 + $0x80] sm:$0x3]
        %v6486 = vld [vmem:[%s1965 + $0x84] sm:$0xf]
        %v6487 = vld [vmem:[%s1965 + $0x88] sm:$0xf]
        %v6488 = vld [vmem:[%s1965 + $0x8c] sm:$0x3]
        %v6489 = vld [vmem:[%s1965 + $0x90] sm:$0xf]
        %v6490 = vld [vmem:[%s1965 + $0x94] sm:$0xf]
        %v6491 = vld [vmem:[%s1965 + $0x98] sm:$0x3]
        %v6492 = vld [vmem:[%s1965 + $0x9c] sm:$0xf]
        %v6493 = vld [vmem:[%s1965 + $0xa0] sm:$0xf]
        %v6494 = vld [vmem:[%s1965 + $0xa4] sm:$0x3]
        %v6495 = vld [vmem:[%s1965 + $0xa8] sm:$0xf]
        %v6496 = vld [vmem:[%s1965 + $0xac] sm:$0xf]
        %v6497 = vld [vmem:[%s1965 + $0xb0] sm:$0x3]
        %v6498 = vld [vmem:[%s1965 + $0xb4] sm:$0xf]
        %v6499 = vld [vmem:[%s1965 + $0xb8] sm:$0xf]
        %v6500 = vld [vmem:[%s1965 + $0xbc] sm:$0x3]
        %v6501 = vunpack.c.l.bf16 %v6405
        %v6502 = vunpack.c.l.bf16 %v6406
        %v6503 = vunpack.c.l.bf16 %v6407
        %v6504 = vunpack.c.l.bf16 %v6408
        %v6505 = vunpack.c.l.bf16 %v6409
        %v6506 = vunpack.c.l.bf16 %v6410
        %v6507 = vunpack.c.l.bf16 %v6411
        %v6508 = vunpack.c.l.bf16 %v6412
        %v6509 = vunpack.c.l.bf16 %v6413
        %v6510 = vunpack.c.l.bf16 %v6414
        %v6511 = vunpack.c.l.bf16 %v6415
        %v6512 = vunpack.c.l.bf16 %v6416
        %v6513 = vunpack.c.l.bf16 %v6417
        %v6514 = vunpack.c.l.bf16 %v6418
        %v6515 = vunpack.c.l.bf16 %v6419
        %v6516 = vunpack.c.l.bf16 %v6420
        %v6517 = vunpack.c.l.bf16 %v6421
        %v6518 = vunpack.c.l.bf16 %v6422
        %v6519 = vunpack.c.l.bf16 %v6423
        %v6520 = vunpack.c.l.bf16 %v6424
        %v6521 = vunpack.c.l.bf16 %v6425
        %v6522 = vunpack.c.l.bf16 %v6426
        %v6523 = vunpack.c.l.bf16 %v6427
        %v6524 = vunpack.c.l.bf16 %v6428
        %v6525 = vunpack.c.l.bf16 %v6429
        %v6526 = vunpack.c.l.bf16 %v6430
        %v6527 = vunpack.c.l.bf16 %v6431
        %v6528 = vunpack.c.l.bf16 %v6432
        %v6529 = vunpack.c.l.bf16 %v6433
        %v6530 = vunpack.c.l.bf16 %v6434
        %v6531 = vunpack.c.l.bf16 %v6435
        %v6532 = vunpack.c.l.bf16 %v6436
        %v6533 = vunpack.c.l.bf16 %v6437
        %v6534 = vunpack.c.l.bf16 %v6438
        %v6535 = vunpack.c.l.bf16 %v6439
        %v6536 = vunpack.c.l.bf16 %v6440
        %v6537 = vunpack.c.l.bf16 %v6441
        %v6538 = vunpack.c.l.bf16 %v6442
        %v6539 = vunpack.c.l.bf16 %v6443
        %v6540 = vunpack.c.l.bf16 %v6444
        %v6541 = vunpack.c.l.bf16 %v6445
        %v6542 = vunpack.c.l.bf16 %v6446
        %v6543 = vunpack.c.l.bf16 %v6447
        %v6544 = vunpack.c.l.bf16 %v6448
        %v6545 = vunpack.c.l.bf16 %v6449
        %v6546 = vunpack.c.l.bf16 %v6450
        %v6547 = vunpack.c.l.bf16 %v6451
        %v6548 = vunpack.c.l.bf16 %v6452
        %v6549 = vunpack.c.l.bf16 %v6453
        %v6550 = vunpack.c.l.bf16 %v6454
        %v6551 = vunpack.c.l.bf16 %v6455
        %v6552 = vunpack.c.l.bf16 %v6456
        %v6553 = vunpack.c.l.bf16 %v6457
        %v6554 = vunpack.c.l.bf16 %v6458
        %v6555 = vunpack.c.l.bf16 %v6459
        %v6556 = vunpack.c.l.bf16 %v6460
        %v6557 = vunpack.c.l.bf16 %v6461
        %v6558 = vunpack.c.l.bf16 %v6462
        %v6559 = vunpack.c.l.bf16 %v6463
        %v6560 = vunpack.c.l.bf16 %v6464
        %v6561 = vunpack.c.l.bf16 %v6465
        %v6562 = vunpack.c.l.bf16 %v6466
        %v6563 = vunpack.c.l.bf16 %v6467
        %v6564 = vunpack.c.l.bf16 %v6468
        %v6565 = vunpack.c.l.bf16 %v6469
        %v6566 = vunpack.c.l.bf16 %v6470
        %v6567 = vunpack.c.l.bf16 %v6471
        %v6568 = vunpack.c.l.bf16 %v6472
        %v6569 = vunpack.c.l.bf16 %v6473
        %v6570 = vunpack.c.l.bf16 %v6474
        %v6571 = vunpack.c.l.bf16 %v6475
        %v6572 = vunpack.c.l.bf16 %v6476
        %v6573 = vunpack.c.l.bf16 %v6477
        %v6574 = vunpack.c.l.bf16 %v6478
        %v6575 = vunpack.c.l.bf16 %v6479
        %v6576 = vunpack.c.l.bf16 %v6480
        %v6577 = vunpack.c.l.bf16 %v6481
        %v6578 = vunpack.c.l.bf16 %v6482
        %v6579 = vunpack.c.l.bf16 %v6483
        %v6580 = vunpack.c.l.bf16 %v6484
        %v6581 = vunpack.c.l.bf16 %v6485
        %v6582 = vunpack.c.l.bf16 %v6486
        %v6583 = vunpack.c.l.bf16 %v6487
        %v6584 = vunpack.c.l.bf16 %v6488
        %v6585 = vunpack.c.l.bf16 %v6489
        %v6586 = vunpack.c.l.bf16 %v6490
        %v6587 = vunpack.c.l.bf16 %v6491
        %v6588 = vunpack.c.l.bf16 %v6492
        %v6589 = vunpack.c.l.bf16 %v6493
        %v6590 = vunpack.c.l.bf16 %v6494
        %v6591 = vunpack.c.l.bf16 %v6495
        %v6592 = vunpack.c.l.bf16 %v6496
        %v6593 = vunpack.c.l.bf16 %v6497
        %v6594 = vunpack.c.l.bf16 %v6498
        %v6595 = vunpack.c.l.bf16 %v6499
        %v6596 = vunpack.c.l.bf16 %v6500
        %v6597 = vmax.f32 %v6501, %v6549
        %v6598 = vmax.f32 %v6502, %v6550
        %v6599 = vmax.f32 %v6503, %v6551
        %v6600 = vmax.f32 %v6504, %v6552
        %v6601 = vmax.f32 %v6505, %v6553
        %v6602 = vmax.f32 %v6506, %v6554
        %v6603 = vmax.f32 %v6507, %v6555
        %v6604 = vmax.f32 %v6508, %v6556
        %v6605 = vmax.f32 %v6509, %v6557
        %v6606 = vmax.f32 %v6510, %v6558
        %v6607 = vmax.f32 %v6511, %v6559
        %v6608 = vmax.f32 %v6512, %v6560
        %v6609 = vmax.f32 %v6513, %v6561
        %v6610 = vmax.f32 %v6514, %v6562
        %v6611 = vmax.f32 %v6515, %v6563
        %v6612 = vmax.f32 %v6516, %v6564
        %v6613 = vmax.f32 %v6517, %v6565
        %v6614 = vmax.f32 %v6518, %v6566
        %v6615 = vmax.f32 %v6519, %v6567
        %v6616 = vmax.f32 %v6520, %v6568
        %v6617 = vmax.f32 %v6521, %v6569
        %v6618 = vmax.f32 %v6522, %v6570
        %v6619 = vmax.f32 %v6523, %v6571
        %v6620 = vmax.f32 %v6524, %v6572
        %v6621 = vmax.f32 %v6525, %v6573
        %v6622 = vmax.f32 %v6526, %v6574
        %v6623 = vmax.f32 %v6527, %v6575
        %v6624 = vmax.f32 %v6528, %v6576
        %v6625 = vmax.f32 %v6529, %v6577
        %v6626 = vmax.f32 %v6530, %v6578
        %v6627 = vmax.f32 %v6531, %v6579
        %v6628 = vmax.f32 %v6532, %v6580
        %v6629 = vmax.f32 %v6533, %v6581
        %v6630 = vmax.f32 %v6534, %v6582
        %v6631 = vmax.f32 %v6535, %v6583
        %v6632 = vmax.f32 %v6536, %v6584
        %v6633 = vmax.f32 %v6537, %v6585
        %v6634 = vmax.f32 %v6538, %v6586
        %v6635 = vmax.f32 %v6539, %v6587
        %v6636 = vmax.f32 %v6540, %v6588
        %v6637 = vmax.f32 %v6541, %v6589
        %v6638 = vmax.f32 %v6542, %v6590
        %v6639 = vmax.f32 %v6543, %v6591
        %v6640 = vmax.f32 %v6544, %v6592
        %v6641 = vmax.f32 %v6545, %v6593
        %v6642 = vmax.f32 %v6546, %v6594
        %v6643 = vmax.f32 %v6547, %v6595
        %v6644 = vmax.f32 %v6548, %v6596
        %v6645 = vpack.c.bf16 %v6597, %v6597
        %v6646 = vpack.c.bf16 %v6598, %v6598
        %v6647 = vpack.c.bf16 %v6599, %v6599
        %v6648 = vpack.c.bf16 %v6600, %v6600
        %v6649 = vpack.c.bf16 %v6601, %v6601
        %v6650 = vpack.c.bf16 %v6602, %v6602
        %v6651 = vpack.c.bf16 %v6603, %v6603
        %v6652 = vpack.c.bf16 %v6604, %v6604
        %v6653 = vpack.c.bf16 %v6605, %v6605
        %v6654 = vpack.c.bf16 %v6606, %v6606
        %v6655 = vpack.c.bf16 %v6607, %v6607
        %v6656 = vpack.c.bf16 %v6608, %v6608
        %v6657 = vpack.c.bf16 %v6609, %v6609
        %v6658 = vpack.c.bf16 %v6610, %v6610
        %v6659 = vpack.c.bf16 %v6611, %v6611
        %v6660 = vpack.c.bf16 %v6612, %v6612
        %v6661 = vpack.c.bf16 %v6613, %v6613
        %v6662 = vpack.c.bf16 %v6614, %v6614
        %v6663 = vpack.c.bf16 %v6615, %v6615
        %v6664 = vpack.c.bf16 %v6616, %v6616
        %v6665 = vpack.c.bf16 %v6617, %v6617
        %v6666 = vpack.c.bf16 %v6618, %v6618
        %v6667 = vpack.c.bf16 %v6619, %v6619
        %v6668 = vpack.c.bf16 %v6620, %v6620
        %v6669 = vpack.c.bf16 %v6621, %v6621
        %v6670 = vpack.c.bf16 %v6622, %v6622
        %v6671 = vpack.c.bf16 %v6623, %v6623
        %v6672 = vpack.c.bf16 %v6624, %v6624
        %v6673 = vpack.c.bf16 %v6625, %v6625
        %v6674 = vpack.c.bf16 %v6626, %v6626
        %v6675 = vpack.c.bf16 %v6627, %v6627
        %v6676 = vpack.c.bf16 %v6628, %v6628
        %v6677 = vpack.c.bf16 %v6629, %v6629
        %v6678 = vpack.c.bf16 %v6630, %v6630
        %v6679 = vpack.c.bf16 %v6631, %v6631
        %v6680 = vpack.c.bf16 %v6632, %v6632
        %v6681 = vpack.c.bf16 %v6633, %v6633
        %v6682 = vpack.c.bf16 %v6634, %v6634
        %v6683 = vpack.c.bf16 %v6635, %v6635
        %v6684 = vpack.c.bf16 %v6636, %v6636
        %v6685 = vpack.c.bf16 %v6637, %v6637
        %v6686 = vpack.c.bf16 %v6638, %v6638
        %v6687 = vpack.c.bf16 %v6639, %v6639
        %v6688 = vpack.c.bf16 %v6640, %v6640
        %v6689 = vpack.c.bf16 %v6641, %v6641
        %v6690 = vpack.c.bf16 %v6642, %v6642
        %v6691 = vpack.c.bf16 %v6643, %v6643
        %v6692 = vpack.c.bf16 %v6644, %v6644
        %v6693 = vld [vmem:[%s2206] sm:$0xf]
        %v6694 = vld [vmem:[%s2206 + $0x4] sm:$0xf]
        %v6695 = vld [vmem:[%s2206 + $0x8] sm:$0x3]
        %v6696 = vld [vmem:[%s2206 + $0xc] sm:$0xf]
        %v6697 = vld [vmem:[%s2206 + $0x10] sm:$0xf]
        %v6698 = vld [vmem:[%s2206 + $0x14] sm:$0x3]
        %v6699 = vld [vmem:[%s2206 + $0x18] sm:$0xf]
        %v6700 = vld [vmem:[%s2206 + $0x1c] sm:$0xf]
        %v6701 = vld [vmem:[%s2206 + $0x20] sm:$0x3]
        %v6702 = vld [vmem:[%s2206 + $0x24] sm:$0xf]
        %v6703 = vld [vmem:[%s2206 + $0x28] sm:$0xf]
        %v6704 = vld [vmem:[%s2206 + $0x2c] sm:$0x3]
        %v6705 = vld [vmem:[%s2206 + $0x30] sm:$0xf]
        %v6706 = vld [vmem:[%s2206 + $0x34] sm:$0xf]
        %v6707 = vld [vmem:[%s2206 + $0x38] sm:$0x3]
        %v6708 = vld [vmem:[%s2206 + $0x3c] sm:$0xf]
        %v6709 = vld [vmem:[%s2206 + $0x40] sm:$0xf]
        %v6710 = vld [vmem:[%s2206 + $0x44] sm:$0x3]
        %v6711 = vld [vmem:[%s2206 + $0x48] sm:$0xf]
        %v6712 = vld [vmem:[%s2206 + $0x4c] sm:$0xf]
        %v6713 = vld [vmem:[%s2206 + $0x50] sm:$0x3]
        %v6714 = vld [vmem:[%s2206 + $0x54] sm:$0xf]
        %v6715 = vld [vmem:[%s2206 + $0x58] sm:$0xf]
        %v6716 = vld [vmem:[%s2206 + $0x5c] sm:$0x3]
        %v6717 = vld [vmem:[%s2206 + $0x60] sm:$0xf]
        %v6718 = vld [vmem:[%s2206 + $0x64] sm:$0xf]
        %v6719 = vld [vmem:[%s2206 + $0x68] sm:$0x3]
        %v6720 = vld [vmem:[%s2206 + $0x6c] sm:$0xf]
        %v6721 = vld [vmem:[%s2206 + $0x70] sm:$0xf]
        %v6722 = vld [vmem:[%s2206 + $0x74] sm:$0x3]
        %v6723 = vld [vmem:[%s2206 + $0x78] sm:$0xf]
        %v6724 = vld [vmem:[%s2206 + $0x7c] sm:$0xf]
        %v6725 = vld [vmem:[%s2206 + $0x80] sm:$0x3]
        %v6726 = vld [vmem:[%s2206 + $0x84] sm:$0xf]
        %v6727 = vld [vmem:[%s2206 + $0x88] sm:$0xf]
        %v6728 = vld [vmem:[%s2206 + $0x8c] sm:$0x3]
        %v6729 = vld [vmem:[%s2206 + $0x90] sm:$0xf]
        %v6730 = vld [vmem:[%s2206 + $0x94] sm:$0xf]
        %v6731 = vld [vmem:[%s2206 + $0x98] sm:$0x3]
        %v6732 = vld [vmem:[%s2206 + $0x9c] sm:$0xf]
        %v6733 = vld [vmem:[%s2206 + $0xa0] sm:$0xf]
        %v6734 = vld [vmem:[%s2206 + $0xa4] sm:$0x3]
        %v6735 = vld [vmem:[%s2206 + $0xa8] sm:$0xf]
        %v6736 = vld [vmem:[%s2206 + $0xac] sm:$0xf]
        %v6737 = vld [vmem:[%s2206 + $0xb0] sm:$0x3]
        %v6738 = vld [vmem:[%s2206 + $0xb4] sm:$0xf]
        %v6739 = vld [vmem:[%s2206 + $0xb8] sm:$0xf]
        %v6740 = vld [vmem:[%s2206 + $0xbc] sm:$0x3]
        %v6741 = vunpack.c.l.bf16 %v6645
        %v6742 = vunpack.c.l.bf16 %v6646
        %v6743 = vunpack.c.l.bf16 %v6647
        %v6744 = vunpack.c.l.bf16 %v6648
        %v6745 = vunpack.c.l.bf16 %v6649
        %v6746 = vunpack.c.l.bf16 %v6650
        %v6747 = vunpack.c.l.bf16 %v6651
        %v6748 = vunpack.c.l.bf16 %v6652
        %v6749 = vunpack.c.l.bf16 %v6653
        %v6750 = vunpack.c.l.bf16 %v6654
        %v6751 = vunpack.c.l.bf16 %v6655
        %v6752 = vunpack.c.l.bf16 %v6656
        %v6753 = vunpack.c.l.bf16 %v6657
        %v6754 = vunpack.c.l.bf16 %v6658
        %v6755 = vunpack.c.l.bf16 %v6659
        %v6756 = vunpack.c.l.bf16 %v6660
        %v6757 = vunpack.c.l.bf16 %v6661
        %v6758 = vunpack.c.l.bf16 %v6662
        %v6759 = vunpack.c.l.bf16 %v6663
        %v6760 = vunpack.c.l.bf16 %v6664
        %v6761 = vunpack.c.l.bf16 %v6665
        %v6762 = vunpack.c.l.bf16 %v6666
        %v6763 = vunpack.c.l.bf16 %v6667
        %v6764 = vunpack.c.l.bf16 %v6668
        %v6765 = vunpack.c.l.bf16 %v6669
        %v6766 = vunpack.c.l.bf16 %v6670
        %v6767 = vunpack.c.l.bf16 %v6671
        %v6768 = vunpack.c.l.bf16 %v6672
        %v6769 = vunpack.c.l.bf16 %v6673
        %v6770 = vunpack.c.l.bf16 %v6674
        %v6771 = vunpack.c.l.bf16 %v6675
        %v6772 = vunpack.c.l.bf16 %v6676
        %v6773 = vunpack.c.l.bf16 %v6677
        %v6774 = vunpack.c.l.bf16 %v6678
        %v6775 = vunpack.c.l.bf16 %v6679
        %v6776 = vunpack.c.l.bf16 %v6680
        %v6777 = vunpack.c.l.bf16 %v6681
        %v6778 = vunpack.c.l.bf16 %v6682
        %v6779 = vunpack.c.l.bf16 %v6683
        %v6780 = vunpack.c.l.bf16 %v6684
        %v6781 = vunpack.c.l.bf16 %v6685
        %v6782 = vunpack.c.l.bf16 %v6686
        %v6783 = vunpack.c.l.bf16 %v6687
        %v6784 = vunpack.c.l.bf16 %v6688
        %v6785 = vunpack.c.l.bf16 %v6689
        %v6786 = vunpack.c.l.bf16 %v6690
        %v6787 = vunpack.c.l.bf16 %v6691
        %v6788 = vunpack.c.l.bf16 %v6692
        %v6789 = vunpack.c.l.bf16 %v6693
        %v6790 = vunpack.c.l.bf16 %v6694
        %v6791 = vunpack.c.l.bf16 %v6695
        %v6792 = vunpack.c.l.bf16 %v6696
        %v6793 = vunpack.c.l.bf16 %v6697
        %v6794 = vunpack.c.l.bf16 %v6698
        %v6795 = vunpack.c.l.bf16 %v6699
        %v6796 = vunpack.c.l.bf16 %v6700
        %v6797 = vunpack.c.l.bf16 %v6701
        %v6798 = vunpack.c.l.bf16 %v6702
        %v6799 = vunpack.c.l.bf16 %v6703
        %v6800 = vunpack.c.l.bf16 %v6704
        %v6801 = vunpack.c.l.bf16 %v6705
        %v6802 = vunpack.c.l.bf16 %v6706
        %v6803 = vunpack.c.l.bf16 %v6707
        %v6804 = vunpack.c.l.bf16 %v6708
        %v6805 = vunpack.c.l.bf16 %v6709
        %v6806 = vunpack.c.l.bf16 %v6710
        %v6807 = vunpack.c.l.bf16 %v6711
        %v6808 = vunpack.c.l.bf16 %v6712
        %v6809 = vunpack.c.l.bf16 %v6713
        %v6810 = vunpack.c.l.bf16 %v6714
        %v6811 = vunpack.c.l.bf16 %v6715
        %v6812 = vunpack.c.l.bf16 %v6716
        %v6813 = vunpack.c.l.bf16 %v6717
        %v6814 = vunpack.c.l.bf16 %v6718
        %v6815 = vunpack.c.l.bf16 %v6719
        %v6816 = vunpack.c.l.bf16 %v6720
        %v6817 = vunpack.c.l.bf16 %v6721
        %v6818 = vunpack.c.l.bf16 %v6722
        %v6819 = vunpack.c.l.bf16 %v6723
        %v6820 = vunpack.c.l.bf16 %v6724
        %v6821 = vunpack.c.l.bf16 %v6725
        %v6822 = vunpack.c.l.bf16 %v6726
        %v6823 = vunpack.c.l.bf16 %v6727
        %v6824 = vunpack.c.l.bf16 %v6728
        %v6825 = vunpack.c.l.bf16 %v6729
        %v6826 = vunpack.c.l.bf16 %v6730
        %v6827 = vunpack.c.l.bf16 %v6731
        %v6828 = vunpack.c.l.bf16 %v6732
        %v6829 = vunpack.c.l.bf16 %v6733
        %v6830 = vunpack.c.l.bf16 %v6734
        %v6831 = vunpack.c.l.bf16 %v6735
        %v6832 = vunpack.c.l.bf16 %v6736
        %v6833 = vunpack.c.l.bf16 %v6737
        %v6834 = vunpack.c.l.bf16 %v6738
        %v6835 = vunpack.c.l.bf16 %v6739
        %v6836 = vunpack.c.l.bf16 %v6740
        %v6837 = vmax.f32 %v6741, %v6789
        %v6838 = vmax.f32 %v6742, %v6790
        %v6839 = vmax.f32 %v6743, %v6791
        %v6840 = vmax.f32 %v6744, %v6792
        %v6841 = vmax.f32 %v6745, %v6793
        %v6842 = vmax.f32 %v6746, %v6794
        %v6843 = vmax.f32 %v6747, %v6795
        %v6844 = vmax.f32 %v6748, %v6796
        %v6845 = vmax.f32 %v6749, %v6797
        %v6846 = vmax.f32 %v6750, %v6798
        %v6847 = vmax.f32 %v6751, %v6799
        %v6848 = vmax.f32 %v6752, %v6800
        %v6849 = vmax.f32 %v6753, %v6801
        %v6850 = vmax.f32 %v6754, %v6802
        %v6851 = vmax.f32 %v6755, %v6803
        %v6852 = vmax.f32 %v6756, %v6804
        %v6853 = vmax.f32 %v6757, %v6805
        %v6854 = vmax.f32 %v6758, %v6806
        %v6855 = vmax.f32 %v6759, %v6807
        %v6856 = vmax.f32 %v6760, %v6808
        %v6857 = vmax.f32 %v6761, %v6809
        %v6858 = vmax.f32 %v6762, %v6810
        %v6859 = vmax.f32 %v6763, %v6811
        %v6860 = vmax.f32 %v6764, %v6812
        %v6861 = vmax.f32 %v6765, %v6813
        %v6862 = vmax.f32 %v6766, %v6814
        %v6863 = vmax.f32 %v6767, %v6815
        %v6864 = vmax.f32 %v6768, %v6816
        %v6865 = vmax.f32 %v6769, %v6817
        %v6866 = vmax.f32 %v6770, %v6818
        %v6867 = vmax.f32 %v6771, %v6819
        %v6868 = vmax.f32 %v6772, %v6820
        %v6869 = vmax.f32 %v6773, %v6821
        %v6870 = vmax.f32 %v6774, %v6822
        %v6871 = vmax.f32 %v6775, %v6823
        %v6872 = vmax.f32 %v6776, %v6824
        %v6873 = vmax.f32 %v6777, %v6825
        %v6874 = vmax.f32 %v6778, %v6826
        %v6875 = vmax.f32 %v6779, %v6827
        %v6876 = vmax.f32 %v6780, %v6828
        %v6877 = vmax.f32 %v6781, %v6829
        %v6878 = vmax.f32 %v6782, %v6830
        %v6879 = vmax.f32 %v6783, %v6831
        %v6880 = vmax.f32 %v6784, %v6832
        %v6881 = vmax.f32 %v6785, %v6833
        %v6882 = vmax.f32 %v6786, %v6834
        %v6883 = vmax.f32 %v6787, %v6835
        %v6884 = vmax.f32 %v6788, %v6836
        %v6885 = vpack.c.bf16 %v6837, %v6837
        %v6886 = vpack.c.bf16 %v6838, %v6838
        %v6887 = vpack.c.bf16 %v6839, %v6839
        %v6888 = vpack.c.bf16 %v6840, %v6840
        %v6889 = vpack.c.bf16 %v6841, %v6841
        %v6890 = vpack.c.bf16 %v6842, %v6842
        %v6891 = vpack.c.bf16 %v6843, %v6843
        %v6892 = vpack.c.bf16 %v6844, %v6844
        %v6893 = vpack.c.bf16 %v6845, %v6845
        %v6894 = vpack.c.bf16 %v6846, %v6846
        %v6895 = vpack.c.bf16 %v6847, %v6847
        %v6896 = vpack.c.bf16 %v6848, %v6848
        %v6897 = vpack.c.bf16 %v6849, %v6849
        %v6898 = vpack.c.bf16 %v6850, %v6850
        %v6899 = vpack.c.bf16 %v6851, %v6851
        %v6900 = vpack.c.bf16 %v6852, %v6852
        %v6901 = vpack.c.bf16 %v6853, %v6853
        %v6902 = vpack.c.bf16 %v6854, %v6854
        %v6903 = vpack.c.bf16 %v6855, %v6855
        %v6904 = vpack.c.bf16 %v6856, %v6856
        %v6905 = vpack.c.bf16 %v6857, %v6857
        %v6906 = vpack.c.bf16 %v6858, %v6858
        %v6907 = vpack.c.bf16 %v6859, %v6859
        %v6908 = vpack.c.bf16 %v6860, %v6860
        %v6909 = vpack.c.bf16 %v6861, %v6861
        %v6910 = vpack.c.bf16 %v6862, %v6862
        %v6911 = vpack.c.bf16 %v6863, %v6863
        %v6912 = vpack.c.bf16 %v6864, %v6864
        %v6913 = vpack.c.bf16 %v6865, %v6865
        %v6914 = vpack.c.bf16 %v6866, %v6866
        %v6915 = vpack.c.bf16 %v6867, %v6867
        %v6916 = vpack.c.bf16 %v6868, %v6868
        %v6917 = vpack.c.bf16 %v6869, %v6869
        %v6918 = vpack.c.bf16 %v6870, %v6870
        %v6919 = vpack.c.bf16 %v6871, %v6871
        %v6920 = vpack.c.bf16 %v6872, %v6872
        %v6921 = vpack.c.bf16 %v6873, %v6873
        %v6922 = vpack.c.bf16 %v6874, %v6874
        %v6923 = vpack.c.bf16 %v6875, %v6875
        %v6924 = vpack.c.bf16 %v6876, %v6876
        %v6925 = vpack.c.bf16 %v6877, %v6877
        %v6926 = vpack.c.bf16 %v6878, %v6878
        %v6927 = vpack.c.bf16 %v6879, %v6879
        %v6928 = vpack.c.bf16 %v6880, %v6880
        %v6929 = vpack.c.bf16 %v6881, %v6881
        %v6930 = vpack.c.bf16 %v6882, %v6882
        %v6931 = vpack.c.bf16 %v6883, %v6883
        %v6932 = vpack.c.bf16 %v6884, %v6884
        %v6933 = vunpack.c.l.bf16 %v6885
        %v6934 = vunpack.c.l.bf16 %v6886
        %v6935 = vunpack.c.l.bf16 %v6888
        %v6936 = vunpack.c.l.bf16 %v6889
        %v6937 = vunpack.c.l.bf16 %v6891
        %v6938 = vunpack.c.l.bf16 %v6892
        %v6939 = vunpack.c.l.bf16 %v6894
        %v6940 = vunpack.c.l.bf16 %v6895
        %v6941 = vunpack.c.l.bf16 %v6897
        %v6942 = vunpack.c.l.bf16 %v6898
        %v6943 = vunpack.c.l.bf16 %v6900
        %v6944 = vunpack.c.l.bf16 %v6901
        %v6945 = vunpack.c.l.bf16 %v6903
        %v6946 = vunpack.c.l.bf16 %v6904
        %v6947 = vunpack.c.l.bf16 %v6906
        %v6948 = vunpack.c.l.bf16 %v6907
        %v6949 = vunpack.c.l.bf16 %v6909
        %v6950 = vunpack.c.l.bf16 %v6910
        %v6951 = vunpack.c.l.bf16 %v6912
        %v6952 = vunpack.c.l.bf16 %v6913
        %v6953 = vunpack.c.l.bf16 %v6915
        %v6954 = vunpack.c.l.bf16 %v6916
        %v6955 = vunpack.c.l.bf16 %v6918
        %v6956 = vunpack.c.l.bf16 %v6919
        %v6957 = vunpack.c.l.bf16 %v6921
        %v6958 = vunpack.c.l.bf16 %v6922
        %v6959 = vunpack.c.l.bf16 %v6924
        %v6960 = vunpack.c.l.bf16 %v6925
        %v6961 = vunpack.c.l.bf16 %v6927
        %v6962 = vunpack.c.l.bf16 %v6928
        %v6963 = vunpack.c.l.bf16 %v6930
        %v6964 = vunpack.c.l.bf16 %v6931
        %v6965 = vunpack.c.l.bf16 %v6887
        %v6966 = vunpack.c.l.bf16 %v6890
        %v6967 = vunpack.c.l.bf16 %v6893
        %v6968 = vunpack.c.l.bf16 %v6896
        %v6969 = vunpack.c.l.bf16 %v6899
        %v6970 = vunpack.c.l.bf16 %v6902
        %v6971 = vunpack.c.l.bf16 %v6905
        %v6972 = vunpack.c.l.bf16 %v6908
        %v6973 = vunpack.c.l.bf16 %v6911
        %v6974 = vunpack.c.l.bf16 %v6914
        %v6975 = vunpack.c.l.bf16 %v6917
        %v6976 = vunpack.c.l.bf16 %v6920
        %v6977 = vunpack.c.l.bf16 %v6923
        %v6978 = vunpack.c.l.bf16 %v6926
        %v6979 = vunpack.c.l.bf16 %v6929
        %v6980 = vunpack.c.l.bf16 %v6932
        %v7029 = vrot.slane %v6933, 1
        %v7030 = vrot.slane %v6934, 1
        %v7031 = vsel %vm2543, %v7029, %v7030
        %v7032 = vrot.slane %v6965, 1
        %v7033 = vsel %vm2543, %v7030, %v7032
        %v7034 = vrot.slane %v6935, 1
        %v7035 = vrot.slane %v6936, 1
        %v7036 = vsel %vm2543, %v7034, %v7035
        %v7037 = vrot.slane %v6966, 1
        %v7038 = vsel %vm2543, %v7035, %v7037
        %v7039 = vrot.slane %v6937, 1
        %v7040 = vrot.slane %v6938, 1
        %v7041 = vsel %vm2543, %v7039, %v7040
        %v7042 = vrot.slane %v6967, 1
        %v7043 = vsel %vm2543, %v7040, %v7042
        %v7044 = vrot.slane %v6939, 1
        %v7045 = vrot.slane %v6940, 1
        %v7046 = vsel %vm2543, %v7044, %v7045
        %v7047 = vrot.slane %v6968, 1
        %v7048 = vsel %vm2543, %v7045, %v7047
        %v7049 = vrot.slane %v6941, 1
        %v7050 = vrot.slane %v6942, 1
        %v7051 = vsel %vm2543, %v7049, %v7050
        %v7052 = vrot.slane %v6969, 1
        %v7053 = vsel %vm2543, %v7050, %v7052
        %v7054 = vrot.slane %v6943, 1
        %v7055 = vrot.slane %v6944, 1
        %v7056 = vsel %vm2543, %v7054, %v7055
        %v7057 = vrot.slane %v6970, 1
        %v7058 = vsel %vm2543, %v7055, %v7057
        %v7059 = vrot.slane %v6945, 1
        %v7060 = vrot.slane %v6946, 1
        %v7061 = vsel %vm2543, %v7059, %v7060
        %v7062 = vrot.slane %v6971, 1
        %v7063 = vsel %vm2543, %v7060, %v7062
        %v7064 = vrot.slane %v6947, 1
        %v7065 = vrot.slane %v6948, 1
        %v7066 = vsel %vm2543, %v7064, %v7065
        %v7067 = vrot.slane %v6972, 1
        %v7068 = vsel %vm2543, %v7065, %v7067
        %v7069 = vrot.slane %v6949, 1
        %v7070 = vrot.slane %v6950, 1
        %v7071 = vsel %vm2543, %v7069, %v7070
        %v7072 = vrot.slane %v6973, 1
        %v7073 = vsel %vm2543, %v7070, %v7072
        %v7074 = vrot.slane %v6951, 1
        %v7075 = vrot.slane %v6952, 1
        %v7076 = vsel %vm2543, %v7074, %v7075
        %v7077 = vrot.slane %v6974, 1
        %v7078 = vsel %vm2543, %v7075, %v7077
        %v7079 = vrot.slane %v6953, 1
        %v7080 = vrot.slane %v6954, 1
        %v7081 = vsel %vm2543, %v7079, %v7080
        %v7082 = vrot.slane %v6975, 1
        %v7083 = vsel %vm2543, %v7080, %v7082
        %v7084 = vrot.slane %v6955, 1
        %v7085 = vrot.slane %v6956, 1
        %v7086 = vsel %vm2543, %v7084, %v7085
        %v7087 = vrot.slane %v6976, 1
        %v7088 = vsel %vm2543, %v7085, %v7087
        %v7089 = vrot.slane %v6957, 1
        %v7090 = vrot.slane %v6958, 1
        %v7091 = vsel %vm2543, %v7089, %v7090
        %v7092 = vrot.slane %v6977, 1
        %v7093 = vsel %vm2543, %v7090, %v7092
        %v7094 = vrot.slane %v6959, 1
        %v7095 = vrot.slane %v6960, 1
        %v7096 = vsel %vm2543, %v7094, %v7095
        %v7097 = vrot.slane %v6978, 1
        %v7098 = vsel %vm2543, %v7095, %v7097
        %v7099 = vrot.slane %v6961, 1
        %v7100 = vrot.slane %v6962, 1
        %v7101 = vsel %vm2543, %v7099, %v7100
        %v7102 = vrot.slane %v6979, 1
        %v7103 = vsel %vm2543, %v7100, %v7102
        %v7104 = vrot.slane %v6963, 1
        %v7105 = vrot.slane %v6964, 1
        %v7106 = vsel %vm2543, %v7104, %v7105
        %v7107 = vrot.slane %v6980, 1
        %v7108 = vsel %vm2543, %v7105, %v7107
        %v7141 = vmax.f32 %v6933, %v7031
        %v7142 = vmax.f32 %v6934, %v7033
        %v7143 = vmax.f32 %v6935, %v7036
        %v7144 = vmax.f32 %v6936, %v7038
        %v7145 = vmax.f32 %v6937, %v7041
        %v7146 = vmax.f32 %v6938, %v7043
        %v7147 = vmax.f32 %v6939, %v7046
        %v7148 = vmax.f32 %v6940, %v7048
        %v7149 = vmax.f32 %v6941, %v7051
        %v7150 = vmax.f32 %v6942, %v7053
        %v7151 = vmax.f32 %v6943, %v7056
        %v7152 = vmax.f32 %v6944, %v7058
        %v7153 = vmax.f32 %v6945, %v7061
        %v7154 = vmax.f32 %v6946, %v7063
        %v7155 = vmax.f32 %v6947, %v7066
        %v7156 = vmax.f32 %v6948, %v7068
        %v7157 = vmax.f32 %v6949, %v7071
        %v7158 = vmax.f32 %v6950, %v7073
        %v7159 = vmax.f32 %v6951, %v7076
        %v7160 = vmax.f32 %v6952, %v7078
        %v7161 = vmax.f32 %v6953, %v7081
        %v7162 = vmax.f32 %v6954, %v7083
        %v7163 = vmax.f32 %v6955, %v7086
        %v7164 = vmax.f32 %v6956, %v7088
        %v7165 = vmax.f32 %v6957, %v7091
        %v7166 = vmax.f32 %v6958, %v7093
        %v7167 = vmax.f32 %v6959, %v7096
        %v7168 = vmax.f32 %v6960, %v7098
        %v7169 = vmax.f32 %v6961, %v7101
        %v7170 = vmax.f32 %v6962, %v7103
        %v7171 = vmax.f32 %v6963, %v7106
        %v7172 = vmax.f32 %v6964, %v7108
        %v7173 = vpack.c.bf16 %v7141, %v7141
        %v7174 = vpack.c.bf16 %v7142, %v7142
        %v7175 = vpack.c.bf16 %v7143, %v7143
        %v7176 = vpack.c.bf16 %v7144, %v7144
        %v7177 = vpack.c.bf16 %v7145, %v7145
        %v7178 = vpack.c.bf16 %v7146, %v7146
        %v7179 = vpack.c.bf16 %v7147, %v7147
        %v7180 = vpack.c.bf16 %v7148, %v7148
        %v7181 = vpack.c.bf16 %v7149, %v7149
        %v7182 = vpack.c.bf16 %v7150, %v7150
        %v7183 = vpack.c.bf16 %v7151, %v7151
        %v7184 = vpack.c.bf16 %v7152, %v7152
        %v7185 = vpack.c.bf16 %v7153, %v7153
        %v7186 = vpack.c.bf16 %v7154, %v7154
        %v7187 = vpack.c.bf16 %v7155, %v7155
        %v7188 = vpack.c.bf16 %v7156, %v7156
        %v7189 = vpack.c.bf16 %v7157, %v7157
        %v7190 = vpack.c.bf16 %v7158, %v7158
        %v7191 = vpack.c.bf16 %v7159, %v7159
        %v7192 = vpack.c.bf16 %v7160, %v7160
        %v7193 = vpack.c.bf16 %v7161, %v7161
        %v7194 = vpack.c.bf16 %v7162, %v7162
        %v7195 = vpack.c.bf16 %v7163, %v7163
        %v7196 = vpack.c.bf16 %v7164, %v7164
        %v7197 = vpack.c.bf16 %v7165, %v7165
        %v7198 = vpack.c.bf16 %v7166, %v7166
        %v7199 = vpack.c.bf16 %v7167, %v7167
        %v7200 = vpack.c.bf16 %v7168, %v7168
        %v7201 = vpack.c.bf16 %v7169, %v7169
        %v7202 = vpack.c.bf16 %v7170, %v7170
        %v7203 = vpack.c.bf16 %v7171, %v7171
        %v7204 = vpack.c.bf16 %v7172, %v7172
        %v7205 = vunpack.c.l.bf16 %v7173
        %v7206 = vunpack.c.l.bf16 %v7174
        %v7207 = vunpack.c.l.bf16 %v7175
        %v7208 = vunpack.c.l.bf16 %v7176
        %v7209 = vunpack.c.l.bf16 %v7177
        %v7210 = vunpack.c.l.bf16 %v7178
        %v7211 = vunpack.c.l.bf16 %v7179
        %v7212 = vunpack.c.l.bf16 %v7180
        %v7213 = vunpack.c.l.bf16 %v7181
        %v7214 = vunpack.c.l.bf16 %v7182
        %v7215 = vunpack.c.l.bf16 %v7183
        %v7216 = vunpack.c.l.bf16 %v7184
        %v7217 = vunpack.c.l.bf16 %v7185
        %v7218 = vunpack.c.l.bf16 %v7186
        %v7219 = vunpack.c.l.bf16 %v7187
        %v7220 = vunpack.c.l.bf16 %v7188
        %v7221 = vunpack.c.l.bf16 %v7189
        %v7222 = vunpack.c.l.bf16 %v7190
        %v7223 = vunpack.c.l.bf16 %v7191
        %v7224 = vunpack.c.l.bf16 %v7192
        %v7225 = vunpack.c.l.bf16 %v7193
        %v7226 = vunpack.c.l.bf16 %v7194
        %v7227 = vunpack.c.l.bf16 %v7195
        %v7228 = vunpack.c.l.bf16 %v7196
        %v7229 = vunpack.c.l.bf16 %v7197
        %v7230 = vunpack.c.l.bf16 %v7198
        %v7231 = vunpack.c.l.bf16 %v7199
        %v7232 = vunpack.c.l.bf16 %v7200
        %v7233 = vunpack.c.l.bf16 %v7201
        %v7234 = vunpack.c.l.bf16 %v7202
        %v7235 = vunpack.c.l.bf16 %v7203
        %v7236 = vunpack.c.l.bf16 %v7204
        %v7237 = vrot.slane %v6933, 2
        %v7238 = vrot.slane %v6934, 2
        %v7239 = vsel %vm2752, %v7237, %v7238
        %v7240 = vrot.slane %v6965, 2
        %v7241 = vsel %vm2752, %v7238, %v7240
        %v7242 = vrot.slane %v6935, 2
        %v7243 = vrot.slane %v6936, 2
        %v7244 = vsel %vm2752, %v7242, %v7243
        %v7245 = vrot.slane %v6966, 2
        %v7246 = vsel %vm2752, %v7243, %v7245
        %v7247 = vrot.slane %v6937, 2
        %v7248 = vrot.slane %v6938, 2
        %v7249 = vsel %vm2752, %v7247, %v7248
        %v7250 = vrot.slane %v6967, 2
        %v7251 = vsel %vm2752, %v7248, %v7250
        %v7252 = vrot.slane %v6939, 2
        %v7253 = vrot.slane %v6940, 2
        %v7254 = vsel %vm2752, %v7252, %v7253
        %v7255 = vrot.slane %v6968, 2
        %v7256 = vsel %vm2752, %v7253, %v7255
        %v7257 = vrot.slane %v6941, 2
        %v7258 = vrot.slane %v6942, 2
        %v7259 = vsel %vm2752, %v7257, %v7258
        %v7260 = vrot.slane %v6969, 2
        %v7261 = vsel %vm2752, %v7258, %v7260
        %v7262 = vrot.slane %v6943, 2
        %v7263 = vrot.slane %v6944, 2
        %v7264 = vsel %vm2752, %v7262, %v7263
        %v7265 = vrot.slane %v6970, 2
        %v7266 = vsel %vm2752, %v7263, %v7265
        %v7267 = vrot.slane %v6945, 2
        %v7268 = vrot.slane %v6946, 2
        %v7269 = vsel %vm2752, %v7267, %v7268
        %v7270 = vrot.slane %v6971, 2
        %v7271 = vsel %vm2752, %v7268, %v7270
        %v7272 = vrot.slane %v6947, 2
        %v7273 = vrot.slane %v6948, 2
        %v7274 = vsel %vm2752, %v7272, %v7273
        %v7275 = vrot.slane %v6972, 2
        %v7276 = vsel %vm2752, %v7273, %v7275
        %v7277 = vrot.slane %v6949, 2
        %v7278 = vrot.slane %v6950, 2
        %v7279 = vsel %vm2752, %v7277, %v7278
        %v7280 = vrot.slane %v6973, 2
        %v7281 = vsel %vm2752, %v7278, %v7280
        %v7282 = vrot.slane %v6951, 2
        %v7283 = vrot.slane %v6952, 2
        %v7284 = vsel %vm2752, %v7282, %v7283
        %v7285 = vrot.slane %v6974, 2
        %v7286 = vsel %vm2752, %v7283, %v7285
        %v7287 = vrot.slane %v6953, 2
        %v7288 = vrot.slane %v6954, 2
        %v7289 = vsel %vm2752, %v7287, %v7288
        %v7290 = vrot.slane %v6975, 2
        %v7291 = vsel %vm2752, %v7288, %v7290
        %v7292 = vrot.slane %v6955, 2
        %v7293 = vrot.slane %v6956, 2
        %v7294 = vsel %vm2752, %v7292, %v7293
        %v7295 = vrot.slane %v6976, 2
        %v7296 = vsel %vm2752, %v7293, %v7295
        %v7297 = vrot.slane %v6957, 2
        %v7298 = vrot.slane %v6958, 2
        %v7299 = vsel %vm2752, %v7297, %v7298
        %v7300 = vrot.slane %v6977, 2
        %v7301 = vsel %vm2752, %v7298, %v7300
        %v7302 = vrot.slane %v6959, 2
        %v7303 = vrot.slane %v6960, 2
        %v7304 = vsel %vm2752, %v7302, %v7303
        %v7305 = vrot.slane %v6978, 2
        %v7306 = vsel %vm2752, %v7303, %v7305
        %v7307 = vrot.slane %v6961, 2
        %v7308 = vrot.slane %v6962, 2
        %v7309 = vsel %vm2752, %v7307, %v7308
        %v7310 = vrot.slane %v6979, 2
        %v7311 = vsel %vm2752, %v7308, %v7310
        %v7312 = vrot.slane %v6963, 2
        %v7313 = vrot.slane %v6964, 2
        %v7314 = vsel %vm2752, %v7312, %v7313
        %v7315 = vrot.slane %v6980, 2
        %v7316 = vsel %vm2752, %v7313, %v7315
        %v7349 = vmax.f32 %v7205, %v7239
        %v7350 = vmax.f32 %v7206, %v7241
        %v7351 = vmax.f32 %v7207, %v7244
        %v7352 = vmax.f32 %v7208, %v7246
        %v7353 = vmax.f32 %v7209, %v7249
        %v7354 = vmax.f32 %v7210, %v7251
        %v7355 = vmax.f32 %v7211, %v7254
        %v7356 = vmax.f32 %v7212, %v7256
        %v7357 = vmax.f32 %v7213, %v7259
        %v7358 = vmax.f32 %v7214, %v7261
        %v7359 = vmax.f32 %v7215, %v7264
        %v7360 = vmax.f32 %v7216, %v7266
        %v7361 = vmax.f32 %v7217, %v7269
        %v7362 = vmax.f32 %v7218, %v7271
        %v7363 = vmax.f32 %v7219, %v7274
        %v7364 = vmax.f32 %v7220, %v7276
        %v7365 = vmax.f32 %v7221, %v7279
        %v7366 = vmax.f32 %v7222, %v7281
        %v7367 = vmax.f32 %v7223, %v7284
        %v7368 = vmax.f32 %v7224, %v7286
        %v7369 = vmax.f32 %v7225, %v7289
        %v7370 = vmax.f32 %v7226, %v7291
        %v7371 = vmax.f32 %v7227, %v7294
        %v7372 = vmax.f32 %v7228, %v7296
        %v7373 = vmax.f32 %v7229, %v7299
        %v7374 = vmax.f32 %v7230, %v7301
        %v7375 = vmax.f32 %v7231, %v7304
        %v7376 = vmax.f32 %v7232, %v7306
        %v7377 = vmax.f32 %v7233, %v7309
        %v7378 = vmax.f32 %v7234, %v7311
        %v7379 = vmax.f32 %v7235, %v7314
        %v7380 = vmax.f32 %v7236, %v7316
        %v7381 = vpack.c.bf16 %v7349, %v7349
        %v7382 = vpack.c.bf16 %v7350, %v7350
        %v7383 = vpack.c.bf16 %v7351, %v7351
        %v7384 = vpack.c.bf16 %v7352, %v7352
        %v7385 = vpack.c.bf16 %v7353, %v7353
        %v7386 = vpack.c.bf16 %v7354, %v7354
        %v7387 = vpack.c.bf16 %v7355, %v7355
        %v7388 = vpack.c.bf16 %v7356, %v7356
        %v7389 = vpack.c.bf16 %v7357, %v7357
        %v7390 = vpack.c.bf16 %v7358, %v7358
        %v7391 = vpack.c.bf16 %v7359, %v7359
        %v7392 = vpack.c.bf16 %v7360, %v7360
        %v7393 = vpack.c.bf16 %v7361, %v7361
        %v7394 = vpack.c.bf16 %v7362, %v7362
        %v7395 = vpack.c.bf16 %v7363, %v7363
        %v7396 = vpack.c.bf16 %v7364, %v7364
        %v7397 = vpack.c.bf16 %v7365, %v7365
        %v7398 = vpack.c.bf16 %v7366, %v7366
        %v7399 = vpack.c.bf16 %v7367, %v7367
        %v7400 = vpack.c.bf16 %v7368, %v7368
        %v7401 = vpack.c.bf16 %v7369, %v7369
        %v7402 = vpack.c.bf16 %v7370, %v7370
        %v7403 = vpack.c.bf16 %v7371, %v7371
        %v7404 = vpack.c.bf16 %v7372, %v7372
        %v7405 = vpack.c.bf16 %v7373, %v7373
        %v7406 = vpack.c.bf16 %v7374, %v7374
        %v7407 = vpack.c.bf16 %v7375, %v7375
        %v7408 = vpack.c.bf16 %v7376, %v7376
        %v7409 = vpack.c.bf16 %v7377, %v7377
        %v7410 = vpack.c.bf16 %v7378, %v7378
        %v7411 = vpack.c.bf16 %v7379, %v7379
        %v7412 = vpack.c.bf16 %v7380, %v7380
        %v7413 = vunpack.c.l.bf16 %v7381
        %v7414 = vunpack.c.l.bf16 %v7382
        %v7415 = vunpack.c.l.bf16 %v7383
        %v7416 = vunpack.c.l.bf16 %v7384
        %v7417 = vunpack.c.l.bf16 %v7385
        %v7418 = vunpack.c.l.bf16 %v7386
        %v7419 = vunpack.c.l.bf16 %v7387
        %v7420 = vunpack.c.l.bf16 %v7388
        %v7421 = vunpack.c.l.bf16 %v7389
        %v7422 = vunpack.c.l.bf16 %v7390
        %v7423 = vunpack.c.l.bf16 %v7391
        %v7424 = vunpack.c.l.bf16 %v7392
        %v7425 = vunpack.c.l.bf16 %v7393
        %v7426 = vunpack.c.l.bf16 %v7394
        %v7427 = vunpack.c.l.bf16 %v7395
        %v7428 = vunpack.c.l.bf16 %v7396
        %v7429 = vunpack.c.l.bf16 %v7397
        %v7430 = vunpack.c.l.bf16 %v7398
        %v7431 = vunpack.c.l.bf16 %v7399
        %v7432 = vunpack.c.l.bf16 %v7400
        %v7433 = vunpack.c.l.bf16 %v7401
        %v7434 = vunpack.c.l.bf16 %v7402
        %v7435 = vunpack.c.l.bf16 %v7403
        %v7436 = vunpack.c.l.bf16 %v7404
        %v7437 = vunpack.c.l.bf16 %v7405
        %v7438 = vunpack.c.l.bf16 %v7406
        %v7439 = vunpack.c.l.bf16 %v7407
        %v7440 = vunpack.c.l.bf16 %v7408
        %v7441 = vunpack.c.l.bf16 %v7409
        %v7442 = vunpack.c.l.bf16 %v7410
        %v7443 = vunpack.c.l.bf16 %v7411
        %v7444 = vunpack.c.l.bf16 %v7412
        %v7445 = vrot.slane %v6933, 3
        %v7446 = vrot.slane %v6934, 3
        %v7447 = vsel %vm2961, %v7445, %v7446
        %v7448 = vrot.slane %v6965, 3
        %v7449 = vsel %vm2961, %v7446, %v7448
        %v7450 = vrot.slane %v6935, 3
        %v7451 = vrot.slane %v6936, 3
        %v7452 = vsel %vm2961, %v7450, %v7451
        %v7453 = vrot.slane %v6966, 3
        %v7454 = vsel %vm2961, %v7451, %v7453
        %v7455 = vrot.slane %v6937, 3
        %v7456 = vrot.slane %v6938, 3
        %v7457 = vsel %vm2961, %v7455, %v7456
        %v7458 = vrot.slane %v6967, 3
        %v7459 = vsel %vm2961, %v7456, %v7458
        %v7460 = vrot.slane %v6939, 3
        %v7461 = vrot.slane %v6940, 3
        %v7462 = vsel %vm2961, %v7460, %v7461
        %v7463 = vrot.slane %v6968, 3
        %v7464 = vsel %vm2961, %v7461, %v7463
        %v7465 = vrot.slane %v6941, 3
        %v7466 = vrot.slane %v6942, 3
        %v7467 = vsel %vm2961, %v7465, %v7466
        %v7468 = vrot.slane %v6969, 3
        %v7469 = vsel %vm2961, %v7466, %v7468
        %v7470 = vrot.slane %v6943, 3
        %v7471 = vrot.slane %v6944, 3
        %v7472 = vsel %vm2961, %v7470, %v7471
        %v7473 = vrot.slane %v6970, 3
        %v7474 = vsel %vm2961, %v7471, %v7473
        %v7475 = vrot.slane %v6945, 3
        %v7476 = vrot.slane %v6946, 3
        %v7477 = vsel %vm2961, %v7475, %v7476
        %v7478 = vrot.slane %v6971, 3
        %v7479 = vsel %vm2961, %v7476, %v7478
        %v7480 = vrot.slane %v6947, 3
        %v7481 = vrot.slane %v6948, 3
        %v7482 = vsel %vm2961, %v7480, %v7481
        %v7483 = vrot.slane %v6972, 3
        %v7484 = vsel %vm2961, %v7481, %v7483
        %v7485 = vrot.slane %v6949, 3
        %v7486 = vrot.slane %v6950, 3
        %v7487 = vsel %vm2961, %v7485, %v7486
        %v7488 = vrot.slane %v6973, 3
        %v7489 = vsel %vm2961, %v7486, %v7488
        %v7490 = vrot.slane %v6951, 3
        %v7491 = vrot.slane %v6952, 3
        %v7492 = vsel %vm2961, %v7490, %v7491
        %v7493 = vrot.slane %v6974, 3
        %v7494 = vsel %vm2961, %v7491, %v7493
        %v7495 = vrot.slane %v6953, 3
        %v7496 = vrot.slane %v6954, 3
        %v7497 = vsel %vm2961, %v7495, %v7496
        %v7498 = vrot.slane %v6975, 3
        %v7499 = vsel %vm2961, %v7496, %v7498
        %v7500 = vrot.slane %v6955, 3
        %v7501 = vrot.slane %v6956, 3
        %v7502 = vsel %vm2961, %v7500, %v7501
        %v7503 = vrot.slane %v6976, 3
        %v7504 = vsel %vm2961, %v7501, %v7503
        %v7505 = vrot.slane %v6957, 3
        %v7506 = vrot.slane %v6958, 3
        %v7507 = vsel %vm2961, %v7505, %v7506
        %v7508 = vrot.slane %v6977, 3
        %v7509 = vsel %vm2961, %v7506, %v7508
        %v7510 = vrot.slane %v6959, 3
        %v7511 = vrot.slane %v6960, 3
        %v7512 = vsel %vm2961, %v7510, %v7511
        %v7513 = vrot.slane %v6978, 3
        %v7514 = vsel %vm2961, %v7511, %v7513
        %v7515 = vrot.slane %v6961, 3
        %v7516 = vrot.slane %v6962, 3
        %v7517 = vsel %vm2961, %v7515, %v7516
        %v7518 = vrot.slane %v6979, 3
        %v7519 = vsel %vm2961, %v7516, %v7518
        %v7520 = vrot.slane %v6963, 3
        %v7521 = vrot.slane %v6964, 3
        %v7522 = vsel %vm2961, %v7520, %v7521
        %v7523 = vrot.slane %v6980, 3
        %v7524 = vsel %vm2961, %v7521, %v7523
        %v7557 = vmax.f32 %v7413, %v7447
        %v7558 = vmax.f32 %v7414, %v7449
        %v7559 = vmax.f32 %v7415, %v7452
        %v7560 = vmax.f32 %v7416, %v7454
        %v7561 = vmax.f32 %v7417, %v7457
        %v7562 = vmax.f32 %v7418, %v7459
        %v7563 = vmax.f32 %v7419, %v7462
        %v7564 = vmax.f32 %v7420, %v7464
        %v7565 = vmax.f32 %v7421, %v7467
        %v7566 = vmax.f32 %v7422, %v7469
        %v7567 = vmax.f32 %v7423, %v7472
        %v7568 = vmax.f32 %v7424, %v7474
        %v7569 = vmax.f32 %v7425, %v7477
        %v7570 = vmax.f32 %v7426, %v7479
        %v7571 = vmax.f32 %v7427, %v7482
        %v7572 = vmax.f32 %v7428, %v7484
        %v7573 = vmax.f32 %v7429, %v7487
        %v7574 = vmax.f32 %v7430, %v7489
        %v7575 = vmax.f32 %v7431, %v7492
        %v7576 = vmax.f32 %v7432, %v7494
        %v7577 = vmax.f32 %v7433, %v7497
        %v7578 = vmax.f32 %v7434, %v7499
        %v7579 = vmax.f32 %v7435, %v7502
        %v7580 = vmax.f32 %v7436, %v7504
        %v7581 = vmax.f32 %v7437, %v7507
        %v7582 = vmax.f32 %v7438, %v7509
        %v7583 = vmax.f32 %v7439, %v7512
        %v7584 = vmax.f32 %v7440, %v7514
        %v7585 = vmax.f32 %v7441, %v7517
        %v7586 = vmax.f32 %v7442, %v7519
        %v7587 = vmax.f32 %v7443, %v7522
        %v7588 = vmax.f32 %v7444, %v7524
        %v7589 = vpack.c.bf16 %v7557, %v7557
        %v7590 = vpack.c.bf16 %v7558, %v7558
        %v7591 = vpack.c.bf16 %v7559, %v7559
        %v7592 = vpack.c.bf16 %v7560, %v7560
        %v7593 = vpack.c.bf16 %v7561, %v7561
        %v7594 = vpack.c.bf16 %v7562, %v7562
        %v7595 = vpack.c.bf16 %v7563, %v7563
        %v7596 = vpack.c.bf16 %v7564, %v7564
        %v7597 = vpack.c.bf16 %v7565, %v7565
        %v7598 = vpack.c.bf16 %v7566, %v7566
        %v7599 = vpack.c.bf16 %v7567, %v7567
        %v7600 = vpack.c.bf16 %v7568, %v7568
        %v7601 = vpack.c.bf16 %v7569, %v7569
        %v7602 = vpack.c.bf16 %v7570, %v7570
        %v7603 = vpack.c.bf16 %v7571, %v7571
        %v7604 = vpack.c.bf16 %v7572, %v7572
        %v7605 = vpack.c.bf16 %v7573, %v7573
        %v7606 = vpack.c.bf16 %v7574, %v7574
        %v7607 = vpack.c.bf16 %v7575, %v7575
        %v7608 = vpack.c.bf16 %v7576, %v7576
        %v7609 = vpack.c.bf16 %v7577, %v7577
        %v7610 = vpack.c.bf16 %v7578, %v7578
        %v7611 = vpack.c.bf16 %v7579, %v7579
        %v7612 = vpack.c.bf16 %v7580, %v7580
        %v7613 = vpack.c.bf16 %v7581, %v7581
        %v7614 = vpack.c.bf16 %v7582, %v7582
        %v7615 = vpack.c.bf16 %v7583, %v7583
        %v7616 = vpack.c.bf16 %v7584, %v7584
        %v7617 = vpack.c.bf16 %v7585, %v7585
        %v7618 = vpack.c.bf16 %v7586, %v7586
        %v7619 = vpack.c.bf16 %v7587, %v7587
        %v7620 = vpack.c.bf16 %v7588, %v7588
        %v7621 = vunpack.c.l.bf16 %v7589
        %v7622 = vunpack.c.l.bf16 %v7590
        %v7623 = vunpack.c.l.bf16 %v7591
        %v7624 = vunpack.c.l.bf16 %v7592
        %v7625 = vunpack.c.l.bf16 %v7593
        %v7626 = vunpack.c.l.bf16 %v7594
        %v7627 = vunpack.c.l.bf16 %v7595
        %v7628 = vunpack.c.l.bf16 %v7596
        %v7629 = vunpack.c.l.bf16 %v7597
        %v7630 = vunpack.c.l.bf16 %v7598
        %v7631 = vunpack.c.l.bf16 %v7599
        %v7632 = vunpack.c.l.bf16 %v7600
        %v7633 = vunpack.c.l.bf16 %v7601
        %v7634 = vunpack.c.l.bf16 %v7602
        %v7635 = vunpack.c.l.bf16 %v7603
        %v7636 = vunpack.c.l.bf16 %v7604
        %v7637 = vunpack.c.l.bf16 %v7605
        %v7638 = vunpack.c.l.bf16 %v7606
        %v7639 = vunpack.c.l.bf16 %v7607
        %v7640 = vunpack.c.l.bf16 %v7608
        %v7641 = vunpack.c.l.bf16 %v7609
        %v7642 = vunpack.c.l.bf16 %v7610
        %v7643 = vunpack.c.l.bf16 %v7611
        %v7644 = vunpack.c.l.bf16 %v7612
        %v7645 = vunpack.c.l.bf16 %v7613
        %v7646 = vunpack.c.l.bf16 %v7614
        %v7647 = vunpack.c.l.bf16 %v7615
        %v7648 = vunpack.c.l.bf16 %v7616
        %v7649 = vunpack.c.l.bf16 %v7617
        %v7650 = vunpack.c.l.bf16 %v7618
        %v7651 = vunpack.c.l.bf16 %v7619
        %v7652 = vunpack.c.l.bf16 %v7620
        %v7653 = vrot.slane %v6933, 4
        %v7654 = vrot.slane %v6934, 4
        %v7655 = vsel %vm3170, %v7653, %v7654
        %v7656 = vrot.slane %v6965, 4
        %v7657 = vsel %vm3170, %v7654, %v7656
        %v7658 = vrot.slane %v6935, 4
        %v7659 = vrot.slane %v6936, 4
        %v7660 = vsel %vm3170, %v7658, %v7659
        %v7661 = vrot.slane %v6966, 4
        %v7662 = vsel %vm3170, %v7659, %v7661
        %v7663 = vrot.slane %v6937, 4
        %v7664 = vrot.slane %v6938, 4
        %v7665 = vsel %vm3170, %v7663, %v7664
        %v7666 = vrot.slane %v6967, 4
        %v7667 = vsel %vm3170, %v7664, %v7666
        %v7668 = vrot.slane %v6939, 4
        %v7669 = vrot.slane %v6940, 4
        %v7670 = vsel %vm3170, %v7668, %v7669
        %v7671 = vrot.slane %v6968, 4
        %v7672 = vsel %vm3170, %v7669, %v7671
        %v7673 = vrot.slane %v6941, 4
        %v7674 = vrot.slane %v6942, 4
        %v7675 = vsel %vm3170, %v7673, %v7674
        %v7676 = vrot.slane %v6969, 4
        %v7677 = vsel %vm3170, %v7674, %v7676
        %v7678 = vrot.slane %v6943, 4
        %v7679 = vrot.slane %v6944, 4
        %v7680 = vsel %vm3170, %v7678, %v7679
        %v7681 = vrot.slane %v6970, 4
        %v7682 = vsel %vm3170, %v7679, %v7681
        %v7683 = vrot.slane %v6945, 4
        %v7684 = vrot.slane %v6946, 4
        %v7685 = vsel %vm3170, %v7683, %v7684
        %v7686 = vrot.slane %v6971, 4
        %v7687 = vsel %vm3170, %v7684, %v7686
        %v7688 = vrot.slane %v6947, 4
        %v7689 = vrot.slane %v6948, 4
        %v7690 = vsel %vm3170, %v7688, %v7689
        %v7691 = vrot.slane %v6972, 4
        %v7692 = vsel %vm3170, %v7689, %v7691
        %v7693 = vrot.slane %v6949, 4
        %v7694 = vrot.slane %v6950, 4
        %v7695 = vsel %vm3170, %v7693, %v7694
        %v7696 = vrot.slane %v6973, 4
        %v7697 = vsel %vm3170, %v7694, %v7696
        %v7698 = vrot.slane %v6951, 4
        %v7699 = vrot.slane %v6952, 4
        %v7700 = vsel %vm3170, %v7698, %v7699
        %v7701 = vrot.slane %v6974, 4
        %v7702 = vsel %vm3170, %v7699, %v7701
        %v7703 = vrot.slane %v6953, 4
        %v7704 = vrot.slane %v6954, 4
        %v7705 = vsel %vm3170, %v7703, %v7704
        %v7706 = vrot.slane %v6975, 4
        %v7707 = vsel %vm3170, %v7704, %v7706
        %v7708 = vrot.slane %v6955, 4
        %v7709 = vrot.slane %v6956, 4
        %v7710 = vsel %vm3170, %v7708, %v7709
        %v7711 = vrot.slane %v6976, 4
        %v7712 = vsel %vm3170, %v7709, %v7711
        %v7713 = vrot.slane %v6957, 4
        %v7714 = vrot.slane %v6958, 4
        %v7715 = vsel %vm3170, %v7713, %v7714
        %v7716 = vrot.slane %v6977, 4
        %v7717 = vsel %vm3170, %v7714, %v7716
        %v7718 = vrot.slane %v6959, 4
        %v7719 = vrot.slane %v6960, 4
        %v7720 = vsel %vm3170, %v7718, %v7719
        %v7721 = vrot.slane %v6978, 4
        %v7722 = vsel %vm3170, %v7719, %v7721
        %v7723 = vrot.slane %v6961, 4
        %v7724 = vrot.slane %v6962, 4
        %v7725 = vsel %vm3170, %v7723, %v7724
        %v7726 = vrot.slane %v6979, 4
        %v7727 = vsel %vm3170, %v7724, %v7726
        %v7728 = vrot.slane %v6963, 4
        %v7729 = vrot.slane %v6964, 4
        %v7730 = vsel %vm3170, %v7728, %v7729
        %v7731 = vrot.slane %v6980, 4
        %v7732 = vsel %vm3170, %v7729, %v7731
        %v7765 = vmax.f32 %v7621, %v7655
        %v7766 = vmax.f32 %v7622, %v7657
        %v7767 = vmax.f32 %v7623, %v7660
        %v7768 = vmax.f32 %v7624, %v7662
        %v7769 = vmax.f32 %v7625, %v7665
        %v7770 = vmax.f32 %v7626, %v7667
        %v7771 = vmax.f32 %v7627, %v7670
        %v7772 = vmax.f32 %v7628, %v7672
        %v7773 = vmax.f32 %v7629, %v7675
        %v7774 = vmax.f32 %v7630, %v7677
        %v7775 = vmax.f32 %v7631, %v7680
        %v7776 = vmax.f32 %v7632, %v7682
        %v7777 = vmax.f32 %v7633, %v7685
        %v7778 = vmax.f32 %v7634, %v7687
        %v7779 = vmax.f32 %v7635, %v7690
        %v7780 = vmax.f32 %v7636, %v7692
        %v7781 = vmax.f32 %v7637, %v7695
        %v7782 = vmax.f32 %v7638, %v7697
        %v7783 = vmax.f32 %v7639, %v7700
        %v7784 = vmax.f32 %v7640, %v7702
        %v7785 = vmax.f32 %v7641, %v7705
        %v7786 = vmax.f32 %v7642, %v7707
        %v7787 = vmax.f32 %v7643, %v7710
        %v7788 = vmax.f32 %v7644, %v7712
        %v7789 = vmax.f32 %v7645, %v7715
        %v7790 = vmax.f32 %v7646, %v7717
        %v7791 = vmax.f32 %v7647, %v7720
        %v7792 = vmax.f32 %v7648, %v7722
        %v7793 = vmax.f32 %v7649, %v7725
        %v7794 = vmax.f32 %v7650, %v7727
        %v7795 = vmax.f32 %v7651, %v7730
        %v7796 = vmax.f32 %v7652, %v7732
        %v7797 = vpack.c.bf16 %v7765, %v7765
        %v7798 = vpack.c.bf16 %v7766, %v7766
        %v7799 = vpack.c.bf16 %v7767, %v7767
        %v7800 = vpack.c.bf16 %v7768, %v7768
        %v7801 = vpack.c.bf16 %v7769, %v7769
        %v7802 = vpack.c.bf16 %v7770, %v7770
        %v7803 = vpack.c.bf16 %v7771, %v7771
        %v7804 = vpack.c.bf16 %v7772, %v7772
        %v7805 = vpack.c.bf16 %v7773, %v7773
        %v7806 = vpack.c.bf16 %v7774, %v7774
        %v7807 = vpack.c.bf16 %v7775, %v7775
        %v7808 = vpack.c.bf16 %v7776, %v7776
        %v7809 = vpack.c.bf16 %v7777, %v7777
        %v7810 = vpack.c.bf16 %v7778, %v7778
        %v7811 = vpack.c.bf16 %v7779, %v7779
        %v7812 = vpack.c.bf16 %v7780, %v7780
        %v7813 = vpack.c.bf16 %v7781, %v7781
        %v7814 = vpack.c.bf16 %v7782, %v7782
        %v7815 = vpack.c.bf16 %v7783, %v7783
        %v7816 = vpack.c.bf16 %v7784, %v7784
        %v7817 = vpack.c.bf16 %v7785, %v7785
        %v7818 = vpack.c.bf16 %v7786, %v7786
        %v7819 = vpack.c.bf16 %v7787, %v7787
        %v7820 = vpack.c.bf16 %v7788, %v7788
        %v7821 = vpack.c.bf16 %v7789, %v7789
        %v7822 = vpack.c.bf16 %v7790, %v7790
        %v7823 = vpack.c.bf16 %v7791, %v7791
        %v7824 = vpack.c.bf16 %v7792, %v7792
        %v7825 = vpack.c.bf16 %v7793, %v7793
        %v7826 = vpack.c.bf16 %v7794, %v7794
        %v7827 = vpack.c.bf16 %v7795, %v7795
        %v7828 = vpack.c.bf16 %v7796, %v7796
        %7861 = vrot.lane.b32.xlu0 %v7797, 24
        %v7862 = vpop.permute.xlu0 %7861
        %7863 = vrot.lane.b32.xlu0 %v7798, 24
        %v7864 = vpop.permute.xlu0 %7863
        %7865 = vrot.lane.b32.xlu0 %v7799, 24
        %v7866 = vpop.permute.xlu0 %7865
        %7867 = vrot.lane.b32.xlu0 %v7800, 24
        %v7868 = vpop.permute.xlu0 %7867
        %7869 = vrot.lane.b32.xlu0 %v7801, 24
        %v7870 = vpop.permute.xlu0 %7869
        %7871 = vrot.lane.b32.xlu0 %v7802, 24
        %v7872 = vpop.permute.xlu0 %7871
        %7873 = vrot.lane.b32.xlu0 %v7803, 24
        %v7874 = vpop.permute.xlu0 %7873
        %7875 = vrot.lane.b32.xlu0 %v7804, 24
        %v7876 = vpop.permute.xlu0 %7875
        %7877 = vrot.lane.b32.xlu0 %v7805, 24
        %v7878 = vpop.permute.xlu0 %7877
        %7879 = vrot.lane.b32.xlu0 %v7806, 24
        %v7880 = vpop.permute.xlu0 %7879
        %7881 = vrot.lane.b32.xlu0 %v7807, 24
        %v7882 = vpop.permute.xlu0 %7881
        %7883 = vrot.lane.b32.xlu0 %v7808, 24
        %v7884 = vpop.permute.xlu0 %7883
        %7885 = vrot.lane.b32.xlu0 %v7809, 24
        %v7886 = vpop.permute.xlu0 %7885
        %7887 = vrot.lane.b32.xlu0 %v7810, 24
        %v7888 = vpop.permute.xlu0 %7887
        %7889 = vrot.lane.b32.xlu0 %v7811, 24
        %v7890 = vpop.permute.xlu0 %7889
        %7891 = vrot.lane.b32.xlu0 %v7812, 24
        %v7892 = vpop.permute.xlu0 %7891
        %7893 = vrot.lane.b32.xlu0 %v7813, 24
        %v7894 = vpop.permute.xlu0 %7893
        %7895 = vrot.lane.b32.xlu0 %v7814, 24
        %v7896 = vpop.permute.xlu0 %7895
        %7897 = vrot.lane.b32.xlu0 %v7815, 24
        %v7898 = vpop.permute.xlu0 %7897
        %7899 = vrot.lane.b32.xlu0 %v7816, 24
        %v7900 = vpop.permute.xlu0 %7899
        %7901 = vrot.lane.b32.xlu0 %v7817, 24
        %v7902 = vpop.permute.xlu0 %7901
        %7903 = vrot.lane.b32.xlu0 %v7818, 24
        %v7904 = vpop.permute.xlu0 %7903
        %7905 = vrot.lane.b32.xlu0 %v7819, 24
        %v7906 = vpop.permute.xlu0 %7905
        %7907 = vrot.lane.b32.xlu0 %v7820, 24
        %v7908 = vpop.permute.xlu0 %7907
        %7909 = vrot.lane.b32.xlu0 %v7821, 24
        %v7910 = vpop.permute.xlu0 %7909
        %7911 = vrot.lane.b32.xlu0 %v7822, 24
        %v7912 = vpop.permute.xlu0 %7911
        %7913 = vrot.lane.b32.xlu0 %v7823, 24
        %v7914 = vpop.permute.xlu0 %7913
        %7915 = vrot.lane.b32.xlu0 %v7824, 24
        %v7916 = vpop.permute.xlu0 %7915
        %7917 = vrot.lane.b32.xlu0 %v7825, 24
        %v7918 = vpop.permute.xlu0 %7917
        %7919 = vrot.lane.b32.xlu0 %v7826, 24
        %v7920 = vpop.permute.xlu0 %7919
        %7921 = vrot.lane.b32.xlu0 %v7827, 24
        %v7922 = vpop.permute.xlu0 %7921
        %7923 = vrot.lane.b32.xlu0 %v7828, 24
        %v7924 = vpop.permute.xlu0 %7923
        %vm7957 = vcmask 257216
        %7958 = vst.msk [vmem:[#allocation3] sm:$0xf] %vm7957, %v7862
        %7959 = vst.msk [vmem:[#allocation3 + $0x4] sm:$0xf] %vm7957, %v7864
        %7960 = vst.msk [vmem:[#allocation3 + $0x8] sm:$0xf] %vm7957, %v7866
        %7961 = vst.msk [vmem:[#allocation3 + $0xc] sm:$0xf] %vm7957, %v7868
        %7962 = vst.msk [vmem:[#allocation3 + $0x10] sm:$0xf] %vm7957, %v7870
        %7963 = vst.msk [vmem:[#allocation3 + $0x14] sm:$0xf] %vm7957, %v7872
        %7964 = vst.msk [vmem:[#allocation3 + $0x18] sm:$0xf] %vm7957, %v7874
        %7965 = vst.msk [vmem:[#allocation3 + $0x1c] sm:$0xf] %vm7957, %v7876
        %7966 = vst.msk [vmem:[#allocation3 + $0x20] sm:$0xf] %vm7957, %v7878
        %7967 = vst.msk [vmem:[#allocation3 + $0x24] sm:$0xf] %vm7957, %v7880
        %7968 = vst.msk [vmem:[#allocation3 + $0x28] sm:$0xf] %vm7957, %v7882
        %7969 = vst.msk [vmem:[#allocation3 + $0x2c] sm:$0xf] %vm7957, %v7884
        %7970 = vst.msk [vmem:[#allocation3 + $0x30] sm:$0xf] %vm7957, %v7886
        %7971 = vst.msk [vmem:[#allocation3 + $0x34] sm:$0xf] %vm7957, %v7888
        %7972 = vst.msk [vmem:[#allocation3 + $0x38] sm:$0xf] %vm7957, %v7890
        %7973 = vst.msk [vmem:[#allocation3 + $0x3c] sm:$0xf] %vm7957, %v7892
        %7974 = vst.msk [vmem:[#allocation3 + $0x40] sm:$0xf] %vm7957, %v7894
        %7975 = vst.msk [vmem:[#allocation3 + $0x44] sm:$0xf] %vm7957, %v7896
        %7976 = vst.msk [vmem:[#allocation3 + $0x48] sm:$0xf] %vm7957, %v7898
        %7977 = vst.msk [vmem:[#allocation3 + $0x4c] sm:$0xf] %vm7957, %v7900
        %7978 = vst.msk [vmem:[#allocation3 + $0x50] sm:$0xf] %vm7957, %v7902
        %7979 = vst.msk [vmem:[#allocation3 + $0x54] sm:$0xf] %vm7957, %v7904
        %7980 = vst.msk [vmem:[#allocation3 + $0x58] sm:$0xf] %vm7957, %v7906
        %7981 = vst.msk [vmem:[#allocation3 + $0x5c] sm:$0xf] %vm7957, %v7908
        %7982 = vst.msk [vmem:[#allocation3 + $0x60] sm:$0xf] %vm7957, %v7910
        %7983 = vst.msk [vmem:[#allocation3 + $0x64] sm:$0xf] %vm7957, %v7912
        %7984 = vst.msk [vmem:[#allocation3 + $0x68] sm:$0xf] %vm7957, %v7914
        %7985 = vst.msk [vmem:[#allocation3 + $0x6c] sm:$0xf] %vm7957, %v7916
        %7986 = vst.msk [vmem:[#allocation3 + $0x70] sm:$0xf] %vm7957, %v7918
        %7987 = vst.msk [vmem:[#allocation3 + $0x74] sm:$0xf] %vm7957, %v7920
        %7988 = vst.msk [vmem:[#allocation3 + $0x78] sm:$0xf] %vm7957, %v7922
        %7989 = vst.msk [vmem:[#allocation3 + $0x7c] sm:$0xf] %vm7957, %v7924
        %v7990 = vld [vmem:[#allocation3] sm:$0xf]
        %v7991 = vld [vmem:[#allocation3 + $0x4] sm:$0xf]
        %v7992 = vld [vmem:[#allocation3 + $0x8] sm:$0xf]
        %v7993 = vld [vmem:[#allocation3 + $0xc] sm:$0xf]
        %v7994 = vld [vmem:[#allocation3 + $0x10] sm:$0xf]
        %v7995 = vld [vmem:[#allocation3 + $0x14] sm:$0xf]
        %v7996 = vld [vmem:[#allocation3 + $0x18] sm:$0xf]
        %v7997 = vld [vmem:[#allocation3 + $0x1c] sm:$0xf]
        %v7998 = vld [vmem:[#allocation3 + $0x20] sm:$0xf]
        %v7999 = vld [vmem:[#allocation3 + $0x24] sm:$0xf]
        %v8000 = vld [vmem:[#allocation3 + $0x28] sm:$0xf]
        %v8001 = vld [vmem:[#allocation3 + $0x2c] sm:$0xf]
        %v8002 = vld [vmem:[#allocation3 + $0x30] sm:$0xf]
        %v8003 = vld [vmem:[#allocation3 + $0x34] sm:$0xf]
        %v8004 = vld [vmem:[#allocation3 + $0x38] sm:$0xf]
        %v8005 = vld [vmem:[#allocation3 + $0x3c] sm:$0xf]
        %v8006 = vld [vmem:[#allocation3 + $0x40] sm:$0xf]
        %v8007 = vld [vmem:[#allocation3 + $0x44] sm:$0xf]
        %v8008 = vld [vmem:[#allocation3 + $0x48] sm:$0xf]
        %v8009 = vld [vmem:[#allocation3 + $0x4c] sm:$0xf]
        %v8010 = vld [vmem:[#allocation3 + $0x50] sm:$0xf]
        %v8011 = vld [vmem:[#allocation3 + $0x54] sm:$0xf]
        %v8012 = vld [vmem:[#allocation3 + $0x58] sm:$0xf]
        %v8013 = vld [vmem:[#allocation3 + $0x5c] sm:$0xf]
        %v8014 = vld [vmem:[#allocation3 + $0x60] sm:$0xf]
        %v8015 = vld [vmem:[#allocation3 + $0x64] sm:$0xf]
        %v8016 = vld [vmem:[#allocation3 + $0x68] sm:$0xf]
        %v8017 = vld [vmem:[#allocation3 + $0x6c] sm:$0xf]
        %v8018 = vld [vmem:[#allocation3 + $0x70] sm:$0xf]
        %v8019 = vld [vmem:[#allocation3 + $0x74] sm:$0xf]
        %v8020 = vld [vmem:[#allocation3 + $0x78] sm:$0xf]
        %v8021 = vld [vmem:[#allocation3 + $0x7c] sm:$0xf]
        %v8022 = vld [vmem:[#allocation7] sm:$0xf]
        %v8023 = vld [vmem:[#allocation7 + $0x4] sm:$0xf]
        %v8024 = vld [vmem:[#allocation7 + $0x8] sm:$0xf]
        %v8025 = vld [vmem:[#allocation7 + $0xc] sm:$0xf]
        %v8026 = vld [vmem:[%s4] sm:$0x1]
        %v8028 = vperm.slane %v8026, 0
        %v8062 = vunpack.c.l.b16 %v7990
        %v8063 = vunpack.c.l.b16 %v7991
        %v8064 = vunpack.c.l.b16 %v7992
        %v8065 = vunpack.c.l.b16 %v7993
        %v8066 = vunpack.c.l.b16 %v7994
        %v8067 = vunpack.c.l.b16 %v7995
        %v8068 = vunpack.c.l.b16 %v7996
        %v8069 = vunpack.c.l.b16 %v7997
        %v8070 = vunpack.c.l.b16 %v7998
        %v8071 = vunpack.c.l.b16 %v7999
        %v8072 = vunpack.c.l.b16 %v8000
        %v8073 = vunpack.c.l.b16 %v8001
        %v8074 = vunpack.c.l.b16 %v8002
        %v8075 = vunpack.c.l.b16 %v8003
        %v8076 = vunpack.c.l.b16 %v8004
        %v8077 = vunpack.c.l.b16 %v8005
        %v8078 = vunpack.c.l.b16 %v8006
        %v8079 = vunpack.c.l.b16 %v8007
        %v8080 = vunpack.c.l.b16 %v8008
        %v8081 = vunpack.c.l.b16 %v8009
        %v8082 = vunpack.c.l.b16 %v8010
        %v8083 = vunpack.c.l.b16 %v8011
        %v8084 = vunpack.c.l.b16 %v8012
        %v8085 = vunpack.c.l.b16 %v8013
        %v8086 = vunpack.c.l.b16 %v8014
        %v8087 = vunpack.c.l.b16 %v8015
        %v8088 = vunpack.c.l.b16 %v8016
        %v8089 = vunpack.c.l.b16 %v8017
        %v8090 = vunpack.c.l.b16 %v8018
        %v8091 = vunpack.c.l.b16 %v8019
        %v8092 = vunpack.c.l.b16 %v8020
        %v8093 = vunpack.c.l.b16 %v8021
        %v8094 = vpack.c.b16 %v8063, %v8062
        %v8095 = vpack.c.b16 %v8065, %v8064
        %v8096 = vpack.c.b16 %v8067, %v8066
        %v8097 = vpack.c.b16 %v8069, %v8068
        %v8098 = vpack.c.b16 %v8071, %v8070
        %v8099 = vpack.c.b16 %v8073, %v8072
        %v8100 = vpack.c.b16 %v8075, %v8074
        %v8101 = vpack.c.b16 %v8077, %v8076
        %v8102 = vpack.c.b16 %v8079, %v8078
        %v8103 = vpack.c.b16 %v8081, %v8080
        %v8104 = vpack.c.b16 %v8083, %v8082
        %v8105 = vpack.c.b16 %v8085, %v8084
        %v8106 = vpack.c.b16 %v8087, %v8086
        %v8107 = vpack.c.b16 %v8089, %v8088
        %v8108 = vpack.c.b16 %v8091, %v8090
        %v8109 = vpack.c.b16 %v8093, %v8092
        %v8114 = vunpack.c.l.b16 %v8022
        %v8115 = vunpack.c.l.b16 %v8023
        %v8116 = vunpack.c.l.b16 %v8024
        %v8117 = vunpack.c.l.b16 %v8025
        %v8118 = vpack.c.b16 %v8115, %v8114
        %v8119 = vpack.c.b16 %v8117, %v8116
        %vm8122 = vcmask 261120
        %v8124 = vsel %vm8122, %v8094, 0
        %v8127 = vsel %vm8122, %v8095, 0
        %v8130 = vsel %vm8122, %v8096, 0
        %v8133 = vsel %vm8122, %v8097, 0
        %v8136 = vsel %vm8122, %v8098, 0
        %v8139 = vsel %vm8122, %v8099, 0
        %v8142 = vsel %vm8122, %v8100, 0
        %v8145 = vsel %vm8122, %v8101, 0
        %v8148 = vsel %vm8122, %v8102, 0
        %v8151 = vsel %vm8122, %v8103, 0
        %v8154 = vsel %vm8122, %v8104, 0
        %v8157 = vsel %vm8122, %v8105, 0
        %v8160 = vsel %vm8122, %v8106, 0
        %v8163 = vsel %vm8122, %v8107, 0
        %v8166 = vsel %vm8122, %v8108, 0
        %v8169 = vsel %vm8122, %v8109, 0
        %8171 = vmatpush.bf16.msra.mxu0 0
        %8172 = vmatpush.bf16.msra.mxu0 0
        %8173 = vmatpush.bf16.msra.mxu0 0
        %8174 = vmatpush.bf16.msra.mxu0 0
        %8175 = vmatpush.bf16.msra.mxu0 0
        %8176 = vmatpush.bf16.msra.mxu0 0
        %8177 = vmatpush.bf16.msra.mxu0 %v8119
        %8178 = vmatpush.bf16.msra.mxu0 %v8118
        %8179 = vmatmul.bf16.gmra.mxu0 %v8124
        %v8180 = vpop.f32.mrf.mxu0
        %v8181 = vadd.f32 %v8028, %v8180
        %v8182 = vpop.f32.mrf.mxu0
        %v8183 = vadd.f32 %v8028, %v8182
        %8184 = vmatmul.bf16.gmra.mxu0 %v8127
        %v8185 = vpop.f32.mrf.mxu0
        %v8186 = vadd.f32 %v8028, %v8185
        %v8187 = vpop.f32.mrf.mxu0
        %v8188 = vadd.f32 %v8028, %v8187
        %8189 = vmatmul.bf16.gmra.mxu0 %v8130
        %v8190 = vpop.f32.mrf.mxu0
        %v8191 = vadd.f32 %v8028, %v8190
        %v8192 = vpop.f32.mrf.mxu0
        %v8193 = vadd.f32 %v8028, %v8192
        %8194 = vmatmul.bf16.gmra.mxu0 %v8133
        %v8195 = vpop.f32.mrf.mxu0
        %v8196 = vadd.f32 %v8028, %v8195
        %v8197 = vpop.f32.mrf.mxu0
        %v8198 = vadd.f32 %v8028, %v8197
        %8199 = vmatmul.bf16.gmra.mxu0 %v8136
        %v8200 = vpop.f32.mrf.mxu0
        %v8201 = vadd.f32 %v8028, %v8200
        %v8202 = vpop.f32.mrf.mxu0
        %v8203 = vadd.f32 %v8028, %v8202
        %8204 = vmatmul.bf16.gmra.mxu0 %v8139
        %v8205 = vpop.f32.mrf.mxu0
        %v8206 = vadd.f32 %v8028, %v8205
        %v8207 = vpop.f32.mrf.mxu0
        %v8208 = vadd.f32 %v8028, %v8207
        %8209 = vmatmul.bf16.gmra.mxu0 %v8142
        %v8210 = vpop.f32.mrf.mxu0
        %v8211 = vadd.f32 %v8028, %v8210
        %v8212 = vpop.f32.mrf.mxu0
        %v8213 = vadd.f32 %v8028, %v8212
        %8214 = vmatmul.bf16.gmra.mxu0 %v8145
        %v8215 = vpop.f32.mrf.mxu0
        %v8216 = vadd.f32 %v8028, %v8215
        %v8217 = vpop.f32.mrf.mxu0
        %v8218 = vadd.f32 %v8028, %v8217
        %8219 = vmatmul.bf16.gmra.mxu0 %v8148
        %v8220 = vpop.f32.mrf.mxu0
        %v8221 = vadd.f32 %v8028, %v8220
        %v8222 = vpop.f32.mrf.mxu0
        %v8223 = vadd.f32 %v8028, %v8222
        %8224 = vmatmul.bf16.gmra.mxu0 %v8151
        %v8225 = vpop.f32.mrf.mxu0
        %v8226 = vadd.f32 %v8028, %v8225
        %v8227 = vpop.f32.mrf.mxu0
        %v8228 = vadd.f32 %v8028, %v8227
        %8229 = vmatmul.bf16.gmra.mxu0 %v8154
        %v8230 = vpop.f32.mrf.mxu0
        %v8231 = vadd.f32 %v8028, %v8230
        %v8232 = vpop.f32.mrf.mxu0
        %v8233 = vadd.f32 %v8028, %v8232
        %8234 = vmatmul.bf16.gmra.mxu0 %v8157
        %v8235 = vpop.f32.mrf.mxu0
        %v8236 = vadd.f32 %v8028, %v8235
        %v8237 = vpop.f32.mrf.mxu0
        %v8238 = vadd.f32 %v8028, %v8237
        %8239 = vmatmul.bf16.gmra.mxu0 %v8160
        %v8240 = vpop.f32.mrf.mxu0
        %v8241 = vadd.f32 %v8028, %v8240
        %v8242 = vpop.f32.mrf.mxu0
        %v8243 = vadd.f32 %v8028, %v8242
        %8244 = vmatmul.bf16.gmra.mxu0 %v8163
        %v8245 = vpop.f32.mrf.mxu0
        %v8246 = vadd.f32 %v8028, %v8245
        %v8247 = vpop.f32.mrf.mxu0
        %v8248 = vadd.f32 %v8028, %v8247
        %8249 = vmatmul.bf16.gmra.mxu0 %v8166
        %v8250 = vpop.f32.mrf.mxu0
        %v8251 = vadd.f32 %v8028, %v8250
        %v8252 = vpop.f32.mrf.mxu0
        %v8253 = vadd.f32 %v8028, %v8252
        %8254 = vmatmul.bf16.gmra.mxu0 %v8169
        %v8255 = vpop.f32.mrf.mxu0
        %v8256 = vadd.f32 %v8028, %v8255
        %v8257 = vpop.f32.mrf.mxu0
        %v8258 = vadd.f32 %v8028, %v8257
        %8259 = vdwg.mxu0
        %v8260 = vxor.u32 %v8181, 2147483648
        %v8261 = vxor.u32 %v8183, 2147483648
        %v8262 = vxor.u32 %v8186, 2147483648
        %v8263 = vxor.u32 %v8188, 2147483648
        %v8264 = vxor.u32 %v8191, 2147483648
        %v8265 = vxor.u32 %v8193, 2147483648
        %v8266 = vxor.u32 %v8196, 2147483648
        %v8267 = vxor.u32 %v8198, 2147483648
        %v8268 = vxor.u32 %v8201, 2147483648
        %v8269 = vxor.u32 %v8203, 2147483648
        %v8270 = vxor.u32 %v8206, 2147483648
        %v8271 = vxor.u32 %v8208, 2147483648
        %v8272 = vxor.u32 %v8211, 2147483648
        %v8273 = vxor.u32 %v8213, 2147483648
        %v8274 = vxor.u32 %v8216, 2147483648
        %v8275 = vxor.u32 %v8218, 2147483648
        %v8276 = vxor.u32 %v8221, 2147483648
        %v8277 = vxor.u32 %v8223, 2147483648
        %v8278 = vxor.u32 %v8226, 2147483648
        %v8279 = vxor.u32 %v8228, 2147483648
        %v8280 = vxor.u32 %v8231, 2147483648
        %v8281 = vxor.u32 %v8233, 2147483648
        %v8282 = vxor.u32 %v8236, 2147483648
        %v8283 = vxor.u32 %v8238, 2147483648
        %v8284 = vxor.u32 %v8241, 2147483648
        %v8285 = vxor.u32 %v8243, 2147483648
        %v8286 = vxor.u32 %v8246, 2147483648
        %v8287 = vxor.u32 %v8248, 2147483648
        %v8288 = vxor.u32 %v8251, 2147483648
        %v8289 = vxor.u32 %v8253, 2147483648
        %v8290 = vxor.u32 %v8256, 2147483648
        %v8291 = vxor.u32 %v8258, 2147483648
        %v8292 = vmul.f32 %v8260, 1.442695
        %v8293 = vpow.pop %v8292
        %v8294 = vmul.f32 %v8261, 1.442695
        %v8295 = vpow.pop %v8294
        %v8296 = vmul.f32 %v8262, 1.442695
        %v8297 = vpow.pop %v8296
        %v8298 = vmul.f32 %v8263, 1.442695
        %v8299 = vpow.pop %v8298
        %v8300 = vmul.f32 %v8264, 1.442695
        %v8301 = vpow.pop %v8300
        %v8302 = vmul.f32 %v8265, 1.442695
        %v8303 = vpow.pop %v8302
        %v8304 = vmul.f32 %v8266, 1.442695
        %v8305 = vpow.pop %v8304
        %v8306 = vmul.f32 %v8267, 1.442695
        %v8307 = vpow.pop %v8306
        %v8308 = vmul.f32 %v8268, 1.442695
        %v8309 = vpow.pop %v8308
        %v8310 = vmul.f32 %v8269, 1.442695
        %v8311 = vpow.pop %v8310
        %v8312 = vmul.f32 %v8270, 1.442695
        %v8313 = vpow.pop %v8312
        %v8314 = vmul.f32 %v8271, 1.442695
        %v8315 = vpow.pop %v8314
        %v8316 = vmul.f32 %v8272, 1.442695
        %v8317 = vpow.pop %v8316
        %v8318 = vmul.f32 %v8273, 1.442695
        %v8319 = vpow.pop %v8318
        %v8320 = vmul.f32 %v8274, 1.442695
        %v8321 = vpow.pop %v8320
        %v8322 = vmul.f32 %v8275, 1.442695
        %v8323 = vpow.pop %v8322
        %v8324 = vmul.f32 %v8276, 1.442695
        %v8325 = vpow.pop %v8324
        %v8326 = vmul.f32 %v8277, 1.442695
        %v8327 = vpow.pop %v8326
        %v8328 = vmul.f32 %v8278, 1.442695
        %v8329 = vpow.pop %v8328
        %v8330 = vmul.f32 %v8279, 1.442695
        %v8331 = vpow.pop %v8330
        %v8332 = vmul.f32 %v8280, 1.442695
        %v8333 = vpow.pop %v8332
        %v8334 = vmul.f32 %v8281, 1.442695
        %v8335 = vpow.pop %v8334
        %v8336 = vmul.f32 %v8282, 1.442695
        %v8337 = vpow.pop %v8336
        %v8338 = vmul.f32 %v8283, 1.442695
        %v8339 = vpow.pop %v8338
        %v8340 = vmul.f32 %v8284, 1.442695
        %v8341 = vpow.pop %v8340
        %v8342 = vmul.f32 %v8285, 1.442695
        %v8343 = vpow.pop %v8342
        %v8344 = vmul.f32 %v8286, 1.442695
        %v8345 = vpow.pop %v8344
        %v8346 = vmul.f32 %v8287, 1.442695
        %v8347 = vpow.pop %v8346
        %v8348 = vmul.f32 %v8288, 1.442695
        %v8349 = vpow.pop %v8348
        %v8350 = vmul.f32 %v8289, 1.442695
        %v8351 = vpow.pop %v8350
        %v8352 = vmul.f32 %v8290, 1.442695
        %v8353 = vpow.pop %v8352
        %v8354 = vmul.f32 %v8291, 1.442695
        %v8355 = vpow.pop %v8354
        %v8356 = vadd.f32 %v8293, 1.0
        %v8357 = vadd.f32 %v8295, 1.0
        %v8358 = vadd.f32 %v8297, 1.0
        %v8359 = vadd.f32 %v8299, 1.0
        %v8360 = vadd.f32 %v8301, 1.0
        %v8361 = vadd.f32 %v8303, 1.0
        %v8362 = vadd.f32 %v8305, 1.0
        %v8363 = vadd.f32 %v8307, 1.0
        %v8364 = vadd.f32 %v8309, 1.0
        %v8365 = vadd.f32 %v8311, 1.0
        %v8366 = vadd.f32 %v8313, 1.0
        %v8367 = vadd.f32 %v8315, 1.0
        %v8368 = vadd.f32 %v8317, 1.0
        %v8369 = vadd.f32 %v8319, 1.0
        %v8370 = vadd.f32 %v8321, 1.0
        %v8371 = vadd.f32 %v8323, 1.0
        %v8372 = vadd.f32 %v8325, 1.0
        %v8373 = vadd.f32 %v8327, 1.0
        %v8374 = vadd.f32 %v8329, 1.0
        %v8375 = vadd.f32 %v8331, 1.0
        %v8376 = vadd.f32 %v8333, 1.0
        %v8377 = vadd.f32 %v8335, 1.0
        %v8378 = vadd.f32 %v8337, 1.0
        %v8379 = vadd.f32 %v8339, 1.0
        %v8380 = vadd.f32 %v8341, 1.0
        %v8381 = vadd.f32 %v8343, 1.0
        %v8382 = vadd.f32 %v8345, 1.0
        %v8383 = vadd.f32 %v8347, 1.0
        %v8384 = vadd.f32 %v8349, 1.0
        %v8385 = vadd.f32 %v8351, 1.0
        %v8386 = vadd.f32 %v8353, 1.0
        %v8387 = vadd.f32 %v8355, 1.0
        %v8388 = vrcp.pop %v8356
        %v8389 = vmul.f32 %v8356, %v8388
        %v8390 = vsub.f32 1.0, %v8389
        %v8391 = vmul.f32 %v8388, %v8390
        %v8392 = vadd.f32 %v8388, %v8391
        %vm8393 = vweird.f32 %v8356
        %vm8394 = vweird.f32 %v8388
        %vm8395 = vmor %vm8393, %vm8394
        %v8396 = vsel %vm8395, %v8388, %v8392
        %v8397 = vand.u32 2147483647, %v8356
        %vm8398 = vcmp.eq.f32.partialorder %v8397, 8.507059e+37
        %v8399 = vand.u32 %v8356, 2147483648
        %v8400 = vor.u32 1.1754944e-38, %v8399
        %v8401 = vsel %vm8398, %v8400, %v8396
        %v8402 = vmul.f32 1.0, %v8401
        %v8403 = vrcp.pop %v8357
        %v8404 = vmul.f32 %v8357, %v8403
        %v8405 = vsub.f32 1.0, %v8404
        %v8406 = vmul.f32 %v8403, %v8405
        %v8407 = vadd.f32 %v8403, %v8406
        %vm8408 = vweird.f32 %v8357
        %vm8409 = vweird.f32 %v8403
        %vm8410 = vmor %vm8408, %vm8409
        %v8411 = vsel %vm8410, %v8403, %v8407
        %v8412 = vand.u32 2147483647, %v8357
        %vm8413 = vcmp.eq.f32.partialorder %v8412, 8.507059e+37
        %v8414 = vand.u32 %v8357, 2147483648
        %v8415 = vor.u32 1.1754944e-38, %v8414
        %v8416 = vsel %vm8413, %v8415, %v8411
        %v8417 = vmul.f32 1.0, %v8416
        %v8418 = vrcp.pop %v8358
        %v8419 = vmul.f32 %v8358, %v8418
        %v8420 = vsub.f32 1.0, %v8419
        %v8421 = vmul.f32 %v8418, %v8420
        %v8422 = vadd.f32 %v8418, %v8421
        %vm8423 = vweird.f32 %v8358
        %vm8424 = vweird.f32 %v8418
        %vm8425 = vmor %vm8423, %vm8424
        %v8426 = vsel %vm8425, %v8418, %v8422
        %v8427 = vand.u32 2147483647, %v8358
        %vm8428 = vcmp.eq.f32.partialorder %v8427, 8.507059e+37
        %v8429 = vand.u32 %v8358, 2147483648
        %v8430 = vor.u32 1.1754944e-38, %v8429
        %v8431 = vsel %vm8428, %v8430, %v8426
        %v8432 = vmul.f32 1.0, %v8431
        %v8433 = vrcp.pop %v8359
        %v8434 = vmul.f32 %v8359, %v8433
        %v8435 = vsub.f32 1.0, %v8434
        %v8436 = vmul.f32 %v8433, %v8435
        %v8437 = vadd.f32 %v8433, %v8436
        %vm8438 = vweird.f32 %v8359
        %vm8439 = vweird.f32 %v8433
        %vm8440 = vmor %vm8438, %vm8439
        %v8441 = vsel %vm8440, %v8433, %v8437
        %v8442 = vand.u32 2147483647, %v8359
        %vm8443 = vcmp.eq.f32.partialorder %v8442, 8.507059e+37
        %v8444 = vand.u32 %v8359, 2147483648
        %v8445 = vor.u32 1.1754944e-38, %v8444
        %v8446 = vsel %vm8443, %v8445, %v8441
        %v8447 = vmul.f32 1.0, %v8446
        %v8448 = vrcp.pop %v8360
        %v8449 = vmul.f32 %v8360, %v8448
        %v8450 = vsub.f32 1.0, %v8449
        %v8451 = vmul.f32 %v8448, %v8450
        %v8452 = vadd.f32 %v8448, %v8451
        %vm8453 = vweird.f32 %v8360
        %vm8454 = vweird.f32 %v8448
        %vm8455 = vmor %vm8453, %vm8454
        %v8456 = vsel %vm8455, %v8448, %v8452
        %v8457 = vand.u32 2147483647, %v8360
        %vm8458 = vcmp.eq.f32.partialorder %v8457, 8.507059e+37
        %v8459 = vand.u32 %v8360, 2147483648
        %v8460 = vor.u32 1.1754944e-38, %v8459
        %v8461 = vsel %vm8458, %v8460, %v8456
        %v8462 = vmul.f32 1.0, %v8461
        %v8463 = vrcp.pop %v8361
        %v8464 = vmul.f32 %v8361, %v8463
        %v8465 = vsub.f32 1.0, %v8464
        %v8466 = vmul.f32 %v8463, %v8465
        %v8467 = vadd.f32 %v8463, %v8466
        %vm8468 = vweird.f32 %v8361
        %vm8469 = vweird.f32 %v8463
        %vm8470 = vmor %vm8468, %vm8469
        %v8471 = vsel %vm8470, %v8463, %v8467
        %v8472 = vand.u32 2147483647, %v8361
        %vm8473 = vcmp.eq.f32.partialorder %v8472, 8.507059e+37
        %v8474 = vand.u32 %v8361, 2147483648
        %v8475 = vor.u32 1.1754944e-38, %v8474
        %v8476 = vsel %vm8473, %v8475, %v8471
        %v8477 = vmul.f32 1.0, %v8476
        %v8478 = vrcp.pop %v8362
        %v8479 = vmul.f32 %v8362, %v8478
        %v8480 = vsub.f32 1.0, %v8479
        %v8481 = vmul.f32 %v8478, %v8480
        %v8482 = vadd.f32 %v8478, %v8481
        %vm8483 = vweird.f32 %v8362
        %vm8484 = vweird.f32 %v8478
        %vm8485 = vmor %vm8483, %vm8484
        %v8486 = vsel %vm8485, %v8478, %v8482
        %v8487 = vand.u32 2147483647, %v8362
        %vm8488 = vcmp.eq.f32.partialorder %v8487, 8.507059e+37
        %v8489 = vand.u32 %v8362, 2147483648
        %v8490 = vor.u32 1.1754944e-38, %v8489
        %v8491 = vsel %vm8488, %v8490, %v8486
        %v8492 = vmul.f32 1.0, %v8491
        %v8493 = vrcp.pop %v8363
        %v8494 = vmul.f32 %v8363, %v8493
        %v8495 = vsub.f32 1.0, %v8494
        %v8496 = vmul.f32 %v8493, %v8495
        %v8497 = vadd.f32 %v8493, %v8496
        %vm8498 = vweird.f32 %v8363
        %vm8499 = vweird.f32 %v8493
        %vm8500 = vmor %vm8498, %vm8499
        %v8501 = vsel %vm8500, %v8493, %v8497
        %v8502 = vand.u32 2147483647, %v8363
        %vm8503 = vcmp.eq.f32.partialorder %v8502, 8.507059e+37
        %v8504 = vand.u32 %v8363, 2147483648
        %v8505 = vor.u32 1.1754944e-38, %v8504
        %v8506 = vsel %vm8503, %v8505, %v8501
        %v8507 = vmul.f32 1.0, %v8506
        %v8508 = vrcp.pop %v8364
        %v8509 = vmul.f32 %v8364, %v8508
        %v8510 = vsub.f32 1.0, %v8509
        %v8511 = vmul.f32 %v8508, %v8510
        %v8512 = vadd.f32 %v8508, %v8511
        %vm8513 = vweird.f32 %v8364
        %vm8514 = vweird.f32 %v8508
        %vm8515 = vmor %vm8513, %vm8514
        %v8516 = vsel %vm8515, %v8508, %v8512
        %v8517 = vand.u32 2147483647, %v8364
        %vm8518 = vcmp.eq.f32.partialorder %v8517, 8.507059e+37
        %v8519 = vand.u32 %v8364, 2147483648
        %v8520 = vor.u32 1.1754944e-38, %v8519
        %v8521 = vsel %vm8518, %v8520, %v8516
        %v8522 = vmul.f32 1.0, %v8521
        %v8523 = vrcp.pop %v8365
        %v8524 = vmul.f32 %v8365, %v8523
        %v8525 = vsub.f32 1.0, %v8524
        %v8526 = vmul.f32 %v8523, %v8525
        %v8527 = vadd.f32 %v8523, %v8526
        %vm8528 = vweird.f32 %v8365
        %vm8529 = vweird.f32 %v8523
        %vm8530 = vmor %vm8528, %vm8529
        %v8531 = vsel %vm8530, %v8523, %v8527
        %v8532 = vand.u32 2147483647, %v8365
        %vm8533 = vcmp.eq.f32.partialorder %v8532, 8.507059e+37
        %v8534 = vand.u32 %v8365, 2147483648
        %v8535 = vor.u32 1.1754944e-38, %v8534
        %v8536 = vsel %vm8533, %v8535, %v8531
        %v8537 = vmul.f32 1.0, %v8536
        %v8538 = vrcp.pop %v8366
        %v8539 = vmul.f32 %v8366, %v8538
        %v8540 = vsub.f32 1.0, %v8539
        %v8541 = vmul.f32 %v8538, %v8540
        %v8542 = vadd.f32 %v8538, %v8541
        %vm8543 = vweird.f32 %v8366
        %vm8544 = vweird.f32 %v8538
        %vm8545 = vmor %vm8543, %vm8544
        %v8546 = vsel %vm8545, %v8538, %v8542
        %v8547 = vand.u32 2147483647, %v8366
        %vm8548 = vcmp.eq.f32.partialorder %v8547, 8.507059e+37
        %v8549 = vand.u32 %v8366, 2147483648
        %v8550 = vor.u32 1.1754944e-38, %v8549
        %v8551 = vsel %vm8548, %v8550, %v8546
        %v8552 = vmul.f32 1.0, %v8551
        %v8553 = vrcp.pop %v8367
        %v8554 = vmul.f32 %v8367, %v8553
        %v8555 = vsub.f32 1.0, %v8554
        %v8556 = vmul.f32 %v8553, %v8555
        %v8557 = vadd.f32 %v8553, %v8556
        %vm8558 = vweird.f32 %v8367
        %vm8559 = vweird.f32 %v8553
        %vm8560 = vmor %vm8558, %vm8559
        %v8561 = vsel %vm8560, %v8553, %v8557
        %v8562 = vand.u32 2147483647, %v8367
        %vm8563 = vcmp.eq.f32.partialorder %v8562, 8.507059e+37
        %v8564 = vand.u32 %v8367, 2147483648
        %v8565 = vor.u32 1.1754944e-38, %v8564
        %v8566 = vsel %vm8563, %v8565, %v8561
        %v8567 = vmul.f32 1.0, %v8566
        %v8568 = vrcp.pop %v8368
        %v8569 = vmul.f32 %v8368, %v8568
        %v8570 = vsub.f32 1.0, %v8569
        %v8571 = vmul.f32 %v8568, %v8570
        %v8572 = vadd.f32 %v8568, %v8571
        %vm8573 = vweird.f32 %v8368
        %vm8574 = vweird.f32 %v8568
        %vm8575 = vmor %vm8573, %vm8574
        %v8576 = vsel %vm8575, %v8568, %v8572
        %v8577 = vand.u32 2147483647, %v8368
        %vm8578 = vcmp.eq.f32.partialorder %v8577, 8.507059e+37
        %v8579 = vand.u32 %v8368, 2147483648
        %v8580 = vor.u32 1.1754944e-38, %v8579
        %v8581 = vsel %vm8578, %v8580, %v8576
        %v8582 = vmul.f32 1.0, %v8581
        %v8583 = vrcp.pop %v8369
        %v8584 = vmul.f32 %v8369, %v8583
        %v8585 = vsub.f32 1.0, %v8584
        %v8586 = vmul.f32 %v8583, %v8585
        %v8587 = vadd.f32 %v8583, %v8586
        %vm8588 = vweird.f32 %v8369
        %vm8589 = vweird.f32 %v8583
        %vm8590 = vmor %vm8588, %vm8589
        %v8591 = vsel %vm8590, %v8583, %v8587
        %v8592 = vand.u32 2147483647, %v8369
        %vm8593 = vcmp.eq.f32.partialorder %v8592, 8.507059e+37
        %v8594 = vand.u32 %v8369, 2147483648
        %v8595 = vor.u32 1.1754944e-38, %v8594
        %v8596 = vsel %vm8593, %v8595, %v8591
        %v8597 = vmul.f32 1.0, %v8596
        %v8598 = vrcp.pop %v8370
        %v8599 = vmul.f32 %v8370, %v8598
        %v8600 = vsub.f32 1.0, %v8599
        %v8601 = vmul.f32 %v8598, %v8600
        %v8602 = vadd.f32 %v8598, %v8601
        %vm8603 = vweird.f32 %v8370
        %vm8604 = vweird.f32 %v8598
        %vm8605 = vmor %vm8603, %vm8604
        %v8606 = vsel %vm8605, %v8598, %v8602
        %v8607 = vand.u32 2147483647, %v8370
        %vm8608 = vcmp.eq.f32.partialorder %v8607, 8.507059e+37
        %v8609 = vand.u32 %v8370, 2147483648
        %v8610 = vor.u32 1.1754944e-38, %v8609
        %v8611 = vsel %vm8608, %v8610, %v8606
        %v8612 = vmul.f32 1.0, %v8611
        %v8613 = vrcp.pop %v8371
        %v8614 = vmul.f32 %v8371, %v8613
        %v8615 = vsub.f32 1.0, %v8614
        %v8616 = vmul.f32 %v8613, %v8615
        %v8617 = vadd.f32 %v8613, %v8616
        %vm8618 = vweird.f32 %v8371
        %vm8619 = vweird.f32 %v8613
        %vm8620 = vmor %vm8618, %vm8619
        %v8621 = vsel %vm8620, %v8613, %v8617
        %v8622 = vand.u32 2147483647, %v8371
        %vm8623 = vcmp.eq.f32.partialorder %v8622, 8.507059e+37
        %v8624 = vand.u32 %v8371, 2147483648
        %v8625 = vor.u32 1.1754944e-38, %v8624
        %v8626 = vsel %vm8623, %v8625, %v8621
        %v8627 = vmul.f32 1.0, %v8626
        %v8628 = vrcp.pop %v8372
        %v8629 = vmul.f32 %v8372, %v8628
        %v8630 = vsub.f32 1.0, %v8629
        %v8631 = vmul.f32 %v8628, %v8630
        %v8632 = vadd.f32 %v8628, %v8631
        %vm8633 = vweird.f32 %v8372
        %vm8634 = vweird.f32 %v8628
        %vm8635 = vmor %vm8633, %vm8634
        %v8636 = vsel %vm8635, %v8628, %v8632
        %v8637 = vand.u32 2147483647, %v8372
        %vm8638 = vcmp.eq.f32.partialorder %v8637, 8.507059e+37
        %v8639 = vand.u32 %v8372, 2147483648
        %v8640 = vor.u32 1.1754944e-38, %v8639
        %v8641 = vsel %vm8638, %v8640, %v8636
        %v8642 = vmul.f32 1.0, %v8641
        %v8643 = vrcp.pop %v8373
        %v8644 = vmul.f32 %v8373, %v8643
        %v8645 = vsub.f32 1.0, %v8644
        %v8646 = vmul.f32 %v8643, %v8645
        %v8647 = vadd.f32 %v8643, %v8646
        %vm8648 = vweird.f32 %v8373
        %vm8649 = vweird.f32 %v8643
        %vm8650 = vmor %vm8648, %vm8649
        %v8651 = vsel %vm8650, %v8643, %v8647
        %v8652 = vand.u32 2147483647, %v8373
        %vm8653 = vcmp.eq.f32.partialorder %v8652, 8.507059e+37
        %v8654 = vand.u32 %v8373, 2147483648
        %v8655 = vor.u32 1.1754944e-38, %v8654
        %v8656 = vsel %vm8653, %v8655, %v8651
        %v8657 = vmul.f32 1.0, %v8656
        %v8658 = vrcp.pop %v8374
        %v8659 = vmul.f32 %v8374, %v8658
        %v8660 = vsub.f32 1.0, %v8659
        %v8661 = vmul.f32 %v8658, %v8660
        %v8662 = vadd.f32 %v8658, %v8661
        %vm8663 = vweird.f32 %v8374
        %vm8664 = vweird.f32 %v8658
        %vm8665 = vmor %vm8663, %vm8664
        %v8666 = vsel %vm8665, %v8658, %v8662
        %v8667 = vand.u32 2147483647, %v8374
        %vm8668 = vcmp.eq.f32.partialorder %v8667, 8.507059e+37
        %v8669 = vand.u32 %v8374, 2147483648
        %v8670 = vor.u32 1.1754944e-38, %v8669
        %v8671 = vsel %vm8668, %v8670, %v8666
        %v8672 = vmul.f32 1.0, %v8671
        %v8673 = vrcp.pop %v8375
        %v8674 = vmul.f32 %v8375, %v8673
        %v8675 = vsub.f32 1.0, %v8674
        %v8676 = vmul.f32 %v8673, %v8675
        %v8677 = vadd.f32 %v8673, %v8676
        %vm8678 = vweird.f32 %v8375
        %vm8679 = vweird.f32 %v8673
        %vm8680 = vmor %vm8678, %vm8679
        %v8681 = vsel %vm8680, %v8673, %v8677
        %v8682 = vand.u32 2147483647, %v8375
        %vm8683 = vcmp.eq.f32.partialorder %v8682, 8.507059e+37
        %v8684 = vand.u32 %v8375, 2147483648
        %v8685 = vor.u32 1.1754944e-38, %v8684
        %v8686 = vsel %vm8683, %v8685, %v8681
        %v8687 = vmul.f32 1.0, %v8686
        %v8688 = vrcp.pop %v8376
        %v8689 = vmul.f32 %v8376, %v8688
        %v8690 = vsub.f32 1.0, %v8689
        %v8691 = vmul.f32 %v8688, %v8690
        %v8692 = vadd.f32 %v8688, %v8691
        %vm8693 = vweird.f32 %v8376
        %vm8694 = vweird.f32 %v8688
        %vm8695 = vmor %vm8693, %vm8694
        %v8696 = vsel %vm8695, %v8688, %v8692
        %v8697 = vand.u32 2147483647, %v8376
        %vm8698 = vcmp.eq.f32.partialorder %v8697, 8.507059e+37
        %v8699 = vand.u32 %v8376, 2147483648
        %v8700 = vor.u32 1.1754944e-38, %v8699
        %v8701 = vsel %vm8698, %v8700, %v8696
        %v8702 = vmul.f32 1.0, %v8701
        %v8703 = vrcp.pop %v8377
        %v8704 = vmul.f32 %v8377, %v8703
        %v8705 = vsub.f32 1.0, %v8704
        %v8706 = vmul.f32 %v8703, %v8705
        %v8707 = vadd.f32 %v8703, %v8706
        %vm8708 = vweird.f32 %v8377
        %vm8709 = vweird.f32 %v8703
        %vm8710 = vmor %vm8708, %vm8709
        %v8711 = vsel %vm8710, %v8703, %v8707
        %v8712 = vand.u32 2147483647, %v8377
        %vm8713 = vcmp.eq.f32.partialorder %v8712, 8.507059e+37
        %v8714 = vand.u32 %v8377, 2147483648
        %v8715 = vor.u32 1.1754944e-38, %v8714
        %v8716 = vsel %vm8713, %v8715, %v8711
        %v8717 = vmul.f32 1.0, %v8716
        %v8718 = vrcp.pop %v8378
        %v8719 = vmul.f32 %v8378, %v8718
        %v8720 = vsub.f32 1.0, %v8719
        %v8721 = vmul.f32 %v8718, %v8720
        %v8722 = vadd.f32 %v8718, %v8721
        %vm8723 = vweird.f32 %v8378
        %vm8724 = vweird.f32 %v8718
        %vm8725 = vmor %vm8723, %vm8724
        %v8726 = vsel %vm8725, %v8718, %v8722
        %v8727 = vand.u32 2147483647, %v8378
        %vm8728 = vcmp.eq.f32.partialorder %v8727, 8.507059e+37
        %v8729 = vand.u32 %v8378, 2147483648
        %v8730 = vor.u32 1.1754944e-38, %v8729
        %v8731 = vsel %vm8728, %v8730, %v8726
        %v8732 = vmul.f32 1.0, %v8731
        %v8733 = vrcp.pop %v8379
        %v8734 = vmul.f32 %v8379, %v8733
        %v8735 = vsub.f32 1.0, %v8734
        %v8736 = vmul.f32 %v8733, %v8735
        %v8737 = vadd.f32 %v8733, %v8736
        %vm8738 = vweird.f32 %v8379
        %vm8739 = vweird.f32 %v8733
        %vm8740 = vmor %vm8738, %vm8739
        %v8741 = vsel %vm8740, %v8733, %v8737
        %v8742 = vand.u32 2147483647, %v8379
        %vm8743 = vcmp.eq.f32.partialorder %v8742, 8.507059e+37
        %v8744 = vand.u32 %v8379, 2147483648
        %v8745 = vor.u32 1.1754944e-38, %v8744
        %v8746 = vsel %vm8743, %v8745, %v8741
        %v8747 = vmul.f32 1.0, %v8746
        %v8748 = vrcp.pop %v8380
        %v8749 = vmul.f32 %v8380, %v8748
        %v8750 = vsub.f32 1.0, %v8749
        %v8751 = vmul.f32 %v8748, %v8750
        %v8752 = vadd.f32 %v8748, %v8751
        %vm8753 = vweird.f32 %v8380
        %vm8754 = vweird.f32 %v8748
        %vm8755 = vmor %vm8753, %vm8754
        %v8756 = vsel %vm8755, %v8748, %v8752
        %v8757 = vand.u32 2147483647, %v8380
        %vm8758 = vcmp.eq.f32.partialorder %v8757, 8.507059e+37
        %v8759 = vand.u32 %v8380, 2147483648
        %v8760 = vor.u32 1.1754944e-38, %v8759
        %v8761 = vsel %vm8758, %v8760, %v8756
        %v8762 = vmul.f32 1.0, %v8761
        %v8763 = vrcp.pop %v8381
        %v8764 = vmul.f32 %v8381, %v8763
        %v8765 = vsub.f32 1.0, %v8764
        %v8766 = vmul.f32 %v8763, %v8765
        %v8767 = vadd.f32 %v8763, %v8766
        %vm8768 = vweird.f32 %v8381
        %vm8769 = vweird.f32 %v8763
        %vm8770 = vmor %vm8768, %vm8769
        %v8771 = vsel %vm8770, %v8763, %v8767
        %v8772 = vand.u32 2147483647, %v8381
        %vm8773 = vcmp.eq.f32.partialorder %v8772, 8.507059e+37
        %v8774 = vand.u32 %v8381, 2147483648
        %v8775 = vor.u32 1.1754944e-38, %v8774
        %v8776 = vsel %vm8773, %v8775, %v8771
        %v8777 = vmul.f32 1.0, %v8776
        %v8778 = vrcp.pop %v8382
        %v8779 = vmul.f32 %v8382, %v8778
        %v8780 = vsub.f32 1.0, %v8779
        %v8781 = vmul.f32 %v8778, %v8780
        %v8782 = vadd.f32 %v8778, %v8781
        %vm8783 = vweird.f32 %v8382
        %vm8784 = vweird.f32 %v8778
        %vm8785 = vmor %vm8783, %vm8784
        %v8786 = vsel %vm8785, %v8778, %v8782
        %v8787 = vand.u32 2147483647, %v8382
        %vm8788 = vcmp.eq.f32.partialorder %v8787, 8.507059e+37
        %v8789 = vand.u32 %v8382, 2147483648
        %v8790 = vor.u32 1.1754944e-38, %v8789
        %v8791 = vsel %vm8788, %v8790, %v8786
        %v8792 = vmul.f32 1.0, %v8791
        %v8793 = vrcp.pop %v8383
        %v8794 = vmul.f32 %v8383, %v8793
        %v8795 = vsub.f32 1.0, %v8794
        %v8796 = vmul.f32 %v8793, %v8795
        %v8797 = vadd.f32 %v8793, %v8796
        %vm8798 = vweird.f32 %v8383
        %vm8799 = vweird.f32 %v8793
        %vm8800 = vmor %vm8798, %vm8799
        %v8801 = vsel %vm8800, %v8793, %v8797
        %v8802 = vand.u32 2147483647, %v8383
        %vm8803 = vcmp.eq.f32.partialorder %v8802, 8.507059e+37
        %v8804 = vand.u32 %v8383, 2147483648
        %v8805 = vor.u32 1.1754944e-38, %v8804
        %v8806 = vsel %vm8803, %v8805, %v8801
        %v8807 = vmul.f32 1.0, %v8806
        %v8808 = vrcp.pop %v8384
        %v8809 = vmul.f32 %v8384, %v8808
        %v8810 = vsub.f32 1.0, %v8809
        %v8811 = vmul.f32 %v8808, %v8810
        %v8812 = vadd.f32 %v8808, %v8811
        %vm8813 = vweird.f32 %v8384
        %vm8814 = vweird.f32 %v8808
        %vm8815 = vmor %vm8813, %vm8814
        %v8816 = vsel %vm8815, %v8808, %v8812
        %v8817 = vand.u32 2147483647, %v8384
        %vm8818 = vcmp.eq.f32.partialorder %v8817, 8.507059e+37
        %v8819 = vand.u32 %v8384, 2147483648
        %v8820 = vor.u32 1.1754944e-38, %v8819
        %v8821 = vsel %vm8818, %v8820, %v8816
        %v8822 = vmul.f32 1.0, %v8821
        %v8823 = vrcp.pop %v8385
        %v8824 = vmul.f32 %v8385, %v8823
        %v8825 = vsub.f32 1.0, %v8824
        %v8826 = vmul.f32 %v8823, %v8825
        %v8827 = vadd.f32 %v8823, %v8826
        %vm8828 = vweird.f32 %v8385
        %vm8829 = vweird.f32 %v8823
        %vm8830 = vmor %vm8828, %vm8829
        %v8831 = vsel %vm8830, %v8823, %v8827
        %v8832 = vand.u32 2147483647, %v8385
        %vm8833 = vcmp.eq.f32.partialorder %v8832, 8.507059e+37
        %v8834 = vand.u32 %v8385, 2147483648
        %v8835 = vor.u32 1.1754944e-38, %v8834
        %v8836 = vsel %vm8833, %v8835, %v8831
        %v8837 = vmul.f32 1.0, %v8836
        %v8838 = vrcp.pop %v8386
        %v8839 = vmul.f32 %v8386, %v8838
        %v8840 = vsub.f32 1.0, %v8839
        %v8841 = vmul.f32 %v8838, %v8840
        %v8842 = vadd.f32 %v8838, %v8841
        %vm8843 = vweird.f32 %v8386
        %vm8844 = vweird.f32 %v8838
        %vm8845 = vmor %vm8843, %vm8844
        %v8846 = vsel %vm8845, %v8838, %v8842
        %v8847 = vand.u32 2147483647, %v8386
        %vm8848 = vcmp.eq.f32.partialorder %v8847, 8.507059e+37
        %v8849 = vand.u32 %v8386, 2147483648
        %v8850 = vor.u32 1.1754944e-38, %v8849
        %v8851 = vsel %vm8848, %v8850, %v8846
        %v8852 = vmul.f32 1.0, %v8851
        %v8853 = vrcp.pop %v8387
        %v8854 = vmul.f32 %v8387, %v8853
        %v8855 = vsub.f32 1.0, %v8854
        %v8856 = vmul.f32 %v8853, %v8855
        %v8857 = vadd.f32 %v8853, %v8856
        %vm8858 = vweird.f32 %v8387
        %vm8859 = vweird.f32 %v8853
        %vm8860 = vmor %vm8858, %vm8859
        %v8861 = vsel %vm8860, %v8853, %v8857
        %v8862 = vand.u32 2147483647, %v8387
        %vm8863 = vcmp.eq.f32.partialorder %v8862, 8.507059e+37
        %v8864 = vand.u32 %v8387, 2147483648
        %v8865 = vor.u32 1.1754944e-38, %v8864
        %v8866 = vsel %vm8863, %v8865, %v8861
        %v8867 = vmul.f32 1.0, %v8866
        %v8868 = vmul.f32 %v8181, %v8402
        %v8869 = vmul.f32 %v8183, %v8417
        %v8870 = vmul.f32 %v8186, %v8432
        %v8871 = vmul.f32 %v8188, %v8447
        %v8872 = vmul.f32 %v8191, %v8462
        %v8873 = vmul.f32 %v8193, %v8477
        %v8874 = vmul.f32 %v8196, %v8492
        %v8875 = vmul.f32 %v8198, %v8507
        %v8876 = vmul.f32 %v8201, %v8522
        %v8877 = vmul.f32 %v8203, %v8537
        %v8878 = vmul.f32 %v8206, %v8552
        %v8879 = vmul.f32 %v8208, %v8567
        %v8880 = vmul.f32 %v8211, %v8582
        %v8881 = vmul.f32 %v8213, %v8597
        %v8882 = vmul.f32 %v8216, %v8612
        %v8883 = vmul.f32 %v8218, %v8627
        %v8884 = vmul.f32 %v8221, %v8642
        %v8885 = vmul.f32 %v8223, %v8657
        %v8886 = vmul.f32 %v8226, %v8672
        %v8887 = vmul.f32 %v8228, %v8687
        %v8888 = vmul.f32 %v8231, %v8702
        %v8889 = vmul.f32 %v8233, %v8717
        %v8890 = vmul.f32 %v8236, %v8732
        %v8891 = vmul.f32 %v8238, %v8747
        %v8892 = vmul.f32 %v8241, %v8762
        %v8893 = vmul.f32 %v8243, %v8777
        %v8894 = vmul.f32 %v8246, %v8792
        %v8895 = vmul.f32 %v8248, %v8807
        %v8896 = vmul.f32 %v8251, %v8822
        %v8897 = vmul.f32 %v8253, %v8837
        %v8898 = vmul.f32 %v8256, %v8852
        %v8899 = vmul.f32 %v8258, %v8867
        %8900 = vst.msk [vmem:[%s261] sm:$0xff] %vm8122, %v8868
        %8901 = vst.msk [vmem:[%s261 + $0x8] sm:$0xff] %vm8122, %v8869
        %8902 = vst.msk [vmem:[%s261 + $0x10] sm:$0xff] %vm8122, %v8870
        %8903 = vst.msk [vmem:[%s261 + $0x18] sm:$0xff] %vm8122, %v8871
        %8904 = vst.msk [vmem:[%s261 + $0x20] sm:$0xff] %vm8122, %v8872
        %8905 = vst.msk [vmem:[%s261 + $0x28] sm:$0xff] %vm8122, %v8873
        %8906 = vst.msk [vmem:[%s261 + $0x30] sm:$0xff] %vm8122, %v8874
        %8907 = vst.msk [vmem:[%s261 + $0x38] sm:$0xff] %vm8122, %v8875
        %8908 = vst.msk [vmem:[%s261 + $0x40] sm:$0xff] %vm8122, %v8876
        %8909 = vst.msk [vmem:[%s261 + $0x48] sm:$0xff] %vm8122, %v8877
        %8910 = vst.msk [vmem:[%s261 + $0x50] sm:$0xff] %vm8122, %v8878
        %8911 = vst.msk [vmem:[%s261 + $0x58] sm:$0xff] %vm8122, %v8879
        %8912 = vst.msk [vmem:[%s261 + $0x60] sm:$0xff] %vm8122, %v8880
        %8913 = vst.msk [vmem:[%s261 + $0x68] sm:$0xff] %vm8122, %v8881
        %8914 = vst.msk [vmem:[%s261 + $0x70] sm:$0xff] %vm8122, %v8882
        %8915 = vst.msk [vmem:[%s261 + $0x78] sm:$0xff] %vm8122, %v8883
        %8916 = vst.msk [vmem:[%s261 + $0x80] sm:$0xff] %vm8122, %v8884
        %8917 = vst.msk [vmem:[%s261 + $0x88] sm:$0xff] %vm8122, %v8885
        %8918 = vst.msk [vmem:[%s261 + $0x90] sm:$0xff] %vm8122, %v8886
        %8919 = vst.msk [vmem:[%s261 + $0x98] sm:$0xff] %vm8122, %v8887
        %8920 = vst.msk [vmem:[%s261 + $0xa0] sm:$0xff] %vm8122, %v8888
        %8921 = vst.msk [vmem:[%s261 + $0xa8] sm:$0xff] %vm8122, %v8889
        %8922 = vst.msk [vmem:[%s261 + $0xb0] sm:$0xff] %vm8122, %v8890
        %8923 = vst.msk [vmem:[%s261 + $0xb8] sm:$0xff] %vm8122, %v8891
        %8924 = vst.msk [vmem:[%s261 + $0xc0] sm:$0xff] %vm8122, %v8892
        %8925 = vst.msk [vmem:[%s261 + $0xc8] sm:$0xff] %vm8122, %v8893
        %8926 = vst.msk [vmem:[%s261 + $0xd0] sm:$0xff] %vm8122, %v8894
        %8927 = vst.msk [vmem:[%s261 + $0xd8] sm:$0xff] %vm8122, %v8895
        %8928 = vst.msk [vmem:[%s261 + $0xe0] sm:$0xff] %vm8122, %v8896
        %8929 = vst.msk [vmem:[%s261 + $0xe8] sm:$0xff] %vm8122, %v8897
        %8930 = vst.msk [vmem:[%s261 + $0xf0] sm:$0xff] %vm8122, %v8898
        %8931 = vst.msk [vmem:[%s261 + $0xf8] sm:$0xff] %vm8122, %v8899
        %s8932 = sand.u32 %s141, 1
        %s8933 = scalar_lea.sflag [#allocation6], %s8932
        %s8934 = sand.u32 %s141, 1
        %s8935 = smul.addr %s8934, 256
        %s8936 = scalar_lea.vmem [#allocation9], %s8935
        // Predicated region
        $region49: #{tpu_custom_call.1} parent=39 // pred_check
          %p8937 = pneg %p151
        $region50: #{tpu_custom_call.1} parent=39 // pred_check_branch
          %8939 = sbr.rel (%p8937) target = $region52
        $region51: #{tpu_custom_call.1} parent=39 // pred_region
          %8941 = vsyncadd %s8933, 0
          %s8942 = smul.addr %s23, 32
          %s8943 = smul.addr %s8942, 8
          %s8944 = scalar_lea.hbm %s5, %s8943
          %s8945 = sshll.u32 %s8936, 4
          %s8946 = int_to_ptr.vmem [resolvable:$true] %s8945
          %s8947 = sshll.u32 %s8944, 4
          %s8948 = int_to_ptr.hbm [resolvable:$true] %s8947
          %8953 = dma.vmem_to_hbm [thread:$0]  %s8946, 4096, %s8948, %s8933, 128, 128, 8
        $region52: #{tpu_custom_call.1} parent=39 // pred_fallthru
          _
      $region40: #{tpu_custom_call.1} parent=5 // pred_fallthru
        _
      %p8954 = scmp.le.s32.totalorder 2, %s18
      // Predicated region
      $region53: #{tpu_custom_call.1} parent=5 // pred_check
        %p8955 = pneg %p8954
      $region54: #{tpu_custom_call.1} parent=5 // pred_check_branch
        %8957 = sbr.rel (%p8955) target = $region56
      $region55: #{tpu_custom_call.1} parent=5 // pred_region
        %s8958 = ssub.s32 %s18, 2
        // Predicated region
        $region57: #{tpu_custom_call.1} parent=55 // pred_check
          %p8959 = pneg %p157
        $region58: #{tpu_custom_call.1} parent=55 // pred_check_branch
          %8961 = sbr.rel (%p8959) target = $region60
        $region59: #{tpu_custom_call.1} parent=55 // pred_region
          %s8962 = sand.u32 %s142, 1
          %s8963 = scalar_lea.sflag [#allocation6], %s8962
          %s8964 = sand.u32 %s142, 1
          %s8965 = smul.addr %s8964, 256
          %s8966 = scalar_lea.vmem [#allocation9], %s8965
          %8968 = dma.done %s8963, 4096
        $region60: #{tpu_custom_call.1} parent=55 // pred_fallthru
          _
      $region56: #{tpu_custom_call.1} parent=5 // pred_fallthru
        _
    $region6: #{tpu_custom_call.1} parent=1 // loop_footer
      %s22 = sadd.s32 1, %s18
    $region7: #{tpu_custom_call.1} parent=1 // loop_footer_branch
      %17 = sbr.rel target = $region3
    $region8: #{tpu_custom_call.1} parent=1 // loop_exit
      _
    %8969 = vsyncpa [#allocation5], 1
    %s8970 = scalar_lea.sflag [#allocation5], 1
    %8971 = vsyncpa %s8970, 1
    %8972 = vsyncpa [#allocation8], 1
    %8973 = vsyncpa [#allocation6], 1
    %s8974 = scalar_lea.sflag [#allocation6], 1
    %8975 = vsyncpa %s8974, 1

</llo_original>
